<compile_context>
chip_gen: v5e
topology: v5e:2x2
jax: 0.10.0
libtpu: 0.0.40
codegen_flags: <defaults>
</compile_context>

<pallas_src>
import functools

import numpy as np
import jax
import jax.numpy as jnp
from jax import lax
from jax.experimental import pallas as pl
from jax.experimental.pallas import tpu as pltpu

# ----------------------------- model dimensions -----------------------------
BATCH = 2
WAV_LEN = 400
CONV_LAYERS = [(32, 10, 5), (32, 3, 2), (32, 2, 2)]   # (out_ch, kernel, stride)
EXTRACTOR_DIM = CONV_LAYERS[-1][0]                    # 32
HIDDEN = 64
HEADS = 4
HEAD_DIM = HIDDEN // HEADS
FFN = 128
NUM_LAYERS = 2
POS_K = 8
POS_PAD = POS_K // 2
POS_GROUPS = 4
CODEBOOK_DIM = 32
CODEBOOK_SIZE = 64
EPSILON = 0.02
TEMPERATURE = 0.1
SINKHORN_ITERS = 3
NEG_BIAS = -1e4

# ---------------------- static (padded) time dimensions ---------------------
S0 = CONV_LAYERS[0][2]                                          # 5
T0_VALID = (WAV_LEN - CONV_LAYERS[0][1]) // S0 + 1              # 79
T0_PAD = WAV_LEN // S0                                          # 80
T1_VALID = (T0_VALID - CONV_LAYERS[1][1]) // CONV_LAYERS[1][2] + 1   # 39
T1_PAD = 40
T_VALID = (T1_VALID - CONV_LAYERS[2][1]) // CONV_LAYERS[2][2] + 1    # 19
T_PAD = 24                                                      # sublane-aligned


def _gelu(x):
    # TODO(synk): PyTorch nn.GELU default is the exact erf form; the tanh approximation
    # is used in-kernel for Mosaic portability.
    return jax.nn.gelu(x, approximate=True)


def _zero_map(ndim, *_):
    return (0,) * ndim


def _full_spec(a):
    return pl.BlockSpec(a.shape, functools.partial(_zero_map, a.ndim))


def _mm(a, b):
    return jnp.dot(a, b, preferred_element_type=jnp.float32)


def _shift_sel(n_out, n_in, stride, offset, dtype):
    """(n_out, n_in) 0/1 matrix M with M[t, stride*t + offset] = 1 (zero if out of range).

    Left-multiplying by M performs an exact, zero-padded shifted/strided row gather on
    the MXU (which has plenty of slack here) instead of masked strided VMEM loads.
    """
    rows = lax.broadcasted_iota(jnp.int32, (n_out, n_in), 0)
    cols = lax.broadcasted_iota(jnp.int32, (n_out, n_in), 1)
    return (cols == stride * rows + offset).astype(dtype)


# --------------- kernel A: conv extractor + encoder + Spin logits -----------
def _encoder_kernel(
    lens_ref, wav_ref,
    cw0a_ref, cw0b_ref, gng_ref, gnb_ref, cw1_ref, cw2_ref,
    fpg_ref, fpb_ref, fpw_ref, fpbias_ref, posw_ref, posb_ref,
    wqkv_ref, bqkv_ref, wo_ref, bo_ref,
    ln1g_ref, ln1b_ref, w1_ref, b1_ref, w2_ref, b2_ref, ln2g_ref, ln2b_ref,
    encg_ref, encb_ref, spinw_ref, spinb_ref, cbt_ref,
    logits_ref):
    f32, bf16 = jnp.float32, jnp.bfloat16
    C = EXTRACTOR_DIM
    b = pl.program_id(0)
    length = lens_ref[b]                               # valid frames for this batch

    def layernorm(v, gamma, beta, eps=1e-5):
        mu = jnp.mean(v, axis=-1, keepdims=True)
        var = jnp.mean(jnp.square(v - mu), axis=-1, keepdims=True)
        return (v - mu) * lax.rsqrt(var + eps) * gamma + beta

    # ---- conv layer 0 (k=10, s=5) as two K=5 matmuls on the (80, 5) reshaped wav ----
    w5 = wav_ref[0].astype(bf16)                       # (80, 5): row t = samples 5t..5t+4
    w5n = _mm(_shift_sel(T0_PAD, T0_PAD, 1, 1, bf16), w5).astype(bf16)   # row t -> w5[t+1]
    y = _mm(w5, cw0a_ref[...]) + _mm(w5n, cw0b_ref[...])                 # (80, 32) f32
    r0 = lax.broadcasted_iota(jnp.int32, (T0_PAD, 1), 0)
    y = jnp.where(r0 < T0_VALID, y, 0.0)               # window 79 does not exist

    # ---- GroupNorm(num_groups=C): per-channel stats over the 79 real frames ----
    inv_t0 = 1.0 / T0_VALID
    mu = jnp.sum(y, axis=0, keepdims=True) * inv_t0
    var = jnp.sum(y * y, axis=0, keepdims=True) * inv_t0 - mu * mu       # row 79 is 0
    y0 = _gelu((y - mu) * lax.rsqrt(var + 1e-5) * gng_ref[...] + gnb_ref[...])
    y0 = y0.astype(bf16)

    # ---- conv layer 1 (k=3, s=2): stride-2 row selection via tiny MXU matmuls ----
    p10 = _mm(_shift_sel(T1_PAD, T0_PAD, 2, 0, bf16), y0).astype(bf16)
    p11 = _mm(_shift_sel(T1_PAD, T0_PAD, 2, 1, bf16), y0).astype(bf16)
    p12 = _mm(_shift_sel(T1_PAD, T0_PAD, 2, 2, bf16), y0).astype(bf16)
    y1 = _gelu(_mm(p10, cw1_ref[0:C, :]) + _mm(p11, cw1_ref[C:2 * C, :])
               + _mm(p12, cw1_ref[2 * C:3 * C, :]))
    y1 = y1.astype(bf16)

    # ---- conv layer 2 (k=2, s=2) ----
    p20 = _mm(_shift_sel(T_PAD, T1_PAD, 2, 0, bf16), y1).astype(bf16)
    p21 = _mm(_shift_sel(T_PAD, T1_PAD, 2, 1, bf16), y1).astype(bf16)
    feats = _gelu(_mm(p20, cw2_ref[0:C, :]) + _mm(p21, cw2_ref[C:2 * C, :]))  # (24, 32)

    # ---- zero padded frames (torchaudio Encoder._preprocess), then feature projection ----
    frame = lax.broadcasted_iota(jnp.int32, (T_PAD, 1), 0)
    feats = jnp.where(frame < length, feats, 0.0)
    h = layernorm(feats, fpg_ref[...], fpb_ref[...])
    h = _mm(h.astype(bf16), fpw_ref[...]) + fpbias_ref[...]               # (24, 64) f32

    # ---- convolutional positional embedding: zero-padded shifted copies assembled
    #      into an in-register (T, POS_K*H) im2col -> ONE K=512 contraction ----
    hz = jnp.where(frame < T_VALID, h, 0.0)            # frames >= T_VALID act as conv padding
    parts = []
    for k in range(POS_K):
        sh = _shift_sel(T_PAD, T_PAD, 1, k - POS_PAD, bf16)   # row t -> hz[t + k - 4] (else 0)
        parts.append(_mm(sh, hz.astype(bf16)).astype(bf16))
    pos = _mm(jnp.concatenate(parts, axis=1), posw_ref[...]) + posb_ref[...]
    x = h + _gelu(pos)

    # ---- transformer encoder layers (post-norm, HuBERT-base style) ----
    key_ok = lax.broadcasted_iota(jnp.int32, (1, T_PAD), 1) < length
    bias = jnp.where(key_ok, 0.0, NEG_BIAS)            # (1, T_PAD) additive key mask
    nt_dims = (((1,), (1,)), ((), ()))                  # contract dim 1 vs dim 1 (no kh.T)
    for l in range(NUM_LAYERS):
        res = x
        qkv = _mm(x.astype(bf16), wqkv_ref[l]) + bqkv_ref[l]              # (24, 192)
        head_outs = []
        for hh in range(HEADS):
            qh = qkv[:, hh * HEAD_DIM:(hh + 1) * HEAD_DIM].astype(bf16)   # scale folded in
            kh = qkv[:, HIDDEN + hh * HEAD_DIM:HIDDEN + (hh + 1) * HEAD_DIM].astype(bf16)
            vh = qkv[:, 2 * HIDDEN + hh * HEAD_DIM:2 * HIDDEN + (hh + 1) * HEAD_DIM].astype(bf16)
            s = lax.dot_general(qh, kh, nt_dims, preferred_element_type=f32) + bias
            s = s - jnp.max(s, axis=-1, keepdims=True)
            p = jnp.exp(s)
            p = p * pl.reciprocal(jnp.sum(p, axis=-1, keepdims=True), approx=True)
            head_outs.append(_mm(p.astype(bf16), vh))
        attn = jnp.concatenate(head_outs, axis=1).astype(bf16)            # (24, 64)
        attn = _mm(attn, wo_ref[l]) + bo_ref[l]                           # single projection
        x = layernorm(res + attn, ln1g_ref[l], ln1b_ref[l])
        ff = _gelu(_mm(x.astype(bf16), w1_ref[l]) + b1_ref[l])
        ff = _mm(ff.astype(bf16), w2_ref[l]) + b2_ref[l]
        x = layernorm(x + ff, ln2g_ref[l], ln2b_ref[l])
    x = layernorm(x, encg_ref[...], encb_ref[...])      # final encoder LayerNorm

    # ---- Spin head: cosine logits against the L2-normalized codebook (kept in f32) ----
    z = _mm(x, spinw_ref[...]) + spinb_ref[...]                           # (24, 32)
    zn = z * lax.rsqrt(jnp.maximum(jnp.sum(z * z, axis=-1, keepdims=True), 1e-12))
    ct = cbt_ref[...]                                                     # (32, 64)
    cn = ct * lax.rsqrt(jnp.maximum(jnp.sum(ct * ct, axis=0, keepdims=True), 1e-12))
    logits_ref[...] = _mm(zn, cn)                                         # (24, 64)


_ENC_WEIGHTS = ["conv_w0a", "conv_w0b", "gn_g", "gn_b", "conv_w1", "conv_w2",
                "fp_ln_g", "fp_ln_b", "fp_w", "fp_b", "pos_w", "pos_b",
                "wqkv", "bqkv", "wo", "bo", "ln1_g", "ln1_b", "w1", "b1",
                "w2", "b2", "ln2_g", "ln2_b", "enc_ln_g", "enc_ln_b",
                "spin_w", "spin_b", "codebook_t"]


def encoder_forward(params, lengths, wav5):
    weights = [params[k] for k in _ENC_WEIGHTS]
    return pl.pallas_call(
        _encoder_kernel,
        grid_spec=pltpu.PrefetchScalarGridSpec(
            num_scalar_prefetch=1,                      # frame lengths -> SMEM
            grid=(BATCH,),
            in_specs=[pl.BlockSpec((1, T0_PAD, S0), lambda b, lens: (b, 0, 0))]
                     + [_full_spec(w) for w in weights],
            out_specs=pl.BlockSpec((T_PAD, CODEBOOK_SIZE), lambda b, lens: (b, 0))),
        out_shape=jax.ShapeDtypeStruct((BATCH * T_PAD, CODEBOOK_SIZE), jnp.float32),
        compiler_params=pltpu.CompilerParams(dimension_semantics=("parallel",)),
    )(lengths, wav5, *weights)


# ------------------ kernel B: Sinkhorn-Knopp targets + CE loss --------------
def _spin_loss_kernel(lens_ref, logits_ref, loss_ref):
    f32 = jnp.float32
    n = BATCH * T_PAD
    logits = logits_ref[...]                            # (B*T_PAD, K)

    # valid-frame mask built in-kernel from the SMEM lengths (no HBM mask tensor).
    r = lax.broadcasted_iota(jnp.int32, (n, 1), 0)
    vrow = jnp.zeros((n, 1), f32)
    for b in range(BATCH):
        in_b = jnp.logical_and(r >= b * T_PAD, r < b * T_PAD + lens_ref[b])
        vrow = jnp.where(in_b, 1.0, vrow)
    n_valid = jnp.sum(vrow, axis=0, keepdims=True)      # (1, 1)

    # Sinkhorn-Knopp soft targets over valid frames only (scale-invariant max shift).
    # TODO(synk): the Spin class body was not provided; this follows the SPIN/SwAV
    # formulation with padded frames excluded from the targets and the loss mean.
    lm = logits * (1.0 / EPSILON)
    gmax = jnp.max(jnp.max(jnp.where(vrow > 0, lm, -1e9), axis=-1, keepdims=True),
                   axis=0, keepdims=True)
    q = jnp.exp(lm - gmax) * vrow
    q = q / jnp.sum(jnp.sum(q, axis=-1, keepdims=True), axis=0, keepdims=True)
    for _ in range(SINKHORN_ITERS):
        q = q / (CODEBOOK_SIZE * jnp.sum(q, axis=0, keepdims=True) + 1e-30)   # prototypes
        row_sum = jnp.sum(q, axis=-1, keepdims=True)
        q = q / (n_valid * row_sum + (1.0 - vrow) + 1e-30)                    # samples
    q = q * n_valid

    # Cross-entropy between Sinkhorn targets and softmax(logits / temperature).
    s = logits * (1.0 / TEMPERATURE)
    s = s - jnp.max(s, axis=-1, keepdims=True)
    logp = s - jnp.log(jnp.sum(jnp.exp(s), axis=-1, keepdims=True))
    ce = -jnp.sum(q * logp, axis=-1, keepdims=True)     # (N, 1); 0 on padded rows
    loss_ref[...] = jnp.sum(ce, axis=0, keepdims=True) / n_valid


def spin_loss(lengths, logits):
    return pl.pallas_call(
        _spin_loss_kernel,
        grid_spec=pltpu.PrefetchScalarGridSpec(
            num_scalar_prefetch=1,
            grid=(1,),
            in_specs=[_full_spec(logits)],
            out_specs=pl.BlockSpec((1, 1), functools.partial(_zero_map, 2))),
        out_shape=jax.ShapeDtypeStruct((1, 1), jnp.float32),
        compiler_params=pltpu.CompilerParams(dimension_semantics=("arbitrary",)),
    )(lengths, logits)


# ------------------------------ JAX glue ------------------------------------
def model_forward(params, wav, wav_len):
    bsz = wav.shape[0]
    lengths = wav_len
    for (_c, k, s) in CONV_LAYERS:                      # conv length formula
        lengths = (lengths - k) // s + 1
    lengths = jnp.minimum(lengths, T_VALID).astype(jnp.int32)

    # (B, WAV_LEN) -> (B, T0_PAD, stride): free reshape; the conv-0 im2col happens in-kernel.
    wav5 = wav.reshape(bsz, T0_PAD, S0)
    logits = encoder_forward(params, lengths, wav5)
    loss = spin_loss(lengths, logits)
    return loss[0, 0]


def init_params(key):
    keys = iter(jax.random.split(key, 32))

    def nrm(shape, scale=0.02):
        return scale * jax.random.normal(next(keys), shape, jnp.float32)

    ones = lambda n: jnp.ones((n,), jnp.float32)
    zeros = lambda n: jnp.zeros((n,), jnp.float32)

    p = {}
    # Conv feature extractor (bias=False; GroupNorm on first layer only).
    conv_raw = []
    cin = 1
    for (cout, k, _s) in CONV_LAYERS:
        conv_raw.append(nrm((cout, cin, k)))            # PyTorch conv1d (cout, cin, k)
        cin = cout
    p["conv_raw"] = conv_raw
    p["gn_g"], p["gn_b"] = ones(EXTRACTOR_DIM), zeros(EXTRACTOR_DIM)

    # Feature projection: LayerNorm + Linear(C -> H).
    p["fp_ln_g"], p["fp_ln_b"] = ones(EXTRACTOR_DIM), zeros(EXTRACTOR_DIM)
    p["fp_w"], p["fp_b"] = nrm((EXTRACTOR_DIM, HIDDEN)), zeros(HIDDEN)

    # Grouped conv positional embedding, expanded to a block-diagonal weight.
    cg = HIDDEN // POS_GROUPS
    wg = np.asarray(nrm((POS_GROUPS, cg, cg, POS_K)))
    w_full = np.zeros((HIDDEN, HIDDEN, POS_K), np.float32)
    for i in range(POS_GROUPS):
        w_full[i * cg:(i + 1) * cg, i * cg:(i + 1) * cg, :] = wg[i]
    p["pos_w_full"] = jnp.asarray(w_full)               # (c_out, c_in, k)
    p["pos_b"] = zeros(HIDDEN)

    # Transformer encoder layers (post-norm, HuBERT-base style).
    layers = []
    for _ in range(NUM_LAYERS):
        layers.append(dict(
            wq=nrm((HIDDEN, HIDDEN)), bq=zeros(HIDDEN),
            wk=nrm((HIDDEN, HIDDEN)), bk=zeros(HIDDEN),
            wv=nrm((HIDDEN, HIDDEN)), bv=zeros(HIDDEN),
            wo=nrm((HIDDEN, HIDDEN)), bo=zeros(HIDDEN),
            ln1_g=ones(HIDDEN), ln1_b=zeros(HIDDEN),
            w1=nrm((HIDDEN, FFN)), b1=zeros(FFN),
            w2=nrm((FFN, HIDDEN)), b2=zeros(HIDDEN),
            ln2_g=ones(HIDDEN), ln2_b=zeros(HIDDEN)))
    p["layers"] = layers
    p["enc_ln_g"], p["enc_ln_b"] = ones(HIDDEN), zeros(HIDDEN)

    # Spin head + codebook (SPIN-paper style; class body not provided).
    p["spin_w"], p["spin_b"] = nrm((HIDDEN, CODEBOOK_DIM)), zeros(CODEBOOK_DIM)
    p["codebook"] = nrm((CODEBOOK_SIZE, CODEBOOK_DIM))
    return p


def pack_params(p):
    """Repack raw params into the fused-kernel layout: tap-major conv weights, fused QKV
    with the attention scale folded in, stacked per-layer weights, 2-D bias rows,
    transposed codebook.  Matmul weights are stored as bf16 (f32 accumulation in-kernel);
    norm affines / biases / the Spin head stay f32."""
    bf16 = jnp.bfloat16
    scale = HEAD_DIM ** -0.5
    row = lambda v: v.reshape(1, -1)

    def tapmajor(w):                                    # (cout, cin, k) -> (k*cin, cout)
        cout, cin, k = w.shape
        return jnp.transpose(w, (2, 1, 0)).reshape(k * cin, cout)

    cw0 = tapmajor(p["conv_raw"][0])                    # (10, 32); row = tap (cin=1)
    out = {
        "conv_w0a": cw0[0:S0].astype(bf16),             # taps 0..4  -> multiply wav5[t]
        "conv_w0b": cw0[S0:2 * S0].astype(bf16),        # taps 5..9  -> multiply wav5[t+1]
        "gn_g": row(p["gn_g"]), "gn_b": row(p["gn_b"]),
        "conv_w1": tapmajor(p["conv_raw"][1]).astype(bf16),   # (3*32, 32)
        "conv_w2": tapmajor(p["conv_raw"][2]).astype(bf16),   # (2*32, 32)
        "fp_ln_g": row(p["fp_ln_g"]), "fp_ln_b": row(p["fp_ln_b"]),
        "fp_w": p["fp_w"].astype(bf16), "fp_b": row(p["fp_b"]),
        # per-tap (c_in -> c_out) matrices stacked along rows: (POS_K*H, H)
        "pos_w": jnp.transpose(p["pos_w_full"], (2, 1, 0))
                    .reshape(POS_K * HIDDEN, HIDDEN).astype(bf16),
        "pos_b": row(p["pos_b"]),
        "enc_ln_g": row(p["enc_ln_g"]), "enc_ln_b": row(p["enc_ln_b"]),
        "spin_w": p["spin_w"], "spin_b": row(p["spin_b"]),
        "codebook_t": p["codebook"].T,
    }
    ls = p["layers"]
    out["wqkv"] = jnp.stack(
        [jnp.concatenate([l["wq"] * scale, l["wk"], l["wv"]], axis=1) for l in ls]).astype(bf16)
    out["bqkv"] = jnp.stack(
        [row(jnp.concatenate([l["bq"] * scale, l["bk"], l["bv"]])) for l in ls])
    out["wo"] = jnp.stack([l["wo"] for l in ls]).astype(bf16)
    out["bo"] = jnp.stack([row(l["bo"]) for l in ls])
    out["ln1_g"] = jnp.stack([row(l["ln1_g"]) for l in ls])
    out["ln1_b"] = jnp.stack([row(l["ln1_b"]) for l in ls])
    out["w1"] = jnp.stack([l["w1"] for l in ls]).astype(bf16)
    out["b1"] = jnp.stack([row(l["b1"]) for l in ls])
    out["w2"] = jnp.stack([l["w2"] for l in ls]).astype(bf16)
    out["b2"] = jnp.stack([row(l["b2"]) for l in ls])
    out["ln2_g"] = jnp.stack([row(l["ln2_g"]) for l in ls])
    out["ln2_b"] = jnp.stack([row(l["ln2_b"]) for l in ls])
    return out


if __name__ == "__main__":
    key = jax.random.PRNGKey(0)
    pkey, wkey = jax.random.split(key)
    params = pack_params(init_params(pkey))
    wav = jax.random.normal(wkey, (BATCH, WAV_LEN), jnp.float32)
    wav_len = jnp.array([WAV_LEN, WAV_LEN - 40], jnp.int32)

    loss = jax.jit(model_forward)(params, wav, wav_len)
    jax.block_until_ready(loss)
    if bool(jnp.isfinite(loss)):
        print("KERNEL_OK")
</pallas_src>

<mosaic_0001>
module attributes {stable_mosaic.version = 11 : i64} {
  func.func @_spin_loss_kernel(%arg0: i32, %arg1: memref<2xi32, #tpu.memory_space<smem>>, %arg2: memref<48x64xf32, #tpu.memory_space<vmem>>, %arg3: memref<1x1xf32, #tpu.memory_space<vmem>>) attributes {dimension_semantics = [#tpu.dimension_semantics<arbitrary>], iteration_bounds = array<i64: 1>, scalar_prefetch = 1 : i64, scratch_operands = 0 : i64, tpu.core_type = #tpu.core_type<tc>, window_params = [{pipeline_mode = #tpu.pipeline_mode<synchronous>, transform_indices = @transform_0, window_bounds = array<i64: 48, 64>}, {pipeline_mode = #tpu.pipeline_mode<synchronous>, transform_indices = @transform_1, window_bounds = array<i64: 1, 1>}]} {
    %c0 = arith.constant 0 : index
    %c0_0 = arith.constant 0 : index
    %0 = vector.load %arg2[%c0, %c0_0] : memref<48x64xf32, #tpu.memory_space<vmem>>, vector<48x64xf32>
    %1 = tpu.iota {dimensions = array<i32: 0>} : vector<48x1xi32>
    %cst = arith.constant 0.000000e+00 : f32
    %2 = vector.broadcast %cst : f32 to vector<48x1xf32>
    %c0_i32 = arith.constant 0 : i32
    %3 = vector.broadcast %c0_i32 : i32 to vector<48x1xi32>
    %4 = arith.cmpi sge, %1, %3 : vector<48x1xi32>
    %c0_1 = arith.constant 0 : index
    %5 = memref.load %arg1[%c0_1] : memref<2xi32, #tpu.memory_space<smem>>
    %c0_i32_2 = arith.constant 0 : i32
    %6 = arith.addi %c0_i32_2, %5 : i32
    %7 = vector.broadcast %6 : i32 to vector<48x1xi32>
    %8 = arith.cmpi slt, %1, %7 : vector<48x1xi32>
    %9 = arith.andi %4, %8 : vector<48x1xi1>
    %cst_3 = arith.constant 1.000000e+00 : f32
    %10 = vector.broadcast %cst_3 : f32 to vector<48x1xf32>
    %11 = arith.select %9, %10, %2 : vector<48x1xi1>, vector<48x1xf32>
    %c24_i32 = arith.constant 24 : i32
    %12 = vector.broadcast %c24_i32 : i32 to vector<48x1xi32>
    %13 = arith.cmpi sge, %1, %12 : vector<48x1xi32>
    %c1 = arith.constant 1 : index
    %14 = memref.load %arg1[%c1] : memref<2xi32, #tpu.memory_space<smem>>
    %c24_i32_4 = arith.constant 24 : i32
    %15 = arith.addi %c24_i32_4, %14 : i32
    %16 = vector.broadcast %15 : i32 to vector<48x1xi32>
    %17 = arith.cmpi slt, %1, %16 : vector<48x1xi32>
    %18 = arith.andi %13, %17 : vector<48x1xi1>
    %cst_5 = arith.constant 1.000000e+00 : f32
    %19 = vector.broadcast %cst_5 : f32 to vector<48x1xf32>
    %20 = arith.select %18, %19, %11 : vector<48x1xi1>, vector<48x1xf32>
    %cst_6 = arith.constant dense<0.000000e+00> : vector<1xf32>
    %21 = vector.multi_reduction <add>, %20, %cst_6 [0] : vector<48x1xf32> to vector<1xf32>
    %22 = vector.shape_cast %21 : vector<1xf32> to vector<1x1xf32>
    %cst_7 = arith.constant 5.000000e+01 : f32
    %23 = vector.broadcast %cst_7 : f32 to vector<48x64xf32>
    %24 = arith.mulf %0, %23 : vector<48x64xf32>
    %cst_8 = arith.constant 0.000000e+00 : f32
    %25 = vector.broadcast %cst_8 : f32 to vector<48x1xf32>
    %26 = arith.cmpf ogt, %20, %25 : vector<48x1xf32>
    %cst_9 = arith.constant -1.000000e+09 : f32
    %27 = vector.shape_cast %26 : vector<48x1xi1> to vector<48x1xi1>
    %28 = vector.broadcast %27 : vector<48x1xi1> to vector<48x64xi1>
    %29 = vector.broadcast %cst_9 : f32 to vector<48x64xf32>
    %30 = arith.select %28, %24, %29 : vector<48x64xi1>, vector<48x64xf32>
    %cst_10 = arith.constant dense<0xFF800000> : vector<48xf32>
    %31 = vector.multi_reduction <maximumf>, %30, %cst_10 [1] : vector<48x64xf32> to vector<48xf32>
    %32 = vector.shape_cast %31 : vector<48xf32> to vector<48x1xf32>
    %cst_11 = arith.constant dense<0xFF800000> : vector<1xf32>
    %33 = vector.multi_reduction <maximumf>, %32, %cst_11 [0] : vector<48x1xf32> to vector<1xf32>
    %34 = vector.shape_cast %33 : vector<1xf32> to vector<1x1xf32>
    %35 = vector.broadcast %34 : vector<1x1xf32> to vector<48x64xf32>
    %36 = arith.subf %24, %35 : vector<48x64xf32>
    %37 = math.exp %36 : vector<48x64xf32>
    %38 = vector.broadcast %20 : vector<48x1xf32> to vector<48x64xf32>
    %39 = arith.mulf %37, %38 : vector<48x64xf32>
    %cst_12 = arith.constant dense<0.000000e+00> : vector<48xf32>
    %40 = vector.multi_reduction <add>, %39, %cst_12 [1] : vector<48x64xf32> to vector<48xf32>
    %41 = vector.shape_cast %40 : vector<48xf32> to vector<48x1xf32>
    %cst_13 = arith.constant dense<0.000000e+00> : vector<1xf32>
    %42 = vector.multi_reduction <add>, %41, %cst_13 [0] : vector<48x1xf32> to vector<1xf32>
    %43 = vector.shape_cast %42 : vector<1xf32> to vector<1x1xf32>
    %44 = vector.broadcast %43 : vector<1x1xf32> to vector<48x64xf32>
    %45 = arith.divf %39, %44 : vector<48x64xf32>
    %cst_14 = arith.constant dense<0.000000e+00> : vector<64xf32>
    %46 = vector.multi_reduction <add>, %45, %cst_14 [0] : vector<48x64xf32> to vector<64xf32>
    %47 = vector.shape_cast %46 : vector<64xf32> to vector<1x64xf32>
    %cst_15 = arith.constant 6.400000e+01 : f32
    %48 = vector.broadcast %cst_15 : f32 to vector<1x64xf32>
    %49 = arith.mulf %48, %47 : vector<1x64xf32>
    %cst_16 = arith.constant 1.000000e-30 : f32
    %50 = vector.broadcast %cst_16 : f32 to vector<1x64xf32>
    %51 = arith.addf %49, %50 : vector<1x64xf32>
    %52 = vector.broadcast %51 : vector<1x64xf32> to vector<48x64xf32>
    %53 = arith.divf %45, %52 : vector<48x64xf32>
    %cst_17 = arith.constant dense<0.000000e+00> : vector<48xf32>
    %54 = vector.multi_reduction <add>, %53, %cst_17 [1] : vector<48x64xf32> to vector<48xf32>
    %55 = vector.shape_cast %54 : vector<48xf32> to vector<48x1xf32>
    %56 = vector.broadcast %22 : vector<1x1xf32> to vector<48x1xf32>
    %57 = arith.mulf %56, %55 : vector<48x1xf32>
    %cst_18 = arith.constant 1.000000e+00 : f32
    %58 = vector.broadcast %cst_18 : f32 to vector<48x1xf32>
    %59 = arith.subf %58, %20 : vector<48x1xf32>
    %60 = arith.addf %57, %59 : vector<48x1xf32>
    %cst_19 = arith.constant 1.000000e-30 : f32
    %61 = vector.broadcast %cst_19 : f32 to vector<48x1xf32>
    %62 = arith.addf %60, %61 : vector<48x1xf32>
    %63 = vector.broadcast %62 : vector<48x1xf32> to vector<48x64xf32>
    %64 = arith.divf %53, %63 : vector<48x64xf32>
    %cst_20 = arith.constant dense<0.000000e+00> : vector<64xf32>
    %65 = vector.multi_reduction <add>, %64, %cst_20 [0] : vector<48x64xf32> to vector<64xf32>
    %66 = vector.shape_cast %65 : vector<64xf32> to vector<1x64xf32>
    %cst_21 = arith.constant 6.400000e+01 : f32
    %67 = vector.broadcast %cst_21 : f32 to vector<1x64xf32>
    %68 = arith.mulf %67, %66 : vector<1x64xf32>
    %cst_22 = arith.constant 1.000000e-30 : f32
    %69 = vector.broadcast %cst_22 : f32 to vector<1x64xf32>
    %70 = arith.addf %68, %69 : vector<1x64xf32>
    %71 = vector.broadcast %70 : vector<1x64xf32> to vector<48x64xf32>
    %72 = arith.divf %64, %71 : vector<48x64xf32>
    %cst_23 = arith.constant dense<0.000000e+00> : vector<48xf32>
    %73 = vector.multi_reduction <add>, %72, %cst_23 [1] : vector<48x64xf32> to vector<48xf32>
    %74 = vector.shape_cast %73 : vector<48xf32> to vector<48x1xf32>
    %75 = vector.broadcast %22 : vector<1x1xf32> to vector<48x1xf32>
    %76 = arith.mulf %75, %74 : vector<48x1xf32>
    %cst_24 = arith.constant 1.000000e+00 : f32
    %77 = vector.broadcast %cst_24 : f32 to vector<48x1xf32>
    %78 = arith.subf %77, %20 : vector<48x1xf32>
    %79 = arith.addf %76, %78 : vector<48x1xf32>
    %cst_25 = arith.constant 1.000000e-30 : f32
    %80 = vector.broadcast %cst_25 : f32 to vector<48x1xf32>
    %81 = arith.addf %79, %80 : vector<48x1xf32>
    %82 = vector.broadcast %81 : vector<48x1xf32> to vector<48x64xf32>
    %83 = arith.divf %72, %82 : vector<48x64xf32>
    %cst_26 = arith.constant dense<0.000000e+00> : vector<64xf32>
    %84 = vector.multi_reduction <add>, %83, %cst_26 [0] : vector<48x64xf32> to vector<64xf32>
    %85 = vector.shape_cast %84 : vector<64xf32> to vector<1x64xf32>
    %cst_27 = arith.constant 6.400000e+01 : f32
    %86 = vector.broadcast %cst_27 : f32 to vector<1x64xf32>
    %87 = arith.mulf %86, %85 : vector<1x64xf32>
    %cst_28 = arith.constant 1.000000e-30 : f32
    %88 = vector.broadcast %cst_28 : f32 to vector<1x64xf32>
    %89 = arith.addf %87, %88 : vector<1x64xf32>
    %90 = vector.broadcast %89 : vector<1x64xf32> to vector<48x64xf32>
    %91 = arith.divf %83, %90 : vector<48x64xf32>
    %cst_29 = arith.constant dense<0.000000e+00> : vector<48xf32>
    %92 = vector.multi_reduction <add>, %91, %cst_29 [1] : vector<48x64xf32> to vector<48xf32>
    %93 = vector.shape_cast %92 : vector<48xf32> to vector<48x1xf32>
    %94 = vector.broadcast %22 : vector<1x1xf32> to vector<48x1xf32>
    %95 = arith.mulf %94, %93 : vector<48x1xf32>
    %cst_30 = arith.constant 1.000000e+00 : f32
    %96 = vector.broadcast %cst_30 : f32 to vector<48x1xf32>
    %97 = arith.subf %96, %20 : vector<48x1xf32>
    %98 = arith.addf %95, %97 : vector<48x1xf32>
    %cst_31 = arith.constant 1.000000e-30 : f32
    %99 = vector.broadcast %cst_31 : f32 to vector<48x1xf32>
    %100 = arith.addf %98, %99 : vector<48x1xf32>
    %101 = vector.broadcast %100 : vector<48x1xf32> to vector<48x64xf32>
    %102 = arith.divf %91, %101 : vector<48x64xf32>
    %103 = vector.broadcast %22 : vector<1x1xf32> to vector<48x64xf32>
    %104 = arith.mulf %102, %103 : vector<48x64xf32>
    %cst_32 = arith.constant 1.000000e+01 : f32
    %105 = vector.broadcast %cst_32 : f32 to vector<48x64xf32>
    %106 = arith.mulf %0, %105 : vector<48x64xf32>
    %cst_33 = arith.constant dense<0xFF800000> : vector<48xf32>
    %107 = vector.multi_reduction <maximumf>, %106, %cst_33 [1] : vector<48x64xf32> to vector<48xf32>
    %108 = vector.shape_cast %107 : vector<48xf32> to vector<48x1xf32>
    %109 = vector.broadcast %108 : vector<48x1xf32> to vector<48x64xf32>
    %110 = arith.subf %106, %109 : vector<48x64xf32>
    %111 = math.exp %110 : vector<48x64xf32>
    %cst_34 = arith.constant dense<0.000000e+00> : vector<48xf32>
    %112 = vector.multi_reduction <add>, %111, %cst_34 [1] : vector<48x64xf32> to vector<48xf32>
    %113 = vector.shape_cast %112 : vector<48xf32> to vector<48x1xf32>
    %114 = math.log %113 : vector<48x1xf32>
    %115 = vector.broadcast %114 : vector<48x1xf32> to vector<48x64xf32>
    %116 = arith.subf %110, %115 : vector<48x64xf32>
    %117 = arith.mulf %104, %116 : vector<48x64xf32>
    %cst_35 = arith.constant dense<0.000000e+00> : vector<48xf32>
    %118 = vector.multi_reduction <add>, %117, %cst_35 [1] : vector<48x64xf32> to vector<48xf32>
    %119 = vector.shape_cast %118 : vector<48xf32> to vector<48x1xf32>
    %cst_36 = arith.constant 0.000000e+00 : f32
    %120 = vector.broadcast %cst_36 : f32 to vector<48x1xf32>
    %121 = arith.subf %120, %119 : vector<48x1xf32>
    %cst_37 = arith.constant dense<0.000000e+00> : vector<1xf32>
    %122 = vector.multi_reduction <add>, %121, %cst_37 [0] : vector<48x1xf32> to vector<1xf32>
    %123 = vector.shape_cast %122 : vector<1xf32> to vector<1x1xf32>
    %124 = arith.divf %123, %22 : vector<1x1xf32>
    %c0_38 = arith.constant 0 : index
    %c0_39 = arith.constant 0 : index
    %125 = vector.load %arg3[%c0_38, %c0_39] : memref<1x1xf32, #tpu.memory_space<vmem>>, vector<1x1xf32>
    tpu.vector_store %arg3[%c0_38, %c0_39], %124 {strides = array<i32>} : memref<1x1xf32, #tpu.memory_space<vmem>>, vector<1x1xf32>,
    return
  }
  func.func @transform_0(%arg0: i32, %arg1: memref<2xi32, #tpu.memory_space<smem>>) -> (i32, i32) {
    %c0_i32 = arith.constant 0 : i32
    %c0_i32_0 = arith.constant 0 : i32
    %c0_i32_1 = arith.constant 0 : i32
    return %c0_i32, %c0_i32_0 : i32, i32
  }
  func.func @transform_1(%arg0: i32, %arg1: memref<2xi32, #tpu.memory_space<smem>>) -> (i32, i32) {
    %c0_i32 = arith.constant 0 : i32
    %c0_i32_0 = arith.constant 0 : i32
    %c0_i32_1 = arith.constant 0 : i32
    return %c0_i32, %c0_i32_0 : i32, i32
  }
}

module attributes {stable_mosaic.version = 11 : i64} {
  func.func @_encoder_kernel(%arg0: i32, %arg1: memref<2xi32, #tpu.memory_space<smem>>, %arg2: memref<1x80x5xf32, #tpu.memory_space<vmem>>, %arg3: memref<5x32xbf16, #tpu.memory_space<vmem>>, %arg4: memref<5x32xbf16, #tpu.memory_space<vmem>>, %arg5: memref<1x32xf32, #tpu.memory_space<vmem>>, %arg6: memref<1x32xf32, #tpu.memory_space<vmem>>, %arg7: memref<96x32xbf16, #tpu.memory_space<vmem>>, %arg8: memref<64x32xbf16, #tpu.memory_space<vmem>>, %arg9: memref<1x32xf32, #tpu.memory_space<vmem>>, %arg10: memref<1x32xf32, #tpu.memory_space<vmem>>, %arg11: memref<32x64xbf16, #tpu.memory_space<vmem>>, %arg12: memref<1x64xf32, #tpu.memory_space<vmem>>, %arg13: memref<512x64xbf16, #tpu.memory_space<vmem>>, %arg14: memref<1x64xf32, #tpu.memory_space<vmem>>, %arg15: memref<2x64x192xbf16, #tpu.memory_space<vmem>>, %arg16: memref<2x1x192xf32, #tpu.memory_space<vmem>>, %arg17: memref<2x64x64xbf16, #tpu.memory_space<vmem>>, %arg18: memref<2x1x64xf32, #tpu.memory_space<vmem>>, %arg19: memref<2x1x64xf32, #tpu.memory_space<vmem>>, %arg20: memref<2x1x64xf32, #tpu.memory_space<vmem>>, %arg21: memref<2x64x128xbf16, #tpu.memory_space<vmem>>, %arg22: memref<2x1x128xf32, #tpu.memory_space<vmem>>, %arg23: memref<2x128x64xbf16, #tpu.memory_space<vmem>>, %arg24: memref<2x1x64xf32, #tpu.memory_space<vmem>>, %arg25: memref<2x1x64xf32, #tpu.memory_space<vmem>>, %arg26: memref<2x1x64xf32, #tpu.memory_space<vmem>>, %arg27: memref<1x64xf32, #tpu.memory_space<vmem>>, %arg28: memref<1x64xf32, #tpu.memory_space<vmem>>, %arg29: memref<64x32xf32, #tpu.memory_space<vmem>>, %arg30: memref<1x32xf32, #tpu.memory_space<vmem>>, %arg31: memref<32x64xf32, #tpu.memory_space<vmem>>, %arg32: memref<24x64xf32, #tpu.memory_space<vmem>>) attributes {dimension_semantics = [#tpu.dimension_semantics<parallel>], iteration_bounds = array<i64: 2>, scalar_prefetch = 1 : i64, scratch_operands = 0 : i64, tpu.core_type = #tpu.core_type<tc>, window_params = [{transform_indices = @transform_0, window_bounds = array<i64: 1, 80, 5>}, {pipeline_mode = #tpu.pipeline_mode<synchronous>, transform_indices = @transform_1, window_bounds = array<i64: 5, 32>}, {pipeline_mode = #tpu.pipeline_mode<synchronous>, transform_indices = @transform_2, window_bounds = array<i64: 5, 32>}, {pipeline_mode = #tpu.pipeline_mode<synchronous>, transform_indices = @transform_3, window_bounds = array<i64: 1, 32>}, {pipeline_mode = #tpu.pipeline_mode<synchronous>, transform_indices = @transform_4, window_bounds = array<i64: 1, 32>}, {pipeline_mode = #tpu.pipeline_mode<synchronous>, transform_indices = @transform_5, window_bounds = array<i64: 96, 32>}, {pipeline_mode = #tpu.pipeline_mode<synchronous>, transform_indices = @transform_6, window_bounds = array<i64: 64, 32>}, {pipeline_mode = #tpu.pipeline_mode<synchronous>, transform_indices = @transform_7, window_bounds = array<i64: 1, 32>}, {pipeline_mode = #tpu.pipeline_mode<synchronous>, transform_indices = @transform_8, window_bounds = array<i64: 1, 32>}, {pipeline_mode = #tpu.pipeline_mode<synchronous>, transform_indices = @transform_9, window_bounds = array<i64: 32, 64>}, {pipeline_mode = #tpu.pipeline_mode<synchronous>, transform_indices = @transform_10, window_bounds = array<i64: 1, 64>}, {pipeline_mode = #tpu.pipeline_mode<synchronous>, transform_indices = @transform_11, window_bounds = array<i64: 512, 64>}, {pipeline_mode = #tpu.pipeline_mode<synchronous>, transform_indices = @transform_12, window_bounds = array<i64: 1, 64>}, {pipeline_mode = #tpu.pipeline_mode<synchronous>, transform_indices = @transform_13, window_bounds = array<i64: 2, 64, 192>}, {pipeline_mode = #tpu.pipeline_mode<synchronous>, transform_indices = @transform_14, window_bounds = array<i64: 2, 1, 192>}, {pipeline_mode = #tpu.pipeline_mode<synchronous>, transform_indices = @transform_15, window_bounds = array<i64: 2, 64, 64>}, {pipeline_mode = #tpu.pipeline_mode<synchronous>, transform_indices = @transform_16, window_bounds = array<i64: 2, 1, 64>}, {pipeline_mode = #tpu.pipeline_mode<synchronous>, transform_indices = @transform_17, window_bounds = array<i64: 2, 1, 64>}, {pipeline_mode = #tpu.pipeline_mode<synchronous>, transform_indices = @transform_18, window_bounds = array<i64: 2, 1, 64>}, {pipeline_mode = #tpu.pipeline_mode<synchronous>, transform_indices = @transform_19, window_bounds = array<i64: 2, 64, 128>}, {pipeline_mode = #tpu.pipeline_mode<synchronous>, transform_indices = @transform_20, window_bounds = array<i64: 2, 1, 128>}, {pipeline_mode = #tpu.pipeline_mode<synchronous>, transform_indices = @transform_21, window_bounds = array<i64: 2, 128, 64>}, {pipeline_mode = #tpu.pipeline_mode<synchronous>, transform_indices = @transform_22, window_bounds = array<i64: 2, 1, 64>}, {pipeline_mode = #tpu.pipeline_mode<synchronous>, transform_indices = @transform_23, window_bounds = array<i64: 2, 1, 64>}, {pipeline_mode = #tpu.pipeline_mode<synchronous>, transform_indices = @transform_24, window_bounds = array<i64: 2, 1, 64>}, {pipeline_mode = #tpu.pipeline_mode<synchronous>, transform_indices = @transform_25, window_bounds = array<i64: 1, 64>}, {pipeline_mode = #tpu.pipeline_mode<synchronous>, transform_indices = @transform_26, window_bounds = array<i64: 1, 64>}, {pipeline_mode = #tpu.pipeline_mode<synchronous>, transform_indices = @transform_27, window_bounds = array<i64: 64, 32>}, {pipeline_mode = #tpu.pipeline_mode<synchronous>, transform_indices = @transform_28, window_bounds = array<i64: 1, 32>}, {pipeline_mode = #tpu.pipeline_mode<synchronous>, transform_indices = @transform_29, window_bounds = array<i64: 32, 64>}, {transform_indices = @transform_30, window_bounds = array<i64: 24, 64>}]} {
    %0 = arith.index_cast %arg0 : i32 to index
    %1 = memref.load %arg1[%0] : memref<2xi32, #tpu.memory_space<smem>>
    %c0 = arith.constant 0 : index
    %c0_0 = arith.constant 0 : index
    %c0_1 = arith.constant 0 : index
    %2 = vector.load %arg2[%c0, %c0_0, %c0_1] : memref<1x80x5xf32, #tpu.memory_space<vmem>>, vector<1x80x5xf32>
    %3 = vector.shape_cast %2 : vector<1x80x5xf32> to vector<80x5xf32>
    %4 = arith.truncf %3 : vector<80x5xf32> to vector<80x5xbf16>
    %5 = tpu.iota {dimensions = array<i32: 0>} : vector<80x80xi32>
    %6 = tpu.iota {dimensions = array<i32: 1>} : vector<80x80xi32>
    %c1_i32 = arith.constant 1 : i32
    %7 = vector.broadcast %c1_i32 : i32 to vector<80x80xi32>
    %8 = arith.muli %7, %5 : vector<80x80xi32>
    %c1_i32_2 = arith.constant 1 : i32
    %9 = vector.broadcast %c1_i32_2 : i32 to vector<80x80xi32>
    %10 = arith.addi %8, %9 : vector<80x80xi32>
    %11 = arith.cmpi eq, %6, %10 : vector<80x80xi32>
    %12 = arith.extui %11 : vector<80x80xi1> to vector<80x80xi32>
    %13 = arith.sitofp %12 : vector<80x80xi32> to vector<80x80xf32>
    %14 = arith.truncf %13 : vector<80x80xf32> to vector<80x80xbf16>
    %cst = arith.constant dense<0.000000e+00> : vector<80x5xf32>
    %15 = tpu.matmul %14, %4, %cst {dimension_numbers = #tpu.dot_dimension_numbers<[1], [0], [0], [1], [0, 0, 1, 1], [], []>} : vector<80x80xbf16>, vector<80x5xbf16>, vector<80x5xf32> -> vector<80x5xf32>
    %16 = arith.truncf %15 : vector<80x5xf32> to vector<80x5xbf16>
    %c0_3 = arith.constant 0 : index
    %c0_4 = arith.constant 0 : index
    %17 = vector.load %arg3[%c0_3, %c0_4] : memref<5x32xbf16, #tpu.memory_space<vmem>>, vector<5x32xbf16>
    %cst_5 = arith.constant dense<0.000000e+00> : vector<80x32xf32>
    %18 = tpu.matmul %4, %17, %cst_5 {dimension_numbers = #tpu.dot_dimension_numbers<[1], [0], [0], [1], [0, 0, 1, 1], [], []>} : vector<80x5xbf16>, vector<5x32xbf16>, vector<80x32xf32> -> vector<80x32xf32>
    %c0_6 = arith.constant 0 : index
    %c0_7 = arith.constant 0 : index
    %19 = vector.load %arg4[%c0_6, %c0_7] : memref<5x32xbf16, #tpu.memory_space<vmem>>, vector<5x32xbf16>
    %cst_8 = arith.constant dense<0.000000e+00> : vector<80x32xf32>
    %20 = tpu.matmul %16, %19, %cst_8 {dimension_numbers = #tpu.dot_dimension_numbers<[1], [0], [0], [1], [0, 0, 1, 1], [], []>} : vector<80x5xbf16>, vector<5x32xbf16>, vector<80x32xf32> -> vector<80x32xf32>
    %21 = arith.addf %18, %20 : vector<80x32xf32>
    %22 = tpu.iota {dimensions = array<i32: 0>} : vector<80x1xi32>
    %c79_i32 = arith.constant 79 : i32
    %23 = vector.broadcast %c79_i32 : i32 to vector<80x1xi32>
    %24 = arith.cmpi slt, %22, %23 : vector<80x1xi32>
    %cst_9 = arith.constant 0.000000e+00 : f32
    %25 = vector.shape_cast %24 : vector<80x1xi1> to vector<80x1xi1>
    %26 = vector.broadcast %25 : vector<80x1xi1> to vector<80x32xi1>
    %27 = vector.broadcast %cst_9 : f32 to vector<80x32xf32>
    %28 = arith.select %26, %21, %27 : vector<80x32xi1>, vector<80x32xf32>
    %cst_10 = arith.constant dense<0.000000e+00> : vector<32xf32>
    %29 = vector.multi_reduction <add>, %28, %cst_10 [0] : vector<80x32xf32> to vector<32xf32>
    %30 = vector.shape_cast %29 : vector<32xf32> to vector<1x32xf32>
    %cst_11 = arith.constant 0.0126582282 : f32
    %31 = vector.broadcast %cst_11 : f32 to vector<1x32xf32>
    %32 = arith.mulf %30, %31 : vector<1x32xf32>
    %33 = arith.mulf %28, %28 : vector<80x32xf32>
    %cst_12 = arith.constant dense<0.000000e+00> : vector<32xf32>
    %34 = vector.multi_reduction <add>, %33, %cst_12 [0] : vector<80x32xf32> to vector<32xf32>
    %35 = vector.shape_cast %34 : vector<32xf32> to vector<1x32xf32>
    %cst_13 = arith.constant 0.0126582282 : f32
    %36 = vector.broadcast %cst_13 : f32 to vector<1x32xf32>
    %37 = arith.mulf %35, %36 : vector<1x32xf32>
    %38 = arith.mulf %32, %32 : vector<1x32xf32>
    %39 = arith.subf %37, %38 : vector<1x32xf32>
    %40 = vector.broadcast %32 : vector<1x32xf32> to vector<80x32xf32>
    %41 = arith.subf %28, %40 : vector<80x32xf32>
    %cst_14 = arith.constant 9.99999974E-6 : f32
    %42 = vector.broadcast %cst_14 : f32 to vector<1x32xf32>
    %43 = arith.addf %39, %42 : vector<1x32xf32>
    %44 = math.rsqrt %43 : vector<1x32xf32>
    %45 = vector.broadcast %44 : vector<1x32xf32> to vector<80x32xf32>
    %46 = arith.mulf %41, %45 : vector<80x32xf32>
    %c0_15 = arith.constant 0 : index
    %c0_16 = arith.constant 0 : index
    %47 = vector.load %arg5[%c0_15, %c0_16] : memref<1x32xf32, #tpu.memory_space<vmem>>, vector<1x32xf32>
    %48 = vector.broadcast %47 : vector<1x32xf32> to vector<80x32xf32>
    %49 = arith.mulf %46, %48 : vector<80x32xf32>
    %c0_17 = arith.constant 0 : index
    %c0_18 = arith.constant 0 : index
    %50 = vector.load %arg6[%c0_17, %c0_18] : memref<1x32xf32, #tpu.memory_space<vmem>>, vector<1x32xf32>
    %51 = vector.broadcast %50 : vector<1x32xf32> to vector<80x32xf32>
    %52 = arith.addf %49, %51 : vector<80x32xf32>
    %53 = arith.mulf %52, %52 : vector<80x32xf32>
    %54 = arith.mulf %52, %53 : vector<80x32xf32>
    %cst_19 = arith.constant 4.471500e-02 : f32
    %55 = vector.broadcast %cst_19 : f32 to vector<80x32xf32>
    %56 = arith.mulf %55, %54 : vector<80x32xf32>
    %57 = arith.addf %52, %56 : vector<80x32xf32>
    %cst_20 = arith.constant 0.797884583 : f32
    %58 = vector.broadcast %cst_20 : f32 to vector<80x32xf32>
    %59 = arith.mulf %58, %57 : vector<80x32xf32>
    %60 = math.tanh %59 : vector<80x32xf32>
    %cst_21 = arith.constant 1.000000e+00 : f32
    %61 = vector.broadcast %cst_21 : f32 to vector<80x32xf32>
    %62 = arith.addf %61, %60 : vector<80x32xf32>
    %cst_22 = arith.constant 5.000000e-01 : f32
    %63 = vector.broadcast %cst_22 : f32 to vector<80x32xf32>
    %64 = arith.mulf %63, %62 : vector<80x32xf32>
    %65 = arith.mulf %52, %64 : vector<80x32xf32>
    %66 = arith.truncf %65 : vector<80x32xf32> to vector<80x32xbf16>
    %67 = tpu.iota {dimensions = array<i32: 0>} : vector<40x80xi32>
    %68 = tpu.iota {dimensions = array<i32: 1>} : vector<40x80xi32>
    %c2_i32 = arith.constant 2 : i32
    %69 = vector.broadcast %c2_i32 : i32 to vector<40x80xi32>
    %70 = arith.muli %69, %67 : vector<40x80xi32>
    %c0_i32 = arith.constant 0 : i32
    %71 = vector.broadcast %c0_i32 : i32 to vector<40x80xi32>
    %72 = arith.addi %70, %71 : vector<40x80xi32>
    %73 = arith.cmpi eq, %68, %72 : vector<40x80xi32>
    %74 = arith.extui %73 : vector<40x80xi1> to vector<40x80xi32>
    %75 = arith.sitofp %74 : vector<40x80xi32> to vector<40x80xf32>
    %76 = arith.truncf %75 : vector<40x80xf32> to vector<40x80xbf16>
    %cst_23 = arith.constant dense<0.000000e+00> : vector<40x32xf32>
    %77 = tpu.matmul %76, %66, %cst_23 {dimension_numbers = #tpu.dot_dimension_numbers<[1], [0], [0], [1], [0, 0, 1, 1], [], []>} : vector<40x80xbf16>, vector<80x32xbf16>, vector<40x32xf32> -> vector<40x32xf32>
    %78 = arith.truncf %77 : vector<40x32xf32> to vector<40x32xbf16>
    %79 = tpu.iota {dimensions = array<i32: 0>} : vector<40x80xi32>
    %80 = tpu.iota {dimensions = array<i32: 1>} : vector<40x80xi32>
    %c2_i32_24 = arith.constant 2 : i32
    %81 = vector.broadcast %c2_i32_24 : i32 to vector<40x80xi32>
    %82 = arith.muli %81, %79 : vector<40x80xi32>
    %c1_i32_25 = arith.constant 1 : i32
    %83 = vector.broadcast %c1_i32_25 : i32 to vector<40x80xi32>
    %84 = arith.addi %82, %83 : vector<40x80xi32>
    %85 = arith.cmpi eq, %80, %84 : vector<40x80xi32>
    %86 = arith.extui %85 : vector<40x80xi1> to vector<40x80xi32>
    %87 = arith.sitofp %86 : vector<40x80xi32> to vector<40x80xf32>
    %88 = arith.truncf %87 : vector<40x80xf32> to vector<40x80xbf16>
    %cst_26 = arith.constant dense<0.000000e+00> : vector<40x32xf32>
    %89 = tpu.matmul %88, %66, %cst_26 {dimension_numbers = #tpu.dot_dimension_numbers<[1], [0], [0], [1], [0, 0, 1, 1], [], []>} : vector<40x80xbf16>, vector<80x32xbf16>, vector<40x32xf32> -> vector<40x32xf32>
    %90 = arith.truncf %89 : vector<40x32xf32> to vector<40x32xbf16>
    %91 = tpu.iota {dimensions = array<i32: 0>} : vector<40x80xi32>
    %92 = tpu.iota {dimensions = array<i32: 1>} : vector<40x80xi32>
    %c2_i32_27 = arith.constant 2 : i32
    %93 = vector.broadcast %c2_i32_27 : i32 to vector<40x80xi32>
    %94 = arith.muli %93, %91 : vector<40x80xi32>
    %c2_i32_28 = arith.constant 2 : i32
    %95 = vector.broadcast %c2_i32_28 : i32 to vector<40x80xi32>
    %96 = arith.addi %94, %95 : vector<40x80xi32>
    %97 = arith.cmpi eq, %92, %96 : vector<40x80xi32>
    %98 = arith.extui %97 : vector<40x80xi1> to vector<40x80xi32>
    %99 = arith.sitofp %98 : vector<40x80xi32> to vector<40x80xf32>
    %100 = arith.truncf %99 : vector<40x80xf32> to vector<40x80xbf16>
    %cst_29 = arith.constant dense<0.000000e+00> : vector<40x32xf32>
    %101 = tpu.matmul %100, %66, %cst_29 {dimension_numbers = #tpu.dot_dimension_numbers<[1], [0], [0], [1], [0, 0, 1, 1], [], []>} : vector<40x80xbf16>, vector<80x32xbf16>, vector<40x32xf32> -> vector<40x32xf32>
    %102 = arith.truncf %101 : vector<40x32xf32> to vector<40x32xbf16>
    %c0_30 = arith.constant 0 : index
    %c0_31 = arith.constant 0 : index
    %103 = vector.load %arg7[%c0_30, %c0_31] : memref<96x32xbf16, #tpu.memory_space<vmem>>, vector<32x32xbf16>
    %cst_32 = arith.constant dense<0.000000e+00> : vector<40x32xf32>
    %104 = tpu.matmul %78, %103, %cst_32 {dimension_numbers = #tpu.dot_dimension_numbers<[1], [0], [0], [1], [0, 0, 1, 1], [], []>} : vector<40x32xbf16>, vector<32x32xbf16>, vector<40x32xf32> -> vector<40x32xf32>
    %c32 = arith.constant 32 : index
    %c0_33 = arith.constant 0 : index
    %105 = vector.load %arg7[%c32, %c0_33] : memref<96x32xbf16, #tpu.memory_space<vmem>>, vector<32x32xbf16>
    %cst_34 = arith.constant dense<0.000000e+00> : vector<40x32xf32>
    %106 = tpu.matmul %90, %105, %cst_34 {dimension_numbers = #tpu.dot_dimension_numbers<[1], [0], [0], [1], [0, 0, 1, 1], [], []>} : vector<40x32xbf16>, vector<32x32xbf16>, vector<40x32xf32> -> vector<40x32xf32>
    %107 = arith.addf %104, %106 : vector<40x32xf32>
    %c64 = arith.constant 64 : index
    %c0_35 = arith.constant 0 : index
    %108 = vector.load %arg7[%c64, %c0_35] : memref<96x32xbf16, #tpu.memory_space<vmem>>, vector<32x32xbf16>
    %cst_36 = arith.constant dense<0.000000e+00> : vector<40x32xf32>
    %109 = tpu.matmul %102, %108, %cst_36 {dimension_numbers = #tpu.dot_dimension_numbers<[1], [0], [0], [1], [0, 0, 1, 1], [], []>} : vector<40x32xbf16>, vector<32x32xbf16>, vector<40x32xf32> -> vector<40x32xf32>
    %110 = arith.addf %107, %109 : vector<40x32xf32>
    %111 = arith.mulf %110, %110 : vector<40x32xf32>
    %112 = arith.mulf %110, %111 : vector<40x32xf32>
    %cst_37 = arith.constant 4.471500e-02 : f32
    %113 = vector.broadcast %cst_37 : f32 to vector<40x32xf32>
    %114 = arith.mulf %113, %112 : vector<40x32xf32>
    %115 = arith.addf %110, %114 : vector<40x32xf32>
    %cst_38 = arith.constant 0.797884583 : f32
    %116 = vector.broadcast %cst_38 : f32 to vector<40x32xf32>
    %117 = arith.mulf %116, %115 : vector<40x32xf32>
    %118 = math.tanh %117 : vector<40x32xf32>
    %cst_39 = arith.constant 1.000000e+00 : f32
    %119 = vector.broadcast %cst_39 : f32 to vector<40x32xf32>
    %120 = arith.addf %119, %118 : vector<40x32xf32>
    %cst_40 = arith.constant 5.000000e-01 : f32
    %121 = vector.broadcast %cst_40 : f32 to vector<40x32xf32>
    %122 = arith.mulf %121, %120 : vector<40x32xf32>
    %123 = arith.mulf %110, %122 : vector<40x32xf32>
    %124 = arith.truncf %123 : vector<40x32xf32> to vector<40x32xbf16>
    %125 = tpu.iota {dimensions = array<i32: 0>} : vector<24x40xi32>
    %126 = tpu.iota {dimensions = array<i32: 1>} : vector<24x40xi32>
    %c2_i32_41 = arith.constant 2 : i32
    %127 = vector.broadcast %c2_i32_41 : i32 to vector<24x40xi32>
    %128 = arith.muli %127, %125 : vector<24x40xi32>
    %c0_i32_42 = arith.constant 0 : i32
    %129 = vector.broadcast %c0_i32_42 : i32 to vector<24x40xi32>
    %130 = arith.addi %128, %129 : vector<24x40xi32>
    %131 = arith.cmpi eq, %126, %130 : vector<24x40xi32>
    %132 = arith.extui %131 : vector<24x40xi1> to vector<24x40xi32>
    %133 = arith.sitofp %132 : vector<24x40xi32> to vector<24x40xf32>
    %134 = arith.truncf %133 : vector<24x40xf32> to vector<24x40xbf16>
    %cst_43 = arith.constant dense<0.000000e+00> : vector<24x32xf32>
    %135 = tpu.matmul %134, %124, %cst_43 {dimension_numbers = #tpu.dot_dimension_numbers<[1], [0], [0], [1], [0, 0, 1, 1], [], []>} : vector<24x40xbf16>, vector<40x32xbf16>, vector<24x32xf32> -> vector<24x32xf32>
    %136 = arith.truncf %135 : vector<24x32xf32> to vector<24x32xbf16>
    %137 = tpu.iota {dimensions = array<i32: 0>} : vector<24x40xi32>
    %138 = tpu.iota {dimensions = array<i32: 1>} : vector<24x40xi32>
    %c2_i32_44 = arith.constant 2 : i32
    %139 = vector.broadcast %c2_i32_44 : i32 to vector<24x40xi32>
    %140 = arith.muli %139, %137 : vector<24x40xi32>
    %c1_i32_45 = arith.constant 1 : i32
    %141 = vector.broadcast %c1_i32_45 : i32 to vector<24x40xi32>
    %142 = arith.addi %140, %141 : vector<24x40xi32>
    %143 = arith.cmpi eq, %138, %142 : vector<24x40xi32>
    %144 = arith.extui %143 : vector<24x40xi1> to vector<24x40xi32>
    %145 = arith.sitofp %144 : vector<24x40xi32> to vector<24x40xf32>
    %146 = arith.truncf %145 : vector<24x40xf32> to vector<24x40xbf16>
    %cst_46 = arith.constant dense<0.000000e+00> : vector<24x32xf32>
    %147 = tpu.matmul %146, %124, %cst_46 {dimension_numbers = #tpu.dot_dimension_numbers<[1], [0], [0], [1], [0, 0, 1, 1], [], []>} : vector<24x40xbf16>, vector<40x32xbf16>, vector<24x32xf32> -> vector<24x32xf32>
    %148 = arith.truncf %147 : vector<24x32xf32> to vector<24x32xbf16>
    %c0_47 = arith.constant 0 : index
    %c0_48 = arith.constant 0 : index
    %149 = vector.load %arg8[%c0_47, %c0_48] : memref<64x32xbf16, #tpu.memory_space<vmem>>, vector<32x32xbf16>
    %cst_49 = arith.constant dense<0.000000e+00> : vector<24x32xf32>
    %150 = tpu.matmul %136, %149, %cst_49 {dimension_numbers = #tpu.dot_dimension_numbers<[1], [0], [0], [1], [0, 0, 1, 1], [], []>} : vector<24x32xbf16>, vector<32x32xbf16>, vector<24x32xf32> -> vector<24x32xf32>
    %c32_50 = arith.constant 32 : index
    %c0_51 = arith.constant 0 : index
    %151 = vector.load %arg8[%c32_50, %c0_51] : memref<64x32xbf16, #tpu.memory_space<vmem>>, vector<32x32xbf16>
    %cst_52 = arith.constant dense<0.000000e+00> : vector<24x32xf32>
    %152 = tpu.matmul %148, %151, %cst_52 {dimension_numbers = #tpu.dot_dimension_numbers<[1], [0], [0], [1], [0, 0, 1, 1], [], []>} : vector<24x32xbf16>, vector<32x32xbf16>, vector<24x32xf32> -> vector<24x32xf32>
    %153 = arith.addf %150, %152 : vector<24x32xf32>
    %154 = arith.mulf %153, %153 : vector<24x32xf32>
    %155 = arith.mulf %153, %154 : vector<24x32xf32>
    %cst_53 = arith.constant 4.471500e-02 : f32
    %156 = vector.broadcast %cst_53 : f32 to vector<24x32xf32>
    %157 = arith.mulf %156, %155 : vector<24x32xf32>
    %158 = arith.addf %153, %157 : vector<24x32xf32>
    %cst_54 = arith.constant 0.797884583 : f32
    %159 = vector.broadcast %cst_54 : f32 to vector<24x32xf32>
    %160 = arith.mulf %159, %158 : vector<24x32xf32>
    %161 = math.tanh %160 : vector<24x32xf32>
    %cst_55 = arith.constant 1.000000e+00 : f32
    %162 = vector.broadcast %cst_55 : f32 to vector<24x32xf32>
    %163 = arith.addf %162, %161 : vector<24x32xf32>
    %cst_56 = arith.constant 5.000000e-01 : f32
    %164 = vector.broadcast %cst_56 : f32 to vector<24x32xf32>
    %165 = arith.mulf %164, %163 : vector<24x32xf32>
    %166 = arith.mulf %153, %165 : vector<24x32xf32>
    %167 = tpu.iota {dimensions = array<i32: 0>} : vector<24x1xi32>
    %168 = vector.broadcast %1 : i32 to vector<24x1xi32>
    %169 = arith.cmpi slt, %167, %168 : vector<24x1xi32>
    %cst_57 = arith.constant 0.000000e+00 : f32
    %170 = vector.shape_cast %169 : vector<24x1xi1> to vector<24x1xi1>
    %171 = vector.broadcast %170 : vector<24x1xi1> to vector<24x32xi1>
    %172 = vector.broadcast %cst_57 : f32 to vector<24x32xf32>
    %173 = arith.select %171, %166, %172 : vector<24x32xi1>, vector<24x32xf32>
    %c0_58 = arith.constant 0 : index
    %c0_59 = arith.constant 0 : index
    %174 = vector.load %arg9[%c0_58, %c0_59] : memref<1x32xf32, #tpu.memory_space<vmem>>, vector<1x32xf32>
    %c0_60 = arith.constant 0 : index
    %c0_61 = arith.constant 0 : index
    %175 = vector.load %arg10[%c0_60, %c0_61] : memref<1x32xf32, #tpu.memory_space<vmem>>, vector<1x32xf32>
    %cst_62 = arith.constant dense<0.000000e+00> : vector<24xf32>
    %176 = vector.multi_reduction <add>, %173, %cst_62 [1] : vector<24x32xf32> to vector<24xf32>
    %177 = vector.shape_cast %176 : vector<24xf32> to vector<24x1xf32>
    %cst_63 = arith.constant 3.200000e+01 : f32
    %178 = vector.broadcast %cst_63 : f32 to vector<24x1xf32>
    %179 = arith.divf %177, %178 : vector<24x1xf32>
    %180 = vector.broadcast %179 : vector<24x1xf32> to vector<24x32xf32>
    %181 = arith.subf %173, %180 : vector<24x32xf32>
    %182 = arith.mulf %181, %181 : vector<24x32xf32>
    %cst_64 = arith.constant dense<0.000000e+00> : vector<24xf32>
    %183 = vector.multi_reduction <add>, %182, %cst_64 [1] : vector<24x32xf32> to vector<24xf32>
    %184 = vector.shape_cast %183 : vector<24xf32> to vector<24x1xf32>
    %cst_65 = arith.constant 3.200000e+01 : f32
    %185 = vector.broadcast %cst_65 : f32 to vector<24x1xf32>
    %186 = arith.divf %184, %185 : vector<24x1xf32>
    %187 = vector.broadcast %179 : vector<24x1xf32> to vector<24x32xf32>
    %188 = arith.subf %173, %187 : vector<24x32xf32>
    %cst_66 = arith.constant 9.99999974E-6 : f32
    %189 = vector.broadcast %cst_66 : f32 to vector<24x1xf32>
    %190 = arith.addf %186, %189 : vector<24x1xf32>
    %191 = math.rsqrt %190 : vector<24x1xf32>
    %192 = vector.broadcast %191 : vector<24x1xf32> to vector<24x32xf32>
    %193 = arith.mulf %188, %192 : vector<24x32xf32>
    %194 = vector.broadcast %174 : vector<1x32xf32> to vector<24x32xf32>
    %195 = arith.mulf %193, %194 : vector<24x32xf32>
    %196 = vector.broadcast %175 : vector<1x32xf32> to vector<24x32xf32>
    %197 = arith.addf %195, %196 : vector<24x32xf32>
    %198 = arith.truncf %197 : vector<24x32xf32> to vector<24x32xbf16>
    %c0_67 = arith.constant 0 : index
    %c0_68 = arith.constant 0 : index
    %199 = vector.load %arg11[%c0_67, %c0_68] : memref<32x64xbf16, #tpu.memory_space<vmem>>, vector<32x64xbf16>
    %cst_69 = arith.constant dense<0.000000e+00> : vector<24x64xf32>
    %200 = tpu.matmul %198, %199, %cst_69 {dimension_numbers = #tpu.dot_dimension_numbers<[1], [0], [0], [1], [0, 0, 1, 1], [], []>} : vector<24x32xbf16>, vector<32x64xbf16>, vector<24x64xf32> -> vector<24x64xf32>
    %c0_70 = arith.constant 0 : index
    %c0_71 = arith.constant 0 : index
    %201 = vector.load %arg12[%c0_70, %c0_71] : memref<1x64xf32, #tpu.memory_space<vmem>>, vector<1x64xf32>
    %202 = vector.broadcast %201 : vector<1x64xf32> to vector<24x64xf32>
    %203 = arith.addf %200, %202 : vector<24x64xf32>
    %c19_i32 = arith.constant 19 : i32
    %204 = vector.broadcast %c19_i32 : i32 to vector<24x1xi32>
    %205 = arith.cmpi slt, %167, %204 : vector<24x1xi32>
    %cst_72 = arith.constant 0.000000e+00 : f32
    %206 = vector.shape_cast %205 : vector<24x1xi1> to vector<24x1xi1>
    %207 = vector.broadcast %206 : vector<24x1xi1> to vector<24x64xi1>
    %208 = vector.broadcast %cst_72 : f32 to vector<24x64xf32>
    %209 = arith.select %207, %203, %208 : vector<24x64xi1>, vector<24x64xf32>
    %210 = tpu.iota {dimensions = array<i32: 0>} : vector<24x24xi32>
    %211 = tpu.iota {dimensions = array<i32: 1>} : vector<24x24xi32>
    %c1_i32_73 = arith.constant 1 : i32
    %212 = vector.broadcast %c1_i32_73 : i32 to vector<24x24xi32>
    %213 = arith.muli %212, %210 : vector<24x24xi32>
    %c-4_i32 = arith.constant -4 : i32
    %214 = vector.broadcast %c-4_i32 : i32 to vector<24x24xi32>
    %215 = arith.addi %213, %214 : vector<24x24xi32>
    %216 = arith.cmpi eq, %211, %215 : vector<24x24xi32>
    %217 = arith.extui %216 : vector<24x24xi1> to vector<24x24xi32>
    %218 = arith.sitofp %217 : vector<24x24xi32> to vector<24x24xf32>
    %219 = arith.truncf %218 : vector<24x24xf32> to vector<24x24xbf16>
    %220 = arith.truncf %209 : vector<24x64xf32> to vector<24x64xbf16>
    %cst_74 = arith.constant dense<0.000000e+00> : vector<24x64xf32>
    %221 = tpu.matmul %219, %220, %cst_74 {dimension_numbers = #tpu.dot_dimension_numbers<[1], [0], [0], [1], [0, 0, 1, 1], [], []>} : vector<24x24xbf16>, vector<24x64xbf16>, vector<24x64xf32> -> vector<24x64xf32>
    %222 = arith.truncf %221 : vector<24x64xf32> to vector<24x64xbf16>
    %223 = tpu.iota {dimensions = array<i32: 0>} : vector<24x24xi32>
    %224 = tpu.iota {dimensions = array<i32: 1>} : vector<24x24xi32>
    %c1_i32_75 = arith.constant 1 : i32
    %225 = vector.broadcast %c1_i32_75 : i32 to vector<24x24xi32>
    %226 = arith.muli %225, %223 : vector<24x24xi32>
    %c-3_i32 = arith.constant -3 : i32
    %227 = vector.broadcast %c-3_i32 : i32 to vector<24x24xi32>
    %228 = arith.addi %226, %227 : vector<24x24xi32>
    %229 = arith.cmpi eq, %224, %228 : vector<24x24xi32>
    %230 = arith.extui %229 : vector<24x24xi1> to vector<24x24xi32>
    %231 = arith.sitofp %230 : vector<24x24xi32> to vector<24x24xf32>
    %232 = arith.truncf %231 : vector<24x24xf32> to vector<24x24xbf16>
    %233 = arith.truncf %209 : vector<24x64xf32> to vector<24x64xbf16>
    %cst_76 = arith.constant dense<0.000000e+00> : vector<24x64xf32>
    %234 = tpu.matmul %232, %233, %cst_76 {dimension_numbers = #tpu.dot_dimension_numbers<[1], [0], [0], [1], [0, 0, 1, 1], [], []>} : vector<24x24xbf16>, vector<24x64xbf16>, vector<24x64xf32> -> vector<24x64xf32>
    %235 = arith.truncf %234 : vector<24x64xf32> to vector<24x64xbf16>
    %236 = tpu.iota {dimensions = array<i32: 0>} : vector<24x24xi32>
    %237 = tpu.iota {dimensions = array<i32: 1>} : vector<24x24xi32>
    %c1_i32_77 = arith.constant 1 : i32
    %238 = vector.broadcast %c1_i32_77 : i32 to vector<24x24xi32>
    %239 = arith.muli %238, %236 : vector<24x24xi32>
    %c-2_i32 = arith.constant -2 : i32
    %240 = vector.broadcast %c-2_i32 : i32 to vector<24x24xi32>
    %241 = arith.addi %239, %240 : vector<24x24xi32>
    %242 = arith.cmpi eq, %237, %241 : vector<24x24xi32>
    %243 = arith.extui %242 : vector<24x24xi1> to vector<24x24xi32>
    %244 = arith.sitofp %243 : vector<24x24xi32> to vector<24x24xf32>
    %245 = arith.truncf %244 : vector<24x24xf32> to vector<24x24xbf16>
    %246 = arith.truncf %209 : vector<24x64xf32> to vector<24x64xbf16>
    %cst_78 = arith.constant dense<0.000000e+00> : vector<24x64xf32>
    %247 = tpu.matmul %245, %246, %cst_78 {dimension_numbers = #tpu.dot_dimension_numbers<[1], [0], [0], [1], [0, 0, 1, 1], [], []>} : vector<24x24xbf16>, vector<24x64xbf16>, vector<24x64xf32> -> vector<24x64xf32>
    %248 = arith.truncf %247 : vector<24x64xf32> to vector<24x64xbf16>
    %249 = tpu.iota {dimensions = array<i32: 0>} : vector<24x24xi32>
    %250 = tpu.iota {dimensions = array<i32: 1>} : vector<24x24xi32>
    %c1_i32_79 = arith.constant 1 : i32
    %251 = vector.broadcast %c1_i32_79 : i32 to vector<24x24xi32>
    %252 = arith.muli %251, %249 : vector<24x24xi32>
    %c-1_i32 = arith.constant -1 : i32
    %253 = vector.broadcast %c-1_i32 : i32 to vector<24x24xi32>
    %254 = arith.addi %252, %253 : vector<24x24xi32>
    %255 = arith.cmpi eq, %250, %254 : vector<24x24xi32>
    %256 = arith.extui %255 : vector<24x24xi1> to vector<24x24xi32>
    %257 = arith.sitofp %256 : vector<24x24xi32> to vector<24x24xf32>
    %258 = arith.truncf %257 : vector<24x24xf32> to vector<24x24xbf16>
    %259 = arith.truncf %209 : vector<24x64xf32> to vector<24x64xbf16>
    %cst_80 = arith.constant dense<0.000000e+00> : vector<24x64xf32>
    %260 = tpu.matmul %258, %259, %cst_80 {dimension_numbers = #tpu.dot_dimension_numbers<[1], [0], [0], [1], [0, 0, 1, 1], [], []>} : vector<24x24xbf16>, vector<24x64xbf16>, vector<24x64xf32> -> vector<24x64xf32>
    %261 = arith.truncf %260 : vector<24x64xf32> to vector<24x64xbf16>
    %262 = tpu.iota {dimensions = array<i32: 0>} : vector<24x24xi32>
    %263 = tpu.iota {dimensions = array<i32: 1>} : vector<24x24xi32>
    %c1_i32_81 = arith.constant 1 : i32
    %264 = vector.broadcast %c1_i32_81 : i32 to vector<24x24xi32>
    %265 = arith.muli %264, %262 : vector<24x24xi32>
    %c0_i32_82 = arith.constant 0 : i32
    %266 = vector.broadcast %c0_i32_82 : i32 to vector<24x24xi32>
    %267 = arith.addi %265, %266 : vector<24x24xi32>
    %268 = arith.cmpi eq, %263, %267 : vector<24x24xi32>
    %269 = arith.extui %268 : vector<24x24xi1> to vector<24x24xi32>
    %270 = arith.sitofp %269 : vector<24x24xi32> to vector<24x24xf32>
    %271 = arith.truncf %270 : vector<24x24xf32> to vector<24x24xbf16>
    %272 = arith.truncf %209 : vector<24x64xf32> to vector<24x64xbf16>
    %cst_83 = arith.constant dense<0.000000e+00> : vector<24x64xf32>
    %273 = tpu.matmul %271, %272, %cst_83 {dimension_numbers = #tpu.dot_dimension_numbers<[1], [0], [0], [1], [0, 0, 1, 1], [], []>} : vector<24x24xbf16>, vector<24x64xbf16>, vector<24x64xf32> -> vector<24x64xf32>
    %274 = arith.truncf %273 : vector<24x64xf32> to vector<24x64xbf16>
    %275 = tpu.iota {dimensions = array<i32: 0>} : vector<24x24xi32>
    %276 = tpu.iota {dimensions = array<i32: 1>} : vector<24x24xi32>
    %c1_i32_84 = arith.constant 1 : i32
    %277 = vector.broadcast %c1_i32_84 : i32 to vector<24x24xi32>
    %278 = arith.muli %277, %275 : vector<24x24xi32>
    %c1_i32_85 = arith.constant 1 : i32
    %279 = vector.broadcast %c1_i32_85 : i32 to vector<24x24xi32>
    %280 = arith.addi %278, %279 : vector<24x24xi32>
    %281 = arith.cmpi eq, %276, %280 : vector<24x24xi32>
    %282 = arith.extui %281 : vector<24x24xi1> to vector<24x24xi32>
    %283 = arith.sitofp %282 : vector<24x24xi32> to vector<24x24xf32>
    %284 = arith.truncf %283 : vector<24x24xf32> to vector<24x24xbf16>
    %285 = arith.truncf %209 : vector<24x64xf32> to vector<24x64xbf16>
    %cst_86 = arith.constant dense<0.000000e+00> : vector<24x64xf32>
    %286 = tpu.matmul %284, %285, %cst_86 {dimension_numbers = #tpu.dot_dimension_numbers<[1], [0], [0], [1], [0, 0, 1, 1], [], []>} : vector<24x24xbf16>, vector<24x64xbf16>, vector<24x64xf32> -> vector<24x64xf32>
    %287 = arith.truncf %286 : vector<24x64xf32> to vector<24x64xbf16>
    %288 = tpu.iota {dimensions = array<i32: 0>} : vector<24x24xi32>
    %289 = tpu.iota {dimensions = array<i32: 1>} : vector<24x24xi32>
    %c1_i32_87 = arith.constant 1 : i32
    %290 = vector.broadcast %c1_i32_87 : i32 to vector<24x24xi32>
    %291 = arith.muli %290, %288 : vector<24x24xi32>
    %c2_i32_88 = arith.constant 2 : i32
    %292 = vector.broadcast %c2_i32_88 : i32 to vector<24x24xi32>
    %293 = arith.addi %291, %292 : vector<24x24xi32>
    %294 = arith.cmpi eq, %289, %293 : vector<24x24xi32>
    %295 = arith.extui %294 : vector<24x24xi1> to vector<24x24xi32>
    %296 = arith.sitofp %295 : vector<24x24xi32> to vector<24x24xf32>
    %297 = arith.truncf %296 : vector<24x24xf32> to vector<24x24xbf16>
    %298 = arith.truncf %209 : vector<24x64xf32> to vector<24x64xbf16>
    %cst_89 = arith.constant dense<0.000000e+00> : vector<24x64xf32>
    %299 = tpu.matmul %297, %298, %cst_89 {dimension_numbers = #tpu.dot_dimension_numbers<[1], [0], [0], [1], [0, 0, 1, 1], [], []>} : vector<24x24xbf16>, vector<24x64xbf16>, vector<24x64xf32> -> vector<24x64xf32>
    %300 = arith.truncf %299 : vector<24x64xf32> to vector<24x64xbf16>
    %301 = tpu.iota {dimensions = array<i32: 0>} : vector<24x24xi32>
    %302 = tpu.iota {dimensions = array<i32: 1>} : vector<24x24xi32>
    %c1_i32_90 = arith.constant 1 : i32
    %303 = vector.broadcast %c1_i32_90 : i32 to vector<24x24xi32>
    %304 = arith.muli %303, %301 : vector<24x24xi32>
    %c3_i32 = arith.constant 3 : i32
    %305 = vector.broadcast %c3_i32 : i32 to vector<24x24xi32>
    %306 = arith.addi %304, %305 : vector<24x24xi32>
    %307 = arith.cmpi eq, %302, %306 : vector<24x24xi32>
    %308 = arith.extui %307 : vector<24x24xi1> to vector<24x24xi32>
    %309 = arith.sitofp %308 : vector<24x24xi32> to vector<24x24xf32>
    %310 = arith.truncf %309 : vector<24x24xf32> to vector<24x24xbf16>
    %311 = arith.truncf %209 : vector<24x64xf32> to vector<24x64xbf16>
    %cst_91 = arith.constant dense<0.000000e+00> : vector<24x64xf32>
    %312 = tpu.matmul %310, %311, %cst_91 {dimension_numbers = #tpu.dot_dimension_numbers<[1], [0], [0], [1], [0, 0, 1, 1], [], []>} : vector<24x24xbf16>, vector<24x64xbf16>, vector<24x64xf32> -> vector<24x64xf32>
    %313 = arith.truncf %312 : vector<24x64xf32> to vector<24x64xbf16>
    %314 = tpu.concatenate %222, %235, %248, %261, %274, %287, %300, %313 in 1 : vector<24x64xbf16>, vector<24x64xbf16>, vector<24x64xbf16>, vector<24x64xbf16>, vector<24x64xbf16>, vector<24x64xbf16>, vector<24x64xbf16>, vector<24x64xbf16> -> vector<24x512xbf16>
    %c0_92 = arith.constant 0 : index
    %c0_93 = arith.constant 0 : index
    %315 = vector.load %arg13[%c0_92, %c0_93] : memref<512x64xbf16, #tpu.memory_space<vmem>>, vector<512x64xbf16>
    %cst_94 = arith.constant dense<0.000000e+00> : vector<24x64xf32>
    %316 = tpu.matmul %314, %315, %cst_94 {dimension_numbers = #tpu.dot_dimension_numbers<[1], [0], [0], [1], [0, 0, 1, 1], [], []>} : vector<24x512xbf16>, vector<512x64xbf16>, vector<24x64xf32> -> vector<24x64xf32>
    %c0_95 = arith.constant 0 : index
    %c0_96 = arith.constant 0 : index
    %317 = vector.load %arg14[%c0_95, %c0_96] : memref<1x64xf32, #tpu.memory_space<vmem>>, vector<1x64xf32>
    %318 = vector.broadcast %317 : vector<1x64xf32> to vector<24x64xf32>
    %319 = arith.addf %316, %318 : vector<24x64xf32>
    %320 = arith.mulf %319, %319 : vector<24x64xf32>
    %321 = arith.mulf %319, %320 : vector<24x64xf32>
    %cst_97 = arith.constant 4.471500e-02 : f32
    %322 = vector.broadcast %cst_97 : f32 to vector<24x64xf32>
    %323 = arith.mulf %322, %321 : vector<24x64xf32>
    %324 = arith.addf %319, %323 : vector<24x64xf32>
    %cst_98 = arith.constant 0.797884583 : f32
    %325 = vector.broadcast %cst_98 : f32 to vector<24x64xf32>
    %326 = arith.mulf %325, %324 : vector<24x64xf32>
    %327 = math.tanh %326 : vector<24x64xf32>
    %cst_99 = arith.constant 1.000000e+00 : f32
    %328 = vector.broadcast %cst_99 : f32 to vector<24x64xf32>
    %329 = arith.addf %328, %327 : vector<24x64xf32>
    %cst_100 = arith.constant 5.000000e-01 : f32
    %330 = vector.broadcast %cst_100 : f32 to vector<24x64xf32>
    %331 = arith.mulf %330, %329 : vector<24x64xf32>
    %332 = arith.mulf %319, %331 : vector<24x64xf32>
    %333 = arith.addf %203, %332 : vector<24x64xf32>
    %334 = tpu.iota {dimensions = array<i32: 1>} : vector<1x24xi32>
    %335 = vector.broadcast %1 : i32 to vector<1x24xi32>
    %336 = arith.cmpi slt, %334, %335 : vector<1x24xi32>
    %cst_101 = arith.constant 0.000000e+00 : f32
    %cst_102 = arith.constant -1.000000e+04 : f32
    %337 = vector.broadcast %cst_101 : f32 to vector<1x24xf32>
    %338 = vector.broadcast %cst_102 : f32 to vector<1x24xf32>
    %339 = arith.select %336, %337, %338 : vector<1x24xi1>, vector<1x24xf32>
    %340 = arith.truncf %333 : vector<24x64xf32> to vector<24x64xbf16>
    %c0_103 = arith.constant 0 : index
    %c0_104 = arith.constant 0 : index
    %c0_105 = arith.constant 0 : index
    %341 = vector.load %arg15[%c0_103, %c0_104, %c0_105] : memref<2x64x192xbf16, #tpu.memory_space<vmem>>, vector<1x64x192xbf16>
    %342 = vector.shape_cast %341 : vector<1x64x192xbf16> to vector<64x192xbf16>
    %cst_106 = arith.constant dense<0.000000e+00> : vector<24x192xf32>
    %343 = tpu.matmul %340, %342, %cst_106 {dimension_numbers = #tpu.dot_dimension_numbers<[1], [0], [0], [1], [0, 0, 1, 1], [], []>} : vector<24x64xbf16>, vector<64x192xbf16>, vector<24x192xf32> -> vector<24x192xf32>
    %c0_107 = arith.constant 0 : index
    %c0_108 = arith.constant 0 : index
    %c0_109 = arith.constant 0 : index
    %344 = vector.load %arg16[%c0_107, %c0_108, %c0_109] : memref<2x1x192xf32, #tpu.memory_space<vmem>>, vector<1x1x192xf32>
    %345 = vector.shape_cast %344 : vector<1x1x192xf32> to vector<1x192xf32>
    %346 = vector.broadcast %345 : vector<1x192xf32> to vector<24x192xf32>
    %347 = arith.addf %343, %346 : vector<24x192xf32>
    %348 = vector.extract_strided_slice %347 {offsets = [0, 0], sizes = [24, 16], strides = [1, 1]} : vector<24x192xf32> to vector<24x16xf32>
    %349 = arith.truncf %348 : vector<24x16xf32> to vector<24x16xbf16>
    %350 = vector.extract_strided_slice %347 {offsets = [0, 64], sizes = [24, 16], strides = [1, 1]} : vector<24x192xf32> to vector<24x16xf32>
    %351 = arith.truncf %350 : vector<24x16xf32> to vector<24x16xbf16>
    %352 = vector.extract_strided_slice %347 {offsets = [0, 128], sizes = [24, 16], strides = [1, 1]} : vector<24x192xf32> to vector<24x16xf32>
    %353 = arith.truncf %352 : vector<24x16xf32> to vector<24x16xbf16>
    %cst_110 = arith.constant dense<0.000000e+00> : vector<24x24xf32>
    %354 = tpu.matmul %349, %351, %cst_110 {dimension_numbers = #tpu.dot_dimension_numbers<[1], [1], [0], [0], [0, 0, 1, 0], [], []>} : vector<24x16xbf16>, vector<24x16xbf16>, vector<24x24xf32> -> vector<24x24xf32>
    %355 = vector.broadcast %339 : vector<1x24xf32> to vector<24x24xf32>
    %356 = arith.addf %354, %355 : vector<24x24xf32>
    %cst_111 = arith.constant dense<0xFF800000> : vector<24xf32>
    %357 = vector.multi_reduction <maximumf>, %356, %cst_111 [1] : vector<24x24xf32> to vector<24xf32>
    %358 = vector.shape_cast %357 : vector<24xf32> to vector<24x1xf32>
    %359 = vector.broadcast %358 : vector<24x1xf32> to vector<24x24xf32>
    %360 = arith.subf %356, %359 : vector<24x24xf32>
    %361 = math.exp %360 : vector<24x24xf32>
    %cst_112 = arith.constant dense<0.000000e+00> : vector<24xf32>
    %362 = vector.multi_reduction <add>, %361, %cst_112 [1] : vector<24x24xf32> to vector<24xf32>
    %363 = vector.shape_cast %362 : vector<24xf32> to vector<24x1xf32>
    %364 = tpu.reciprocal %363 {approx = true} : vector<24x1xf32> -> vector<24x1xf32>
    %365 = vector.broadcast %364 : vector<24x1xf32> to vector<24x24xf32>
    %366 = arith.mulf %361, %365 : vector<24x24xf32>
    %367 = arith.truncf %366 : vector<24x24xf32> to vector<24x24xbf16>
    %cst_113 = arith.constant dense<0.000000e+00> : vector<24x16xf32>
    %368 = tpu.matmul %367, %353, %cst_113 {dimension_numbers = #tpu.dot_dimension_numbers<[1], [0], [0], [1], [0, 0, 1, 1], [], []>} : vector<24x24xbf16>, vector<24x16xbf16>, vector<24x16xf32> -> vector<24x16xf32>
    %369 = vector.extract_strided_slice %347 {offsets = [0, 16], sizes = [24, 16], strides = [1, 1]} : vector<24x192xf32> to vector<24x16xf32>
    %370 = arith.truncf %369 : vector<24x16xf32> to vector<24x16xbf16>
    %371 = vector.extract_strided_slice %347 {offsets = [0, 80], sizes = [24, 16], strides = [1, 1]} : vector<24x192xf32> to vector<24x16xf32>
    %372 = arith.truncf %371 : vector<24x16xf32> to vector<24x16xbf16>
    %373 = vector.extract_strided_slice %347 {offsets = [0, 144], sizes = [24, 16], strides = [1, 1]} : vector<24x192xf32> to vector<24x16xf32>
    %374 = arith.truncf %373 : vector<24x16xf32> to vector<24x16xbf16>
    %cst_114 = arith.constant dense<0.000000e+00> : vector<24x24xf32>
    %375 = tpu.matmul %370, %372, %cst_114 {dimension_numbers = #tpu.dot_dimension_numbers<[1], [1], [0], [0], [0, 0, 1, 0], [], []>} : vector<24x16xbf16>, vector<24x16xbf16>, vector<24x24xf32> -> vector<24x24xf32>
    %376 = vector.broadcast %339 : vector<1x24xf32> to vector<24x24xf32>
    %377 = arith.addf %375, %376 : vector<24x24xf32>
    %cst_115 = arith.constant dense<0xFF800000> : vector<24xf32>
    %378 = vector.multi_reduction <maximumf>, %377, %cst_115 [1] : vector<24x24xf32> to vector<24xf32>
    %379 = vector.shape_cast %378 : vector<24xf32> to vector<24x1xf32>
    %380 = vector.broadcast %379 : vector<24x1xf32> to vector<24x24xf32>
    %381 = arith.subf %377, %380 : vector<24x24xf32>
    %382 = math.exp %381 : vector<24x24xf32>
    %cst_116 = arith.constant dense<0.000000e+00> : vector<24xf32>
    %383 = vector.multi_reduction <add>, %382, %cst_116 [1] : vector<24x24xf32> to vector<24xf32>
    %384 = vector.shape_cast %383 : vector<24xf32> to vector<24x1xf32>
    %385 = tpu.reciprocal %384 {approx = true} : vector<24x1xf32> -> vector<24x1xf32>
    %386 = vector.broadcast %385 : vector<24x1xf32> to vector<24x24xf32>
    %387 = arith.mulf %382, %386 : vector<24x24xf32>
    %388 = arith.truncf %387 : vector<24x24xf32> to vector<24x24xbf16>
    %cst_117 = arith.constant dense<0.000000e+00> : vector<24x16xf32>
    %389 = tpu.matmul %388, %374, %cst_117 {dimension_numbers = #tpu.dot_dimension_numbers<[1], [0], [0], [1], [0, 0, 1, 1], [], []>} : vector<24x24xbf16>, vector<24x16xbf16>, vector<24x16xf32> -> vector<24x16xf32>
    %390 = vector.extract_strided_slice %347 {offsets = [0, 32], sizes = [24, 16], strides = [1, 1]} : vector<24x192xf32> to vector<24x16xf32>
    %391 = arith.truncf %390 : vector<24x16xf32> to vector<24x16xbf16>
    %392 = vector.extract_strided_slice %347 {offsets = [0, 96], sizes = [24, 16], strides = [1, 1]} : vector<24x192xf32> to vector<24x16xf32>
    %393 = arith.truncf %392 : vector<24x16xf32> to vector<24x16xbf16>
    %394 = vector.extract_strided_slice %347 {offsets = [0, 160], sizes = [24, 16], strides = [1, 1]} : vector<24x192xf32> to vector<24x16xf32>
    %395 = arith.truncf %394 : vector<24x16xf32> to vector<24x16xbf16>
    %cst_118 = arith.constant dense<0.000000e+00> : vector<24x24xf32>
    %396 = tpu.matmul %391, %393, %cst_118 {dimension_numbers = #tpu.dot_dimension_numbers<[1], [1], [0], [0], [0, 0, 1, 0], [], []>} : vector<24x16xbf16>, vector<24x16xbf16>, vector<24x24xf32> -> vector<24x24xf32>
    %397 = vector.broadcast %339 : vector<1x24xf32> to vector<24x24xf32>
    %398 = arith.addf %396, %397 : vector<24x24xf32>
    %cst_119 = arith.constant dense<0xFF800000> : vector<24xf32>
    %399 = vector.multi_reduction <maximumf>, %398, %cst_119 [1] : vector<24x24xf32> to vector<24xf32>
    %400 = vector.shape_cast %399 : vector<24xf32> to vector<24x1xf32>
    %401 = vector.broadcast %400 : vector<24x1xf32> to vector<24x24xf32>
    %402 = arith.subf %398, %401 : vector<24x24xf32>
    %403 = math.exp %402 : vector<24x24xf32>
    %cst_120 = arith.constant dense<0.000000e+00> : vector<24xf32>
    %404 = vector.multi_reduction <add>, %403, %cst_120 [1] : vector<24x24xf32> to vector<24xf32>
    %405 = vector.shape_cast %404 : vector<24xf32> to vector<24x1xf32>
    %406 = tpu.reciprocal %405 {approx = true} : vector<24x1xf32> -> vector<24x1xf32>
    %407 = vector.broadcast %406 : vector<24x1xf32> to vector<24x24xf32>
    %408 = arith.mulf %403, %407 : vector<24x24xf32>
    %409 = arith.truncf %408 : vector<24x24xf32> to vector<24x24xbf16>
    %cst_121 = arith.constant dense<0.000000e+00> : vector<24x16xf32>
    %410 = tpu.matmul %409, %395, %cst_121 {dimension_numbers = #tpu.dot_dimension_numbers<[1], [0], [0], [1], [0, 0, 1, 1], [], []>} : vector<24x24xbf16>, vector<24x16xbf16>, vector<24x16xf32> -> vector<24x16xf32>
    %411 = vector.extract_strided_slice %347 {offsets = [0, 48], sizes = [24, 16], strides = [1, 1]} : vector<24x192xf32> to vector<24x16xf32>
    %412 = arith.truncf %411 : vector<24x16xf32> to vector<24x16xbf16>
    %413 = vector.extract_strided_slice %347 {offsets = [0, 112], sizes = [24, 16], strides = [1, 1]} : vector<24x192xf32> to vector<24x16xf32>
    %414 = arith.truncf %413 : vector<24x16xf32> to vector<24x16xbf16>
    %415 = vector.extract_strided_slice %347 {offsets = [0, 176], sizes = [24, 16], strides = [1, 1]} : vector<24x192xf32> to vector<24x16xf32>
    %416 = arith.truncf %415 : vector<24x16xf32> to vector<24x16xbf16>
    %cst_122 = arith.constant dense<0.000000e+00> : vector<24x24xf32>
    %417 = tpu.matmul %412, %414, %cst_122 {dimension_numbers = #tpu.dot_dimension_numbers<[1], [1], [0], [0], [0, 0, 1, 0], [], []>} : vector<24x16xbf16>, vector<24x16xbf16>, vector<24x24xf32> -> vector<24x24xf32>
    %418 = vector.broadcast %339 : vector<1x24xf32> to vector<24x24xf32>
    %419 = arith.addf %417, %418 : vector<24x24xf32>
    %cst_123 = arith.constant dense<0xFF800000> : vector<24xf32>
    %420 = vector.multi_reduction <maximumf>, %419, %cst_123 [1] : vector<24x24xf32> to vector<24xf32>
    %421 = vector.shape_cast %420 : vector<24xf32> to vector<24x1xf32>
    %422 = vector.broadcast %421 : vector<24x1xf32> to vector<24x24xf32>
    %423 = arith.subf %419, %422 : vector<24x24xf32>
    %424 = math.exp %423 : vector<24x24xf32>
    %cst_124 = arith.constant dense<0.000000e+00> : vector<24xf32>
    %425 = vector.multi_reduction <add>, %424, %cst_124 [1] : vector<24x24xf32> to vector<24xf32>
    %426 = vector.shape_cast %425 : vector<24xf32> to vector<24x1xf32>
    %427 = tpu.reciprocal %426 {approx = true} : vector<24x1xf32> -> vector<24x1xf32>
    %428 = vector.broadcast %427 : vector<24x1xf32> to vector<24x24xf32>
    %429 = arith.mulf %424, %428 : vector<24x24xf32>
    %430 = arith.truncf %429 : vector<24x24xf32> to vector<24x24xbf16>
    %cst_125 = arith.constant dense<0.000000e+00> : vector<24x16xf32>
    %431 = tpu.matmul %430, %416, %cst_125 {dimension_numbers = #tpu.dot_dimension_numbers<[1], [0], [0], [1], [0, 0, 1, 1], [], []>} : vector<24x24xbf16>, vector<24x16xbf16>, vector<24x16xf32> -> vector<24x16xf32>
    %432 = tpu.concatenate %368, %389, %410, %431 in 1 : vector<24x16xf32>, vector<24x16xf32>, vector<24x16xf32>, vector<24x16xf32> -> vector<24x64xf32>
    %433 = arith.truncf %432 : vector<24x64xf32> to vector<24x64xbf16>
    %c0_126 = arith.constant 0 : index
    %c0_127 = arith.constant 0 : index
    %c0_128 = arith.constant 0 : index
    %434 = vector.load %arg17[%c0_126, %c0_127, %c0_128] : memref<2x64x64xbf16, #tpu.memory_space<vmem>>, vector<1x64x64xbf16>
    %435 = vector.shape_cast %434 : vector<1x64x64xbf16> to vector<64x64xbf16>
    %cst_129 = arith.constant dense<0.000000e+00> : vector<24x64xf32>
    %436 = tpu.matmul %433, %435, %cst_129 {dimension_numbers = #tpu.dot_dimension_numbers<[1], [0], [0], [1], [0, 0, 1, 1], [], []>} : vector<24x64xbf16>, vector<64x64xbf16>, vector<24x64xf32> -> vector<24x64xf32>
    %c0_130 = arith.constant 0 : index
    %c0_131 = arith.constant 0 : index
    %c0_132 = arith.constant 0 : index
    %437 = vector.load %arg18[%c0_130, %c0_131, %c0_132] : memref<2x1x64xf32, #tpu.memory_space<vmem>>, vector<1x1x64xf32>
    %438 = vector.shape_cast %437 : vector<1x1x64xf32> to vector<1x64xf32>
    %439 = vector.broadcast %438 : vector<1x64xf32> to vector<24x64xf32>
    %440 = arith.addf %436, %439 : vector<24x64xf32>
    %441 = arith.addf %333, %440 : vector<24x64xf32>
    %c0_133 = arith.constant 0 : index
    %c0_134 = arith.constant 0 : index
    %c0_135 = arith.constant 0 : index
    %442 = vector.load %arg19[%c0_133, %c0_134, %c0_135] : memref<2x1x64xf32, #tpu.memory_space<vmem>>, vector<1x1x64xf32>
    %443 = vector.shape_cast %442 : vector<1x1x64xf32> to vector<1x64xf32>
    %c0_136 = arith.constant 0 : index
    %c0_137 = arith.constant 0 : index
    %c0_138 = arith.constant 0 : index
    %444 = vector.load %arg20[%c0_136, %c0_137, %c0_138] : memref<2x1x64xf32, #tpu.memory_space<vmem>>, vector<1x1x64xf32>
    %445 = vector.shape_cast %444 : vector<1x1x64xf32> to vector<1x64xf32>
    %cst_139 = arith.constant dense<0.000000e+00> : vector<24xf32>
    %446 = vector.multi_reduction <add>, %441, %cst_139 [1] : vector<24x64xf32> to vector<24xf32>
    %447 = vector.shape_cast %446 : vector<24xf32> to vector<24x1xf32>
    %cst_140 = arith.constant 6.400000e+01 : f32
    %448 = vector.broadcast %cst_140 : f32 to vector<24x1xf32>
    %449 = arith.divf %447, %448 : vector<24x1xf32>
    %450 = vector.broadcast %449 : vector<24x1xf32> to vector<24x64xf32>
    %451 = arith.subf %441, %450 : vector<24x64xf32>
    %452 = arith.mulf %451, %451 : vector<24x64xf32>
    %cst_141 = arith.constant dense<0.000000e+00> : vector<24xf32>
    %453 = vector.multi_reduction <add>, %452, %cst_141 [1] : vector<24x64xf32> to vector<24xf32>
    %454 = vector.shape_cast %453 : vector<24xf32> to vector<24x1xf32>
    %cst_142 = arith.constant 6.400000e+01 : f32
    %455 = vector.broadcast %cst_142 : f32 to vector<24x1xf32>
    %456 = arith.divf %454, %455 : vector<24x1xf32>
    %457 = vector.broadcast %449 : vector<24x1xf32> to vector<24x64xf32>
    %458 = arith.subf %441, %457 : vector<24x64xf32>
    %cst_143 = arith.constant 9.99999974E-6 : f32
    %459 = vector.broadcast %cst_143 : f32 to vector<24x1xf32>
    %460 = arith.addf %456, %459 : vector<24x1xf32>
    %461 = math.rsqrt %460 : vector<24x1xf32>
    %462 = vector.broadcast %461 : vector<24x1xf32> to vector<24x64xf32>
    %463 = arith.mulf %458, %462 : vector<24x64xf32>
    %464 = vector.broadcast %443 : vector<1x64xf32> to vector<24x64xf32>
    %465 = arith.mulf %463, %464 : vector<24x64xf32>
    %466 = vector.broadcast %445 : vector<1x64xf32> to vector<24x64xf32>
    %467 = arith.addf %465, %466 : vector<24x64xf32>
    %468 = arith.truncf %467 : vector<24x64xf32> to vector<24x64xbf16>
    %c0_144 = arith.constant 0 : index
    %c0_145 = arith.constant 0 : index
    %c0_146 = arith.constant 0 : index
    %469 = vector.load %arg21[%c0_144, %c0_145, %c0_146] : memref<2x64x128xbf16, #tpu.memory_space<vmem>>, vector<1x64x128xbf16>
    %470 = vector.shape_cast %469 : vector<1x64x128xbf16> to vector<64x128xbf16>
    %cst_147 = arith.constant dense<0.000000e+00> : vector<24x128xf32>
    %471 = tpu.matmul %468, %470, %cst_147 {dimension_numbers = #tpu.dot_dimension_numbers<[1], [0], [0], [1], [0, 0, 1, 1], [], []>} : vector<24x64xbf16>, vector<64x128xbf16>, vector<24x128xf32> -> vector<24x128xf32>
    %c0_148 = arith.constant 0 : index
    %c0_149 = arith.constant 0 : index
    %c0_150 = arith.constant 0 : index
    %472 = vector.load %arg22[%c0_148, %c0_149, %c0_150] : memref<2x1x128xf32, #tpu.memory_space<vmem>>, vector<1x1x128xf32>
    %473 = vector.shape_cast %472 : vector<1x1x128xf32> to vector<1x128xf32>
    %474 = vector.broadcast %473 : vector<1x128xf32> to vector<24x128xf32>
    %475 = arith.addf %471, %474 : vector<24x128xf32>
    %476 = arith.mulf %475, %475 : vector<24x128xf32>
    %477 = arith.mulf %475, %476 : vector<24x128xf32>
    %cst_151 = arith.constant 4.471500e-02 : f32
    %478 = vector.broadcast %cst_151 : f32 to vector<24x128xf32>
    %479 = arith.mulf %478, %477 : vector<24x128xf32>
    %480 = arith.addf %475, %479 : vector<24x128xf32>
    %cst_152 = arith.constant 0.797884583 : f32
    %481 = vector.broadcast %cst_152 : f32 to vector<24x128xf32>
    %482 = arith.mulf %481, %480 : vector<24x128xf32>
    %483 = math.tanh %482 : vector<24x128xf32>
    %cst_153 = arith.constant 1.000000e+00 : f32
    %484 = vector.broadcast %cst_153 : f32 to vector<24x128xf32>
    %485 = arith.addf %484, %483 : vector<24x128xf32>
    %cst_154 = arith.constant 5.000000e-01 : f32
    %486 = vector.broadcast %cst_154 : f32 to vector<24x128xf32>
    %487 = arith.mulf %486, %485 : vector<24x128xf32>
    %488 = arith.mulf %475, %487 : vector<24x128xf32>
    %489 = arith.truncf %488 : vector<24x128xf32> to vector<24x128xbf16>
    %c0_155 = arith.constant 0 : index
    %c0_156 = arith.constant 0 : index
    %c0_157 = arith.constant 0 : index
    %490 = vector.load %arg23[%c0_155, %c0_156, %c0_157] : memref<2x128x64xbf16, #tpu.memory_space<vmem>>, vector<1x128x64xbf16>
    %491 = vector.shape_cast %490 : vector<1x128x64xbf16> to vector<128x64xbf16>
    %cst_158 = arith.constant dense<0.000000e+00> : vector<24x64xf32>
    %492 = tpu.matmul %489, %491, %cst_158 {dimension_numbers = #tpu.dot_dimension_numbers<[1], [0], [0], [1], [0, 0, 1, 1], [], []>} : vector<24x128xbf16>, vector<128x64xbf16>, vector<24x64xf32> -> vector<24x64xf32>
    %c0_159 = arith.constant 0 : index
    %c0_160 = arith.constant 0 : index
    %c0_161 = arith.constant 0 : index
    %493 = vector.load %arg24[%c0_159, %c0_160, %c0_161] : memref<2x1x64xf32, #tpu.memory_space<vmem>>, vector<1x1x64xf32>
    %494 = vector.shape_cast %493 : vector<1x1x64xf32> to vector<1x64xf32>
    %495 = vector.broadcast %494 : vector<1x64xf32> to vector<24x64xf32>
    %496 = arith.addf %492, %495 : vector<24x64xf32>
    %497 = arith.addf %467, %496 : vector<24x64xf32>
    %c0_162 = arith.constant 0 : index
    %c0_163 = arith.constant 0 : index
    %c0_164 = arith.constant 0 : index
    %498 = vector.load %arg25[%c0_162, %c0_163, %c0_164] : memref<2x1x64xf32, #tpu.memory_space<vmem>>, vector<1x1x64xf32>
    %499 = vector.shape_cast %498 : vector<1x1x64xf32> to vector<1x64xf32>
    %c0_165 = arith.constant 0 : index
    %c0_166 = arith.constant 0 : index
    %c0_167 = arith.constant 0 : index
    %500 = vector.load %arg26[%c0_165, %c0_166, %c0_167] : memref<2x1x64xf32, #tpu.memory_space<vmem>>, vector<1x1x64xf32>
    %501 = vector.shape_cast %500 : vector<1x1x64xf32> to vector<1x64xf32>
    %cst_168 = arith.constant dense<0.000000e+00> : vector<24xf32>
    %502 = vector.multi_reduction <add>, %497, %cst_168 [1] : vector<24x64xf32> to vector<24xf32>
    %503 = vector.shape_cast %502 : vector<24xf32> to vector<24x1xf32>
    %cst_169 = arith.constant 6.400000e+01 : f32
    %504 = vector.broadcast %cst_169 : f32 to vector<24x1xf32>
    %505 = arith.divf %503, %504 : vector<24x1xf32>
    %506 = vector.broadcast %505 : vector<24x1xf32> to vector<24x64xf32>
    %507 = arith.subf %497, %506 : vector<24x64xf32>
    %508 = arith.mulf %507, %507 : vector<24x64xf32>
    %cst_170 = arith.constant dense<0.000000e+00> : vector<24xf32>
    %509 = vector.multi_reduction <add>, %508, %cst_170 [1] : vector<24x64xf32> to vector<24xf32>
    %510 = vector.shape_cast %509 : vector<24xf32> to vector<24x1xf32>
    %cst_171 = arith.constant 6.400000e+01 : f32
    %511 = vector.broadcast %cst_171 : f32 to vector<24x1xf32>
    %512 = arith.divf %510, %511 : vector<24x1xf32>
    %513 = vector.broadcast %505 : vector<24x1xf32> to vector<24x64xf32>
    %514 = arith.subf %497, %513 : vector<24x64xf32>
    %cst_172 = arith.constant 9.99999974E-6 : f32
    %515 = vector.broadcast %cst_172 : f32 to vector<24x1xf32>
    %516 = arith.addf %512, %515 : vector<24x1xf32>
    %517 = math.rsqrt %516 : vector<24x1xf32>
    %518 = vector.broadcast %517 : vector<24x1xf32> to vector<24x64xf32>
    %519 = arith.mulf %514, %518 : vector<24x64xf32>
    %520 = vector.broadcast %499 : vector<1x64xf32> to vector<24x64xf32>
    %521 = arith.mulf %519, %520 : vector<24x64xf32>
    %522 = vector.broadcast %501 : vector<1x64xf32> to vector<24x64xf32>
    %523 = arith.addf %521, %522 : vector<24x64xf32>
    %524 = arith.truncf %523 : vector<24x64xf32> to vector<24x64xbf16>
    %c1 = arith.constant 1 : index
    %c0_173 = arith.constant 0 : index
    %c0_174 = arith.constant 0 : index
    %525 = vector.load %arg15[%c1, %c0_173, %c0_174] : memref<2x64x192xbf16, #tpu.memory_space<vmem>>, vector<1x64x192xbf16>
    %526 = vector.shape_cast %525 : vector<1x64x192xbf16> to vector<64x192xbf16>
    %cst_175 = arith.constant dense<0.000000e+00> : vector<24x192xf32>
    %527 = tpu.matmul %524, %526, %cst_175 {dimension_numbers = #tpu.dot_dimension_numbers<[1], [0], [0], [1], [0, 0, 1, 1], [], []>} : vector<24x64xbf16>, vector<64x192xbf16>, vector<24x192xf32> -> vector<24x192xf32>
    %c1_176 = arith.constant 1 : index
    %c0_177 = arith.constant 0 : index
    %c0_178 = arith.constant 0 : index
    %528 = vector.load %arg16[%c1_176, %c0_177, %c0_178] : memref<2x1x192xf32, #tpu.memory_space<vmem>>, vector<1x1x192xf32>
    %529 = vector.shape_cast %528 : vector<1x1x192xf32> to vector<1x192xf32>
    %530 = vector.broadcast %529 : vector<1x192xf32> to vector<24x192xf32>
    %531 = arith.addf %527, %530 : vector<24x192xf32>
    %532 = vector.extract_strided_slice %531 {offsets = [0, 0], sizes = [24, 16], strides = [1, 1]} : vector<24x192xf32> to vector<24x16xf32>
    %533 = arith.truncf %532 : vector<24x16xf32> to vector<24x16xbf16>
    %534 = vector.extract_strided_slice %531 {offsets = [0, 64], sizes = [24, 16], strides = [1, 1]} : vector<24x192xf32> to vector<24x16xf32>
    %535 = arith.truncf %534 : vector<24x16xf32> to vector<24x16xbf16>
    %536 = vector.extract_strided_slice %531 {offsets = [0, 128], sizes = [24, 16], strides = [1, 1]} : vector<24x192xf32> to vector<24x16xf32>
    %537 = arith.truncf %536 : vector<24x16xf32> to vector<24x16xbf16>
    %cst_179 = arith.constant dense<0.000000e+00> : vector<24x24xf32>
    %538 = tpu.matmul %533, %535, %cst_179 {dimension_numbers = #tpu.dot_dimension_numbers<[1], [1], [0], [0], [0, 0, 1, 0], [], []>} : vector<24x16xbf16>, vector<24x16xbf16>, vector<24x24xf32> -> vector<24x24xf32>
    %539 = vector.broadcast %339 : vector<1x24xf32> to vector<24x24xf32>
    %540 = arith.addf %538, %539 : vector<24x24xf32>
    %cst_180 = arith.constant dense<0xFF800000> : vector<24xf32>
    %541 = vector.multi_reduction <maximumf>, %540, %cst_180 [1] : vector<24x24xf32> to vector<24xf32>
    %542 = vector.shape_cast %541 : vector<24xf32> to vector<24x1xf32>
    %543 = vector.broadcast %542 : vector<24x1xf32> to vector<24x24xf32>
    %544 = arith.subf %540, %543 : vector<24x24xf32>
    %545 = math.exp %544 : vector<24x24xf32>
    %cst_181 = arith.constant dense<0.000000e+00> : vector<24xf32>
    %546 = vector.multi_reduction <add>, %545, %cst_181 [1] : vector<24x24xf32> to vector<24xf32>
    %547 = vector.shape_cast %546 : vector<24xf32> to vector<24x1xf32>
    %548 = tpu.reciprocal %547 {approx = true} : vector<24x1xf32> -> vector<24x1xf32>
    %549 = vector.broadcast %548 : vector<24x1xf32> to vector<24x24xf32>
    %550 = arith.mulf %545, %549 : vector<24x24xf32>
    %551 = arith.truncf %550 : vector<24x24xf32> to vector<24x24xbf16>
    %cst_182 = arith.constant dense<0.000000e+00> : vector<24x16xf32>
    %552 = tpu.matmul %551, %537, %cst_182 {dimension_numbers = #tpu.dot_dimension_numbers<[1], [0], [0], [1], [0, 0, 1, 1], [], []>} : vector<24x24xbf16>, vector<24x16xbf16>, vector<24x16xf32> -> vector<24x16xf32>
    %553 = vector.extract_strided_slice %531 {offsets = [0, 16], sizes = [24, 16], strides = [1, 1]} : vector<24x192xf32> to vector<24x16xf32>
    %554 = arith.truncf %553 : vector<24x16xf32> to vector<24x16xbf16>
    %555 = vector.extract_strided_slice %531 {offsets = [0, 80], sizes = [24, 16], strides = [1, 1]} : vector<24x192xf32> to vector<24x16xf32>
    %556 = arith.truncf %555 : vector<24x16xf32> to vector<24x16xbf16>
    %557 = vector.extract_strided_slice %531 {offsets = [0, 144], sizes = [24, 16], strides = [1, 1]} : vector<24x192xf32> to vector<24x16xf32>
    %558 = arith.truncf %557 : vector<24x16xf32> to vector<24x16xbf16>
    %cst_183 = arith.constant dense<0.000000e+00> : vector<24x24xf32>
    %559 = tpu.matmul %554, %556, %cst_183 {dimension_numbers = #tpu.dot_dimension_numbers<[1], [1], [0], [0], [0, 0, 1, 0], [], []>} : vector<24x16xbf16>, vector<24x16xbf16>, vector<24x24xf32> -> vector<24x24xf32>
    %560 = vector.broadcast %339 : vector<1x24xf32> to vector<24x24xf32>
    %561 = arith.addf %559, %560 : vector<24x24xf32>
    %cst_184 = arith.constant dense<0xFF800000> : vector<24xf32>
    %562 = vector.multi_reduction <maximumf>, %561, %cst_184 [1] : vector<24x24xf32> to vector<24xf32>
    %563 = vector.shape_cast %562 : vector<24xf32> to vector<24x1xf32>
    %564 = vector.broadcast %563 : vector<24x1xf32> to vector<24x24xf32>
    %565 = arith.subf %561, %564 : vector<24x24xf32>
    %566 = math.exp %565 : vector<24x24xf32>
    %cst_185 = arith.constant dense<0.000000e+00> : vector<24xf32>
    %567 = vector.multi_reduction <add>, %566, %cst_185 [1] : vector<24x24xf32> to vector<24xf32>
    %568 = vector.shape_cast %567 : vector<24xf32> to vector<24x1xf32>
    %569 = tpu.reciprocal %568 {approx = true} : vector<24x1xf32> -> vector<24x1xf32>
    %570 = vector.broadcast %569 : vector<24x1xf32> to vector<24x24xf32>
    %571 = arith.mulf %566, %570 : vector<24x24xf32>
    %572 = arith.truncf %571 : vector<24x24xf32> to vector<24x24xbf16>
    %cst_186 = arith.constant dense<0.000000e+00> : vector<24x16xf32>
    %573 = tpu.matmul %572, %558, %cst_186 {dimension_numbers = #tpu.dot_dimension_numbers<[1], [0], [0], [1], [0, 0, 1, 1], [], []>} : vector<24x24xbf16>, vector<24x16xbf16>, vector<24x16xf32> -> vector<24x16xf32>
    %574 = vector.extract_strided_slice %531 {offsets = [0, 32], sizes = [24, 16], strides = [1, 1]} : vector<24x192xf32> to vector<24x16xf32>
    %575 = arith.truncf %574 : vector<24x16xf32> to vector<24x16xbf16>
    %576 = vector.extract_strided_slice %531 {offsets = [0, 96], sizes = [24, 16], strides = [1, 1]} : vector<24x192xf32> to vector<24x16xf32>
    %577 = arith.truncf %576 : vector<24x16xf32> to vector<24x16xbf16>
    %578 = vector.extract_strided_slice %531 {offsets = [0, 160], sizes = [24, 16], strides = [1, 1]} : vector<24x192xf32> to vector<24x16xf32>
    %579 = arith.truncf %578 : vector<24x16xf32> to vector<24x16xbf16>
    %cst_187 = arith.constant dense<0.000000e+00> : vector<24x24xf32>
    %580 = tpu.matmul %575, %577, %cst_187 {dimension_numbers = #tpu.dot_dimension_numbers<[1], [1], [0], [0], [0, 0, 1, 0], [], []>} : vector<24x16xbf16>, vector<24x16xbf16>, vector<24x24xf32> -> vector<24x24xf32>
    %581 = vector.broadcast %339 : vector<1x24xf32> to vector<24x24xf32>
    %582 = arith.addf %580, %581 : vector<24x24xf32>
    %cst_188 = arith.constant dense<0xFF800000> : vector<24xf32>
    %583 = vector.multi_reduction <maximumf>, %582, %cst_188 [1] : vector<24x24xf32> to vector<24xf32>
    %584 = vector.shape_cast %583 : vector<24xf32> to vector<24x1xf32>
    %585 = vector.broadcast %584 : vector<24x1xf32> to vector<24x24xf32>
    %586 = arith.subf %582, %585 : vector<24x24xf32>
    %587 = math.exp %586 : vector<24x24xf32>
    %cst_189 = arith.constant dense<0.000000e+00> : vector<24xf32>
    %588 = vector.multi_reduction <add>, %587, %cst_189 [1] : vector<24x24xf32> to vector<24xf32>
    %589 = vector.shape_cast %588 : vector<24xf32> to vector<24x1xf32>
    %590 = tpu.reciprocal %589 {approx = true} : vector<24x1xf32> -> vector<24x1xf32>
    %591 = vector.broadcast %590 : vector<24x1xf32> to vector<24x24xf32>
    %592 = arith.mulf %587, %591 : vector<24x24xf32>
    %593 = arith.truncf %592 : vector<24x24xf32> to vector<24x24xbf16>
    %cst_190 = arith.constant dense<0.000000e+00> : vector<24x16xf32>
    %594 = tpu.matmul %593, %579, %cst_190 {dimension_numbers = #tpu.dot_dimension_numbers<[1], [0], [0], [1], [0, 0, 1, 1], [], []>} : vector<24x24xbf16>, vector<24x16xbf16>, vector<24x16xf32> -> vector<24x16xf32>
    %595 = vector.extract_strided_slice %531 {offsets = [0, 48], sizes = [24, 16], strides = [1, 1]} : vector<24x192xf32> to vector<24x16xf32>
    %596 = arith.truncf %595 : vector<24x16xf32> to vector<24x16xbf16>
    %597 = vector.extract_strided_slice %531 {offsets = [0, 112], sizes = [24, 16], strides = [1, 1]} : vector<24x192xf32> to vector<24x16xf32>
    %598 = arith.truncf %597 : vector<24x16xf32> to vector<24x16xbf16>
    %599 = vector.extract_strided_slice %531 {offsets = [0, 176], sizes = [24, 16], strides = [1, 1]} : vector<24x192xf32> to vector<24x16xf32>
    %600 = arith.truncf %599 : vector<24x16xf32> to vector<24x16xbf16>
    %cst_191 = arith.constant dense<0.000000e+00> : vector<24x24xf32>
    %601 = tpu.matmul %596, %598, %cst_191 {dimension_numbers = #tpu.dot_dimension_numbers<[1], [1], [0], [0], [0, 0, 1, 0], [], []>} : vector<24x16xbf16>, vector<24x16xbf16>, vector<24x24xf32> -> vector<24x24xf32>
    %602 = vector.broadcast %339 : vector<1x24xf32> to vector<24x24xf32>
    %603 = arith.addf %601, %602 : vector<24x24xf32>
    %cst_192 = arith.constant dense<0xFF800000> : vector<24xf32>
    %604 = vector.multi_reduction <maximumf>, %603, %cst_192 [1] : vector<24x24xf32> to vector<24xf32>
    %605 = vector.shape_cast %604 : vector<24xf32> to vector<24x1xf32>
    %606 = vector.broadcast %605 : vector<24x1xf32> to vector<24x24xf32>
    %607 = arith.subf %603, %606 : vector<24x24xf32>
    %608 = math.exp %607 : vector<24x24xf32>
    %cst_193 = arith.constant dense<0.000000e+00> : vector<24xf32>
    %609 = vector.multi_reduction <add>, %608, %cst_193 [1] : vector<24x24xf32> to vector<24xf32>
    %610 = vector.shape_cast %609 : vector<24xf32> to vector<24x1xf32>
    %611 = tpu.reciprocal %610 {approx = true} : vector<24x1xf32> -> vector<24x1xf32>
    %612 = vector.broadcast %611 : vector<24x1xf32> to vector<24x24xf32>
    %613 = arith.mulf %608, %612 : vector<24x24xf32>
    %614 = arith.truncf %613 : vector<24x24xf32> to vector<24x24xbf16>
    %cst_194 = arith.constant dense<0.000000e+00> : vector<24x16xf32>
    %615 = tpu.matmul %614, %600, %cst_194 {dimension_numbers = #tpu.dot_dimension_numbers<[1], [0], [0], [1], [0, 0, 1, 1], [], []>} : vector<24x24xbf16>, vector<24x16xbf16>, vector<24x16xf32> -> vector<24x16xf32>
    %616 = tpu.concatenate %552, %573, %594, %615 in 1 : vector<24x16xf32>, vector<24x16xf32>, vector<24x16xf32>, vector<24x16xf32> -> vector<24x64xf32>
    %617 = arith.truncf %616 : vector<24x64xf32> to vector<24x64xbf16>
    %c1_195 = arith.constant 1 : index
    %c0_196 = arith.constant 0 : index
    %c0_197 = arith.constant 0 : index
    %618 = vector.load %arg17[%c1_195, %c0_196, %c0_197] : memref<2x64x64xbf16, #tpu.memory_space<vmem>>, vector<1x64x64xbf16>
    %619 = vector.shape_cast %618 : vector<1x64x64xbf16> to vector<64x64xbf16>
    %cst_198 = arith.constant dense<0.000000e+00> : vector<24x64xf32>
    %620 = tpu.matmul %617, %619, %cst_198 {dimension_numbers = #tpu.dot_dimension_numbers<[1], [0], [0], [1], [0, 0, 1, 1], [], []>} : vector<24x64xbf16>, vector<64x64xbf16>, vector<24x64xf32> -> vector<24x64xf32>
    %c1_199 = arith.constant 1 : index
    %c0_200 = arith.constant 0 : index
    %c0_201 = arith.constant 0 : index
    %621 = vector.load %arg18[%c1_199, %c0_200, %c0_201] : memref<2x1x64xf32, #tpu.memory_space<vmem>>, vector<1x1x64xf32>
    %622 = vector.shape_cast %621 : vector<1x1x64xf32> to vector<1x64xf32>
    %623 = vector.broadcast %622 : vector<1x64xf32> to vector<24x64xf32>
    %624 = arith.addf %620, %623 : vector<24x64xf32>
    %625 = arith.addf %523, %624 : vector<24x64xf32>
    %c1_202 = arith.constant 1 : index
    %c0_203 = arith.constant 0 : index
    %c0_204 = arith.constant 0 : index
    %626 = vector.load %arg19[%c1_202, %c0_203, %c0_204] : memref<2x1x64xf32, #tpu.memory_space<vmem>>, vector<1x1x64xf32>
    %627 = vector.shape_cast %626 : vector<1x1x64xf32> to vector<1x64xf32>
    %c1_205 = arith.constant 1 : index
    %c0_206 = arith.constant 0 : index
    %c0_207 = arith.constant 0 : index
    %628 = vector.load %arg20[%c1_205, %c0_206, %c0_207] : memref<2x1x64xf32, #tpu.memory_space<vmem>>, vector<1x1x64xf32>
    %629 = vector.shape_cast %628 : vector<1x1x64xf32> to vector<1x64xf32>
    %cst_208 = arith.constant dense<0.000000e+00> : vector<24xf32>
    %630 = vector.multi_reduction <add>, %625, %cst_208 [1] : vector<24x64xf32> to vector<24xf32>
    %631 = vector.shape_cast %630 : vector<24xf32> to vector<24x1xf32>
    %cst_209 = arith.constant 6.400000e+01 : f32
    %632 = vector.broadcast %cst_209 : f32 to vector<24x1xf32>
    %633 = arith.divf %631, %632 : vector<24x1xf32>
    %634 = vector.broadcast %633 : vector<24x1xf32> to vector<24x64xf32>
    %635 = arith.subf %625, %634 : vector<24x64xf32>
    %636 = arith.mulf %635, %635 : vector<24x64xf32>
    %cst_210 = arith.constant dense<0.000000e+00> : vector<24xf32>
    %637 = vector.multi_reduction <add>, %636, %cst_210 [1] : vector<24x64xf32> to vector<24xf32>
    %638 = vector.shape_cast %637 : vector<24xf32> to vector<24x1xf32>
    %cst_211 = arith.constant 6.400000e+01 : f32
    %639 = vector.broadcast %cst_211 : f32 to vector<24x1xf32>
    %640 = arith.divf %638, %639 : vector<24x1xf32>
    %641 = vector.broadcast %633 : vector<24x1xf32> to vector<24x64xf32>
    %642 = arith.subf %625, %641 : vector<24x64xf32>
    %cst_212 = arith.constant 9.99999974E-6 : f32
    %643 = vector.broadcast %cst_212 : f32 to vector<24x1xf32>
    %644 = arith.addf %640, %643 : vector<24x1xf32>
    %645 = math.rsqrt %644 : vector<24x1xf32>
    %646 = vector.broadcast %645 : vector<24x1xf32> to vector<24x64xf32>
    %647 = arith.mulf %642, %646 : vector<24x64xf32>
    %648 = vector.broadcast %627 : vector<1x64xf32> to vector<24x64xf32>
    %649 = arith.mulf %647, %648 : vector<24x64xf32>
    %650 = vector.broadcast %629 : vector<1x64xf32> to vector<24x64xf32>
    %651 = arith.addf %649, %650 : vector<24x64xf32>
    %652 = arith.truncf %651 : vector<24x64xf32> to vector<24x64xbf16>
    %c1_213 = arith.constant 1 : index
    %c0_214 = arith.constant 0 : index
    %c0_215 = arith.constant 0 : index
    %653 = vector.load %arg21[%c1_213, %c0_214, %c0_215] : memref<2x64x128xbf16, #tpu.memory_space<vmem>>, vector<1x64x128xbf16>
    %654 = vector.shape_cast %653 : vector<1x64x128xbf16> to vector<64x128xbf16>
    %cst_216 = arith.constant dense<0.000000e+00> : vector<24x128xf32>
    %655 = tpu.matmul %652, %654, %cst_216 {dimension_numbers = #tpu.dot_dimension_numbers<[1], [0], [0], [1], [0, 0, 1, 1], [], []>} : vector<24x64xbf16>, vector<64x128xbf16>, vector<24x128xf32> -> vector<24x128xf32>
    %c1_217 = arith.constant 1 : index
    %c0_218 = arith.constant 0 : index
    %c0_219 = arith.constant 0 : index
    %656 = vector.load %arg22[%c1_217, %c0_218, %c0_219] : memref<2x1x128xf32, #tpu.memory_space<vmem>>, vector<1x1x128xf32>
    %657 = vector.shape_cast %656 : vector<1x1x128xf32> to vector<1x128xf32>
    %658 = vector.broadcast %657 : vector<1x128xf32> to vector<24x128xf32>
    %659 = arith.addf %655, %658 : vector<24x128xf32>
    %660 = arith.mulf %659, %659 : vector<24x128xf32>
    %661 = arith.mulf %659, %660 : vector<24x128xf32>
    %cst_220 = arith.constant 4.471500e-02 : f32
    %662 = vector.broadcast %cst_220 : f32 to vector<24x128xf32>
    %663 = arith.mulf %662, %661 : vector<24x128xf32>
    %664 = arith.addf %659, %663 : vector<24x128xf32>
    %cst_221 = arith.constant 0.797884583 : f32
    %665 = vector.broadcast %cst_221 : f32 to vector<24x128xf32>
    %666 = arith.mulf %665, %664 : vector<24x128xf32>
    %667 = math.tanh %666 : vector<24x128xf32>
    %cst_222 = arith.constant 1.000000e+00 : f32
    %668 = vector.broadcast %cst_222 : f32 to vector<24x128xf32>
    %669 = arith.addf %668, %667 : vector<24x128xf32>
    %cst_223 = arith.constant 5.000000e-01 : f32
    %670 = vector.broadcast %cst_223 : f32 to vector<24x128xf32>
    %671 = arith.mulf %670, %669 : vector<24x128xf32>
    %672 = arith.mulf %659, %671 : vector<24x128xf32>
    %673 = arith.truncf %672 : vector<24x128xf32> to vector<24x128xbf16>
    %c1_224 = arith.constant 1 : index
    %c0_225 = arith.constant 0 : index
    %c0_226 = arith.constant 0 : index
    %674 = vector.load %arg23[%c1_224, %c0_225, %c0_226] : memref<2x128x64xbf16, #tpu.memory_space<vmem>>, vector<1x128x64xbf16>
    %675 = vector.shape_cast %674 : vector<1x128x64xbf16> to vector<128x64xbf16>
    %cst_227 = arith.constant dense<0.000000e+00> : vector<24x64xf32>
    %676 = tpu.matmul %673, %675, %cst_227 {dimension_numbers = #tpu.dot_dimension_numbers<[1], [0], [0], [1], [0, 0, 1, 1], [], []>} : vector<24x128xbf16>, vector<128x64xbf16>, vector<24x64xf32> -> vector<24x64xf32>
    %c1_228 = arith.constant 1 : index
    %c0_229 = arith.constant 0 : index
    %c0_230 = arith.constant 0 : index
    %677 = vector.load %arg24[%c1_228, %c0_229, %c0_230] : memref<2x1x64xf32, #tpu.memory_space<vmem>>, vector<1x1x64xf32>
    %678 = vector.shape_cast %677 : vector<1x1x64xf32> to vector<1x64xf32>
    %679 = vector.broadcast %678 : vector<1x64xf32> to vector<24x64xf32>
    %680 = arith.addf %676, %679 : vector<24x64xf32>
    %681 = arith.addf %651, %680 : vector<24x64xf32>
    %c1_231 = arith.constant 1 : index
    %c0_232 = arith.constant 0 : index
    %c0_233 = arith.constant 0 : index
    %682 = vector.load %arg25[%c1_231, %c0_232, %c0_233] : memref<2x1x64xf32, #tpu.memory_space<vmem>>, vector<1x1x64xf32>
    %683 = vector.shape_cast %682 : vector<1x1x64xf32> to vector<1x64xf32>
    %c1_234 = arith.constant 1 : index
    %c0_235 = arith.constant 0 : index
    %c0_236 = arith.constant 0 : index
    %684 = vector.load %arg26[%c1_234, %c0_235, %c0_236] : memref<2x1x64xf32, #tpu.memory_space<vmem>>, vector<1x1x64xf32>
    %685 = vector.shape_cast %684 : vector<1x1x64xf32> to vector<1x64xf32>
    %cst_237 = arith.constant dense<0.000000e+00> : vector<24xf32>
    %686 = vector.multi_reduction <add>, %681, %cst_237 [1] : vector<24x64xf32> to vector<24xf32>
    %687 = vector.shape_cast %686 : vector<24xf32> to vector<24x1xf32>
    %cst_238 = arith.constant 6.400000e+01 : f32
    %688 = vector.broadcast %cst_238 : f32 to vector<24x1xf32>
    %689 = arith.divf %687, %688 : vector<24x1xf32>
    %690 = vector.broadcast %689 : vector<24x1xf32> to vector<24x64xf32>
    %691 = arith.subf %681, %690 : vector<24x64xf32>
    %692 = arith.mulf %691, %691 : vector<24x64xf32>
    %cst_239 = arith.constant dense<0.000000e+00> : vector<24xf32>
    %693 = vector.multi_reduction <add>, %692, %cst_239 [1] : vector<24x64xf32> to vector<24xf32>
    %694 = vector.shape_cast %693 : vector<24xf32> to vector<24x1xf32>
    %cst_240 = arith.constant 6.400000e+01 : f32
    %695 = vector.broadcast %cst_240 : f32 to vector<24x1xf32>
    %696 = arith.divf %694, %695 : vector<24x1xf32>
    %697 = vector.broadcast %689 : vector<24x1xf32> to vector<24x64xf32>
    %698 = arith.subf %681, %697 : vector<24x64xf32>
    %cst_241 = arith.constant 9.99999974E-6 : f32
    %699 = vector.broadcast %cst_241 : f32 to vector<24x1xf32>
    %700 = arith.addf %696, %699 : vector<24x1xf32>
    %701 = math.rsqrt %700 : vector<24x1xf32>
    %702 = vector.broadcast %701 : vector<24x1xf32> to vector<24x64xf32>
    %703 = arith.mulf %698, %702 : vector<24x64xf32>
    %704 = vector.broadcast %683 : vector<1x64xf32> to vector<24x64xf32>
    %705 = arith.mulf %703, %704 : vector<24x64xf32>
    %706 = vector.broadcast %685 : vector<1x64xf32> to vector<24x64xf32>
    %707 = arith.addf %705, %706 : vector<24x64xf32>
    %c0_242 = arith.constant 0 : index
    %c0_243 = arith.constant 0 : index
    %708 = vector.load %arg27[%c0_242, %c0_243] : memref<1x64xf32, #tpu.memory_space<vmem>>, vector<1x64xf32>
    %c0_244 = arith.constant 0 : index
    %c0_245 = arith.constant 0 : index
    %709 = vector.load %arg28[%c0_244, %c0_245] : memref<1x64xf32, #tpu.memory_space<vmem>>, vector<1x64xf32>
    %cst_246 = arith.constant dense<0.000000e+00> : vector<24xf32>
    %710 = vector.multi_reduction <add>, %707, %cst_246 [1] : vector<24x64xf32> to vector<24xf32>
    %711 = vector.shape_cast %710 : vector<24xf32> to vector<24x1xf32>
    %cst_247 = arith.constant 6.400000e+01 : f32
    %712 = vector.broadcast %cst_247 : f32 to vector<24x1xf32>
    %713 = arith.divf %711, %712 : vector<24x1xf32>
    %714 = vector.broadcast %713 : vector<24x1xf32> to vector<24x64xf32>
    %715 = arith.subf %707, %714 : vector<24x64xf32>
    %716 = arith.mulf %715, %715 : vector<24x64xf32>
    %cst_248 = arith.constant dense<0.000000e+00> : vector<24xf32>
    %717 = vector.multi_reduction <add>, %716, %cst_248 [1] : vector<24x64xf32> to vector<24xf32>
    %718 = vector.shape_cast %717 : vector<24xf32> to vector<24x1xf32>
    %cst_249 = arith.constant 6.400000e+01 : f32
    %719 = vector.broadcast %cst_249 : f32 to vector<24x1xf32>
    %720 = arith.divf %718, %719 : vector<24x1xf32>
    %721 = vector.broadcast %713 : vector<24x1xf32> to vector<24x64xf32>
    %722 = arith.subf %707, %721 : vector<24x64xf32>
    %cst_250 = arith.constant 9.99999974E-6 : f32
    %723 = vector.broadcast %cst_250 : f32 to vector<24x1xf32>
    %724 = arith.addf %720, %723 : vector<24x1xf32>
    %725 = math.rsqrt %724 : vector<24x1xf32>
    %726 = vector.broadcast %725 : vector<24x1xf32> to vector<24x64xf32>
    %727 = arith.mulf %722, %726 : vector<24x64xf32>
    %728 = vector.broadcast %708 : vector<1x64xf32> to vector<24x64xf32>
    %729 = arith.mulf %727, %728 : vector<24x64xf32>
    %730 = vector.broadcast %709 : vector<1x64xf32> to vector<24x64xf32>
    %731 = arith.addf %729, %730 : vector<24x64xf32>
    %c0_251 = arith.constant 0 : index
    %c0_252 = arith.constant 0 : index
    %732 = vector.load %arg29[%c0_251, %c0_252] : memref<64x32xf32, #tpu.memory_space<vmem>>, vector<64x32xf32>
    %cst_253 = arith.constant dense<0.000000e+00> : vector<24x32xf32>
    %733 = tpu.matmul %731, %732, %cst_253 {dimension_numbers = #tpu.dot_dimension_numbers<[1], [0], [0], [1], [0, 0, 1, 1], [], []>} : vector<24x64xf32>, vector<64x32xf32>, vector<24x32xf32> -> vector<24x32xf32>
    %c0_254 = arith.constant 0 : index
    %c0_255 = arith.constant 0 : index
    %734 = vector.load %arg30[%c0_254, %c0_255] : memref<1x32xf32, #tpu.memory_space<vmem>>, vector<1x32xf32>
    %735 = vector.broadcast %734 : vector<1x32xf32> to vector<24x32xf32>
    %736 = arith.addf %733, %735 : vector<24x32xf32>
    %737 = arith.mulf %736, %736 : vector<24x32xf32>
    %cst_256 = arith.constant dense<0.000000e+00> : vector<24xf32>
    %738 = vector.multi_reduction <add>, %737, %cst_256 [1] : vector<24x32xf32> to vector<24xf32>
    %739 = vector.shape_cast %738 : vector<24xf32> to vector<24x1xf32>
    %cst_257 = arith.constant 9.99999996E-13 : f32
    %740 = vector.broadcast %cst_257 : f32 to vector<24x1xf32>
    %741 = arith.maximumf %739, %740 : vector<24x1xf32>
    %742 = math.rsqrt %741 : vector<24x1xf32>
    %743 = vector.broadcast %742 : vector<24x1xf32> to vector<24x32xf32>
    %744 = arith.mulf %736, %743 : vector<24x32xf32>
    %c0_258 = arith.constant 0 : index
    %c0_259 = arith.constant 0 : index
    %745 = vector.load %arg31[%c0_258, %c0_259] : memref<32x64xf32, #tpu.memory_space<vmem>>, vector<32x64xf32>
    %746 = arith.mulf %745, %745 : vector<32x64xf32>
    %cst_260 = arith.constant dense<0.000000e+00> : vector<64xf32>
    %747 = vector.multi_reduction <add>, %746, %cst_260 [0] : vector<32x64xf32> to vector<64xf32>
    %748 = vector.shape_cast %747 : vector<64xf32> to vector<1x64xf32>
    %cst_261 = arith.constant 9.99999996E-13 : f32
    %749 = vector.broadcast %cst_261 : f32 to vector<1x64xf32>
    %750 = arith.maximumf %748, %749 : vector<1x64xf32>
    %751 = math.rsqrt %750 : vector<1x64xf32>
    %752 = vector.broadcast %751 : vector<1x64xf32> to vector<32x64xf32>
    %753 = arith.mulf %745, %752 : vector<32x64xf32>
    %cst_262 = arith.constant dense<0.000000e+00> : vector<24x64xf32>
    %754 = tpu.matmul %744, %753, %cst_262 {dimension_numbers = #tpu.dot_dimension_numbers<[1], [0], [0], [1], [0, 0, 1, 1], [], []>} : vector<24x32xf32>, vector<32x64xf32>, vector<24x64xf32> -> vector<24x64xf32>
    %c0_263 = arith.constant 0 : index
    %c0_264 = arith.constant 0 : index
    %755 = vector.load %arg32[%c0_263, %c0_264] : memref<24x64xf32, #tpu.memory_space<vmem>>, vector<24x64xf32>
    tpu.vector_store %arg32[%c0_263, %c0_264], %754 {strides = array<i32>} : memref<24x64xf32, #tpu.memory_space<vmem>>, vector<24x64xf32>,
    return
  }
  func.func @transform_0(%arg0: i32, %arg1: memref<2xi32, #tpu.memory_space<smem>>) -> (i32, i32, i32) {
    %c0_i32 = arith.constant 0 : i32
    %c0_i32_0 = arith.constant 0 : i32
    %c0_i32_1 = arith.constant 0 : i32
    return %arg0, %c0_i32, %c0_i32_0 : i32, i32, i32
  }
  func.func @transform_1(%arg0: i32, %arg1: memref<2xi32, #tpu.memory_space<smem>>) -> (i32, i32) {
    %c0_i32 = arith.constant 0 : i32
    %c0_i32_0 = arith.constant 0 : i32
    %c0_i32_1 = arith.constant 0 : i32
    return %c0_i32, %c0_i32_0 : i32, i32
  }
  func.func @transform_2(%arg0: i32, %arg1: memref<2xi32, #tpu.memory_space<smem>>) -> (i32, i32) {
    %c0_i32 = arith.constant 0 : i32
    %c0_i32_0 = arith.constant 0 : i32
    %c0_i32_1 = arith.constant 0 : i32
    return %c0_i32, %c0_i32_0 : i32, i32
  }
  func.func @transform_3(%arg0: i32, %arg1: memref<2xi32, #tpu.memory_space<smem>>) -> (i32, i32) {
    %c0_i32 = arith.constant 0 : i32
    %c0_i32_0 = arith.constant 0 : i32
    %c0_i32_1 = arith.constant 0 : i32
    return %c0_i32, %c0_i32_0 : i32, i32
  }
  func.func @transform_4(%arg0: i32, %arg1: memref<2xi32, #tpu.memory_space<smem>>) -> (i32, i32) {
    %c0_i32 = arith.constant 0 : i32
    %c0_i32_0 = arith.constant 0 : i32
    %c0_i32_1 = arith.constant 0 : i32
    return %c0_i32, %c0_i32_0 : i32, i32
  }
  func.func @transform_5(%arg0: i32, %arg1: memref<2xi32, #tpu.memory_space<smem>>) -> (i32, i32) {
    %c0_i32 = arith.constant 0 : i32
    %c0_i32_0 = arith.constant 0 : i32
    %c0_i32_1 = arith.constant 0 : i32
    return %c0_i32, %c0_i32_0 : i32, i32
  }
  func.func @transform_6(%arg0: i32, %arg1: memref<2xi32, #tpu.memory_space<smem>>) -> (i32, i32) {
    %c0_i32 = arith.constant 0 : i32
    %c0_i32_0 = arith.constant 0 : i32
    %c0_i32_1 = arith.constant 0 : i32
    return %c0_i32, %c0_i32_0 : i32, i32
  }
  func.func @transform_7(%arg0: i32, %arg1: memref<2xi32, #tpu.memory_space<smem>>) -> (i32, i32) {
    %c0_i32 = arith.constant 0 : i32
    %c0_i32_0 = arith.constant 0 : i32
    %c0_i32_1 = arith.constant 0 : i32
    return %c0_i32, %c0_i32_0 : i32, i32
  }
  func.func @transform_8(%arg0: i32, %arg1: memref<2xi32, #tpu.memory_space<smem>>) -> (i32, i32) {
    %c0_i32 = arith.constant 0 : i32
    %c0_i32_0 = arith.constant 0 : i32
    %c0_i32_1 = arith.constant 0 : i32
    return %c0_i32, %c0_i32_0 : i32, i32
  }
  func.func @transform_9(%arg0: i32, %arg1: memref<2xi32, #tpu.memory_space<smem>>) -> (i32, i32) {
    %c0_i32 = arith.constant 0 : i32
    %c0_i32_0 = arith.constant 0 : i32
    %c0_i32_1 = arith.constant 0 : i32
    return %c0_i32, %c0_i32_0 : i32, i32
  }
  func.func @transform_10(%arg0: i32, %arg1: memref<2xi32, #tpu.memory_space<smem>>) -> (i32, i32) {
    %c0_i32 = arith.constant 0 : i32
    %c0_i32_0 = arith.constant 0 : i32
    %c0_i32_1 = arith.constant 0 : i32
    return %c0_i32, %c0_i32_0 : i32, i32
  }
  func.func @transform_11(%arg0: i32, %arg1: memref<2xi32, #tpu.memory_space<smem>>) -> (i32, i32) {
    %c0_i32 = arith.constant 0 : i32
    %c0_i32_0 = arith.constant 0 : i32
    %c0_i32_1 = arith.constant 0 : i32
    return %c0_i32, %c0_i32_0 : i32, i32
  }
  func.func @transform_12(%arg0: i32, %arg1: memref<2xi32, #tpu.memory_space<smem>>) -> (i32, i32) {
    %c0_i32 = arith.constant 0 : i32
    %c0_i32_0 = arith.constant 0 : i32
    %c0_i32_1 = arith.constant 0 : i32
    return %c0_i32, %c0_i32_0 : i32, i32
  }
  func.func @transform_13(%arg0: i32, %arg1: memref<2xi32, #tpu.memory_space<smem>>) -> (i32, i32, i32) {
    %c0_i32 = arith.constant 0 : i32
    %c0_i32_0 = arith.constant 0 : i32
    %c0_i32_1 = arith.constant 0 : i32
    %c0_i32_2 = arith.constant 0 : i32
    return %c0_i32, %c0_i32_0, %c0_i32_1 : i32, i32, i32
  }
  func.func @transform_14(%arg0: i32, %arg1: memref<2xi32, #tpu.memory_space<smem>>) -> (i32, i32, i32) {
    %c0_i32 = arith.constant 0 : i32
    %c0_i32_0 = arith.constant 0 : i32
    %c0_i32_1 = arith.constant 0 : i32
    %c0_i32_2 = arith.constant 0 : i32
    return %c0_i32, %c0_i32_0, %c0_i32_1 : i32, i32, i32
  }
  func.func @transform_15(%arg0: i32, %arg1: memref<2xi32, #tpu.memory_space<smem>>) -> (i32, i32, i32) {
    %c0_i32 = arith.constant 0 : i32
    %c0_i32_0 = arith.constant 0 : i32
    %c0_i32_1 = arith.constant 0 : i32
    %c0_i32_2 = arith.constant 0 : i32
    return %c0_i32, %c0_i32_0, %c0_i32_1 : i32, i32, i32
  }
  func.func @transform_16(%arg0: i32, %arg1: memref<2xi32, #tpu.memory_space<smem>>) -> (i32, i32, i32) {
    %c0_i32 = arith.constant 0 : i32
    %c0_i32_0 = arith.constant 0 : i32
    %c0_i32_1 = arith.constant 0 : i32
    %c0_i32_2 = arith.constant 0 : i32
    return %c0_i32, %c0_i32_0, %c0_i32_1 : i32, i32, i32
  }
  func.func @transform_17(%arg0: i32, %arg1: memref<2xi32, #tpu.memory_space<smem>>) -> (i32, i32, i32) {
    %c0_i32 = arith.constant 0 : i32
    %c0_i32_0 = arith.constant 0 : i32
    %c0_i32_1 = arith.constant 0 : i32
    %c0_i32_2 = arith.constant 0 : i32
    return %c0_i32, %c0_i32_0, %c0_i32_1 : i32, i32, i32
  }
  func.func @transform_18(%arg0: i32, %arg1: memref<2xi32, #tpu.memory_space<smem>>) -> (i32, i32, i32) {
    %c0_i32 = arith.constant 0 : i32
    %c0_i32_0 = arith.constant 0 : i32
    %c0_i32_1 = arith.constant 0 : i32
    %c0_i32_2 = arith.constant 0 : i32
    return %c0_i32, %c0_i32_0, %c0_i32_1 : i32, i32, i32
  }
  func.func @transform_19(%arg0: i32, %arg1: memref<2xi32, #tpu.memory_space<smem>>) -> (i32, i32, i32) {
    %c0_i32 = arith.constant 0 : i32
    %c0_i32_0 = arith.constant 0 : i32
    %c0_i32_1 = arith.constant 0 : i32
    %c0_i32_2 = arith.constant 0 : i32
    return %c0_i32, %c0_i32_0, %c0_i32_1 : i32, i32, i32
  }
  func.func @transform_20(%arg0: i32, %arg1: memref<2xi32, #tpu.memory_space<smem>>) -> (i32, i32, i32) {
    %c0_i32 = arith.constant 0 : i32
    %c0_i32_0 = arith.constant 0 : i32
    %c0_i32_1 = arith.constant 0 : i32
    %c0_i32_2 = arith.constant 0 : i32
    return %c0_i32, %c0_i32_0, %c0_i32_1 : i32, i32, i32
  }
  func.func @transform_21(%arg0: i32, %arg1: memref<2xi32, #tpu.memory_space<smem>>) -> (i32, i32, i32) {
    %c0_i32 = arith.constant 0 : i32
    %c0_i32_0 = arith.constant 0 : i32
    %c0_i32_1 = arith.constant 0 : i32
    %c0_i32_2 = arith.constant 0 : i32
    return %c0_i32, %c0_i32_0, %c0_i32_1 : i32, i32, i32
  }
  func.func @transform_22(%arg0: i32, %arg1: memref<2xi32, #tpu.memory_space<smem>>) -> (i32, i32, i32) {
    %c0_i32 = arith.constant 0 : i32
    %c0_i32_0 = arith.constant 0 : i32
    %c0_i32_1 = arith.constant 0 : i32
    %c0_i32_2 = arith.constant 0 : i32
    return %c0_i32, %c0_i32_0, %c0_i32_1 : i32, i32, i32
  }
  func.func @transform_23(%arg0: i32, %arg1: memref<2xi32, #tpu.memory_space<smem>>) -> (i32, i32, i32) {
    %c0_i32 = arith.constant 0 : i32
    %c0_i32_0 = arith.constant 0 : i32
    %c0_i32_1 = arith.constant 0 : i32
    %c0_i32_2 = arith.constant 0 : i32
    return %c0_i32, %c0_i32_0, %c0_i32_1 : i32, i32, i32
  }
  func.func @transform_24(%arg0: i32, %arg1: memref<2xi32, #tpu.memory_space<smem>>) -> (i32, i32, i32) {
    %c0_i32 = arith.constant 0 : i32
    %c0_i32_0 = arith.constant 0 : i32
    %c0_i32_1 = arith.constant 0 : i32
    %c0_i32_2 = arith.constant 0 : i32
    return %c0_i32, %c0_i32_0, %c0_i32_1 : i32, i32, i32
  }
  func.func @transform_25(%arg0: i32, %arg1: memref<2xi32, #tpu.memory_space<smem>>) -> (i32, i32) {
    %c0_i32 = arith.constant 0 : i32
    %c0_i32_0 = arith.constant 0 : i32
    %c0_i32_1 = arith.constant 0 : i32
    return %c0_i32, %c0_i32_0 : i32, i32
  }
  func.func @transform_26(%arg0: i32, %arg1: memref<2xi32, #tpu.memory_space<smem>>) -> (i32, i32) {
    %c0_i32 = arith.constant 0 : i32
    %c0_i32_0 = arith.constant 0 : i32
    %c0_i32_1 = arith.constant 0 : i32
    return %c0_i32, %c0_i32_0 : i32, i32
  }
  func.func @transform_27(%arg0: i32, %arg1: memref<2xi32, #tpu.memory_space<smem>>) -> (i32, i32) {
    %c0_i32 = arith.constant 0 : i32
    %c0_i32_0 = arith.constant 0 : i32
    %c0_i32_1 = arith.constant 0 : i32
    return %c0_i32, %c0_i32_0 : i32, i32
  }
  func.func @transform_28(%arg0: i32, %arg1: memref<2xi32, #tpu.memory_space<smem>>) -> (i32, i32) {
    %c0_i32 = arith.constant 0 : i32
    %c0_i32_0 = arith.constant 0 : i32
    %c0_i32_1 = arith.constant 0 : i32
    return %c0_i32, %c0_i32_0 : i32, i32
  }
  func.func @transform_29(%arg0: i32, %arg1: memref<2xi32, #tpu.memory_space<smem>>) -> (i32, i32) {
    %c0_i32 = arith.constant 0 : i32
    %c0_i32_0 = arith.constant 0 : i32
    %c0_i32_1 = arith.constant 0 : i32
    return %c0_i32, %c0_i32_0 : i32, i32
  }
  func.func @transform_30(%arg0: i32, %arg1: memref<2xi32, #tpu.memory_space<smem>>) -> (i32, i32) {
    %c0_i32 = arith.constant 0 : i32
    %c0_i32_0 = arith.constant 0 : i32
    return %arg0, %c0_i32 : i32, i32
  }
}

</mosaic_0001>

<llo_original>
// kernel: model_forward.3
$region0: #{model_forward.3}
  #allocation0 [shape = 'u32[]', space=smem, size = 0x4, offset = 0x4, fixed_abs, tag = 'smem constant byte address 0x4 - core index']
  #allocation1 [shape = 'u32[72,128]{1,0:T(1,128)}', space=vmem, size = 0x9000, scoped, tag = 'internal scratch']
  #allocation2 [shape = 's32[1]{0}', space=sflag, size = 0x4, scoped, tag = 'scoped memory for model_forward.3']
  #allocation3 [shape = 'u8[512]{0}', space=smem, size = 0x200, scoped, tag = 'prefetched SMEM operand 0']
  %s0 = inlined_call_operand.vmem [shape: s32[2], index: 0, kind: input, shape index: {}]
  %s1 = inlined_call_operand.vmem [shape: f32[48,64], index: 1, kind: input, shape index: {}]
  %s2 = inlined_call_operand.hbm [shape: f32[1,1], index: 2, kind: output, shape index: {}]
  %s3 = sld [smem:[#allocation0]]
  $region14: #{model_forward.3} parent=0
    _
  %s5 = ssub.s32 1, %s3
  %s6 = scalar_select 0, %s5, %s3
  %s8 = sshll.u32 %s0, 4
  %s9 = int_to_ptr.vmem [resolvable:$true] %s8
  %11 = dma.vmem_to_smem %s9, 16, [#allocation3], [#allocation2]
  %13 = dma.done [#allocation2], 16
  %14 = sfence
  $region1: #{model_forward.3} parent=0
    #allocation4 [shape = 'u8[512]{0}', space=vmem, size = 0x400, scoped, tag = 'output window, operand 0, single buffered']
    #allocation5 [shape = 's32[1]{0}', space=sflag, size = 0x4, scoped, tag = 'scoped memory for model_forward.3']
    %15 = vsyncpa [#allocation5], 0
    // Predicated region
    $region2: #{model_forward.3} parent=1 // pred_check
      _
    $region3: #{model_forward.3} parent=1 // pred_check_branch
      %17 = sbr.rel (0) target = $region5
    $region4: #{model_forward.3} parent=1 // pred_region
      _
    $region5: #{model_forward.3} parent=1 // pred_fallthru
      _
    %v18 = vld [vmem:[%s1] sm:$0xff]
    %v19 = vld [vmem:[%s1 + $0x8] sm:$0xff]
    %v20 = vld [vmem:[%s1 + $0x10] sm:$0xff]
    %v21 = vld [vmem:[%s1 + $0x18] sm:$0xff]
    %v22 = vld [vmem:[%s1 + $0x20] sm:$0xff]
    %v23 = vld [vmem:[%s1 + $0x28] sm:$0xff]
    %v24 = vlaneseq
    %v25 = vshrl.u32 %v24, 7
    %v26 = vadd.s32 %v25, 8
    %v27 = vadd.s32 %v25, 16
    %v28 = vadd.s32 %v25, 24
    %v29 = vadd.s32 %v25, 32
    %v30 = vadd.s32 %v25, 40
    %vm31 = vcmp.ge.s32.totalorder %v25, 0
    %vm32 = vcmp.ge.s32.totalorder %v26, 0
    %vm33 = vcmp.ge.s32.totalorder %v27, 0
    %vm34 = vcmp.ge.s32.totalorder %v28, 0
    %vm35 = vcmp.ge.s32.totalorder %v29, 0
    %vm36 = vcmp.ge.s32.totalorder %v30, 0
    %s37 = sld [smem:[#allocation3]]
    %v38 = vstv %s37
    %vm39 = vcmp.lt.s32.totalorder %v25, %v38
    %vm40 = vcmp.lt.s32.totalorder %v26, %v38
    %vm41 = vcmp.lt.s32.totalorder %v27, %v38
    %vm42 = vcmp.lt.s32.totalorder %v28, %v38
    %vm43 = vcmp.lt.s32.totalorder %v29, %v38
    %vm44 = vcmp.lt.s32.totalorder %v30, %v38
    %vm45 = vmand %vm31, %vm39
    %vm46 = vmand %vm32, %vm40
    %vm47 = vmand %vm33, %vm41
    %vm48 = vmand %vm34, %vm42
    %vm49 = vmand %vm35, %vm43
    %vm50 = vmand %vm36, %vm44
    %v51 = vsel %vm45, 1.0, 0.0
    %v52 = vsel %vm46, 1.0, 0.0
    %v53 = vsel %vm47, 1.0, 0.0
    %v54 = vsel %vm48, 1.0, 0.0
    %v55 = vsel %vm49, 1.0, 0.0
    %v56 = vsel %vm50, 1.0, 0.0
    %vm57 = vcmp.ge.s32.totalorder %v25, 24
    %vm58 = vcmp.ge.s32.totalorder %v26, 24
    %vm59 = vcmp.ge.s32.totalorder %v27, 24
    %vm60 = vcmp.ge.s32.totalorder %v28, 24
    %vm61 = vcmp.ge.s32.totalorder %v29, 24
    %vm62 = vcmp.ge.s32.totalorder %v30, 24
    %s63 = sld [smem:[#allocation3 + $0x1]]
    %s64 = sadd.s32 %s63, 24
    %v65 = vstv %s64
    %vm66 = vcmp.lt.s32.totalorder %v25, %v65
    %vm67 = vcmp.lt.s32.totalorder %v26, %v65
    %vm68 = vcmp.lt.s32.totalorder %v27, %v65
    %vm69 = vcmp.lt.s32.totalorder %v28, %v65
    %vm70 = vcmp.lt.s32.totalorder %v29, %v65
    %vm71 = vcmp.lt.s32.totalorder %v30, %v65
    %vm72 = vmand %vm57, %vm66
    %vm73 = vmand %vm58, %vm67
    %vm74 = vmand %vm59, %vm68
    %vm75 = vmand %vm60, %vm69
    %vm76 = vmand %vm61, %vm70
    %vm77 = vmand %vm62, %vm71
    %v78 = vsel %vm72, 1.0, %v51
    %v79 = vsel %vm73, 1.0, %v52
    %v80 = vsel %vm74, 1.0, %v53
    %v81 = vsel %vm75, 1.0, %v54
    %v82 = vsel %vm76, 1.0, %v55
    %v83 = vsel %vm77, 1.0, %v56
    %v84 = vadd.f32 %v78, %v79
    %v85 = vadd.f32 %v84, %v80
    %v86 = vadd.f32 %v85, %v81
    %v87 = vadd.f32 %v86, %v82
    %v88 = vadd.f32 %v87, %v83
    %v89 = vrot.slane %v88, 4
    %v90 = vadd.f32 %v88, %v89
    %v91 = vrot.slane %v90, 2
    %v92 = vadd.f32 %v90, %v91
    %v93 = vrot.slane %v92, 1
    %v94 = vadd.f32 %v92, %v93
    %v95 = vmul.f32 %v18, 50.0
    %v96 = vmul.f32 %v19, 50.0
    %v97 = vmul.f32 %v20, 50.0
    %v98 = vmul.f32 %v21, 50.0
    %v99 = vmul.f32 %v22, 50.0
    %v100 = vmul.f32 %v23, 50.0
    %vm101 = vcmp.gt.f32.partialorder %v78, 0.0
    %vm102 = vcmp.gt.f32.partialorder %v79, 0.0
    %vm103 = vcmp.gt.f32.partialorder %v80, 0.0
    %vm104 = vcmp.gt.f32.partialorder %v81, 0.0
    %vm105 = vcmp.gt.f32.partialorder %v82, 0.0
    %vm106 = vcmp.gt.f32.partialorder %v83, 0.0
    %v107 = vsel %vm101, 1, 0
    %v108 = vsel %vm102, 1, 0
    %v109 = vsel %vm103, 1, 0
    %v110 = vsel %vm104, 1, 0
    %v111 = vsel %vm105, 1, 0
    %v112 = vsel %vm106, 1, 0
    %vm113 = vcmp.eq.s32.totalorder %v107, 1
    %vm114 = vcmp.eq.s32.totalorder %v108, 1
    %vm115 = vcmp.eq.s32.totalorder %v109, 1
    %vm116 = vcmp.eq.s32.totalorder %v110, 1
    %vm117 = vcmp.eq.s32.totalorder %v111, 1
    %vm118 = vcmp.eq.s32.totalorder %v112, 1
    %v119 = vsel %vm113, %v95, -1e+09
    %v120 = vsel %vm114, %v96, -1e+09
    %v121 = vsel %vm115, %v97, -1e+09
    %v122 = vsel %vm116, %v98, -1e+09
    %v123 = vsel %vm117, %v99, -1e+09
    %v124 = vsel %vm118, %v100, -1e+09
    %vm125 = vcmask 523264
    %v126 = vsel %vm125, %v119, -inf
    %127 = vmax.xlane.f32.xlu0 %v126
    %v128 = vpop.xlane.xlu0 %127
    %v129 = vsel %vm125, %v120, -inf
    %130 = vmax.xlane.f32.xlu0 %v129
    %v131 = vpop.xlane.xlu0 %130
    %v132 = vsel %vm125, %v121, -inf
    %133 = vmax.xlane.f32.xlu0 %v132
    %v134 = vpop.xlane.xlu0 %133
    %v135 = vsel %vm125, %v122, -inf
    %136 = vmax.xlane.f32.xlu0 %v135
    %v137 = vpop.xlane.xlu0 %136
    %v138 = vsel %vm125, %v123, -inf
    %139 = vmax.xlane.f32.xlu0 %v138
    %v140 = vpop.xlane.xlu0 %139
    %v141 = vsel %vm125, %v124, -inf
    %142 = vmax.xlane.f32.xlu0 %v141
    %v143 = vpop.xlane.xlu0 %142
    %v144 = vmax.f32 %v128, %v140
    %v145 = vmax.f32 %v131, %v143
    %v146 = vmax.f32 %v144, %v145
    %v147 = vmax.f32 %v134, %v137
    %v148 = vmax.f32 %v146, %v147
    %v149 = vrot.slane %v148, 4
    %v150 = vmax.f32 %v148, %v149
    %v151 = vrot.slane %v150, 2
    %v152 = vmax.f32 %v150, %v151
    %v153 = vrot.slane %v152, 1
    %v154 = vmax.f32 %v152, %v153
    %v155 = vsub.f32 %v95, %v154
    %v156 = vsub.f32 %v96, %v154
    %v157 = vsub.f32 %v97, %v154
    %v158 = vsub.f32 %v98, %v154
    %v159 = vsub.f32 %v99, %v154
    %v160 = vsub.f32 %v100, %v154
    %v161 = vmul.f32 %v155, 1.442695
    %v162 = vpow.pop %v161
    %v163 = vmul.f32 %v156, 1.442695
    %v164 = vpow.pop %v163
    %v165 = vmul.f32 %v157, 1.442695
    %v166 = vpow.pop %v165
    %v167 = vmul.f32 %v158, 1.442695
    %v168 = vpow.pop %v167
    %v169 = vmul.f32 %v159, 1.442695
    %v170 = vpow.pop %v169
    %v171 = vmul.f32 %v160, 1.442695
    %v172 = vpow.pop %v171
    %v173 = vmul.f32 %v162, %v78
    %v174 = vmul.f32 %v164, %v79
    %v175 = vmul.f32 %v166, %v80
    %v176 = vmul.f32 %v168, %v81
    %v177 = vmul.f32 %v170, %v82
    %v178 = vmul.f32 %v172, %v83
    %v179 = vsel %vm125, %v173, 0.0
    %180 = vadd.xlane.f32.xlu0 %v179
    %v181 = vpop.xlane.xlu0 %180
    %v182 = vsel %vm125, %v174, 0.0
    %183 = vadd.xlane.f32.xlu0 %v182
    %v184 = vpop.xlane.xlu0 %183
    %v185 = vsel %vm125, %v175, 0.0
    %186 = vadd.xlane.f32.xlu0 %v185
    %v187 = vpop.xlane.xlu0 %186
    %v188 = vsel %vm125, %v176, 0.0
    %189 = vadd.xlane.f32.xlu0 %v188
    %v190 = vpop.xlane.xlu0 %189
    %v191 = vsel %vm125, %v177, 0.0
    %192 = vadd.xlane.f32.xlu0 %v191
    %v193 = vpop.xlane.xlu0 %192
    %v194 = vsel %vm125, %v178, 0.0
    %195 = vadd.xlane.f32.xlu0 %v194
    %v196 = vpop.xlane.xlu0 %195
    %v197 = vadd.f32 %v181, %v184
    %v198 = vadd.f32 %v197, %v187
    %v199 = vadd.f32 %v198, %v190
    %v200 = vadd.f32 %v199, %v193
    %v201 = vadd.f32 %v200, %v196
    %v202 = vrot.slane %v201, 4
    %v203 = vadd.f32 %v201, %v202
    %v204 = vrot.slane %v203, 2
    %v205 = vadd.f32 %v203, %v204
    %v206 = vrot.slane %v205, 1
    %v207 = vadd.f32 %v205, %v206
    %v208 = vrcp.pop %v207
    %v209 = vmul.f32 %v207, %v208
    %v210 = vsub.f32 1.0, %v209
    %v211 = vmul.f32 %v208, %v210
    %v212 = vadd.f32 %v208, %v211
    %vm213 = vweird.f32 %v207
    %vm214 = vweird.f32 %v208
    %vm215 = vmor %vm213, %vm214
    %v216 = vsel %vm215, %v208, %v212
    %v217 = vand.u32 2147483647, %v207
    %vm218 = vcmp.eq.f32.partialorder %v217, 8.507059e+37
    %v219 = vand.u32 %v207, 2147483648
    %v220 = vor.u32 1.1754944e-38, %v219
    %v221 = vsel %vm218, %v220, %v216
    %v222 = vmul.f32 %v173, %v221
    %v223 = vmul.f32 %v174, %v221
    %v224 = vmul.f32 %v175, %v221
    %v225 = vmul.f32 %v176, %v221
    %v226 = vmul.f32 %v177, %v221
    %v227 = vmul.f32 %v178, %v221
    %v228 = vsel %vm125, %v222, 0.0
    %v229 = vsel %vm125, %v223, 0.0
    %v230 = vadd.f32 %v228, %v229
    %v231 = vsel %vm125, %v224, 0.0
    %v232 = vadd.f32 %v230, %v231
    %v233 = vsel %vm125, %v225, 0.0
    %v234 = vadd.f32 %v232, %v233
    %v235 = vsel %vm125, %v226, 0.0
    %v236 = vadd.f32 %v234, %v235
    %v237 = vsel %vm125, %v227, 0.0
    %v238 = vadd.f32 %v236, %v237
    %v239 = vrot.slane %v238, 4
    %v240 = vadd.f32 %v238, %v239
    %v241 = vrot.slane %v240, 2
    %v242 = vadd.f32 %v240, %v241
    %v243 = vrot.slane %v242, 1
    %v244 = vadd.f32 %v242, %v243
    %v245 = vmul.f32 %v244, 64.0
    %v246 = vadd.f32 %v245, 1e-30
    %v247 = vrcp.pop %v246
    %v248 = vmul.f32 %v246, %v247
    %v249 = vsub.f32 1.0, %v248
    %v250 = vmul.f32 %v247, %v249
    %v251 = vadd.f32 %v247, %v250
    %vm252 = vweird.f32 %v246
    %vm253 = vweird.f32 %v247
    %vm254 = vmor %vm252, %vm253
    %v255 = vsel %vm254, %v247, %v251
    %v256 = vand.u32 2147483647, %v246
    %vm257 = vcmp.eq.f32.partialorder %v256, 8.507059e+37
    %v258 = vand.u32 %v246, 2147483648
    %v259 = vor.u32 1.1754944e-38, %v258
    %v260 = vsel %vm257, %v259, %v255
    %v261 = vmul.f32 %v222, %v260
    %v262 = vmul.f32 %v223, %v260
    %v263 = vmul.f32 %v224, %v260
    %v264 = vmul.f32 %v225, %v260
    %v265 = vmul.f32 %v226, %v260
    %v266 = vmul.f32 %v227, %v260
    %v267 = vsel %vm125, %v261, 0.0
    %268 = vadd.xlane.f32.xlu0 %v267
    %v269 = vpop.xlane.xlu0 %268
    %v270 = vsel %vm125, %v262, 0.0
    %271 = vadd.xlane.f32.xlu0 %v270
    %v272 = vpop.xlane.xlu0 %271
    %v273 = vsel %vm125, %v263, 0.0
    %274 = vadd.xlane.f32.xlu0 %v273
    %v275 = vpop.xlane.xlu0 %274
    %v276 = vsel %vm125, %v264, 0.0
    %277 = vadd.xlane.f32.xlu0 %v276
    %v278 = vpop.xlane.xlu0 %277
    %v279 = vsel %vm125, %v265, 0.0
    %280 = vadd.xlane.f32.xlu0 %v279
    %v281 = vpop.xlane.xlu0 %280
    %v282 = vsel %vm125, %v266, 0.0
    %283 = vadd.xlane.f32.xlu0 %v282
    %v284 = vpop.xlane.xlu0 %283
    %v285 = vmul.f32 %v94, %v269
    %v286 = vmul.f32 %v94, %v272
    %v287 = vmul.f32 %v94, %v275
    %v288 = vmul.f32 %v94, %v278
    %v289 = vmul.f32 %v94, %v281
    %v290 = vmul.f32 %v94, %v284
    %v291 = vsub.f32 1.0, %v78
    %v292 = vsub.f32 1.0, %v79
    %v293 = vsub.f32 1.0, %v80
    %v294 = vsub.f32 1.0, %v81
    %v295 = vsub.f32 1.0, %v82
    %v296 = vsub.f32 1.0, %v83
    %v297 = vadd.f32 %v285, %v291
    %v298 = vadd.f32 %v286, %v292
    %v299 = vadd.f32 %v287, %v293
    %v300 = vadd.f32 %v288, %v294
    %v301 = vadd.f32 %v289, %v295
    %v302 = vadd.f32 %v290, %v296
    %v303 = vadd.f32 %v297, 1e-30
    %v304 = vadd.f32 %v298, 1e-30
    %v305 = vadd.f32 %v299, 1e-30
    %v306 = vadd.f32 %v300, 1e-30
    %v307 = vadd.f32 %v301, 1e-30
    %v308 = vadd.f32 %v302, 1e-30
    %v309 = vrcp.pop %v303
    %v310 = vmul.f32 %v303, %v309
    %v311 = vsub.f32 1.0, %v310
    %v312 = vmul.f32 %v309, %v311
    %v313 = vadd.f32 %v309, %v312
    %vm314 = vweird.f32 %v303
    %vm315 = vweird.f32 %v309
    %vm316 = vmor %vm314, %vm315
    %v317 = vsel %vm316, %v309, %v313
    %v318 = vand.u32 2147483647, %v303
    %vm319 = vcmp.eq.f32.partialorder %v318, 8.507059e+37
    %v320 = vand.u32 %v303, 2147483648
    %v321 = vor.u32 1.1754944e-38, %v320
    %v322 = vsel %vm319, %v321, %v317
    %v323 = vmul.f32 %v261, %v322
    %v324 = vrcp.pop %v304
    %v325 = vmul.f32 %v304, %v324
    %v326 = vsub.f32 1.0, %v325
    %v327 = vmul.f32 %v324, %v326
    %v328 = vadd.f32 %v324, %v327
    %vm329 = vweird.f32 %v304
    %vm330 = vweird.f32 %v324
    %vm331 = vmor %vm329, %vm330
    %v332 = vsel %vm331, %v324, %v328
    %v333 = vand.u32 2147483647, %v304
    %vm334 = vcmp.eq.f32.partialorder %v333, 8.507059e+37
    %v335 = vand.u32 %v304, 2147483648
    %v336 = vor.u32 1.1754944e-38, %v335
    %v337 = vsel %vm334, %v336, %v332
    %v338 = vmul.f32 %v262, %v337
    %v339 = vrcp.pop %v305
    %v340 = vmul.f32 %v305, %v339
    %v341 = vsub.f32 1.0, %v340
    %v342 = vmul.f32 %v339, %v341
    %v343 = vadd.f32 %v339, %v342
    %vm344 = vweird.f32 %v305
    %vm345 = vweird.f32 %v339
    %vm346 = vmor %vm344, %vm345
    %v347 = vsel %vm346, %v339, %v343
    %v348 = vand.u32 2147483647, %v305
    %vm349 = vcmp.eq.f32.partialorder %v348, 8.507059e+37
    %v350 = vand.u32 %v305, 2147483648
    %v351 = vor.u32 1.1754944e-38, %v350
    %v352 = vsel %vm349, %v351, %v347
    %v353 = vmul.f32 %v263, %v352
    %v354 = vrcp.pop %v306
    %v355 = vmul.f32 %v306, %v354
    %v356 = vsub.f32 1.0, %v355
    %v357 = vmul.f32 %v354, %v356
    %v358 = vadd.f32 %v354, %v357
    %vm359 = vweird.f32 %v306
    %vm360 = vweird.f32 %v354
    %vm361 = vmor %vm359, %vm360
    %v362 = vsel %vm361, %v354, %v358
    %v363 = vand.u32 2147483647, %v306
    %vm364 = vcmp.eq.f32.partialorder %v363, 8.507059e+37
    %v365 = vand.u32 %v306, 2147483648
    %v366 = vor.u32 1.1754944e-38, %v365
    %v367 = vsel %vm364, %v366, %v362
    %v368 = vmul.f32 %v264, %v367
    %v369 = vrcp.pop %v307
    %v370 = vmul.f32 %v307, %v369
    %v371 = vsub.f32 1.0, %v370
    %v372 = vmul.f32 %v369, %v371
    %v373 = vadd.f32 %v369, %v372
    %vm374 = vweird.f32 %v307
    %vm375 = vweird.f32 %v369
    %vm376 = vmor %vm374, %vm375
    %v377 = vsel %vm376, %v369, %v373
    %v378 = vand.u32 2147483647, %v307
    %vm379 = vcmp.eq.f32.partialorder %v378, 8.507059e+37
    %v380 = vand.u32 %v307, 2147483648
    %v381 = vor.u32 1.1754944e-38, %v380
    %v382 = vsel %vm379, %v381, %v377
    %v383 = vmul.f32 %v265, %v382
    %v384 = vrcp.pop %v308
    %v385 = vmul.f32 %v308, %v384
    %v386 = vsub.f32 1.0, %v385
    %v387 = vmul.f32 %v384, %v386
    %v388 = vadd.f32 %v384, %v387
    %vm389 = vweird.f32 %v308
    %vm390 = vweird.f32 %v384
    %vm391 = vmor %vm389, %vm390
    %v392 = vsel %vm391, %v384, %v388
    %v393 = vand.u32 2147483647, %v308
    %vm394 = vcmp.eq.f32.partialorder %v393, 8.507059e+37
    %v395 = vand.u32 %v308, 2147483648
    %v396 = vor.u32 1.1754944e-38, %v395
    %v397 = vsel %vm394, %v396, %v392
    %v398 = vmul.f32 %v266, %v397
    %v399 = vsel %vm125, %v323, 0.0
    %v400 = vsel %vm125, %v338, 0.0
    %v401 = vadd.f32 %v399, %v400
    %v402 = vsel %vm125, %v353, 0.0
    %v403 = vadd.f32 %v401, %v402
    %v404 = vsel %vm125, %v368, 0.0
    %v405 = vadd.f32 %v403, %v404
    %v406 = vsel %vm125, %v383, 0.0
    %v407 = vadd.f32 %v405, %v406
    %v408 = vsel %vm125, %v398, 0.0
    %v409 = vadd.f32 %v407, %v408
    %v410 = vrot.slane %v409, 4
    %v411 = vadd.f32 %v409, %v410
    %v412 = vrot.slane %v411, 2
    %v413 = vadd.f32 %v411, %v412
    %v414 = vrot.slane %v413, 1
    %v415 = vadd.f32 %v413, %v414
    %v416 = vmul.f32 %v415, 64.0
    %v417 = vadd.f32 %v416, 1e-30
    %v418 = vrcp.pop %v417
    %v419 = vmul.f32 %v417, %v418
    %v420 = vsub.f32 1.0, %v419
    %v421 = vmul.f32 %v418, %v420
    %v422 = vadd.f32 %v418, %v421
    %vm423 = vweird.f32 %v417
    %vm424 = vweird.f32 %v418
    %vm425 = vmor %vm423, %vm424
    %v426 = vsel %vm425, %v418, %v422
    %v427 = vand.u32 2147483647, %v417
    %vm428 = vcmp.eq.f32.partialorder %v427, 8.507059e+37
    %v429 = vand.u32 %v417, 2147483648
    %v430 = vor.u32 1.1754944e-38, %v429
    %v431 = vsel %vm428, %v430, %v426
    %v432 = vmul.f32 %v323, %v431
    %v433 = vmul.f32 %v338, %v431
    %v434 = vmul.f32 %v353, %v431
    %v435 = vmul.f32 %v368, %v431
    %v436 = vmul.f32 %v383, %v431
    %v437 = vmul.f32 %v398, %v431
    %v438 = vsel %vm125, %v432, 0.0
    %439 = vadd.xlane.f32.xlu0 %v438
    %v440 = vpop.xlane.xlu0 %439
    %v441 = vsel %vm125, %v433, 0.0
    %442 = vadd.xlane.f32.xlu0 %v441
    %v443 = vpop.xlane.xlu0 %442
    %v444 = vsel %vm125, %v434, 0.0
    %445 = vadd.xlane.f32.xlu0 %v444
    %v446 = vpop.xlane.xlu0 %445
    %v447 = vsel %vm125, %v435, 0.0
    %448 = vadd.xlane.f32.xlu0 %v447
    %v449 = vpop.xlane.xlu0 %448
    %v450 = vsel %vm125, %v436, 0.0
    %451 = vadd.xlane.f32.xlu0 %v450
    %v452 = vpop.xlane.xlu0 %451
    %v453 = vsel %vm125, %v437, 0.0
    %454 = vadd.xlane.f32.xlu0 %v453
    %v455 = vpop.xlane.xlu0 %454
    %v456 = vmul.f32 %v94, %v440
    %v457 = vmul.f32 %v94, %v443
    %v458 = vmul.f32 %v94, %v446
    %v459 = vmul.f32 %v94, %v449
    %v460 = vmul.f32 %v94, %v452
    %v461 = vmul.f32 %v94, %v455
    %v462 = vadd.f32 %v456, %v291
    %v463 = vadd.f32 %v457, %v292
    %v464 = vadd.f32 %v458, %v293
    %v465 = vadd.f32 %v459, %v294
    %v466 = vadd.f32 %v460, %v295
    %v467 = vadd.f32 %v461, %v296
    %v468 = vadd.f32 %v462, 1e-30
    %v469 = vadd.f32 %v463, 1e-30
    %v470 = vadd.f32 %v464, 1e-30
    %v471 = vadd.f32 %v465, 1e-30
    %v472 = vadd.f32 %v466, 1e-30
    %v473 = vadd.f32 %v467, 1e-30
    %v474 = vrcp.pop %v468
    %v475 = vmul.f32 %v468, %v474
    %v476 = vsub.f32 1.0, %v475
    %v477 = vmul.f32 %v474, %v476
    %v478 = vadd.f32 %v474, %v477
    %vm479 = vweird.f32 %v468
    %vm480 = vweird.f32 %v474
    %vm481 = vmor %vm479, %vm480
    %v482 = vsel %vm481, %v474, %v478
    %v483 = vand.u32 2147483647, %v468
    %vm484 = vcmp.eq.f32.partialorder %v483, 8.507059e+37
    %v485 = vand.u32 %v468, 2147483648
    %v486 = vor.u32 1.1754944e-38, %v485
    %v487 = vsel %vm484, %v486, %v482
    %v488 = vmul.f32 %v432, %v487
    %v489 = vrcp.pop %v469
    %v490 = vmul.f32 %v469, %v489
    %v491 = vsub.f32 1.0, %v490
    %v492 = vmul.f32 %v489, %v491
    %v493 = vadd.f32 %v489, %v492
    %vm494 = vweird.f32 %v469
    %vm495 = vweird.f32 %v489
    %vm496 = vmor %vm494, %vm495
    %v497 = vsel %vm496, %v489, %v493
    %v498 = vand.u32 2147483647, %v469
    %vm499 = vcmp.eq.f32.partialorder %v498, 8.507059e+37
    %v500 = vand.u32 %v469, 2147483648
    %v501 = vor.u32 1.1754944e-38, %v500
    %v502 = vsel %vm499, %v501, %v497
    %v503 = vmul.f32 %v433, %v502
    %v504 = vrcp.pop %v470
    %v505 = vmul.f32 %v470, %v504
    %v506 = vsub.f32 1.0, %v505
    %v507 = vmul.f32 %v504, %v506
    %v508 = vadd.f32 %v504, %v507
    %vm509 = vweird.f32 %v470
    %vm510 = vweird.f32 %v504
    %vm511 = vmor %vm509, %vm510
    %v512 = vsel %vm511, %v504, %v508
    %v513 = vand.u32 2147483647, %v470
    %vm514 = vcmp.eq.f32.partialorder %v513, 8.507059e+37
    %v515 = vand.u32 %v470, 2147483648
    %v516 = vor.u32 1.1754944e-38, %v515
    %v517 = vsel %vm514, %v516, %v512
    %v518 = vmul.f32 %v434, %v517
    %v519 = vrcp.pop %v471
    %v520 = vmul.f32 %v471, %v519
    %v521 = vsub.f32 1.0, %v520
    %v522 = vmul.f32 %v519, %v521
    %v523 = vadd.f32 %v519, %v522
    %vm524 = vweird.f32 %v471
    %vm525 = vweird.f32 %v519
    %vm526 = vmor %vm524, %vm525
    %v527 = vsel %vm526, %v519, %v523
    %v528 = vand.u32 2147483647, %v471
    %vm529 = vcmp.eq.f32.partialorder %v528, 8.507059e+37
    %v530 = vand.u32 %v471, 2147483648
    %v531 = vor.u32 1.1754944e-38, %v530
    %v532 = vsel %vm529, %v531, %v527
    %v533 = vmul.f32 %v435, %v532
    %v534 = vrcp.pop %v472
    %v535 = vmul.f32 %v472, %v534
    %v536 = vsub.f32 1.0, %v535
    %v537 = vmul.f32 %v534, %v536
    %v538 = vadd.f32 %v534, %v537
    %vm539 = vweird.f32 %v472
    %vm540 = vweird.f32 %v534
    %vm541 = vmor %vm539, %vm540
    %v542 = vsel %vm541, %v534, %v538
    %v543 = vand.u32 2147483647, %v472
    %vm544 = vcmp.eq.f32.partialorder %v543, 8.507059e+37
    %v545 = vand.u32 %v472, 2147483648
    %v546 = vor.u32 1.1754944e-38, %v545
    %v547 = vsel %vm544, %v546, %v542
    %v548 = vmul.f32 %v436, %v547
    %v549 = vrcp.pop %v473
    %v550 = vmul.f32 %v473, %v549
    %v551 = vsub.f32 1.0, %v550
    %v552 = vmul.f32 %v549, %v551
    %v553 = vadd.f32 %v549, %v552
    %vm554 = vweird.f32 %v473
    %vm555 = vweird.f32 %v549
    %vm556 = vmor %vm554, %vm555
    %v557 = vsel %vm556, %v549, %v553
    %v558 = vand.u32 2147483647, %v473
    %vm559 = vcmp.eq.f32.partialorder %v558, 8.507059e+37
    %v560 = vand.u32 %v473, 2147483648
    %v561 = vor.u32 1.1754944e-38, %v560
    %v562 = vsel %vm559, %v561, %v557
    %v563 = vmul.f32 %v437, %v562
    %v564 = vsel %vm125, %v488, 0.0
    %v565 = vsel %vm125, %v503, 0.0
    %v566 = vadd.f32 %v564, %v565
    %v567 = vsel %vm125, %v518, 0.0
    %v568 = vadd.f32 %v566, %v567
    %v569 = vsel %vm125, %v533, 0.0
    %v570 = vadd.f32 %v568, %v569
    %v571 = vsel %vm125, %v548, 0.0
    %v572 = vadd.f32 %v570, %v571
    %v573 = vsel %vm125, %v563, 0.0
    %v574 = vadd.f32 %v572, %v573
    %v575 = vrot.slane %v574, 4
    %v576 = vadd.f32 %v574, %v575
    %v577 = vrot.slane %v576, 2
    %v578 = vadd.f32 %v576, %v577
    %v579 = vrot.slane %v578, 1
    %v580 = vadd.f32 %v578, %v579
    %v581 = vmul.f32 %v580, 64.0
    %v582 = vadd.f32 %v581, 1e-30
    %v583 = vrcp.pop %v582
    %v584 = vmul.f32 %v582, %v583
    %v585 = vsub.f32 1.0, %v584
    %v586 = vmul.f32 %v583, %v585
    %v587 = vadd.f32 %v583, %v586
    %vm588 = vweird.f32 %v582
    %vm589 = vweird.f32 %v583
    %vm590 = vmor %vm588, %vm589
    %v591 = vsel %vm590, %v583, %v587
    %v592 = vand.u32 2147483647, %v582
    %vm593 = vcmp.eq.f32.partialorder %v592, 8.507059e+37
    %v594 = vand.u32 %v582, 2147483648
    %v595 = vor.u32 1.1754944e-38, %v594
    %v596 = vsel %vm593, %v595, %v591
    %v597 = vmul.f32 %v488, %v596
    %v598 = vmul.f32 %v503, %v596
    %v599 = vmul.f32 %v518, %v596
    %v600 = vmul.f32 %v533, %v596
    %v601 = vmul.f32 %v548, %v596
    %v602 = vmul.f32 %v563, %v596
    %v603 = vsel %vm125, %v597, 0.0
    %604 = vadd.xlane.f32.xlu0 %v603
    %v605 = vpop.xlane.xlu0 %604
    %v606 = vsel %vm125, %v598, 0.0
    %607 = vadd.xlane.f32.xlu0 %v606
    %v608 = vpop.xlane.xlu0 %607
    %v609 = vsel %vm125, %v599, 0.0
    %610 = vadd.xlane.f32.xlu0 %v609
    %v611 = vpop.xlane.xlu0 %610
    %v612 = vsel %vm125, %v600, 0.0
    %613 = vadd.xlane.f32.xlu0 %v612
    %v614 = vpop.xlane.xlu0 %613
    %v615 = vsel %vm125, %v601, 0.0
    %616 = vadd.xlane.f32.xlu0 %v615
    %v617 = vpop.xlane.xlu0 %616
    %v618 = vsel %vm125, %v602, 0.0
    %619 = vadd.xlane.f32.xlu0 %v618
    %v620 = vpop.xlane.xlu0 %619
    %v621 = vmul.f32 %v94, %v605
    %v622 = vmul.f32 %v94, %v608
    %v623 = vmul.f32 %v94, %v611
    %v624 = vmul.f32 %v94, %v614
    %v625 = vmul.f32 %v94, %v617
    %v626 = vmul.f32 %v94, %v620
    %v627 = vadd.f32 %v621, %v291
    %v628 = vadd.f32 %v622, %v292
    %v629 = vadd.f32 %v623, %v293
    %v630 = vadd.f32 %v624, %v294
    %v631 = vadd.f32 %v625, %v295
    %v632 = vadd.f32 %v626, %v296
    %v633 = vadd.f32 %v627, 1e-30
    %v634 = vadd.f32 %v628, 1e-30
    %v635 = vadd.f32 %v629, 1e-30
    %v636 = vadd.f32 %v630, 1e-30
    %v637 = vadd.f32 %v631, 1e-30
    %v638 = vadd.f32 %v632, 1e-30
    %v639 = vrcp.pop %v633
    %v640 = vmul.f32 %v633, %v639
    %v641 = vsub.f32 1.0, %v640
    %v642 = vmul.f32 %v639, %v641
    %v643 = vadd.f32 %v639, %v642
    %vm644 = vweird.f32 %v633
    %vm645 = vweird.f32 %v639
    %vm646 = vmor %vm644, %vm645
    %v647 = vsel %vm646, %v639, %v643
    %v648 = vand.u32 2147483647, %v633
    %vm649 = vcmp.eq.f32.partialorder %v648, 8.507059e+37
    %v650 = vand.u32 %v633, 2147483648
    %v651 = vor.u32 1.1754944e-38, %v650
    %v652 = vsel %vm649, %v651, %v647
    %v653 = vmul.f32 %v597, %v652
    %v654 = vrcp.pop %v634
    %v655 = vmul.f32 %v634, %v654
    %v656 = vsub.f32 1.0, %v655
    %v657 = vmul.f32 %v654, %v656
    %v658 = vadd.f32 %v654, %v657
    %vm659 = vweird.f32 %v634
    %vm660 = vweird.f32 %v654
    %vm661 = vmor %vm659, %vm660
    %v662 = vsel %vm661, %v654, %v658
    %v663 = vand.u32 2147483647, %v634
    %vm664 = vcmp.eq.f32.partialorder %v663, 8.507059e+37
    %v665 = vand.u32 %v634, 2147483648
    %v666 = vor.u32 1.1754944e-38, %v665
    %v667 = vsel %vm664, %v666, %v662
    %v668 = vmul.f32 %v598, %v667
    %v669 = vrcp.pop %v635
    %v670 = vmul.f32 %v635, %v669
    %v671 = vsub.f32 1.0, %v670
    %v672 = vmul.f32 %v669, %v671
    %v673 = vadd.f32 %v669, %v672
    %vm674 = vweird.f32 %v635
    %vm675 = vweird.f32 %v669
    %vm676 = vmor %vm674, %vm675
    %v677 = vsel %vm676, %v669, %v673
    %v678 = vand.u32 2147483647, %v635
    %vm679 = vcmp.eq.f32.partialorder %v678, 8.507059e+37
    %v680 = vand.u32 %v635, 2147483648
    %v681 = vor.u32 1.1754944e-38, %v680
    %v682 = vsel %vm679, %v681, %v677
    %v683 = vmul.f32 %v599, %v682
    %v684 = vrcp.pop %v636
    %v685 = vmul.f32 %v636, %v684
    %v686 = vsub.f32 1.0, %v685
    %v687 = vmul.f32 %v684, %v686
    %v688 = vadd.f32 %v684, %v687
    %vm689 = vweird.f32 %v636
    %vm690 = vweird.f32 %v684
    %vm691 = vmor %vm689, %vm690
    %v692 = vsel %vm691, %v684, %v688
    %v693 = vand.u32 2147483647, %v636
    %vm694 = vcmp.eq.f32.partialorder %v693, 8.507059e+37
    %v695 = vand.u32 %v636, 2147483648
    %v696 = vor.u32 1.1754944e-38, %v695
    %v697 = vsel %vm694, %v696, %v692
    %v698 = vmul.f32 %v600, %v697
    %v699 = vrcp.pop %v637
    %v700 = vmul.f32 %v637, %v699
    %v701 = vsub.f32 1.0, %v700
    %v702 = vmul.f32 %v699, %v701
    %v703 = vadd.f32 %v699, %v702
    %vm704 = vweird.f32 %v637
    %vm705 = vweird.f32 %v699
    %vm706 = vmor %vm704, %vm705
    %v707 = vsel %vm706, %v699, %v703
    %v708 = vand.u32 2147483647, %v637
    %vm709 = vcmp.eq.f32.partialorder %v708, 8.507059e+37
    %v710 = vand.u32 %v637, 2147483648
    %v711 = vor.u32 1.1754944e-38, %v710
    %v712 = vsel %vm709, %v711, %v707
    %v713 = vmul.f32 %v601, %v712
    %v714 = vrcp.pop %v638
    %v715 = vmul.f32 %v638, %v714
    %v716 = vsub.f32 1.0, %v715
    %v717 = vmul.f32 %v714, %v716
    %v718 = vadd.f32 %v714, %v717
    %vm719 = vweird.f32 %v638
    %vm720 = vweird.f32 %v714
    %vm721 = vmor %vm719, %vm720
    %v722 = vsel %vm721, %v714, %v718
    %v723 = vand.u32 2147483647, %v638
    %vm724 = vcmp.eq.f32.partialorder %v723, 8.507059e+37
    %v725 = vand.u32 %v638, 2147483648
    %v726 = vor.u32 1.1754944e-38, %v725
    %v727 = vsel %vm724, %v726, %v722
    %v728 = vmul.f32 %v602, %v727
    %v729 = vmul.f32 %v653, %v94
    %v730 = vmul.f32 %v668, %v94
    %v731 = vmul.f32 %v683, %v94
    %v732 = vmul.f32 %v698, %v94
    %v733 = vmul.f32 %v713, %v94
    %v734 = vmul.f32 %v728, %v94
    %v735 = vmul.f32 %v18, 10.0
    %v736 = vmul.f32 %v19, 10.0
    %v737 = vmul.f32 %v20, 10.0
    %v738 = vmul.f32 %v21, 10.0
    %v739 = vmul.f32 %v22, 10.0
    %v740 = vmul.f32 %v23, 10.0
    %v741 = vsel %vm125, %v735, -inf
    %742 = vmax.xlane.f32.xlu0 %v741
    %v743 = vpop.xlane.xlu0 %742
    %v744 = vsel %vm125, %v736, -inf
    %745 = vmax.xlane.f32.xlu0 %v744
    %v746 = vpop.xlane.xlu0 %745
    %v747 = vsel %vm125, %v737, -inf
    %748 = vmax.xlane.f32.xlu0 %v747
    %v749 = vpop.xlane.xlu0 %748
    %v750 = vsel %vm125, %v738, -inf
    %751 = vmax.xlane.f32.xlu0 %v750
    %v752 = vpop.xlane.xlu0 %751
    %v753 = vsel %vm125, %v739, -inf
    %754 = vmax.xlane.f32.xlu0 %v753
    %v755 = vpop.xlane.xlu0 %754
    %v756 = vsel %vm125, %v740, -inf
    %757 = vmax.xlane.f32.xlu0 %v756
    %v758 = vpop.xlane.xlu0 %757
    %v759 = vsub.f32 %v735, %v743
    %v760 = vsub.f32 %v736, %v746
    %v761 = vsub.f32 %v737, %v749
    %v762 = vsub.f32 %v738, %v752
    %v763 = vsub.f32 %v739, %v755
    %v764 = vsub.f32 %v740, %v758
    %v765 = vmul.f32 %v759, 1.442695
    %v766 = vpow.pop %v765
    %v767 = vmul.f32 %v760, 1.442695
    %v768 = vpow.pop %v767
    %v769 = vmul.f32 %v761, 1.442695
    %v770 = vpow.pop %v769
    %v771 = vmul.f32 %v762, 1.442695
    %v772 = vpow.pop %v771
    %v773 = vmul.f32 %v763, 1.442695
    %v774 = vpow.pop %v773
    %v775 = vmul.f32 %v764, 1.442695
    %v776 = vpow.pop %v775
    %v777 = vsel %vm125, %v766, 0.0
    %778 = vadd.xlane.f32.xlu0 %v777
    %v779 = vpop.xlane.xlu0 %778
    %v780 = vsel %vm125, %v768, 0.0
    %781 = vadd.xlane.f32.xlu0 %v780
    %v782 = vpop.xlane.xlu0 %781
    %v783 = vsel %vm125, %v770, 0.0
    %784 = vadd.xlane.f32.xlu0 %v783
    %v785 = vpop.xlane.xlu0 %784
    %v786 = vsel %vm125, %v772, 0.0
    %787 = vadd.xlane.f32.xlu0 %v786
    %v788 = vpop.xlane.xlu0 %787
    %v789 = vsel %vm125, %v774, 0.0
    %790 = vadd.xlane.f32.xlu0 %v789
    %v791 = vpop.xlane.xlu0 %790
    %v792 = vsel %vm125, %v776, 0.0
    %793 = vadd.xlane.f32.xlu0 %v792
    %v794 = vpop.xlane.xlu0 %793
    %v795 = vlog2.pop %v779
    %v796 = vmul.f32 %v795, 0.6931472
    %v797 = vlog2.pop %v782
    %v798 = vmul.f32 %v797, 0.6931472
    %v799 = vlog2.pop %v785
    %v800 = vmul.f32 %v799, 0.6931472
    %v801 = vlog2.pop %v788
    %v802 = vmul.f32 %v801, 0.6931472
    %v803 = vlog2.pop %v791
    %v804 = vmul.f32 %v803, 0.6931472
    %v805 = vlog2.pop %v794
    %v806 = vmul.f32 %v805, 0.6931472
    %v807 = vsub.f32 %v759, %v796
    %v808 = vsub.f32 %v760, %v798
    %v809 = vsub.f32 %v761, %v800
    %v810 = vsub.f32 %v762, %v802
    %v811 = vsub.f32 %v763, %v804
    %v812 = vsub.f32 %v764, %v806
    %v813 = vmul.f32 %v729, %v807
    %v814 = vmul.f32 %v730, %v808
    %v815 = vmul.f32 %v731, %v809
    %v816 = vmul.f32 %v732, %v810
    %v817 = vmul.f32 %v733, %v811
    %v818 = vmul.f32 %v734, %v812
    %v819 = vsel %vm125, %v813, 0.0
    %820 = vadd.xlane.f32.xlu0 %v819
    %v821 = vpop.xlane.xlu0 %820
    %v822 = vsel %vm125, %v814, 0.0
    %823 = vadd.xlane.f32.xlu0 %v822
    %v824 = vpop.xlane.xlu0 %823
    %v825 = vsel %vm125, %v815, 0.0
    %826 = vadd.xlane.f32.xlu0 %v825
    %v827 = vpop.xlane.xlu0 %826
    %v828 = vsel %vm125, %v816, 0.0
    %829 = vadd.xlane.f32.xlu0 %v828
    %v830 = vpop.xlane.xlu0 %829
    %v831 = vsel %vm125, %v817, 0.0
    %832 = vadd.xlane.f32.xlu0 %v831
    %v833 = vpop.xlane.xlu0 %832
    %v834 = vsel %vm125, %v818, 0.0
    %835 = vadd.xlane.f32.xlu0 %v834
    %v836 = vpop.xlane.xlu0 %835
    %v837 = vsub.f32 0.0, %v821
    %v838 = vsub.f32 0.0, %v824
    %v839 = vsub.f32 0.0, %v827
    %v840 = vsub.f32 0.0, %v830
    %v841 = vsub.f32 0.0, %v833
    %v842 = vsub.f32 0.0, %v836
    %v843 = vadd.f32 %v837, %v838
    %v844 = vadd.f32 %v843, %v839
    %v845 = vadd.f32 %v844, %v840
    %v846 = vadd.f32 %v845, %v841
    %v847 = vadd.f32 %v846, %v842
    %v848 = vrot.slane %v847, 4
    %v849 = vadd.f32 %v847, %v848
    %v850 = vrot.slane %v849, 2
    %v851 = vadd.f32 %v849, %v850
    %v852 = vrot.slane %v851, 1
    %v853 = vadd.f32 %v851, %v852
    %v854 = vrcp.pop %v94
    %v855 = vmul.f32 %v94, %v854
    %v856 = vsub.f32 1.0, %v855
    %v857 = vmul.f32 %v854, %v856
    %v858 = vadd.f32 %v854, %v857
    %vm859 = vweird.f32 %v94
    %vm860 = vweird.f32 %v854
    %vm861 = vmor %vm859, %vm860
    %v862 = vsel %vm861, %v854, %v858
    %v863 = vand.u32 2147483647, %v94
    %vm864 = vcmp.eq.f32.partialorder %v863, 8.507059e+37
    %v865 = vand.u32 %v94, 2147483648
    %v866 = vor.u32 1.1754944e-38, %v865
    %v867 = vsel %vm864, %v866, %v862
    %v868 = vmul.f32 %v853, %v867
    %vm869 = vcmask 0
    %870 = vst.msk [vmem:[#allocation4] sm:$0x1] %vm869, %v868
    // Predicated region
    $region6: #{model_forward.3} parent=1 // pred_check
      _
    $region7: #{model_forward.3} parent=1 // pred_check_branch
      %872 = sbr.rel (0) target = $region9
    $region8: #{model_forward.3} parent=1 // pred_region
      %874 = vsyncadd [#allocation5], 0
      %s876 = sshll.u32 [#allocation4], 4
      %s877 = int_to_ptr.vmem [resolvable:$true] %s876
      %s878 = sshll.u32 %s2, 4
      %s879 = int_to_ptr.hbm [resolvable:$true] %s878
      %881 = dma.vmem_to_hbm [thread:$0]  %s877, 16, %s879, [#allocation5]
    $region9: #{model_forward.3} parent=1 // pred_fallthru
      _
    // Predicated region
    $region10: #{model_forward.3} parent=1 // pred_check
      _
    $region11: #{model_forward.3} parent=1 // pred_check_branch
      %883 = sbr.rel (0) target = $region13
    $region12: #{model_forward.3} parent=1 // pred_region
      %885 = dma.done [#allocation5], 16
    $region13: #{model_forward.3} parent=1 // pred_fallthru
      _
    %886 = vsyncpa [#allocation5], 1

// kernel: model_forward.2
$region0: #{model_forward.2}
  #allocation0 [shape = 'u32[]', space=smem, size = 0x4, offset = 0x4, fixed_abs, tag = 'smem constant byte address 0x4 - core index']
  #allocation1 [shape = 'u32[72,128]{1,0:T(1,128)}', space=vmem, size = 0x9000, scoped, tag = 'internal scratch']
  #allocation2 [shape = 's32[1]{0}', space=sflag, size = 0x4, scoped, tag = 'scoped memory for model_forward.2']
  #allocation3 [shape = 'u8[512]{0}', space=smem, size = 0x200, scoped, tag = 'prefetched SMEM operand 0']
  %s0 = inlined_call_operand.smem [shape: u32[32], index: -1, kind: input, shape index: {}]
  %s1 = sld [smem:[%s0]]
  %s2 = scalar_lea.smem %s0, 1
  %s3 = sld [smem:[%s2]]
  %s4 = scalar_lea.smem %s0, 2
  %s5 = sld [smem:[%s4]]
  %s6 = scalar_lea.smem %s0, 3
  %s7 = sld [smem:[%s6]]
  %s8 = scalar_lea.smem %s0, 4
  %s9 = sld [smem:[%s8]]
  %s10 = scalar_lea.smem %s0, 5
  %s11 = sld [smem:[%s10]]
  %s12 = scalar_lea.smem %s0, 6
  %s13 = sld [smem:[%s12]]
  %s14 = scalar_lea.smem %s0, 7
  %s15 = sld [smem:[%s14]]
  %s16 = scalar_lea.smem %s0, 8
  %s17 = sld [smem:[%s16]]
  %s18 = scalar_lea.smem %s0, 9
  %s19 = sld [smem:[%s18]]
  %s20 = scalar_lea.smem %s0, 10
  %s21 = sld [smem:[%s20]]
  %s22 = scalar_lea.smem %s0, 11
  %s23 = sld [smem:[%s22]]
  %s24 = scalar_lea.smem %s0, 12
  %s25 = sld [smem:[%s24]]
  %s26 = scalar_lea.smem %s0, 13
  %s27 = sld [smem:[%s26]]
  %s28 = scalar_lea.smem %s0, 14
  %s29 = sld [smem:[%s28]]
  %s30 = scalar_lea.smem %s0, 15
  %s31 = sld [smem:[%s30]]
  %s32 = scalar_lea.smem %s0, 16
  %s33 = sld [smem:[%s32]]
  %s34 = scalar_lea.smem %s0, 17
  %s35 = sld [smem:[%s34]]
  %s36 = scalar_lea.smem %s0, 18
  %s37 = sld [smem:[%s36]]
  %s38 = scalar_lea.smem %s0, 19
  %s39 = sld [smem:[%s38]]
  %s40 = scalar_lea.smem %s0, 20
  %s41 = sld [smem:[%s40]]
  %s42 = scalar_lea.smem %s0, 21
  %s43 = sld [smem:[%s42]]
  %s44 = scalar_lea.smem %s0, 22
  %s45 = sld [smem:[%s44]]
  %s46 = scalar_lea.smem %s0, 23
  %s47 = sld [smem:[%s46]]
  %s48 = scalar_lea.smem %s0, 24
  %s49 = sld [smem:[%s48]]
  %s50 = scalar_lea.smem %s0, 25
  %s51 = sld [smem:[%s50]]
  %s52 = scalar_lea.smem %s0, 26
  %s53 = sld [smem:[%s52]]
  %s54 = scalar_lea.smem %s0, 27
  %s55 = sld [smem:[%s54]]
  %s56 = scalar_lea.smem %s0, 28
  %s57 = sld [smem:[%s56]]
  %s58 = scalar_lea.smem %s0, 29
  %s59 = sld [smem:[%s58]]
  %s60 = scalar_lea.smem %s0, 30
  %s61 = sld [smem:[%s60]]
  %s62 = scalar_lea.smem %s0, 31
  %s63 = sld [smem:[%s62]]
  %s64 = sld [smem:[#allocation0]]
  $region153: #{model_forward.2} parent=0
    _
  %s66 = ssub.s32 1, %s64
  %s67 = scalar_select 0, %s66, %s64
  %s69 = sshll.u32 %s1, 4
  %s70 = int_to_ptr.vmem [resolvable:$true] %s69
  %72 = dma.vmem_to_smem %s70, 16, [#allocation3], [#allocation2]
  %74 = dma.done [#allocation2], 16
  %75 = sfence
  loop: start=0, step=1, limit=4
  $region2: #{model_forward.2} parent=0 // loop_pre_header
    _
  $region3: #{model_forward.2} parent=0 // loop_header
    %s77 = sphi 0, %s81
    %p78 = scmp.ge.s32.totalorder %s77, 4
    %s87 = sphi 0, %s89
    %s90 = sphi 0, %s87
    %s91 = sphi 0, %s90
    %s107 = sphi 0, %s91
    %s111 = sphi 0, %s111
    %s113 = sphi 0, %s111
    %s114 = sphi 0, %s113
    %s128 = sphi 0, %s114
    %s132 = sphi 0, %s132
    %s134 = sphi 0, %s132
    %s135 = sphi 0, %s134
    %s149 = sphi 0, %s135
    %s153 = sphi 0, %s153
    %s155 = sphi 0, %s153
    %s156 = sphi 0, %s155
    %s170 = sphi 0, %s156
    %s174 = sphi 0, %s174
    %s176 = sphi 0, %s174
    %s177 = sphi 0, %s176
    %s191 = sphi 0, %s177
    %s195 = sphi 0, %s195
    %s197 = sphi 0, %s195
    %s198 = sphi 0, %s197
    %s212 = sphi 0, %s198
    %s216 = sphi 0, %s216
    %s218 = sphi 0, %s216
    %s219 = sphi 0, %s218
    %s233 = sphi 0, %s219
    %s237 = sphi 0, %s237
    %s239 = sphi 0, %s237
    %s240 = sphi 0, %s239
    %s254 = sphi 0, %s240
    %s258 = sphi 0, %s258
    %s260 = sphi 0, %s258
    %s261 = sphi 0, %s260
    %s275 = sphi 0, %s261
    %s279 = sphi 0, %s279
    %s281 = sphi 0, %s279
    %s282 = sphi 0, %s281
    %s296 = sphi 0, %s282
    %s300 = sphi 0, %s300
    %s302 = sphi 0, %s300
    %s303 = sphi 0, %s302
    %s317 = sphi 0, %s303
    %s321 = sphi 0, %s321
    %s323 = sphi 0, %s321
    %s324 = sphi 0, %s323
    %s338 = sphi 0, %s324
    %s342 = sphi 0, %s342
    %s344 = sphi 0, %s342
    %s345 = sphi 0, %s344
    %s359 = sphi 0, %s345
    %s363 = sphi 0, %s363
    %s365 = sphi 0, %s363
    %s366 = sphi 0, %s365
    %s380 = sphi 0, %s366
    %s384 = sphi 0, %s384
    %s386 = sphi 0, %s384
    %s387 = sphi 0, %s386
    %s401 = sphi 0, %s387
    %s405 = sphi 0, %s405
    %s407 = sphi 0, %s405
    %s408 = sphi 0, %s407
    %s422 = sphi 0, %s408
    %s426 = sphi 0, %s426
    %s428 = sphi 0, %s426
    %s429 = sphi 0, %s428
    %s443 = sphi 0, %s429
    %s447 = sphi 0, %s447
    %s449 = sphi 0, %s447
    %s450 = sphi 0, %s449
    %s464 = sphi 0, %s450
    %s468 = sphi 0, %s468
    %s470 = sphi 0, %s468
    %s471 = sphi 0, %s470
    %s485 = sphi 0, %s471
    %s489 = sphi 0, %s489
    %s491 = sphi 0, %s489
    %s492 = sphi 0, %s491
    %s506 = sphi 0, %s492
    %s510 = sphi 0, %s510
    %s512 = sphi 0, %s510
    %s513 = sphi 0, %s512
    %s527 = sphi 0, %s513
    %s531 = sphi 0, %s531
    %s533 = sphi 0, %s531
    %s534 = sphi 0, %s533
    %s548 = sphi 0, %s534
    %s552 = sphi 0, %s552
    %s554 = sphi 0, %s552
    %s555 = sphi 0, %s554
    %s569 = sphi 0, %s555
    %s573 = sphi 0, %s573
    %s575 = sphi 0, %s573
    %s576 = sphi 0, %s575
    %s590 = sphi 0, %s576
    %s594 = sphi 0, %s594
    %s596 = sphi 0, %s594
    %s597 = sphi 0, %s596
    %s611 = sphi 0, %s597
    %s615 = sphi 0, %s615
    %s617 = sphi 0, %s615
    %s618 = sphi 0, %s617
    %s632 = sphi 0, %s618
    %s636 = sphi 0, %s636
    %s638 = sphi 0, %s636
    %s639 = sphi 0, %s638
    %s653 = sphi 0, %s639
    %s657 = sphi 0, %s657
    %s659 = sphi 0, %s657
    %s660 = sphi 0, %s659
    %s674 = sphi 0, %s660
    %s678 = sphi 0, %s678
    %s680 = sphi 0, %s678
    %s681 = sphi 0, %s680
    %s695 = sphi 0, %s681
    %s699 = sphi 0, %s699
    %s701 = sphi 0, %s699
    %s702 = sphi 0, %s701
    %s716 = sphi 0, %s702
    %s722 = sphi 0, %s724
    %s725 = sphi 0, %s722
    %s726 = sphi 0, %s725
    %s742 = sphi 0, %s726
  $region4: #{model_forward.2} parent=0 // loop_header_branch
    %80 = sbr.rel (%p78) target = $region8
  $region5: #{model_forward.2} parent=0 // loop_body
    %s82 = ssub.s32 %s77, 1
    %s83 = ssub.s32 %s77, 2
    %s84 = sadd.s32 %s77, 1
    %s85 = ssub.s32 %s77, %s84
    %p86 = scmp.eq.s32.totalorder %s85, 0
    %s88 = sadd.s32 %s87, 1
    %s89 = scalar_select %p86, %s87, %s88
    %p92 = pneg %p86
    %p93 = scmp.eq.s32.totalorder %s77, 1
    %p94 = por %p92, %p93
    %p95 = scmp.ne.s32.totalorder %s87, %s90
    %p96 = scmp.eq.s32.totalorder %s77, 0
    %p97 = por %p95, %p96
    %p98 = scmp.ne.s32.totalorder %s87, %s90
    %p99 = scmp.eq.s32.totalorder %s82, 1
    %p100 = por %p98, %p99
    %p101 = scmp.ne.s32.totalorder %s90, %s91
    %p102 = scmp.eq.s32.totalorder %s82, 0
    %p103 = por %p101, %p102
    %p104 = scmp.ne.s32.totalorder %s90, %s91
    %p105 = scmp.eq.s32.totalorder %s83, 1
    %p106 = por %p104, %p105
    %p108 = scmp.ne.s32.totalorder %s91, %s107
    %p109 = scmp.eq.s32.totalorder %s83, 0
    %p110 = por %p108, %p109
    %s112 = sadd.s32 %s111, 1
    %p115 = scmp.eq.s32.totalorder %s77, 1
    %p116 = scmp.ne.s32.totalorder %s111, %s113
    %p117 = scmp.eq.s32.totalorder %s77, 0
    %p118 = por %p116, %p117
    %p119 = scmp.ne.s32.totalorder %s111, %s113
    %p120 = scmp.eq.s32.totalorder %s82, 1
    %p121 = por %p119, %p120
    %p122 = scmp.ne.s32.totalorder %s113, %s114
    %p123 = scmp.eq.s32.totalorder %s82, 0
    %p124 = por %p122, %p123
    %p125 = scmp.ne.s32.totalorder %s113, %s114
    %p126 = scmp.eq.s32.totalorder %s83, 1
    %p127 = por %p125, %p126
    %p129 = scmp.ne.s32.totalorder %s114, %s128
    %p130 = scmp.eq.s32.totalorder %s83, 0
    %p131 = por %p129, %p130
    %s133 = sadd.s32 %s132, 1
    %p136 = scmp.eq.s32.totalorder %s77, 1
    %p137 = scmp.ne.s32.totalorder %s132, %s134
    %p138 = scmp.eq.s32.totalorder %s77, 0
    %p139 = por %p137, %p138
    %p140 = scmp.ne.s32.totalorder %s132, %s134
    %p141 = scmp.eq.s32.totalorder %s82, 1
    %p142 = por %p140, %p141
    %p143 = scmp.ne.s32.totalorder %s134, %s135
    %p144 = scmp.eq.s32.totalorder %s82, 0
    %p145 = por %p143, %p144
    %p146 = scmp.ne.s32.totalorder %s134, %s135
    %p147 = scmp.eq.s32.totalorder %s83, 1
    %p148 = por %p146, %p147
    %p150 = scmp.ne.s32.totalorder %s135, %s149
    %p151 = scmp.eq.s32.totalorder %s83, 0
    %p152 = por %p150, %p151
    %s154 = sadd.s32 %s153, 1
    %p157 = scmp.eq.s32.totalorder %s77, 1
    %p158 = scmp.ne.s32.totalorder %s153, %s155
    %p159 = scmp.eq.s32.totalorder %s77, 0
    %p160 = por %p158, %p159
    %p161 = scmp.ne.s32.totalorder %s153, %s155
    %p162 = scmp.eq.s32.totalorder %s82, 1
    %p163 = por %p161, %p162
    %p164 = scmp.ne.s32.totalorder %s155, %s156
    %p165 = scmp.eq.s32.totalorder %s82, 0
    %p166 = por %p164, %p165
    %p167 = scmp.ne.s32.totalorder %s155, %s156
    %p168 = scmp.eq.s32.totalorder %s83, 1
    %p169 = por %p167, %p168
    %p171 = scmp.ne.s32.totalorder %s156, %s170
    %p172 = scmp.eq.s32.totalorder %s83, 0
    %p173 = por %p171, %p172
    %s175 = sadd.s32 %s174, 1
    %p178 = scmp.eq.s32.totalorder %s77, 1
    %p179 = scmp.ne.s32.totalorder %s174, %s176
    %p180 = scmp.eq.s32.totalorder %s77, 0
    %p181 = por %p179, %p180
    %p182 = scmp.ne.s32.totalorder %s174, %s176
    %p183 = scmp.eq.s32.totalorder %s82, 1
    %p184 = por %p182, %p183
    %p185 = scmp.ne.s32.totalorder %s176, %s177
    %p186 = scmp.eq.s32.totalorder %s82, 0
    %p187 = por %p185, %p186
    %p188 = scmp.ne.s32.totalorder %s176, %s177
    %p189 = scmp.eq.s32.totalorder %s83, 1
    %p190 = por %p188, %p189
    %p192 = scmp.ne.s32.totalorder %s177, %s191
    %p193 = scmp.eq.s32.totalorder %s83, 0
    %p194 = por %p192, %p193
    %s196 = sadd.s32 %s195, 1
    %p199 = scmp.eq.s32.totalorder %s77, 1
    %p200 = scmp.ne.s32.totalorder %s195, %s197
    %p201 = scmp.eq.s32.totalorder %s77, 0
    %p202 = por %p200, %p201
    %p203 = scmp.ne.s32.totalorder %s195, %s197
    %p204 = scmp.eq.s32.totalorder %s82, 1
    %p205 = por %p203, %p204
    %p206 = scmp.ne.s32.totalorder %s197, %s198
    %p207 = scmp.eq.s32.totalorder %s82, 0
    %p208 = por %p206, %p207
    %p209 = scmp.ne.s32.totalorder %s197, %s198
    %p210 = scmp.eq.s32.totalorder %s83, 1
    %p211 = por %p209, %p210
    %p213 = scmp.ne.s32.totalorder %s198, %s212
    %p214 = scmp.eq.s32.totalorder %s83, 0
    %p215 = por %p213, %p214
    %s217 = sadd.s32 %s216, 1
    %p220 = scmp.eq.s32.totalorder %s77, 1
    %p221 = scmp.ne.s32.totalorder %s216, %s218
    %p222 = scmp.eq.s32.totalorder %s77, 0
    %p223 = por %p221, %p222
    %p224 = scmp.ne.s32.totalorder %s216, %s218
    %p225 = scmp.eq.s32.totalorder %s82, 1
    %p226 = por %p224, %p225
    %p227 = scmp.ne.s32.totalorder %s218, %s219
    %p228 = scmp.eq.s32.totalorder %s82, 0
    %p229 = por %p227, %p228
    %p230 = scmp.ne.s32.totalorder %s218, %s219
    %p231 = scmp.eq.s32.totalorder %s83, 1
    %p232 = por %p230, %p231
    %p234 = scmp.ne.s32.totalorder %s219, %s233
    %p235 = scmp.eq.s32.totalorder %s83, 0
    %p236 = por %p234, %p235
    %s238 = sadd.s32 %s237, 1
    %p241 = scmp.eq.s32.totalorder %s77, 1
    %p242 = scmp.ne.s32.totalorder %s237, %s239
    %p243 = scmp.eq.s32.totalorder %s77, 0
    %p244 = por %p242, %p243
    %p245 = scmp.ne.s32.totalorder %s237, %s239
    %p246 = scmp.eq.s32.totalorder %s82, 1
    %p247 = por %p245, %p246
    %p248 = scmp.ne.s32.totalorder %s239, %s240
    %p249 = scmp.eq.s32.totalorder %s82, 0
    %p250 = por %p248, %p249
    %p251 = scmp.ne.s32.totalorder %s239, %s240
    %p252 = scmp.eq.s32.totalorder %s83, 1
    %p253 = por %p251, %p252
    %p255 = scmp.ne.s32.totalorder %s240, %s254
    %p256 = scmp.eq.s32.totalorder %s83, 0
    %p257 = por %p255, %p256
    %s259 = sadd.s32 %s258, 1
    %p262 = scmp.eq.s32.totalorder %s77, 1
    %p263 = scmp.ne.s32.totalorder %s258, %s260
    %p264 = scmp.eq.s32.totalorder %s77, 0
    %p265 = por %p263, %p264
    %p266 = scmp.ne.s32.totalorder %s258, %s260
    %p267 = scmp.eq.s32.totalorder %s82, 1
    %p268 = por %p266, %p267
    %p269 = scmp.ne.s32.totalorder %s260, %s261
    %p270 = scmp.eq.s32.totalorder %s82, 0
    %p271 = por %p269, %p270
    %p272 = scmp.ne.s32.totalorder %s260, %s261
    %p273 = scmp.eq.s32.totalorder %s83, 1
    %p274 = por %p272, %p273
    %p276 = scmp.ne.s32.totalorder %s261, %s275
    %p277 = scmp.eq.s32.totalorder %s83, 0
    %p278 = por %p276, %p277
    %s280 = sadd.s32 %s279, 1
    %p283 = scmp.eq.s32.totalorder %s77, 1
    %p284 = scmp.ne.s32.totalorder %s279, %s281
    %p285 = scmp.eq.s32.totalorder %s77, 0
    %p286 = por %p284, %p285
    %p287 = scmp.ne.s32.totalorder %s279, %s281
    %p288 = scmp.eq.s32.totalorder %s82, 1
    %p289 = por %p287, %p288
    %p290 = scmp.ne.s32.totalorder %s281, %s282
    %p291 = scmp.eq.s32.totalorder %s82, 0
    %p292 = por %p290, %p291
    %p293 = scmp.ne.s32.totalorder %s281, %s282
    %p294 = scmp.eq.s32.totalorder %s83, 1
    %p295 = por %p293, %p294
    %p297 = scmp.ne.s32.totalorder %s282, %s296
    %p298 = scmp.eq.s32.totalorder %s83, 0
    %p299 = por %p297, %p298
    %s301 = sadd.s32 %s300, 1
    %p304 = scmp.eq.s32.totalorder %s77, 1
    %p305 = scmp.ne.s32.totalorder %s300, %s302
    %p306 = scmp.eq.s32.totalorder %s77, 0
    %p307 = por %p305, %p306
    %p308 = scmp.ne.s32.totalorder %s300, %s302
    %p309 = scmp.eq.s32.totalorder %s82, 1
    %p310 = por %p308, %p309
    %p311 = scmp.ne.s32.totalorder %s302, %s303
    %p312 = scmp.eq.s32.totalorder %s82, 0
    %p313 = por %p311, %p312
    %p314 = scmp.ne.s32.totalorder %s302, %s303
    %p315 = scmp.eq.s32.totalorder %s83, 1
    %p316 = por %p314, %p315
    %p318 = scmp.ne.s32.totalorder %s303, %s317
    %p319 = scmp.eq.s32.totalorder %s83, 0
    %p320 = por %p318, %p319
    %s322 = sadd.s32 %s321, 1
    %p325 = scmp.eq.s32.totalorder %s77, 1
    %p326 = scmp.ne.s32.totalorder %s321, %s323
    %p327 = scmp.eq.s32.totalorder %s77, 0
    %p328 = por %p326, %p327
    %p329 = scmp.ne.s32.totalorder %s321, %s323
    %p330 = scmp.eq.s32.totalorder %s82, 1
    %p331 = por %p329, %p330
    %p332 = scmp.ne.s32.totalorder %s323, %s324
    %p333 = scmp.eq.s32.totalorder %s82, 0
    %p334 = por %p332, %p333
    %p335 = scmp.ne.s32.totalorder %s323, %s324
    %p336 = scmp.eq.s32.totalorder %s83, 1
    %p337 = por %p335, %p336
    %p339 = scmp.ne.s32.totalorder %s324, %s338
    %p340 = scmp.eq.s32.totalorder %s83, 0
    %p341 = por %p339, %p340
    %s343 = sadd.s32 %s342, 1
    %p346 = scmp.eq.s32.totalorder %s77, 1
    %p347 = scmp.ne.s32.totalorder %s342, %s344
    %p348 = scmp.eq.s32.totalorder %s77, 0
    %p349 = por %p347, %p348
    %p350 = scmp.ne.s32.totalorder %s342, %s344
    %p351 = scmp.eq.s32.totalorder %s82, 1
    %p352 = por %p350, %p351
    %p353 = scmp.ne.s32.totalorder %s344, %s345
    %p354 = scmp.eq.s32.totalorder %s82, 0
    %p355 = por %p353, %p354
    %p356 = scmp.ne.s32.totalorder %s344, %s345
    %p357 = scmp.eq.s32.totalorder %s83, 1
    %p358 = por %p356, %p357
    %p360 = scmp.ne.s32.totalorder %s345, %s359
    %p361 = scmp.eq.s32.totalorder %s83, 0
    %p362 = por %p360, %p361
    %s364 = sadd.s32 %s363, 1
    %p367 = scmp.eq.s32.totalorder %s77, 1
    %p368 = scmp.ne.s32.totalorder %s363, %s365
    %p369 = scmp.eq.s32.totalorder %s77, 0
    %p370 = por %p368, %p369
    %p371 = scmp.ne.s32.totalorder %s363, %s365
    %p372 = scmp.eq.s32.totalorder %s82, 1
    %p373 = por %p371, %p372
    %p374 = scmp.ne.s32.totalorder %s365, %s366
    %p375 = scmp.eq.s32.totalorder %s82, 0
    %p376 = por %p374, %p375
    %p377 = scmp.ne.s32.totalorder %s365, %s366
    %p378 = scmp.eq.s32.totalorder %s83, 1
    %p379 = por %p377, %p378
    %p381 = scmp.ne.s32.totalorder %s366, %s380
    %p382 = scmp.eq.s32.totalorder %s83, 0
    %p383 = por %p381, %p382
    %s385 = sadd.s32 %s384, 1
    %p388 = scmp.eq.s32.totalorder %s77, 1
    %p389 = scmp.ne.s32.totalorder %s384, %s386
    %p390 = scmp.eq.s32.totalorder %s77, 0
    %p391 = por %p389, %p390
    %p392 = scmp.ne.s32.totalorder %s384, %s386
    %p393 = scmp.eq.s32.totalorder %s82, 1
    %p394 = por %p392, %p393
    %p395 = scmp.ne.s32.totalorder %s386, %s387
    %p396 = scmp.eq.s32.totalorder %s82, 0
    %p397 = por %p395, %p396
    %p398 = scmp.ne.s32.totalorder %s386, %s387
    %p399 = scmp.eq.s32.totalorder %s83, 1
    %p400 = por %p398, %p399
    %p402 = scmp.ne.s32.totalorder %s387, %s401
    %p403 = scmp.eq.s32.totalorder %s83, 0
    %p404 = por %p402, %p403
    %s406 = sadd.s32 %s405, 1
    %p409 = scmp.eq.s32.totalorder %s77, 1
    %p410 = scmp.ne.s32.totalorder %s405, %s407
    %p411 = scmp.eq.s32.totalorder %s77, 0
    %p412 = por %p410, %p411
    %p413 = scmp.ne.s32.totalorder %s405, %s407
    %p414 = scmp.eq.s32.totalorder %s82, 1
    %p415 = por %p413, %p414
    %p416 = scmp.ne.s32.totalorder %s407, %s408
    %p417 = scmp.eq.s32.totalorder %s82, 0
    %p418 = por %p416, %p417
    %p419 = scmp.ne.s32.totalorder %s407, %s408
    %p420 = scmp.eq.s32.totalorder %s83, 1
    %p421 = por %p419, %p420
    %p423 = scmp.ne.s32.totalorder %s408, %s422
    %p424 = scmp.eq.s32.totalorder %s83, 0
    %p425 = por %p423, %p424
    %s427 = sadd.s32 %s426, 1
    %p430 = scmp.eq.s32.totalorder %s77, 1
    %p431 = scmp.ne.s32.totalorder %s426, %s428
    %p432 = scmp.eq.s32.totalorder %s77, 0
    %p433 = por %p431, %p432
    %p434 = scmp.ne.s32.totalorder %s426, %s428
    %p435 = scmp.eq.s32.totalorder %s82, 1
    %p436 = por %p434, %p435
    %p437 = scmp.ne.s32.totalorder %s428, %s429
    %p438 = scmp.eq.s32.totalorder %s82, 0
    %p439 = por %p437, %p438
    %p440 = scmp.ne.s32.totalorder %s428, %s429
    %p441 = scmp.eq.s32.totalorder %s83, 1
    %p442 = por %p440, %p441
    %p444 = scmp.ne.s32.totalorder %s429, %s443
    %p445 = scmp.eq.s32.totalorder %s83, 0
    %p446 = por %p444, %p445
    %s448 = sadd.s32 %s447, 1
    %p451 = scmp.eq.s32.totalorder %s77, 1
    %p452 = scmp.ne.s32.totalorder %s447, %s449
    %p453 = scmp.eq.s32.totalorder %s77, 0
    %p454 = por %p452, %p453
    %p455 = scmp.ne.s32.totalorder %s447, %s449
    %p456 = scmp.eq.s32.totalorder %s82, 1
    %p457 = por %p455, %p456
    %p458 = scmp.ne.s32.totalorder %s449, %s450
    %p459 = scmp.eq.s32.totalorder %s82, 0
    %p460 = por %p458, %p459
    %p461 = scmp.ne.s32.totalorder %s449, %s450
    %p462 = scmp.eq.s32.totalorder %s83, 1
    %p463 = por %p461, %p462
    %p465 = scmp.ne.s32.totalorder %s450, %s464
    %p466 = scmp.eq.s32.totalorder %s83, 0
    %p467 = por %p465, %p466
    %s469 = sadd.s32 %s468, 1
    %p472 = scmp.eq.s32.totalorder %s77, 1
    %p473 = scmp.ne.s32.totalorder %s468, %s470
    %p474 = scmp.eq.s32.totalorder %s77, 0
    %p475 = por %p473, %p474
    %p476 = scmp.ne.s32.totalorder %s468, %s470
    %p477 = scmp.eq.s32.totalorder %s82, 1
    %p478 = por %p476, %p477
    %p479 = scmp.ne.s32.totalorder %s470, %s471
    %p480 = scmp.eq.s32.totalorder %s82, 0
    %p481 = por %p479, %p480
    %p482 = scmp.ne.s32.totalorder %s470, %s471
    %p483 = scmp.eq.s32.totalorder %s83, 1
    %p484 = por %p482, %p483
    %p486 = scmp.ne.s32.totalorder %s471, %s485
    %p487 = scmp.eq.s32.totalorder %s83, 0
    %p488 = por %p486, %p487
    %s490 = sadd.s32 %s489, 1
    %p493 = scmp.eq.s32.totalorder %s77, 1
    %p494 = scmp.ne.s32.totalorder %s489, %s491
    %p495 = scmp.eq.s32.totalorder %s77, 0
    %p496 = por %p494, %p495
    %p497 = scmp.ne.s32.totalorder %s489, %s491
    %p498 = scmp.eq.s32.totalorder %s82, 1
    %p499 = por %p497, %p498
    %p500 = scmp.ne.s32.totalorder %s491, %s492
    %p501 = scmp.eq.s32.totalorder %s82, 0
    %p502 = por %p500, %p501
    %p503 = scmp.ne.s32.totalorder %s491, %s492
    %p504 = scmp.eq.s32.totalorder %s83, 1
    %p505 = por %p503, %p504
    %p507 = scmp.ne.s32.totalorder %s492, %s506
    %p508 = scmp.eq.s32.totalorder %s83, 0
    %p509 = por %p507, %p508
    %s511 = sadd.s32 %s510, 1
    %p514 = scmp.eq.s32.totalorder %s77, 1
    %p515 = scmp.ne.s32.totalorder %s510, %s512
    %p516 = scmp.eq.s32.totalorder %s77, 0
    %p517 = por %p515, %p516
    %p518 = scmp.ne.s32.totalorder %s510, %s512
    %p519 = scmp.eq.s32.totalorder %s82, 1
    %p520 = por %p518, %p519
    %p521 = scmp.ne.s32.totalorder %s512, %s513
    %p522 = scmp.eq.s32.totalorder %s82, 0
    %p523 = por %p521, %p522
    %p524 = scmp.ne.s32.totalorder %s512, %s513
    %p525 = scmp.eq.s32.totalorder %s83, 1
    %p526 = por %p524, %p525
    %p528 = scmp.ne.s32.totalorder %s513, %s527
    %p529 = scmp.eq.s32.totalorder %s83, 0
    %p530 = por %p528, %p529
    %s532 = sadd.s32 %s531, 1
    %p535 = scmp.eq.s32.totalorder %s77, 1
    %p536 = scmp.ne.s32.totalorder %s531, %s533
    %p537 = scmp.eq.s32.totalorder %s77, 0
    %p538 = por %p536, %p537
    %p539 = scmp.ne.s32.totalorder %s531, %s533
    %p540 = scmp.eq.s32.totalorder %s82, 1
    %p541 = por %p539, %p540
    %p542 = scmp.ne.s32.totalorder %s533, %s534
    %p543 = scmp.eq.s32.totalorder %s82, 0
    %p544 = por %p542, %p543
    %p545 = scmp.ne.s32.totalorder %s533, %s534
    %p546 = scmp.eq.s32.totalorder %s83, 1
    %p547 = por %p545, %p546
    %p549 = scmp.ne.s32.totalorder %s534, %s548
    %p550 = scmp.eq.s32.totalorder %s83, 0
    %p551 = por %p549, %p550
    %s553 = sadd.s32 %s552, 1
    %p556 = scmp.eq.s32.totalorder %s77, 1
    %p557 = scmp.ne.s32.totalorder %s552, %s554
    %p558 = scmp.eq.s32.totalorder %s77, 0
    %p559 = por %p557, %p558
    %p560 = scmp.ne.s32.totalorder %s552, %s554
    %p561 = scmp.eq.s32.totalorder %s82, 1
    %p562 = por %p560, %p561
    %p563 = scmp.ne.s32.totalorder %s554, %s555
    %p564 = scmp.eq.s32.totalorder %s82, 0
    %p565 = por %p563, %p564
    %p566 = scmp.ne.s32.totalorder %s554, %s555
    %p567 = scmp.eq.s32.totalorder %s83, 1
    %p568 = por %p566, %p567
    %p570 = scmp.ne.s32.totalorder %s555, %s569
    %p571 = scmp.eq.s32.totalorder %s83, 0
    %p572 = por %p570, %p571
    %s574 = sadd.s32 %s573, 1
    %p577 = scmp.eq.s32.totalorder %s77, 1
    %p578 = scmp.ne.s32.totalorder %s573, %s575
    %p579 = scmp.eq.s32.totalorder %s77, 0
    %p580 = por %p578, %p579
    %p581 = scmp.ne.s32.totalorder %s573, %s575
    %p582 = scmp.eq.s32.totalorder %s82, 1
    %p583 = por %p581, %p582
    %p584 = scmp.ne.s32.totalorder %s575, %s576
    %p585 = scmp.eq.s32.totalorder %s82, 0
    %p586 = por %p584, %p585
    %p587 = scmp.ne.s32.totalorder %s575, %s576
    %p588 = scmp.eq.s32.totalorder %s83, 1
    %p589 = por %p587, %p588
    %p591 = scmp.ne.s32.totalorder %s576, %s590
    %p592 = scmp.eq.s32.totalorder %s83, 0
    %p593 = por %p591, %p592
    %s595 = sadd.s32 %s594, 1
    %p598 = scmp.eq.s32.totalorder %s77, 1
    %p599 = scmp.ne.s32.totalorder %s594, %s596
    %p600 = scmp.eq.s32.totalorder %s77, 0
    %p601 = por %p599, %p600
    %p602 = scmp.ne.s32.totalorder %s594, %s596
    %p603 = scmp.eq.s32.totalorder %s82, 1
    %p604 = por %p602, %p603
    %p605 = scmp.ne.s32.totalorder %s596, %s597
    %p606 = scmp.eq.s32.totalorder %s82, 0
    %p607 = por %p605, %p606
    %p608 = scmp.ne.s32.totalorder %s596, %s597
    %p609 = scmp.eq.s32.totalorder %s83, 1
    %p610 = por %p608, %p609
    %p612 = scmp.ne.s32.totalorder %s597, %s611
    %p613 = scmp.eq.s32.totalorder %s83, 0
    %p614 = por %p612, %p613
    %s616 = sadd.s32 %s615, 1
    %p619 = scmp.eq.s32.totalorder %s77, 1
    %p620 = scmp.ne.s32.totalorder %s615, %s617
    %p621 = scmp.eq.s32.totalorder %s77, 0
    %p622 = por %p620, %p621
    %p623 = scmp.ne.s32.totalorder %s615, %s617
    %p624 = scmp.eq.s32.totalorder %s82, 1
    %p625 = por %p623, %p624
    %p626 = scmp.ne.s32.totalorder %s617, %s618
    %p627 = scmp.eq.s32.totalorder %s82, 0
    %p628 = por %p626, %p627
    %p629 = scmp.ne.s32.totalorder %s617, %s618
    %p630 = scmp.eq.s32.totalorder %s83, 1
    %p631 = por %p629, %p630
    %p633 = scmp.ne.s32.totalorder %s618, %s632
    %p634 = scmp.eq.s32.totalorder %s83, 0
    %p635 = por %p633, %p634
    %s637 = sadd.s32 %s636, 1
    %p640 = scmp.eq.s32.totalorder %s77, 1
    %p641 = scmp.ne.s32.totalorder %s636, %s638
    %p642 = scmp.eq.s32.totalorder %s77, 0
    %p643 = por %p641, %p642
    %p644 = scmp.ne.s32.totalorder %s636, %s638
    %p645 = scmp.eq.s32.totalorder %s82, 1
    %p646 = por %p644, %p645
    %p647 = scmp.ne.s32.totalorder %s638, %s639
    %p648 = scmp.eq.s32.totalorder %s82, 0
    %p649 = por %p647, %p648
    %p650 = scmp.ne.s32.totalorder %s638, %s639
    %p651 = scmp.eq.s32.totalorder %s83, 1
    %p652 = por %p650, %p651
    %p654 = scmp.ne.s32.totalorder %s639, %s653
    %p655 = scmp.eq.s32.totalorder %s83, 0
    %p656 = por %p654, %p655
    %s658 = sadd.s32 %s657, 1
    %p661 = scmp.eq.s32.totalorder %s77, 1
    %p662 = scmp.ne.s32.totalorder %s657, %s659
    %p663 = scmp.eq.s32.totalorder %s77, 0
    %p664 = por %p662, %p663
    %p665 = scmp.ne.s32.totalorder %s657, %s659
    %p666 = scmp.eq.s32.totalorder %s82, 1
    %p667 = por %p665, %p666
    %p668 = scmp.ne.s32.totalorder %s659, %s660
    %p669 = scmp.eq.s32.totalorder %s82, 0
    %p670 = por %p668, %p669
    %p671 = scmp.ne.s32.totalorder %s659, %s660
    %p672 = scmp.eq.s32.totalorder %s83, 1
    %p673 = por %p671, %p672
    %p675 = scmp.ne.s32.totalorder %s660, %s674
    %p676 = scmp.eq.s32.totalorder %s83, 0
    %p677 = por %p675, %p676
    %s679 = sadd.s32 %s678, 1
    %p682 = scmp.eq.s32.totalorder %s77, 1
    %p683 = scmp.ne.s32.totalorder %s678, %s680
    %p684 = scmp.eq.s32.totalorder %s77, 0
    %p685 = por %p683, %p684
    %p686 = scmp.ne.s32.totalorder %s678, %s680
    %p687 = scmp.eq.s32.totalorder %s82, 1
    %p688 = por %p686, %p687
    %p689 = scmp.ne.s32.totalorder %s680, %s681
    %p690 = scmp.eq.s32.totalorder %s82, 0
    %p691 = por %p689, %p690
    %p692 = scmp.ne.s32.totalorder %s680, %s681
    %p693 = scmp.eq.s32.totalorder %s83, 1
    %p694 = por %p692, %p693
    %p696 = scmp.ne.s32.totalorder %s681, %s695
    %p697 = scmp.eq.s32.totalorder %s83, 0
    %p698 = por %p696, %p697
    %s700 = sadd.s32 %s699, 1
    %p703 = scmp.eq.s32.totalorder %s77, 1
    %p704 = scmp.ne.s32.totalorder %s699, %s701
    %p705 = scmp.eq.s32.totalorder %s77, 0
    %p706 = por %p704, %p705
    %p707 = scmp.ne.s32.totalorder %s699, %s701
    %p708 = scmp.eq.s32.totalorder %s82, 1
    %p709 = por %p707, %p708
    %p710 = scmp.ne.s32.totalorder %s701, %s702
    %p711 = scmp.eq.s32.totalorder %s82, 0
    %p712 = por %p710, %p711
    %p713 = scmp.ne.s32.totalorder %s701, %s702
    %p714 = scmp.eq.s32.totalorder %s83, 1
    %p715 = por %p713, %p714
    %p717 = scmp.ne.s32.totalorder %s702, %s716
    %p718 = scmp.eq.s32.totalorder %s83, 0
    %p719 = por %p717, %p718
    %s720 = ssub.s32 %s77, %s84
    %p721 = scmp.eq.s32.totalorder %s720, 0
    %s723 = sadd.s32 %s722, 1
    %s724 = scalar_select %p721, %s722, %s723
    %p727 = pneg %p721
    %p728 = scmp.eq.s32.totalorder %s77, 1
    %p729 = por %p727, %p728
    %p730 = scmp.ne.s32.totalorder %s722, %s725
    %p731 = scmp.eq.s32.totalorder %s77, 0
    %p732 = por %p730, %p731
    %p733 = scmp.ne.s32.totalorder %s722, %s725
    %p734 = scmp.eq.s32.totalorder %s82, 1
    %p735 = por %p733, %p734
    %p736 = scmp.ne.s32.totalorder %s725, %s726
    %p737 = scmp.eq.s32.totalorder %s82, 0
    %p738 = por %p736, %p737
    %p739 = scmp.ne.s32.totalorder %s725, %s726
    %p740 = scmp.eq.s32.totalorder %s83, 1
    %p741 = por %p739, %p740
    %p743 = scmp.ne.s32.totalorder %s726, %s742
    %p744 = scmp.eq.s32.totalorder %s83, 0
    %p745 = por %p743, %p744
    %p746 = scmp.le.s32.totalorder 1, %s77
    %p747 = scmp.lt.s32.totalorder %s77, 3
    %p748 = pnand %p746, %p747
    %p749 = pneg %p748
    // Predicated region
    $region9: #{model_forward.2} parent=5 // pred_check
      _
    $region10: #{model_forward.2} parent=5 // pred_check_branch
      %751 = sbr.rel (%p748) target = $region12
    $region11: #{model_forward.2} parent=5 // pred_region
      %s752 = ssub.s32 %s77, 1
      // Predicated region
      $region13: #{model_forward.2} parent=11 // pred_check
        %p753 = pneg %p124
      $region14: #{model_forward.2} parent=11 // pred_check_branch
        %755 = sbr.rel (%p753) target = $region16
      $region15: #{model_forward.2} parent=11 // pred_region
        _
      $region16: #{model_forward.2} parent=11 // pred_fallthru
        _
      // Predicated region
      $region17: #{model_forward.2} parent=11 // pred_check
        %p756 = pneg %p145
      $region18: #{model_forward.2} parent=11 // pred_check_branch
        %758 = sbr.rel (%p756) target = $region20
      $region19: #{model_forward.2} parent=11 // pred_region
        _
      $region20: #{model_forward.2} parent=11 // pred_fallthru
        _
      // Predicated region
      $region21: #{model_forward.2} parent=11 // pred_check
        %p759 = pneg %p166
      $region22: #{model_forward.2} parent=11 // pred_check_branch
        %761 = sbr.rel (%p759) target = $region24
      $region23: #{model_forward.2} parent=11 // pred_region
        _
      $region24: #{model_forward.2} parent=11 // pred_fallthru
        _
      // Predicated region
      $region25: #{model_forward.2} parent=11 // pred_check
        %p762 = pneg %p187
      $region26: #{model_forward.2} parent=11 // pred_check_branch
        %764 = sbr.rel (%p762) target = $region28
      $region27: #{model_forward.2} parent=11 // pred_region
        _
      $region28: #{model_forward.2} parent=11 // pred_fallthru
        _
      // Predicated region
      $region29: #{model_forward.2} parent=11 // pred_check
        %p765 = pneg %p208
      $region30: #{model_forward.2} parent=11 // pred_check_branch
        %767 = sbr.rel (%p765) target = $region32
      $region31: #{model_forward.2} parent=11 // pred_region
        _
      $region32: #{model_forward.2} parent=11 // pred_fallthru
        _
      // Predicated region
      $region33: #{model_forward.2} parent=11 // pred_check
        %p768 = pneg %p229
      $region34: #{model_forward.2} parent=11 // pred_check_branch
        %770 = sbr.rel (%p768) target = $region36
      $region35: #{model_forward.2} parent=11 // pred_region
        _
      $region36: #{model_forward.2} parent=11 // pred_fallthru
        _
      // Predicated region
      $region37: #{model_forward.2} parent=11 // pred_check
        %p771 = pneg %p250
      $region38: #{model_forward.2} parent=11 // pred_check_branch
        %773 = sbr.rel (%p771) target = $region40
      $region39: #{model_forward.2} parent=11 // pred_region
        _
      $region40: #{model_forward.2} parent=11 // pred_fallthru
        _
      // Predicated region
      $region41: #{model_forward.2} parent=11 // pred_check
        %p774 = pneg %p271
      $region42: #{model_forward.2} parent=11 // pred_check_branch
        %776 = sbr.rel (%p774) target = $region44
      $region43: #{model_forward.2} parent=11 // pred_region
        _
      $region44: #{model_forward.2} parent=11 // pred_fallthru
        _
      // Predicated region
      $region45: #{model_forward.2} parent=11 // pred_check
        %p777 = pneg %p292
      $region46: #{model_forward.2} parent=11 // pred_check_branch
        %779 = sbr.rel (%p777) target = $region48
      $region47: #{model_forward.2} parent=11 // pred_region
        _
      $region48: #{model_forward.2} parent=11 // pred_fallthru
        _
      // Predicated region
      $region49: #{model_forward.2} parent=11 // pred_check
        %p780 = pneg %p313
      $region50: #{model_forward.2} parent=11 // pred_check_branch
        %782 = sbr.rel (%p780) target = $region52
      $region51: #{model_forward.2} parent=11 // pred_region
        _
      $region52: #{model_forward.2} parent=11 // pred_fallthru
        _
      // Predicated region
      $region53: #{model_forward.2} parent=11 // pred_check
        %p783 = pneg %p334
      $region54: #{model_forward.2} parent=11 // pred_check_branch
        %785 = sbr.rel (%p783) target = $region56
      $region55: #{model_forward.2} parent=11 // pred_region
        _
      $region56: #{model_forward.2} parent=11 // pred_fallthru
        _
      // Predicated region
      $region57: #{model_forward.2} parent=11 // pred_check
        %p786 = pneg %p355
      $region58: #{model_forward.2} parent=11 // pred_check_branch
        %788 = sbr.rel (%p786) target = $region60
      $region59: #{model_forward.2} parent=11 // pred_region
        _
      $region60: #{model_forward.2} parent=11 // pred_fallthru
        _
      // Predicated region
      $region61: #{model_forward.2} parent=11 // pred_check
        %p789 = pneg %p376
      $region62: #{model_forward.2} parent=11 // pred_check_branch
        %791 = sbr.rel (%p789) target = $region64
      $region63: #{model_forward.2} parent=11 // pred_region
        _
      $region64: #{model_forward.2} parent=11 // pred_fallthru
        _
      // Predicated region
      $region65: #{model_forward.2} parent=11 // pred_check
        %p792 = pneg %p397
      $region66: #{model_forward.2} parent=11 // pred_check_branch
        %794 = sbr.rel (%p792) target = $region68
      $region67: #{model_forward.2} parent=11 // pred_region
        _
      $region68: #{model_forward.2} parent=11 // pred_fallthru
        _
      // Predicated region
      $region69: #{model_forward.2} parent=11 // pred_check
        %p795 = pneg %p418
      $region70: #{model_forward.2} parent=11 // pred_check_branch
        %797 = sbr.rel (%p795) target = $region72
      $region71: #{model_forward.2} parent=11 // pred_region
        _
      $region72: #{model_forward.2} parent=11 // pred_fallthru
        _
      // Predicated region
      $region73: #{model_forward.2} parent=11 // pred_check
        %p798 = pneg %p439
      $region74: #{model_forward.2} parent=11 // pred_check_branch
        %800 = sbr.rel (%p798) target = $region76
      $region75: #{model_forward.2} parent=11 // pred_region
        _
      $region76: #{model_forward.2} parent=11 // pred_fallthru
        _
      // Predicated region
      $region77: #{model_forward.2} parent=11 // pred_check
        %p801 = pneg %p460
      $region78: #{model_forward.2} parent=11 // pred_check_branch
        %803 = sbr.rel (%p801) target = $region80
      $region79: #{model_forward.2} parent=11 // pred_region
        _
      $region80: #{model_forward.2} parent=11 // pred_fallthru
        _
      // Predicated region
      $region81: #{model_forward.2} parent=11 // pred_check
        %p804 = pneg %p481
      $region82: #{model_forward.2} parent=11 // pred_check_branch
        %806 = sbr.rel (%p804) target = $region84
      $region83: #{model_forward.2} parent=11 // pred_region
        _
      $region84: #{model_forward.2} parent=11 // pred_fallthru
        _
      // Predicated region
      $region85: #{model_forward.2} parent=11 // pred_check
        %p807 = pneg %p502
      $region86: #{model_forward.2} parent=11 // pred_check_branch
        %809 = sbr.rel (%p807) target = $region88
      $region87: #{model_forward.2} parent=11 // pred_region
        _
      $region88: #{model_forward.2} parent=11 // pred_fallthru
        _
      // Predicated region
      $region89: #{model_forward.2} parent=11 // pred_check
        %p810 = pneg %p523
      $region90: #{model_forward.2} parent=11 // pred_check_branch
        %812 = sbr.rel (%p810) target = $region92
      $region91: #{model_forward.2} parent=11 // pred_region
        _
      $region92: #{model_forward.2} parent=11 // pred_fallthru
        _
      // Predicated region
      $region93: #{model_forward.2} parent=11 // pred_check
        %p813 = pneg %p544
      $region94: #{model_forward.2} parent=11 // pred_check_branch
        %815 = sbr.rel (%p813) target = $region96
      $region95: #{model_forward.2} parent=11 // pred_region
        _
      $region96: #{model_forward.2} parent=11 // pred_fallthru
        _
      // Predicated region
      $region97: #{model_forward.2} parent=11 // pred_check
        %p816 = pneg %p565
      $region98: #{model_forward.2} parent=11 // pred_check_branch
        %818 = sbr.rel (%p816) target = $region100
      $region99: #{model_forward.2} parent=11 // pred_region
        _
      $region100: #{model_forward.2} parent=11 // pred_fallthru
        _
      // Predicated region
      $region101: #{model_forward.2} parent=11 // pred_check
        %p819 = pneg %p586
      $region102: #{model_forward.2} parent=11 // pred_check_branch
        %821 = sbr.rel (%p819) target = $region104
      $region103: #{model_forward.2} parent=11 // pred_region
        _
      $region104: #{model_forward.2} parent=11 // pred_fallthru
        _
      // Predicated region
      $region105: #{model_forward.2} parent=11 // pred_check
        %p822 = pneg %p607
      $region106: #{model_forward.2} parent=11 // pred_check_branch
        %824 = sbr.rel (%p822) target = $region108
      $region107: #{model_forward.2} parent=11 // pred_region
        _
      $region108: #{model_forward.2} parent=11 // pred_fallthru
        _
      // Predicated region
      $region109: #{model_forward.2} parent=11 // pred_check
        %p825 = pneg %p628
      $region110: #{model_forward.2} parent=11 // pred_check_branch
        %827 = sbr.rel (%p825) target = $region112
      $region111: #{model_forward.2} parent=11 // pred_region
        _
      $region112: #{model_forward.2} parent=11 // pred_fallthru
        _
      // Predicated region
      $region113: #{model_forward.2} parent=11 // pred_check
        %p828 = pneg %p649
      $region114: #{model_forward.2} parent=11 // pred_check_branch
        %830 = sbr.rel (%p828) target = $region116
      $region115: #{model_forward.2} parent=11 // pred_region
        _
      $region116: #{model_forward.2} parent=11 // pred_fallthru
        _
      // Predicated region
      $region117: #{model_forward.2} parent=11 // pred_check
        %p831 = pneg %p670
      $region118: #{model_forward.2} parent=11 // pred_check_branch
        %833 = sbr.rel (%p831) target = $region120
      $region119: #{model_forward.2} parent=11 // pred_region
        _
      $region120: #{model_forward.2} parent=11 // pred_fallthru
        _
      // Predicated region
      $region121: #{model_forward.2} parent=11 // pred_check
        %p834 = pneg %p691
      $region122: #{model_forward.2} parent=11 // pred_check_branch
        %836 = sbr.rel (%p834) target = $region124
      $region123: #{model_forward.2} parent=11 // pred_region
        _
      $region124: #{model_forward.2} parent=11 // pred_fallthru
        _
      // Predicated region
      $region125: #{model_forward.2} parent=11 // pred_check
        %p837 = pneg %p712
      $region126: #{model_forward.2} parent=11 // pred_check_branch
        %839 = sbr.rel (%p837) target = $region128
      $region127: #{model_forward.2} parent=11 // pred_region
        _
      $region128: #{model_forward.2} parent=11 // pred_fallthru
        _
    $region12: #{model_forward.2} parent=5 // pred_fallthru
      _
    %p840 = scmp.lt.s32.totalorder %s77, 2
    // Predicated region
    $region129: #{model_forward.2} parent=5 // pred_check
      %p841 = pneg %p840
    $region130: #{model_forward.2} parent=5 // pred_check_branch
      %843 = sbr.rel (%p841) target = $region132
    $region131: #{model_forward.2} parent=5 // pred_region
      // Predicated region
      $region133: #{model_forward.2} parent=131 // pred_check
        %p844 = pneg %p97
      $region134: #{model_forward.2} parent=131 // pred_check_branch
        %846 = sbr.rel (%p844) target = $region136
      $region135: #{model_forward.2} parent=131 // pred_region
        %p847 = scmp.lt.s32.totalorder %s77, 1
        %s848 = scalar_select %p847, %s77, 1
        %s849 = smul.addr %s848, 10
        %s850 = smul.addr %s849, 8
        %s851 = scalar_lea.vmem %s3, %s850
      $region136: #{model_forward.2} parent=131 // pred_fallthru
        _
    $region132: #{model_forward.2} parent=5 // pred_fallthru
      _
    %p852 = scmp.le.s32.totalorder 1, %s77
    %p853 = scmp.lt.s32.totalorder %s77, 3
    %p854 = pnand %p852, %p853
    %p855 = pneg %p854
    // Predicated region
    $region137: #{model_forward.2} parent=5 // pred_check
      _
    $region138: #{model_forward.2} parent=5 // pred_check_branch
      %857 = sbr.rel (%p854) target = $region140
    $region139: #{model_forward.2} parent=5 // pred_region
      %s858 = ssub.s32 %s77, 1
      %p859 = scmp.lt.s32.totalorder %s82, 1
      %s860 = scalar_select %p859, %s82, 1
      %s861 = smul.addr %s860, 10
      %s862 = smul.addr %s861, 8
      %s863 = scalar_lea.vmem %s3, %s862
      %p864 = pneg %p103
      %p865 = pneg %p100
      %p866 = pneg %p124
      %p867 = pneg %p121
      %p868 = pneg %p145
      %p869 = pneg %p142
      %p870 = pneg %p166
      %p871 = pneg %p163
      %p872 = pneg %p187
      %p873 = pneg %p184
      %p874 = pneg %p208
      %p875 = pneg %p205
      %p876 = pneg %p229
      %p877 = pneg %p226
      %p878 = pneg %p250
      %p879 = pneg %p247
      %p880 = pneg %p271
      %p881 = pneg %p268
      %p882 = pneg %p292
      %p883 = pneg %p289
      %p884 = pneg %p313
      %p885 = pneg %p310
      %p886 = pneg %p334
      %p887 = pneg %p331
      %p888 = pneg %p355
      %p889 = pneg %p352
      %p890 = pneg %p376
      %p891 = pneg %p373
      %p892 = pneg %p397
      %p893 = pneg %p394
      %p894 = pneg %p418
      %p895 = pneg %p415
      %p896 = pneg %p439
      %p897 = pneg %p436
      %p898 = pneg %p460
      %p899 = pneg %p457
      %p900 = pneg %p481
      %p901 = pneg %p478
      %p902 = pneg %p502
      %p903 = pneg %p499
      %p904 = pneg %p523
      %p905 = pneg %p520
      %p906 = pneg %p544
      %p907 = pneg %p541
      %p908 = pneg %p565
      %p909 = pneg %p562
      %p910 = pneg %p586
      %p911 = pneg %p583
      %p912 = pneg %p607
      %p913 = pneg %p604
      %p914 = pneg %p628
      %p915 = pneg %p625
      %p916 = pneg %p649
      %p917 = pneg %p646
      %p918 = pneg %p670
      %p919 = pneg %p667
      %p920 = pneg %p691
      %p921 = pneg %p688
      %p922 = pneg %p712
      %p923 = pneg %p709
      %p924 = pneg %p738
      %p925 = pneg %p735
      %s926 = smul.u32 3, %s82
      %p927 = scmp.lt.s32.totalorder %s926, 5
      %s928 = scalar_select %p927, %s926, 5
      %s929 = smul.addr %s928, 8
      %s930 = scalar_lea.vmem %s63, %s929
      %p931 = scmp.lt.s32.totalorder %s82, 1
      %s932 = scalar_select %p931, %s82, 1
      %s933 = smul.addr %s932, 10
      %s934 = smul.addr %s933, 8
      %s935 = scalar_lea.vmem %s3, %s934
      %s936 = smul.u32 3, %s82
      %p937 = scmp.lt.s32.totalorder %s936, 5
      %s938 = scalar_select %p937, %s936, 5
      %s939 = smul.addr %s938, 8
      %s940 = scalar_lea.vmem %s63, %s939
      %s941 = smul.u32 3, %s82
      %s943 = sld [smem:[#allocation3 + %s82]]
      %v944 = vld [vmem:[%s935] sm:$0xff]
      %v945 = vld [vmem:[%s935 + $0x8] sm:$0xff]
      %v946 = vld [vmem:[%s935 + $0x10] sm:$0xff]
      %v947 = vld [vmem:[%s935 + $0x18] sm:$0xff]
      %v948 = vld [vmem:[%s935 + $0x20] sm:$0xff]
      %v949 = vld [vmem:[%s935 + $0x28] sm:$0xff]
      %v950 = vld [vmem:[%s935 + $0x30] sm:$0xff]
      %v951 = vld [vmem:[%s935 + $0x38] sm:$0xff]
      %v952 = vld [vmem:[%s935 + $0x40] sm:$0xff]
      %v953 = vld [vmem:[%s935 + $0x48] sm:$0xff]
      %v954 = vpack.c.bf16 %v945, %v944
      %v955 = vpack.c.bf16 %v947, %v946
      %v956 = vpack.c.bf16 %v949, %v948
      %v957 = vpack.c.bf16 %v951, %v950
      %v958 = vpack.c.bf16 %v953, %v952
      %v959 = vlaneseq
      %v960 = vshrl.u32 %v959, 7
      %v961 = vadd.s32 %v960, 8
      %v962 = vadd.s32 %v960, 16
      %v963 = vadd.s32 %v960, 24
      %v964 = vadd.s32 %v960, 32
      %v965 = vadd.s32 %v960, 40
      %v966 = vadd.s32 %v960, 48
      %v967 = vadd.s32 %v960, 56
      %v968 = vadd.s32 %v960, 64
      %v969 = vadd.s32 %v960, 72
      %v970 = vlaneseq
      %v971 = vand.u32 %v970, 127
      %v972 = vadd.s32 %v960, 1
      %v973 = vadd.s32 %v961, 1
      %v974 = vadd.s32 %v962, 1
      %v975 = vadd.s32 %v963, 1
      %v976 = vadd.s32 %v964, 1
      %v977 = vadd.s32 %v965, 1
      %v978 = vadd.s32 %v966, 1
      %v979 = vadd.s32 %v967, 1
      %v980 = vadd.s32 %v968, 1
      %v981 = vadd.s32 %v969, 1
      %vm982 = vcmp.eq.s32.totalorder %v971, %v972
      %vm983 = vcmp.eq.s32.totalorder %v971, %v973
      %vm984 = vcmp.eq.s32.totalorder %v971, %v974
      %vm985 = vcmp.eq.s32.totalorder %v971, %v975
      %vm986 = vcmp.eq.s32.totalorder %v971, %v976
      %vm987 = vcmp.eq.s32.totalorder %v971, %v977
      %vm988 = vcmp.eq.s32.totalorder %v971, %v978
      %vm989 = vcmp.eq.s32.totalorder %v971, %v979
      %vm990 = vcmp.eq.s32.totalorder %v971, %v980
      %vm991 = vcmp.eq.s32.totalorder %v971, %v981
      %v992 = vsel %vm982, 1, 0
      %v993 = vsel %vm983, 1, 0
      %v994 = vsel %vm984, 1, 0
      %v995 = vsel %vm985, 1, 0
      %v996 = vsel %vm986, 1, 0
      %v997 = vsel %vm987, 1, 0
      %v998 = vsel %vm988, 1, 0
      %v999 = vsel %vm989, 1, 0
      %v1000 = vsel %vm990, 1, 0
      %v1001 = vsel %vm991, 1, 0
      %v1002 = vcvt.s32.f32 %v992
      %v1003 = vcvt.s32.f32 %v993
      %v1004 = vcvt.s32.f32 %v994
      %v1005 = vcvt.s32.f32 %v995
      %v1006 = vcvt.s32.f32 %v996
      %v1007 = vcvt.s32.f32 %v997
      %v1008 = vcvt.s32.f32 %v998
      %v1009 = vcvt.s32.f32 %v999
      %v1010 = vcvt.s32.f32 %v1000
      %v1011 = vcvt.s32.f32 %v1001
      %v1012 = vpack.c.bf16 %v1003, %v1002
      %v1013 = vpack.c.bf16 %v1005, %v1004
      %v1014 = vpack.c.bf16 %v1007, %v1006
      %v1015 = vpack.c.bf16 %v1009, %v1008
      %v1016 = vpack.c.bf16 %v1011, %v1010
      %vm1017 = vcmask 654336
      %v1019 = vsel %vm1017, %v1012, 0
      %v1022 = vsel %vm1017, %v1013, 0
      %v1025 = vsel %vm1017, %v1014, 0
      %v1028 = vsel %vm1017, %v1015, 0
      %v1031 = vsel %vm1017, %v1016, 0
      %1033 = vmatpush.bf16.msra.mxu0 0
      %1034 = vmatpush.bf16.msra.mxu0 0
      %1035 = vmatpush.bf16.msra.mxu0 0
      %1036 = vmatpush.bf16.msra.mxu0 %v958
      %1037 = vmatpush.bf16.msra.mxu0 %v957
      %1038 = vmatpush.bf16.msra.mxu0 %v956
      %1039 = vmatpush.bf16.msra.mxu0 %v955
      %1040 = vmatpush.bf16.msra.mxu0 %v954
      %1041 = vmatmul.bf16.gmra.mxu0 %v1019
      %v1042 = vpop.f32.mrf.mxu0
      %v1043 = vadd.f32 0.0, %v1042
      %v1044 = vpop.f32.mrf.mxu0
      %v1045 = vadd.f32 0.0, %v1044
      %1046 = vmatmul.bf16.gmra.mxu0 %v1022
      %v1047 = vpop.f32.mrf.mxu0
      %v1048 = vadd.f32 0.0, %v1047
      %v1049 = vpop.f32.mrf.mxu0
      %v1050 = vadd.f32 0.0, %v1049
      %1051 = vmatmul.bf16.gmra.mxu0 %v1025
      %v1052 = vpop.f32.mrf.mxu0
      %v1053 = vadd.f32 0.0, %v1052
      %v1054 = vpop.f32.mrf.mxu0
      %v1055 = vadd.f32 0.0, %v1054
      %1056 = vmatmul.bf16.gmra.mxu0 %v1028
      %v1057 = vpop.f32.mrf.mxu0
      %v1058 = vadd.f32 0.0, %v1057
      %v1059 = vpop.f32.mrf.mxu0
      %v1060 = vadd.f32 0.0, %v1059
      %1061 = vmatmul.bf16.gmra.mxu0 %v1031
      %v1062 = vpop.f32.mrf.mxu0
      %v1063 = vadd.f32 0.0, %v1062
      %v1064 = vpop.f32.mrf.mxu0
      %v1065 = vadd.f32 0.0, %v1064
      %1066 = vdwg.mxu0
      %v1067 = vpack.c.bf16 %v1045, %v1043
      %v1068 = vpack.c.bf16 %v1050, %v1048
      %v1069 = vpack.c.bf16 %v1055, %v1053
      %v1070 = vpack.c.bf16 %v1060, %v1058
      %v1071 = vpack.c.bf16 %v1065, %v1063
      %v1072 = vld [vmem:[%s5] sm:$0x7]
      %v1073 = vld [vmem:[%s7] sm:$0x7]
      %vm1074 = vcmask 39936
      %v1076 = vsel %vm1074, %v1067, 0
      %v1079 = vsel %vm1074, %v1068, 0
      %v1082 = vsel %vm1074, %v1069, 0
      %v1085 = vsel %vm1074, %v1070, 0
      %v1088 = vsel %vm1074, %v1071, 0
      %vm1090 = vcmask 1041408
      %vm1091 = vcmask 1042432
      %v1092 = vsel %vm1090, 4294967295, 65535
      %v1093 = vsel %vm1091, %v1092, 0
      %v1095 = vand.u32 %v1073, %v1093
      %1097 = vmatpush.bf16.msra.mxu0 0
      %1098 = vmatpush.bf16.msra.mxu0 0
      %1099 = vmatpush.bf16.msra.mxu0 0
      %1100 = vmatpush.bf16.msra.mxu0 0
      %1101 = vmatpush.bf16.msra.mxu0 0
      %1102 = vmatpush.bf16.msra.mxu0 0
      %1103 = vmatpush.bf16.msra.mxu0 0
      %1104 = vmatpush.bf16.msra.mxu0 %v1095
      %1105 = vmatmul.bf16.gmra.mxu0 %v1076
      %v1106 = vpop.f32.mrf.mxu0
      %v1107 = vadd.f32 0.0, %v1106
      %v1108 = vpop.f32.mrf.mxu0
      %v1109 = vadd.f32 0.0, %v1108
      %1110 = vmatmul.bf16.gmra.mxu0 %v1079
      %v1111 = vpop.f32.mrf.mxu0
      %v1112 = vadd.f32 0.0, %v1111
      %v1113 = vpop.f32.mrf.mxu0
      %v1114 = vadd.f32 0.0, %v1113
      %1115 = vmatmul.bf16.gmra.mxu0 %v1082
      %v1116 = vpop.f32.mrf.mxu0
      %v1117 = vadd.f32 0.0, %v1116
      %v1118 = vpop.f32.mrf.mxu0
      %v1119 = vadd.f32 0.0, %v1118
      %1120 = vmatmul.bf16.gmra.mxu0 %v1085
      %v1121 = vpop.f32.mrf.mxu0
      %v1122 = vadd.f32 0.0, %v1121
      %v1123 = vpop.f32.mrf.mxu0
      %v1124 = vadd.f32 0.0, %v1123
      %1125 = vmatmul.bf16.gmra.mxu0 %v1088
      %v1126 = vpop.f32.mrf.mxu0
      %v1127 = vadd.f32 0.0, %v1126
      %v1128 = vpop.f32.mrf.mxu0
      %v1129 = vadd.f32 0.0, %v1128
      %1130 = vdwg.mxu0
      %v1132 = vsel %vm1074, %v954, 0
      %v1135 = vsel %vm1074, %v955, 0
      %v1138 = vsel %vm1074, %v956, 0
      %v1141 = vsel %vm1074, %v957, 0
      %v1144 = vsel %vm1074, %v958, 0
      %v1147 = vand.u32 %v1072, %v1093
      %1149 = vmatpush.bf16.msra.mxu0 0
      %1150 = vmatpush.bf16.msra.mxu0 0
      %1151 = vmatpush.bf16.msra.mxu0 0
      %1152 = vmatpush.bf16.msra.mxu0 0
      %1153 = vmatpush.bf16.msra.mxu0 0
      %1154 = vmatpush.bf16.msra.mxu0 0
      %1155 = vmatpush.bf16.msra.mxu0 0
      %1156 = vmatpush.bf16.msra.mxu0 %v1147
      %1157 = vmatmul.bf16.gmra.mxu0 %v1132
      %v1158 = vpop.f32.mrf.mxu0
      %v1159 = vadd.f32 %v1107, %v1158
      %v1160 = vpop.f32.mrf.mxu0
      %v1161 = vadd.f32 %v1109, %v1160
      %1162 = vmatmul.bf16.gmra.mxu0 %v1135
      %v1163 = vpop.f32.mrf.mxu0
      %v1164 = vadd.f32 %v1112, %v1163
      %v1165 = vpop.f32.mrf.mxu0
      %v1166 = vadd.f32 %v1114, %v1165
      %1167 = vmatmul.bf16.gmra.mxu0 %v1138
      %v1168 = vpop.f32.mrf.mxu0
      %v1169 = vadd.f32 %v1117, %v1168
      %v1170 = vpop.f32.mrf.mxu0
      %v1171 = vadd.f32 %v1119, %v1170
      %1172 = vmatmul.bf16.gmra.mxu0 %v1141
      %v1173 = vpop.f32.mrf.mxu0
      %v1174 = vadd.f32 %v1122, %v1173
      %v1175 = vpop.f32.mrf.mxu0
      %v1176 = vadd.f32 %v1124, %v1175
      %1177 = vmatmul.bf16.gmra.mxu0 %v1144
      %v1178 = vpop.f32.mrf.mxu0
      %v1179 = vadd.f32 %v1127, %v1178
      %v1180 = vpop.f32.mrf.mxu0
      %v1181 = vadd.f32 %v1129, %v1180
      %1182 = vdwg.mxu0
      %vm1183 = vcmp.lt.s32.totalorder %v960, 79
      %vm1184 = vcmp.lt.s32.totalorder %v961, 79
      %vm1185 = vcmp.lt.s32.totalorder %v962, 79
      %vm1186 = vcmp.lt.s32.totalorder %v963, 79
      %vm1187 = vcmp.lt.s32.totalorder %v964, 79
      %vm1188 = vcmp.lt.s32.totalorder %v965, 79
      %vm1189 = vcmp.lt.s32.totalorder %v966, 79
      %vm1190 = vcmp.lt.s32.totalorder %v967, 79
      %vm1191 = vcmp.lt.s32.totalorder %v968, 79
      %vm1192 = vcmp.lt.s32.totalorder %v969, 79
      %v1193 = vsel %vm1183, 1, 0
      %v1194 = vsel %vm1184, 1, 0
      %v1195 = vsel %vm1185, 1, 0
      %v1196 = vsel %vm1186, 1, 0
      %v1197 = vsel %vm1187, 1, 0
      %v1198 = vsel %vm1188, 1, 0
      %v1199 = vsel %vm1189, 1, 0
      %v1200 = vsel %vm1190, 1, 0
      %v1201 = vsel %vm1191, 1, 0
      %v1202 = vsel %vm1192, 1, 0
      %vm1203 = vcmp.eq.s32.totalorder %v1193, 1
      %vm1204 = vcmp.eq.s32.totalorder %v1194, 1
      %vm1205 = vcmp.eq.s32.totalorder %v1195, 1
      %vm1206 = vcmp.eq.s32.totalorder %v1196, 1
      %vm1207 = vcmp.eq.s32.totalorder %v1197, 1
      %vm1208 = vcmp.eq.s32.totalorder %v1198, 1
      %vm1209 = vcmp.eq.s32.totalorder %v1199, 1
      %vm1210 = vcmp.eq.s32.totalorder %v1200, 1
      %vm1211 = vcmp.eq.s32.totalorder %v1201, 1
      %vm1212 = vcmp.eq.s32.totalorder %v1202, 1
      %v1213 = vsel %vm1203, %v1159, 0.0
      %v1214 = vsel %vm1204, %v1161, 0.0
      %v1215 = vsel %vm1205, %v1164, 0.0
      %v1216 = vsel %vm1206, %v1166, 0.0
      %v1217 = vsel %vm1207, %v1169, 0.0
      %v1218 = vsel %vm1208, %v1171, 0.0
      %v1219 = vsel %vm1209, %v1174, 0.0
      %v1220 = vsel %vm1210, %v1176, 0.0
      %v1221 = vsel %vm1211, %v1179, 0.0
      %v1222 = vsel %vm1212, %v1181, 0.0
      %vm1223 = vcmask 261120
      %v1224 = vsel %vm1223, %v1213, 0.0
      %v1225 = vsel %vm1223, %v1214, 0.0
      %v1226 = vadd.f32 %v1224, %v1225
      %v1227 = vsel %vm1223, %v1215, 0.0
      %v1228 = vadd.f32 %v1226, %v1227
      %v1229 = vsel %vm1223, %v1216, 0.0
      %v1230 = vadd.f32 %v1228, %v1229
      %v1231 = vsel %vm1223, %v1217, 0.0
      %v1232 = vadd.f32 %v1230, %v1231
      %v1233 = vsel %vm1223, %v1218, 0.0
      %v1234 = vadd.f32 %v1232, %v1233
      %v1235 = vsel %vm1223, %v1219, 0.0
      %v1236 = vadd.f32 %v1234, %v1235
      %v1237 = vsel %vm1223, %v1220, 0.0
      %v1238 = vadd.f32 %v1236, %v1237
      %v1239 = vsel %vm1223, %v1221, 0.0
      %v1240 = vadd.f32 %v1238, %v1239
      %v1241 = vsel %vm1223, %v1222, 0.0
      %v1242 = vadd.f32 %v1240, %v1241
      %v1243 = vrot.slane %v1242, 4
      %v1244 = vadd.f32 %v1242, %v1243
      %v1245 = vrot.slane %v1244, 2
      %v1246 = vadd.f32 %v1244, %v1245
      %v1247 = vrot.slane %v1246, 1
      %v1248 = vadd.f32 %v1246, %v1247
      %v1249 = vmul.f32 %v1248, 0.012658228
      %v1250 = vmul.f32 %v1213, %v1213
      %v1251 = vmul.f32 %v1214, %v1214
      %v1252 = vmul.f32 %v1215, %v1215
      %v1253 = vmul.f32 %v1216, %v1216
      %v1254 = vmul.f32 %v1217, %v1217
      %v1255 = vmul.f32 %v1218, %v1218
      %v1256 = vmul.f32 %v1219, %v1219
      %v1257 = vmul.f32 %v1220, %v1220
      %v1258 = vmul.f32 %v1221, %v1221
      %v1259 = vmul.f32 %v1222, %v1222
      %v1260 = vsel %vm1223, %v1250, 0.0
      %v1261 = vsel %vm1223, %v1251, 0.0
      %v1262 = vadd.f32 %v1260, %v1261
      %v1263 = vsel %vm1223, %v1252, 0.0
      %v1264 = vadd.f32 %v1262, %v1263
      %v1265 = vsel %vm1223, %v1253, 0.0
      %v1266 = vadd.f32 %v1264, %v1265
      %v1267 = vsel %vm1223, %v1254, 0.0
      %v1268 = vadd.f32 %v1266, %v1267
      %v1269 = vsel %vm1223, %v1255, 0.0
      %v1270 = vadd.f32 %v1268, %v1269
      %v1271 = vsel %vm1223, %v1256, 0.0
      %v1272 = vadd.f32 %v1270, %v1271
      %v1273 = vsel %vm1223, %v1257, 0.0
      %v1274 = vadd.f32 %v1272, %v1273
      %v1275 = vsel %vm1223, %v1258, 0.0
      %v1276 = vadd.f32 %v1274, %v1275
      %v1277 = vsel %vm1223, %v1259, 0.0
      %v1278 = vadd.f32 %v1276, %v1277
      %v1279 = vrot.slane %v1278, 4
      %v1280 = vadd.f32 %v1278, %v1279
      %v1281 = vrot.slane %v1280, 2
      %v1282 = vadd.f32 %v1280, %v1281
      %v1283 = vrot.slane %v1282, 1
      %v1284 = vadd.f32 %v1282, %v1283
      %v1285 = vmul.f32 %v1284, 0.012658228
      %v1286 = vmul.f32 %v1249, %v1249
      %v1287 = vsub.f32 %v1285, %v1286
      %v1288 = vsub.f32 %v1213, %v1249
      %v1289 = vsub.f32 %v1214, %v1249
      %v1290 = vsub.f32 %v1215, %v1249
      %v1291 = vsub.f32 %v1216, %v1249
      %v1292 = vsub.f32 %v1217, %v1249
      %v1293 = vsub.f32 %v1218, %v1249
      %v1294 = vsub.f32 %v1219, %v1249
      %v1295 = vsub.f32 %v1220, %v1249
      %v1296 = vsub.f32 %v1221, %v1249
      %v1297 = vsub.f32 %v1222, %v1249
      %v1298 = vadd.f32 %v1287, 1e-05
      %v1299 = vrsqrt.pop %v1298
      %v1300 = vmul.f32 %v1299, %v1298
      %v1301 = vmul.f32 %v1300, %v1299
      %v1302 = vmul.f32 0.5, %v1301
      %v1303 = vsub.f32 1.5, %v1302
      %v1304 = vmul.f32 %v1299, %v1303
      %vm1305 = vweird.f32 %v1298
      %vm1306 = vweird.f32 %v1299
      %vm1307 = vmor %vm1305, %vm1306
      %v1308 = vsel %vm1307, %v1299, %v1304
      %v1309 = vmul.f32 %v1288, %v1308
      %v1310 = vmul.f32 %v1289, %v1308
      %v1311 = vmul.f32 %v1290, %v1308
      %v1312 = vmul.f32 %v1291, %v1308
      %v1313 = vmul.f32 %v1292, %v1308
      %v1314 = vmul.f32 %v1293, %v1308
      %v1315 = vmul.f32 %v1294, %v1308
      %v1316 = vmul.f32 %v1295, %v1308
      %v1317 = vmul.f32 %v1296, %v1308
      %v1318 = vmul.f32 %v1297, %v1308
      %v1319 = vld [vmem:[%s9] sm:$0x1]
      %v1321 = vperm.slane %v1319, 0
      %v1323 = vmul.f32 %v1309, %v1321
      %v1324 = vmul.f32 %v1310, %v1321
      %v1325 = vmul.f32 %v1311, %v1321
      %v1326 = vmul.f32 %v1312, %v1321
      %v1327 = vmul.f32 %v1313, %v1321
      %v1328 = vmul.f32 %v1314, %v1321
      %v1329 = vmul.f32 %v1315, %v1321
      %v1330 = vmul.f32 %v1316, %v1321
      %v1331 = vmul.f32 %v1317, %v1321
      %v1332 = vmul.f32 %v1318, %v1321
      %v1333 = vld [vmem:[%s11] sm:$0x1]
      %v1335 = vperm.slane %v1333, 0
      %v1337 = vadd.f32 %v1323, %v1335
      %v1338 = vadd.f32 %v1324, %v1335
      %v1339 = vadd.f32 %v1325, %v1335
      %v1340 = vadd.f32 %v1326, %v1335
      %v1341 = vadd.f32 %v1327, %v1335
      %v1342 = vadd.f32 %v1328, %v1335
      %v1343 = vadd.f32 %v1329, %v1335
      %v1344 = vadd.f32 %v1330, %v1335
      %v1345 = vadd.f32 %v1331, %v1335
      %v1346 = vadd.f32 %v1332, %v1335
      %v1347 = vmul.f32 %v1337, %v1337
      %v1348 = vmul.f32 %v1338, %v1338
      %v1349 = vmul.f32 %v1339, %v1339
      %v1350 = vmul.f32 %v1340, %v1340
      %v1351 = vmul.f32 %v1341, %v1341
      %v1352 = vmul.f32 %v1342, %v1342
      %v1353 = vmul.f32 %v1343, %v1343
      %v1354 = vmul.f32 %v1344, %v1344
      %v1355 = vmul.f32 %v1345, %v1345
      %v1356 = vmul.f32 %v1346, %v1346
      %v1357 = vmul.f32 %v1337, %v1347
      %v1358 = vmul.f32 %v1338, %v1348
      %v1359 = vmul.f32 %v1339, %v1349
      %v1360 = vmul.f32 %v1340, %v1350
      %v1361 = vmul.f32 %v1341, %v1351
      %v1362 = vmul.f32 %v1342, %v1352
      %v1363 = vmul.f32 %v1343, %v1353
      %v1364 = vmul.f32 %v1344, %v1354
      %v1365 = vmul.f32 %v1345, %v1355
      %v1366 = vmul.f32 %v1346, %v1356
      %v1367 = vmul.f32 %v1357, 0.044715
      %v1368 = vmul.f32 %v1358, 0.044715
      %v1369 = vmul.f32 %v1359, 0.044715
      %v1370 = vmul.f32 %v1360, 0.044715
      %v1371 = vmul.f32 %v1361, 0.044715
      %v1372 = vmul.f32 %v1362, 0.044715
      %v1373 = vmul.f32 %v1363, 0.044715
      %v1374 = vmul.f32 %v1364, 0.044715
      %v1375 = vmul.f32 %v1365, 0.044715
      %v1376 = vmul.f32 %v1366, 0.044715
      %v1377 = vadd.f32 %v1337, %v1367
      %v1378 = vadd.f32 %v1338, %v1368
      %v1379 = vadd.f32 %v1339, %v1369
      %v1380 = vadd.f32 %v1340, %v1370
      %v1381 = vadd.f32 %v1341, %v1371
      %v1382 = vadd.f32 %v1342, %v1372
      %v1383 = vadd.f32 %v1343, %v1373
      %v1384 = vadd.f32 %v1344, %v1374
      %v1385 = vadd.f32 %v1345, %v1375
      %v1386 = vadd.f32 %v1346, %v1376
      %v1387 = vmul.f32 %v1377, 0.7978846
      %v1388 = vmul.f32 %v1378, 0.7978846
      %v1389 = vmul.f32 %v1379, 0.7978846
      %v1390 = vmul.f32 %v1380, 0.7978846
      %v1391 = vmul.f32 %v1381, 0.7978846
      %v1392 = vmul.f32 %v1382, 0.7978846
      %v1393 = vmul.f32 %v1383, 0.7978846
      %v1394 = vmul.f32 %v1384, 0.7978846
      %v1395 = vmul.f32 %v1385, 0.7978846
      %v1396 = vmul.f32 %v1386, 0.7978846
      %v1397 = vtanh.pop %v1387
      %v1398 = vtanh.pop %v1388
      %v1399 = vtanh.pop %v1389
      %v1400 = vtanh.pop %v1390
      %v1401 = vtanh.pop %v1391
      %v1402 = vtanh.pop %v1392
      %v1403 = vtanh.pop %v1393
      %v1404 = vtanh.pop %v1394
      %v1405 = vtanh.pop %v1395
      %v1406 = vtanh.pop %v1396
      %v1407 = vadd.f32 %v1397, 1.0
      %v1408 = vadd.f32 %v1398, 1.0
      %v1409 = vadd.f32 %v1399, 1.0
      %v1410 = vadd.f32 %v1400, 1.0
      %v1411 = vadd.f32 %v1401, 1.0
      %v1412 = vadd.f32 %v1402, 1.0
      %v1413 = vadd.f32 %v1403, 1.0
      %v1414 = vadd.f32 %v1404, 1.0
      %v1415 = vadd.f32 %v1405, 1.0
      %v1416 = vadd.f32 %v1406, 1.0
      %v1417 = vmul.f32 %v1407, 0.5
      %v1418 = vmul.f32 %v1408, 0.5
      %v1419 = vmul.f32 %v1409, 0.5
      %v1420 = vmul.f32 %v1410, 0.5
      %v1421 = vmul.f32 %v1411, 0.5
      %v1422 = vmul.f32 %v1412, 0.5
      %v1423 = vmul.f32 %v1413, 0.5
      %v1424 = vmul.f32 %v1414, 0.5
      %v1425 = vmul.f32 %v1415, 0.5
      %v1426 = vmul.f32 %v1416, 0.5
      %v1427 = vmul.f32 %v1337, %v1417
      %v1428 = vmul.f32 %v1338, %v1418
      %v1429 = vmul.f32 %v1339, %v1419
      %v1430 = vmul.f32 %v1340, %v1420
      %v1431 = vmul.f32 %v1341, %v1421
      %v1432 = vmul.f32 %v1342, %v1422
      %v1433 = vmul.f32 %v1343, %v1423
      %v1434 = vmul.f32 %v1344, %v1424
      %v1435 = vmul.f32 %v1345, %v1425
      %v1436 = vmul.f32 %v1346, %v1426
      %v1437 = vpack.c.bf16 %v1428, %v1427
      %v1438 = vpack.c.bf16 %v1430, %v1429
      %v1439 = vpack.c.bf16 %v1432, %v1431
      %v1440 = vpack.c.bf16 %v1434, %v1433
      %v1441 = vpack.c.bf16 %v1436, %v1435
      %v1442 = vmul.u32 %v960, 2
      %v1443 = vmul.u32 %v961, 2
      %v1444 = vmul.u32 %v962, 2
      %v1445 = vmul.u32 %v963, 2
      %v1446 = vmul.u32 %v964, 2
      %vm1447 = vcmp.eq.s32.totalorder %v971, %v1442
      %vm1448 = vcmp.eq.s32.totalorder %v971, %v1443
      %vm1449 = vcmp.eq.s32.totalorder %v971, %v1444
      %vm1450 = vcmp.eq.s32.totalorder %v971, %v1445
      %vm1451 = vcmp.eq.s32.totalorder %v971, %v1446
      %v1452 = vsel %vm1447, 1, 0
      %v1453 = vsel %vm1448, 1, 0
      %v1454 = vsel %vm1449, 1, 0
      %v1455 = vsel %vm1450, 1, 0
      %v1456 = vsel %vm1451, 1, 0
      %v1457 = vcvt.s32.f32 %v1452
      %v1458 = vcvt.s32.f32 %v1453
      %v1459 = vcvt.s32.f32 %v1454
      %v1460 = vcvt.s32.f32 %v1455
      %v1461 = vcvt.s32.f32 %v1456
      %v1462 = vpack.c.bf16 %v1458, %v1457
      %v1463 = vpack.c.bf16 %v1460, %v1459
      %v1464 = vpack.c.bf16 %v1461, %v1461
      %v1466 = vsel %vm1017, %v1462, 0
      %v1469 = vsel %vm1017, %v1463, 0
      %v1472 = vsel %vm1017, %v1464, 0
      %1474 = vmatpush.bf16.msra.mxu0 0
      %1475 = vmatpush.bf16.msra.mxu0 0
      %1476 = vmatpush.bf16.msra.mxu0 0
      %1477 = vmatpush.bf16.msra.mxu0 %v1441
      %1478 = vmatpush.bf16.msra.mxu0 %v1440
      %1479 = vmatpush.bf16.msra.mxu0 %v1439
      %1480 = vmatpush.bf16.msra.mxu0 %v1438
      %1481 = vmatpush.bf16.msra.mxu0 %v1437
      %1482 = vmatmul.bf16.gmra.mxu0 %v1466
      %v1483 = vpop.f32.mrf.mxu0
      %v1484 = vadd.f32 0.0, %v1483
      %v1485 = vpop.f32.mrf.mxu0
      %v1486 = vadd.f32 0.0, %v1485
      %1487 = vmatmul.bf16.gmra.mxu0 %v1469
      %v1488 = vpop.f32.mrf.mxu0
      %v1489 = vadd.f32 0.0, %v1488
      %v1490 = vpop.f32.mrf.mxu0
      %v1491 = vadd.f32 0.0, %v1490
      %1492 = vmatmul.bf16.gmra.mxu0 %v1472
      %v1493 = vpop.f32.mrf.mxu0
      %v1494 = vadd.f32 0.0, %v1493
      %v1495 = vpop.f32.mrf.mxu0
      %1496 = vdwg.mxu0
      %v1497 = vpack.c.bf16 %v1486, %v1484
      %v1498 = vpack.c.bf16 %v1491, %v1489
      %v1499 = vpack.c.bf16 %v1494, %v1494
      %v1500 = vadd.s32 %v1442, 1
      %v1501 = vadd.s32 %v1443, 1
      %v1502 = vadd.s32 %v1444, 1
      %v1503 = vadd.s32 %v1445, 1
      %v1504 = vadd.s32 %v1446, 1
      %vm1505 = vcmp.eq.s32.totalorder %v971, %v1500
      %vm1506 = vcmp.eq.s32.totalorder %v971, %v1501
      %vm1507 = vcmp.eq.s32.totalorder %v971, %v1502
      %vm1508 = vcmp.eq.s32.totalorder %v971, %v1503
      %vm1509 = vcmp.eq.s32.totalorder %v971, %v1504
      %v1510 = vsel %vm1505, 1, 0
      %v1511 = vsel %vm1506, 1, 0
      %v1512 = vsel %vm1507, 1, 0
      %v1513 = vsel %vm1508, 1, 0
      %v1514 = vsel %vm1509, 1, 0
      %v1515 = vcvt.s32.f32 %v1510
      %v1516 = vcvt.s32.f32 %v1511
      %v1517 = vcvt.s32.f32 %v1512
      %v1518 = vcvt.s32.f32 %v1513
      %v1519 = vcvt.s32.f32 %v1514
      %v1520 = vpack.c.bf16 %v1516, %v1515
      %v1521 = vpack.c.bf16 %v1518, %v1517
      %v1522 = vpack.c.bf16 %v1519, %v1519
      %v1524 = vsel %vm1017, %v1520, 0
      %v1527 = vsel %vm1017, %v1521, 0
      %v1530 = vsel %vm1017, %v1522, 0
      %1532 = vmatpush.bf16.msra.mxu0 0
      %1533 = vmatpush.bf16.msra.mxu0 0
      %1534 = vmatpush.bf16.msra.mxu0 0
      %1535 = vmatpush.bf16.msra.mxu0 %v1441
      %1536 = vmatpush.bf16.msra.mxu0 %v1440
      %1537 = vmatpush.bf16.msra.mxu0 %v1439
      %1538 = vmatpush.bf16.msra.mxu0 %v1438
      %1539 = vmatpush.bf16.msra.mxu0 %v1437
      %1540 = vmatmul.bf16.gmra.mxu0 %v1524
      %v1541 = vpop.f32.mrf.mxu0
      %v1542 = vadd.f32 0.0, %v1541
      %v1543 = vpop.f32.mrf.mxu0
      %v1544 = vadd.f32 0.0, %v1543
      %1545 = vmatmul.bf16.gmra.mxu0 %v1527
      %v1546 = vpop.f32.mrf.mxu0
      %v1547 = vadd.f32 0.0, %v1546
      %v1548 = vpop.f32.mrf.mxu0
      %v1549 = vadd.f32 0.0, %v1548
      %1550 = vmatmul.bf16.gmra.mxu0 %v1530
      %v1551 = vpop.f32.mrf.mxu0
      %v1552 = vadd.f32 0.0, %v1551
      %v1553 = vpop.f32.mrf.mxu0
      %1554 = vdwg.mxu0
      %v1555 = vpack.c.bf16 %v1544, %v1542
      %v1556 = vpack.c.bf16 %v1549, %v1547
      %v1557 = vpack.c.bf16 %v1552, %v1552
      %v1558 = vadd.s32 %v1442, 2
      %v1559 = vadd.s32 %v1443, 2
      %v1560 = vadd.s32 %v1444, 2
      %v1561 = vadd.s32 %v1445, 2
      %v1562 = vadd.s32 %v1446, 2
      %vm1563 = vcmp.eq.s32.totalorder %v971, %v1558
      %vm1564 = vcmp.eq.s32.totalorder %v971, %v1559
      %vm1565 = vcmp.eq.s32.totalorder %v971, %v1560
      %vm1566 = vcmp.eq.s32.totalorder %v971, %v1561
      %vm1567 = vcmp.eq.s32.totalorder %v971, %v1562
      %v1568 = vsel %vm1563, 1, 0
      %v1569 = vsel %vm1564, 1, 0
      %v1570 = vsel %vm1565, 1, 0
      %v1571 = vsel %vm1566, 1, 0
      %v1572 = vsel %vm1567, 1, 0
      %v1573 = vcvt.s32.f32 %v1568
      %v1574 = vcvt.s32.f32 %v1569
      %v1575 = vcvt.s32.f32 %v1570
      %v1576 = vcvt.s32.f32 %v1571
      %v1577 = vcvt.s32.f32 %v1572
      %v1578 = vpack.c.bf16 %v1574, %v1573
      %v1579 = vpack.c.bf16 %v1576, %v1575
      %v1580 = vpack.c.bf16 %v1577, %v1577
      %v1582 = vsel %vm1017, %v1578, 0
      %v1585 = vsel %vm1017, %v1579, 0
      %v1588 = vsel %vm1017, %v1580, 0
      %1590 = vmatpush.bf16.msra.mxu0 0
      %1591 = vmatpush.bf16.msra.mxu0 0
      %1592 = vmatpush.bf16.msra.mxu0 0
      %1593 = vmatpush.bf16.msra.mxu0 %v1441
      %1594 = vmatpush.bf16.msra.mxu0 %v1440
      %1595 = vmatpush.bf16.msra.mxu0 %v1439
      %1596 = vmatpush.bf16.msra.mxu0 %v1438
      %1597 = vmatpush.bf16.msra.mxu0 %v1437
      %1598 = vmatmul.bf16.gmra.mxu0 %v1582
      %v1599 = vpop.f32.mrf.mxu0
      %v1600 = vadd.f32 0.0, %v1599
      %v1601 = vpop.f32.mrf.mxu0
      %v1602 = vadd.f32 0.0, %v1601
      %1603 = vmatmul.bf16.gmra.mxu0 %v1585
      %v1604 = vpop.f32.mrf.mxu0
      %v1605 = vadd.f32 0.0, %v1604
      %v1606 = vpop.f32.mrf.mxu0
      %v1607 = vadd.f32 0.0, %v1606
      %1608 = vmatmul.bf16.gmra.mxu0 %v1588
      %v1609 = vpop.f32.mrf.mxu0
      %v1610 = vadd.f32 0.0, %v1609
      %v1611 = vpop.f32.mrf.mxu0
      %1612 = vdwg.mxu0
      %v1613 = vpack.c.bf16 %v1602, %v1600
      %v1614 = vpack.c.bf16 %v1607, %v1605
      %v1615 = vpack.c.bf16 %v1610, %v1610
      %v1616 = vld [vmem:[%s13] sm:$0xf]
      %v1617 = vld [vmem:[%s13 + $0x4] sm:$0xf]
      %v1618 = vld [vmem:[%s13 + $0x8] sm:$0xf]
      %v1619 = vld [vmem:[%s13 + $0xc] sm:$0xf]
      %v1620 = vld [vmem:[%s13 + $0x10] sm:$0xf]
      %v1621 = vld [vmem:[%s13 + $0x14] sm:$0xf]
      %v1622 = vld [vmem:[%s13 + $0x18] sm:$0xf]
      %v1623 = vld [vmem:[%s13 + $0x1c] sm:$0xf]
      %v1628 = vunpack.c.l.b16 %v1620
      %v1629 = vunpack.c.l.b16 %v1621
      %v1630 = vunpack.c.l.b16 %v1622
      %v1631 = vunpack.c.l.b16 %v1623
      %v1632 = vpack.c.b16 %v1629, %v1628
      %v1633 = vpack.c.b16 %v1631, %v1630
      %v1637 = vsel %vm1223, %v1555, 0
      %v1640 = vsel %vm1223, %v1556, 0
      %v1643 = vsel %vm1223, %v1557, 0
      %1645 = vmatpush.bf16.msra.mxu0 0
      %1646 = vmatpush.bf16.msra.mxu0 0
      %1647 = vmatpush.bf16.msra.mxu0 0
      %1648 = vmatpush.bf16.msra.mxu0 0
      %1649 = vmatpush.bf16.msra.mxu0 0
      %1650 = vmatpush.bf16.msra.mxu0 0
      %1651 = vmatpush.bf16.msra.mxu0 %v1633
      %1652 = vmatpush.bf16.msra.mxu0 %v1632
      %1653 = vmatmul.bf16.gmra.mxu0 %v1637
      %v1654 = vpop.f32.mrf.mxu0
      %v1655 = vadd.f32 0.0, %v1654
      %v1656 = vpop.f32.mrf.mxu0
      %v1657 = vadd.f32 0.0, %v1656
      %1658 = vmatmul.bf16.gmra.mxu0 %v1640
      %v1659 = vpop.f32.mrf.mxu0
      %v1660 = vadd.f32 0.0, %v1659
      %v1661 = vpop.f32.mrf.mxu0
      %v1662 = vadd.f32 0.0, %v1661
      %1663 = vmatmul.bf16.gmra.mxu0 %v1643
      %v1664 = vpop.f32.mrf.mxu0
      %v1665 = vadd.f32 0.0, %v1664
      %v1666 = vpop.f32.mrf.mxu0
      %1667 = vdwg.mxu0
      %v1672 = vunpack.c.l.b16 %v1616
      %v1673 = vunpack.c.l.b16 %v1617
      %v1674 = vunpack.c.l.b16 %v1618
      %v1675 = vunpack.c.l.b16 %v1619
      %v1676 = vpack.c.b16 %v1673, %v1672
      %v1677 = vpack.c.b16 %v1675, %v1674
      %v1681 = vsel %vm1223, %v1497, 0
      %v1684 = vsel %vm1223, %v1498, 0
      %v1687 = vsel %vm1223, %v1499, 0
      %1689 = vmatpush.bf16.msra.mxu0 0
      %1690 = vmatpush.bf16.msra.mxu0 0
      %1691 = vmatpush.bf16.msra.mxu0 0
      %1692 = vmatpush.bf16.msra.mxu0 0
      %1693 = vmatpush.bf16.msra.mxu0 0
      %1694 = vmatpush.bf16.msra.mxu0 0
      %1695 = vmatpush.bf16.msra.mxu0 %v1677
      %1696 = vmatpush.bf16.msra.mxu0 %v1676
      %1697 = vmatmul.bf16.gmra.mxu0 %v1681
      %v1698 = vpop.f32.mrf.mxu0
      %v1699 = vadd.f32 %v1655, %v1698
      %v1700 = vpop.f32.mrf.mxu0
      %v1701 = vadd.f32 %v1657, %v1700
      %1702 = vmatmul.bf16.gmra.mxu0 %v1684
      %v1703 = vpop.f32.mrf.mxu0
      %v1704 = vadd.f32 %v1660, %v1703
      %v1705 = vpop.f32.mrf.mxu0
      %v1706 = vadd.f32 %v1662, %v1705
      %1707 = vmatmul.bf16.gmra.mxu0 %v1687
      %v1708 = vpop.f32.mrf.mxu0
      %v1709 = vadd.f32 %v1665, %v1708
      %v1710 = vpop.f32.mrf.mxu0
      %1711 = vdwg.mxu0
      %v1712 = vld [vmem:[%s13 + $0x20] sm:$0xf]
      %v1713 = vld [vmem:[%s13 + $0x24] sm:$0xf]
      %v1714 = vld [vmem:[%s13 + $0x28] sm:$0xf]
      %v1715 = vld [vmem:[%s13 + $0x2c] sm:$0xf]
      %v1720 = vunpack.c.l.b16 %v1712
      %v1721 = vunpack.c.l.b16 %v1713
      %v1722 = vunpack.c.l.b16 %v1714
      %v1723 = vunpack.c.l.b16 %v1715
      %v1724 = vpack.c.b16 %v1721, %v1720
      %v1725 = vpack.c.b16 %v1723, %v1722
      %v1729 = vsel %vm1223, %v1613, 0
      %v1732 = vsel %vm1223, %v1614, 0
      %v1735 = vsel %vm1223, %v1615, 0
      %1737 = vmatpush.bf16.msra.mxu0 0
      %1738 = vmatpush.bf16.msra.mxu0 0
      %1739 = vmatpush.bf16.msra.mxu0 0
      %1740 = vmatpush.bf16.msra.mxu0 0
      %1741 = vmatpush.bf16.msra.mxu0 0
      %1742 = vmatpush.bf16.msra.mxu0 0
      %1743 = vmatpush.bf16.msra.mxu0 %v1725
      %1744 = vmatpush.bf16.msra.mxu0 %v1724
      %1745 = vmatmul.bf16.gmra.mxu0 %v1729
      %v1746 = vpop.f32.mrf.mxu0
      %v1747 = vadd.f32 0.0, %v1746
      %v1748 = vpop.f32.mrf.mxu0
      %v1749 = vadd.f32 0.0, %v1748
      %1750 = vmatmul.bf16.gmra.mxu0 %v1732
      %v1751 = vpop.f32.mrf.mxu0
      %v1752 = vadd.f32 0.0, %v1751
      %v1753 = vpop.f32.mrf.mxu0
      %v1754 = vadd.f32 0.0, %v1753
      %1755 = vmatmul.bf16.gmra.mxu0 %v1735
      %v1756 = vpop.f32.mrf.mxu0
      %v1757 = vadd.f32 0.0, %v1756
      %v1758 = vpop.f32.mrf.mxu0
      %1759 = vdwg.mxu0
      %v1760 = vadd.f32 %v1699, %v1747
      %v1761 = vadd.f32 %v1701, %v1749
      %v1762 = vadd.f32 %v1704, %v1752
      %v1763 = vadd.f32 %v1706, %v1754
      %v1764 = vadd.f32 %v1709, %v1757
      %v1765 = vmul.f32 %v1760, %v1760
      %v1766 = vmul.f32 %v1761, %v1761
      %v1767 = vmul.f32 %v1762, %v1762
      %v1768 = vmul.f32 %v1763, %v1763
      %v1769 = vmul.f32 %v1764, %v1764
      %v1770 = vmul.f32 %v1760, %v1765
      %v1771 = vmul.f32 %v1761, %v1766
      %v1772 = vmul.f32 %v1762, %v1767
      %v1773 = vmul.f32 %v1763, %v1768
      %v1774 = vmul.f32 %v1764, %v1769
      %v1775 = vmul.f32 %v1770, 0.044715
      %v1776 = vmul.f32 %v1771, 0.044715
      %v1777 = vmul.f32 %v1772, 0.044715
      %v1778 = vmul.f32 %v1773, 0.044715
      %v1779 = vmul.f32 %v1774, 0.044715
      %v1780 = vadd.f32 %v1760, %v1775
      %v1781 = vadd.f32 %v1761, %v1776
      %v1782 = vadd.f32 %v1762, %v1777
      %v1783 = vadd.f32 %v1763, %v1778
      %v1784 = vadd.f32 %v1764, %v1779
      %v1785 = vmul.f32 %v1780, 0.7978846
      %v1786 = vmul.f32 %v1781, 0.7978846
      %v1787 = vmul.f32 %v1782, 0.7978846
      %v1788 = vmul.f32 %v1783, 0.7978846
      %v1789 = vmul.f32 %v1784, 0.7978846
      %v1790 = vtanh.pop %v1785
      %v1791 = vtanh.pop %v1786
      %v1792 = vtanh.pop %v1787
      %v1793 = vtanh.pop %v1788
      %v1794 = vtanh.pop %v1789
      %v1795 = vadd.f32 %v1790, 1.0
      %v1796 = vadd.f32 %v1791, 1.0
      %v1797 = vadd.f32 %v1792, 1.0
      %v1798 = vadd.f32 %v1793, 1.0
      %v1799 = vadd.f32 %v1794, 1.0
      %v1800 = vmul.f32 %v1795, 0.5
      %v1801 = vmul.f32 %v1796, 0.5
      %v1802 = vmul.f32 %v1797, 0.5
      %v1803 = vmul.f32 %v1798, 0.5
      %v1804 = vmul.f32 %v1799, 0.5
      %v1805 = vmul.f32 %v1760, %v1800
      %v1806 = vmul.f32 %v1761, %v1801
      %v1807 = vmul.f32 %v1762, %v1802
      %v1808 = vmul.f32 %v1763, %v1803
      %v1809 = vmul.f32 %v1764, %v1804
      %v1810 = vpack.c.bf16 %v1806, %v1805
      %v1811 = vpack.c.bf16 %v1808, %v1807
      %v1812 = vpack.c.bf16 %v1809, %v1809
      %v1813 = vpack.c.bf16 %v1459, %v1459
      %vm1814 = vcmask 326656
      %v1815 = vsel %vm1814, %v1462, 0
      %v1818 = vsel %vm1814, %v1813, 0
      %vm1820 = vcmask 1043456
      %v1822 = vsel %vm1820, %v1812, 0
      %1824 = vmatpush.bf16.msra.mxu0 0
      %1825 = vmatpush.bf16.msra.mxu0 0
      %1826 = vmatpush.bf16.msra.mxu0 0
      %1827 = vmatpush.bf16.msra.mxu0 0
      %1828 = vmatpush.bf16.msra.mxu0 0
      %1829 = vmatpush.bf16.msra.mxu0 %v1822
      %1830 = vmatpush.bf16.msra.mxu0 %v1811
      %1831 = vmatpush.bf16.msra.mxu0 %v1810
      %1832 = vmatmul.bf16.gmra.mxu0 %v1815
      %v1833 = vpop.f32.mrf.mxu0
      %v1834 = vadd.f32 0.0, %v1833
      %v1835 = vpop.f32.mrf.mxu0
      %v1836 = vadd.f32 0.0, %v1835
      %1837 = vmatmul.bf16.gmra.mxu0 %v1818
      %v1838 = vpop.f32.mrf.mxu0
      %v1839 = vadd.f32 0.0, %v1838
      %v1840 = vpop.f32.mrf.mxu0
      %1841 = vdwg.mxu0
      %v1842 = vpack.c.bf16 %v1836, %v1834
      %v1843 = vpack.c.bf16 %v1839, %v1839
      %v1844 = vpack.c.bf16 %v1517, %v1517
      %v1845 = vsel %vm1814, %v1520, 0
      %v1848 = vsel %vm1814, %v1844, 0
      %1850 = vmatpush.bf16.msra.mxu0 0
      %1851 = vmatpush.bf16.msra.mxu0 0
      %1852 = vmatpush.bf16.msra.mxu0 0
      %1853 = vmatpush.bf16.msra.mxu0 0
      %1854 = vmatpush.bf16.msra.mxu0 0
      %1855 = vmatpush.bf16.msra.mxu0 %v1822
      %1856 = vmatpush.bf16.msra.mxu0 %v1811
      %1857 = vmatpush.bf16.msra.mxu0 %v1810
      %1858 = vmatmul.bf16.gmra.mxu0 %v1845
      %v1859 = vpop.f32.mrf.mxu0
      %v1860 = vadd.f32 0.0, %v1859
      %v1861 = vpop.f32.mrf.mxu0
      %v1862 = vadd.f32 0.0, %v1861
      %1863 = vmatmul.bf16.gmra.mxu0 %v1848
      %v1864 = vpop.f32.mrf.mxu0
      %v1865 = vadd.f32 0.0, %v1864
      %v1866 = vpop.f32.mrf.mxu0
      %1867 = vdwg.mxu0
      %v1868 = vpack.c.bf16 %v1862, %v1860
      %v1869 = vpack.c.bf16 %v1865, %v1865
      %v1870 = vld [vmem:[%s15] sm:$0xf]
      %v1871 = vld [vmem:[%s15 + $0x4] sm:$0xf]
      %v1872 = vld [vmem:[%s15 + $0x8] sm:$0xf]
      %v1873 = vld [vmem:[%s15 + $0xc] sm:$0xf]
      %v1874 = vld [vmem:[%s15 + $0x10] sm:$0xf]
      %v1875 = vld [vmem:[%s15 + $0x14] sm:$0xf]
      %v1876 = vld [vmem:[%s15 + $0x18] sm:$0xf]
      %v1877 = vld [vmem:[%s15 + $0x1c] sm:$0xf]
      %v1882 = vunpack.c.l.b16 %v1874
      %v1883 = vunpack.c.l.b16 %v1875
      %v1884 = vunpack.c.l.b16 %v1876
      %v1885 = vunpack.c.l.b16 %v1877
      %v1886 = vpack.c.b16 %v1883, %v1882
      %v1887 = vpack.c.b16 %v1885, %v1884
      %v1891 = vsel %vm1223, %v1868, 0
      %v1894 = vsel %vm1223, %v1869, 0
      %1896 = vmatpush.bf16.msra.mxu0 0
      %1897 = vmatpush.bf16.msra.mxu0 0
      %1898 = vmatpush.bf16.msra.mxu0 0
      %1899 = vmatpush.bf16.msra.mxu0 0
      %1900 = vmatpush.bf16.msra.mxu0 0
      %1901 = vmatpush.bf16.msra.mxu0 0
      %1902 = vmatpush.bf16.msra.mxu0 %v1887
      %1903 = vmatpush.bf16.msra.mxu0 %v1886
      %1904 = vmatmul.bf16.gmra.mxu0 %v1891
      %v1905 = vpop.f32.mrf.mxu0
      %v1906 = vadd.f32 0.0, %v1905
      %v1907 = vpop.f32.mrf.mxu0
      %v1908 = vadd.f32 0.0, %v1907
      %1909 = vmatmul.bf16.gmra.mxu0 %v1894
      %v1910 = vpop.f32.mrf.mxu0
      %v1911 = vadd.f32 0.0, %v1910
      %v1912 = vpop.f32.mrf.mxu0
      %1913 = vdwg.mxu0
      %v1918 = vunpack.c.l.b16 %v1870
      %v1919 = vunpack.c.l.b16 %v1871
      %v1920 = vunpack.c.l.b16 %v1872
      %v1921 = vunpack.c.l.b16 %v1873
      %v1922 = vpack.c.b16 %v1919, %v1918
      %v1923 = vpack.c.b16 %v1921, %v1920
      %v1927 = vsel %vm1223, %v1842, 0
      %v1930 = vsel %vm1223, %v1843, 0
      %1932 = vmatpush.bf16.msra.mxu0 0
      %1933 = vmatpush.bf16.msra.mxu0 0
      %1934 = vmatpush.bf16.msra.mxu0 0
      %1935 = vmatpush.bf16.msra.mxu0 0
      %1936 = vmatpush.bf16.msra.mxu0 0
      %1937 = vmatpush.bf16.msra.mxu0 0
      %1938 = vmatpush.bf16.msra.mxu0 %v1923
      %1939 = vmatpush.bf16.msra.mxu0 %v1922
      %1940 = vmatmul.bf16.gmra.mxu0 %v1927
      %v1941 = vpop.f32.mrf.mxu0
      %v1942 = vadd.f32 %v1906, %v1941
      %v1943 = vpop.f32.mrf.mxu0
      %v1944 = vadd.f32 %v1908, %v1943
      %1945 = vmatmul.bf16.gmra.mxu0 %v1930
      %v1946 = vpop.f32.mrf.mxu0
      %v1947 = vadd.f32 %v1911, %v1946
      %v1948 = vpop.f32.mrf.mxu0
      %1949 = vdwg.mxu0
      %v1950 = vmul.f32 %v1942, %v1942
      %v1951 = vmul.f32 %v1944, %v1944
      %v1952 = vmul.f32 %v1947, %v1947
      %v1953 = vmul.f32 %v1942, %v1950
      %v1954 = vmul.f32 %v1944, %v1951
      %v1955 = vmul.f32 %v1947, %v1952
      %v1956 = vmul.f32 %v1953, 0.044715
      %v1957 = vmul.f32 %v1954, 0.044715
      %v1958 = vmul.f32 %v1955, 0.044715
      %v1959 = vadd.f32 %v1942, %v1956
      %v1960 = vadd.f32 %v1944, %v1957
      %v1961 = vadd.f32 %v1947, %v1958
      %v1962 = vmul.f32 %v1959, 0.7978846
      %v1963 = vmul.f32 %v1960, 0.7978846
      %v1964 = vmul.f32 %v1961, 0.7978846
      %v1965 = vtanh.pop %v1962
      %v1966 = vtanh.pop %v1963
      %v1967 = vtanh.pop %v1964
      %v1968 = vadd.f32 %v1965, 1.0
      %v1969 = vadd.f32 %v1966, 1.0
      %v1970 = vadd.f32 %v1967, 1.0
      %v1971 = vmul.f32 %v1968, 0.5
      %v1972 = vmul.f32 %v1969, 0.5
      %v1973 = vmul.f32 %v1970, 0.5
      %v1974 = vmul.f32 %v1942, %v1971
      %v1975 = vmul.f32 %v1944, %v1972
      %v1976 = vmul.f32 %v1947, %v1973
      %v1977 = vstv %s943
      %vm1978 = vcmp.lt.s32.totalorder %v960, %v1977
      %vm1979 = vcmp.lt.s32.totalorder %v961, %v1977
      %vm1980 = vcmp.lt.s32.totalorder %v962, %v1977
      %v1981 = vsel %vm1978, 1, 0
      %v1982 = vsel %vm1979, 1, 0
      %v1983 = vsel %vm1980, 1, 0
      %vm1984 = vcmp.eq.s32.totalorder %v1981, 1
      %vm1985 = vcmp.eq.s32.totalorder %v1982, 1
      %vm1986 = vcmp.eq.s32.totalorder %v1983, 1
      %v1987 = vsel %vm1984, %v1974, 0.0
      %v1988 = vsel %vm1985, %v1975, 0.0
      %v1989 = vsel %vm1986, %v1976, 0.0
      %v1990 = vld [vmem:[%s17] sm:$0x1]
      %v1991 = vld [vmem:[%s19] sm:$0x1]
      %v1992 = vsel %vm1223, %v1987, 0.0
      %1993 = vadd.xlane.f32.xlu0 %v1992
      %v1994 = vpop.xlane.xlu0 %1993
      %v1995 = vsel %vm1223, %v1988, 0.0
      %1996 = vadd.xlane.f32.xlu0 %v1995
      %v1997 = vpop.xlane.xlu0 %1996
      %v1998 = vsel %vm1223, %v1989, 0.0
      %1999 = vadd.xlane.f32.xlu0 %v1998
      %v2000 = vpop.xlane.xlu0 %1999
      %v2001 = vrcp.pop 32.0
      %v2002 = vmul.f32 32.0, %v2001
      %v2003 = vsub.f32 1.0, %v2002
      %v2004 = vmul.f32 %v2001, %v2003
      %v2005 = vadd.f32 %v2001, %v2004
      %vm2006 = vweird.f32 %v2001
      %v2007 = vsel %vm2006, %v2001, %v2005
      %v2008 = vmul.f32 %v1994, %v2007
      %v2009 = vmul.f32 %v1997, %v2007
      %v2010 = vmul.f32 %v2000, %v2007
      %v2011 = vsub.f32 %v1987, %v2008
      %v2012 = vsub.f32 %v1988, %v2009
      %v2013 = vsub.f32 %v1989, %v2010
      %v2014 = vmul.f32 %v2011, %v2011
      %v2015 = vmul.f32 %v2012, %v2012
      %v2016 = vmul.f32 %v2013, %v2013
      %v2017 = vsel %vm1223, %v2014, 0.0
      %2018 = vadd.xlane.f32.xlu0 %v2017
      %v2019 = vpop.xlane.xlu0 %2018
      %v2020 = vsel %vm1223, %v2015, 0.0
      %2021 = vadd.xlane.f32.xlu0 %v2020
      %v2022 = vpop.xlane.xlu0 %2021
      %v2023 = vsel %vm1223, %v2016, 0.0
      %2024 = vadd.xlane.f32.xlu0 %v2023
      %v2025 = vpop.xlane.xlu0 %2024
      %v2026 = vmul.f32 %v2019, %v2007
      %v2027 = vmul.f32 %v2022, %v2007
      %v2028 = vmul.f32 %v2025, %v2007
      %v2029 = vadd.f32 %v2026, 1e-05
      %v2030 = vadd.f32 %v2027, 1e-05
      %v2031 = vadd.f32 %v2028, 1e-05
      %v2032 = vrsqrt.pop %v2029
      %v2033 = vmul.f32 %v2032, %v2029
      %v2034 = vmul.f32 %v2033, %v2032
      %v2035 = vmul.f32 0.5, %v2034
      %v2036 = vsub.f32 1.5, %v2035
      %v2037 = vmul.f32 %v2032, %v2036
      %vm2038 = vweird.f32 %v2029
      %vm2039 = vweird.f32 %v2032
      %vm2040 = vmor %vm2038, %vm2039
      %v2041 = vsel %vm2040, %v2032, %v2037
      %v2042 = vrsqrt.pop %v2030
      %v2043 = vmul.f32 %v2042, %v2030
      %v2044 = vmul.f32 %v2043, %v2042
      %v2045 = vmul.f32 0.5, %v2044
      %v2046 = vsub.f32 1.5, %v2045
      %v2047 = vmul.f32 %v2042, %v2046
      %vm2048 = vweird.f32 %v2030
      %vm2049 = vweird.f32 %v2042
      %vm2050 = vmor %vm2048, %vm2049
      %v2051 = vsel %vm2050, %v2042, %v2047
      %v2052 = vrsqrt.pop %v2031
      %v2053 = vmul.f32 %v2052, %v2031
      %v2054 = vmul.f32 %v2053, %v2052
      %v2055 = vmul.f32 0.5, %v2054
      %v2056 = vsub.f32 1.5, %v2055
      %v2057 = vmul.f32 %v2052, %v2056
      %vm2058 = vweird.f32 %v2031
      %vm2059 = vweird.f32 %v2052
      %vm2060 = vmor %vm2058, %vm2059
      %v2061 = vsel %vm2060, %v2052, %v2057
      %v2062 = vmul.f32 %v2011, %v2041
      %v2063 = vmul.f32 %v2012, %v2051
      %v2064 = vmul.f32 %v2013, %v2061
      %v2066 = vperm.slane %v1990, 0
      %v2068 = vmul.f32 %v2062, %v2066
      %v2069 = vmul.f32 %v2063, %v2066
      %v2070 = vmul.f32 %v2064, %v2066
      %v2072 = vperm.slane %v1991, 0
      %v2074 = vadd.f32 %v2068, %v2072
      %v2075 = vadd.f32 %v2069, %v2072
      %v2076 = vadd.f32 %v2070, %v2072
      %v2077 = vpack.c.bf16 %v2075, %v2074
      %v2078 = vpack.c.bf16 %v2076, %v2076
      %v2079 = vld [vmem:[%s21] sm:$0xf]
      %v2080 = vld [vmem:[%s21 + $0x4] sm:$0xf]
      %v2081 = vld [vmem:[%s21 + $0x8] sm:$0xf]
      %v2082 = vld [vmem:[%s21 + $0xc] sm:$0xf]
      %v2083 = vld [vmem:[%s23] sm:$0x1]
      %v2085 = vperm.slane %v2083, 0
      %v2091 = vunpack.c.l.b16 %v2079
      %v2092 = vunpack.c.l.b16 %v2080
      %v2093 = vunpack.c.l.b16 %v2081
      %v2094 = vunpack.c.l.b16 %v2082
      %v2095 = vpack.c.b16 %v2092, %v2091
      %v2096 = vpack.c.b16 %v2094, %v2093
      %v2100 = vsel %vm1223, %v2077, 0
      %v2103 = vsel %vm1223, %v2078, 0
      %2105 = vmatpush.bf16.msra.mxu0 0
      %2106 = vmatpush.bf16.msra.mxu0 0
      %2107 = vmatpush.bf16.msra.mxu0 0
      %2108 = vmatpush.bf16.msra.mxu0 0
      %2109 = vmatpush.bf16.msra.mxu0 0
      %2110 = vmatpush.bf16.msra.mxu0 0
      %2111 = vmatpush.bf16.msra.mxu0 %v2096
      %2112 = vmatpush.bf16.msra.mxu0 %v2095
      %2113 = vmatmul.bf16.gmra.mxu0 %v2100
      %v2114 = vpop.f32.mrf.mxu0
      %v2115 = vadd.f32 %v2085, %v2114
      %v2116 = vpop.f32.mrf.mxu0
      %v2117 = vadd.f32 %v2085, %v2116
      %2118 = vmatmul.bf16.gmra.mxu0 %v2103
      %v2119 = vpop.f32.mrf.mxu0
      %v2120 = vadd.f32 %v2085, %v2119
      %v2121 = vpop.f32.mrf.mxu0
      %2122 = vdwg.mxu0
      %vm2123 = vcmp.lt.s32.totalorder %v960, 19
      %vm2124 = vcmp.lt.s32.totalorder %v961, 19
      %vm2125 = vcmp.lt.s32.totalorder %v962, 19
      %v2126 = vsel %vm2123, 1, 0
      %v2127 = vsel %vm2124, 1, 0
      %v2128 = vsel %vm2125, 1, 0
      %vm2129 = vcmp.eq.s32.totalorder %v2126, 1
      %vm2130 = vcmp.eq.s32.totalorder %v2127, 1
      %vm2131 = vcmp.eq.s32.totalorder %v2128, 1
      %v2132 = vsel %vm2129, %v2115, 0.0
      %v2133 = vsel %vm2130, %v2117, 0.0
      %v2134 = vsel %vm2131, %v2120, 0.0
      %v2135 = vadd.s32 %v960, 4294967292
      %v2136 = vadd.s32 %v961, 4294967292
      %v2137 = vadd.s32 %v962, 4294967292
      %vm2138 = vcmp.eq.s32.totalorder %v971, %v2135
      %vm2139 = vcmp.eq.s32.totalorder %v971, %v2136
      %vm2140 = vcmp.eq.s32.totalorder %v971, %v2137
      %v2141 = vsel %vm2138, 1, 0
      %v2142 = vsel %vm2139, 1, 0
      %v2143 = vsel %vm2140, 1, 0
      %v2144 = vcvt.s32.f32 %v2141
      %v2145 = vcvt.s32.f32 %v2142
      %v2146 = vcvt.s32.f32 %v2143
      %v2147 = vpack.c.bf16 %v2145, %v2144
      %v2148 = vpack.c.bf16 %v2146, %v2146
      %v2149 = vpack.c.bf16 %v2133, %v2132
      %v2150 = vpack.c.bf16 %v2134, %v2134
      %vm2151 = vcmask 195584
      %v2153 = vsel %vm2151, %v2147, 0
      %v2156 = vsel %vm2151, %v2148, 0
      %v2159 = vsel %vm1820, %v2150, 0
      %2161 = vmatpush.bf16.msra.mxu0 0
      %2162 = vmatpush.bf16.msra.mxu0 0
      %2163 = vmatpush.bf16.msra.mxu0 0
      %2164 = vmatpush.bf16.msra.mxu0 0
      %2165 = vmatpush.bf16.msra.mxu0 0
      %2166 = vmatpush.bf16.msra.mxu0 0
      %2167 = vmatpush.bf16.msra.mxu0 %v2159
      %2168 = vmatpush.bf16.msra.mxu0 %v2149
      %2169 = vmatmul.bf16.gmra.mxu0 %v2153
      %v2170 = vpop.f32.mrf.mxu0
      %v2171 = vadd.f32 0.0, %v2170
      %v2172 = vpop.f32.mrf.mxu0
      %v2173 = vadd.f32 0.0, %v2172
      %2174 = vmatmul.bf16.gmra.mxu0 %v2156
      %v2175 = vpop.f32.mrf.mxu0
      %v2176 = vadd.f32 0.0, %v2175
      %v2177 = vpop.f32.mrf.mxu0
      %2178 = vdwg.mxu0
      %v2179 = vpack.c.bf16 %v2171, %v2171
      %v2180 = vpack.c.bf16 %v2173, %v2173
      %v2181 = vpack.c.bf16 %v2176, %v2176
      %v2182 = vadd.s32 %v960, 4294967293
      %v2183 = vadd.s32 %v961, 4294967293
      %v2184 = vadd.s32 %v962, 4294967293
      %vm2185 = vcmp.eq.s32.totalorder %v971, %v2182
      %vm2186 = vcmp.eq.s32.totalorder %v971, %v2183
      %vm2187 = vcmp.eq.s32.totalorder %v971, %v2184
      %v2188 = vsel %vm2185, 1, 0
      %v2189 = vsel %vm2186, 1, 0
      %v2190 = vsel %vm2187, 1, 0
      %v2191 = vcvt.s32.f32 %v2188
      %v2192 = vcvt.s32.f32 %v2189
      %v2193 = vcvt.s32.f32 %v2190
      %v2194 = vpack.c.bf16 %v2192, %v2191
      %v2195 = vpack.c.bf16 %v2193, %v2193
      %v2197 = vsel %vm2151, %v2194, 0
      %v2200 = vsel %vm2151, %v2195, 0
      %2202 = vmatpush.bf16.msra.mxu0 0
      %2203 = vmatpush.bf16.msra.mxu0 0
      %2204 = vmatpush.bf16.msra.mxu0 0
      %2205 = vmatpush.bf16.msra.mxu0 0
      %2206 = vmatpush.bf16.msra.mxu0 0
      %2207 = vmatpush.bf16.msra.mxu0 0
      %2208 = vmatpush.bf16.msra.mxu0 %v2159
      %2209 = vmatpush.bf16.msra.mxu0 %v2149
      %2210 = vmatmul.bf16.gmra.mxu0 %v2197
      %v2211 = vpop.f32.mrf.mxu0
      %v2212 = vadd.f32 0.0, %v2211
      %v2213 = vpop.f32.mrf.mxu0
      %v2214 = vadd.f32 0.0, %v2213
      %2215 = vmatmul.bf16.gmra.mxu0 %v2200
      %v2216 = vpop.f32.mrf.mxu0
      %v2217 = vadd.f32 0.0, %v2216
      %v2218 = vpop.f32.mrf.mxu0
      %2219 = vdwg.mxu0
      %v2220 = vpack.c.bf16 %v2212, %v2212
      %v2221 = vpack.c.bf16 %v2214, %v2214
      %v2222 = vpack.c.bf16 %v2217, %v2217
      %v2223 = vadd.s32 %v960, 4294967294
      %v2224 = vadd.s32 %v961, 4294967294
      %v2225 = vadd.s32 %v962, 4294967294
      %vm2226 = vcmp.eq.s32.totalorder %v971, %v2223
      %vm2227 = vcmp.eq.s32.totalorder %v971, %v2224
      %vm2228 = vcmp.eq.s32.totalorder %v971, %v2225
      %v2229 = vsel %vm2226, 1, 0
      %v2230 = vsel %vm2227, 1, 0
      %v2231 = vsel %vm2228, 1, 0
      %v2232 = vcvt.s32.f32 %v2229
      %v2233 = vcvt.s32.f32 %v2230
      %v2234 = vcvt.s32.f32 %v2231
      %v2235 = vpack.c.bf16 %v2233, %v2232
      %v2236 = vpack.c.bf16 %v2234, %v2234
      %v2238 = vsel %vm2151, %v2235, 0
      %v2241 = vsel %vm2151, %v2236, 0
      %2243 = vmatpush.bf16.msra.mxu0 0
      %2244 = vmatpush.bf16.msra.mxu0 0
      %2245 = vmatpush.bf16.msra.mxu0 0
      %2246 = vmatpush.bf16.msra.mxu0 0
      %2247 = vmatpush.bf16.msra.mxu0 0
      %2248 = vmatpush.bf16.msra.mxu0 0
      %2249 = vmatpush.bf16.msra.mxu0 %v2159
      %2250 = vmatpush.bf16.msra.mxu0 %v2149
      %2251 = vmatmul.bf16.gmra.mxu0 %v2238
      %v2252 = vpop.f32.mrf.mxu0
      %v2253 = vadd.f32 0.0, %v2252
      %v2254 = vpop.f32.mrf.mxu0
      %v2255 = vadd.f32 0.0, %v2254
      %2256 = vmatmul.bf16.gmra.mxu0 %v2241
      %v2257 = vpop.f32.mrf.mxu0
      %v2258 = vadd.f32 0.0, %v2257
      %v2259 = vpop.f32.mrf.mxu0
      %2260 = vdwg.mxu0
      %v2261 = vpack.c.bf16 %v2253, %v2253
      %v2262 = vpack.c.bf16 %v2255, %v2255
      %v2263 = vpack.c.bf16 %v2258, %v2258
      %v2264 = vadd.s32 %v960, 4294967295
      %v2265 = vadd.s32 %v961, 4294967295
      %v2266 = vadd.s32 %v962, 4294967295
      %vm2267 = vcmp.eq.s32.totalorder %v971, %v2264
      %vm2268 = vcmp.eq.s32.totalorder %v971, %v2265
      %vm2269 = vcmp.eq.s32.totalorder %v971, %v2266
      %v2270 = vsel %vm2267, 1, 0
      %v2271 = vsel %vm2268, 1, 0
      %v2272 = vsel %vm2269, 1, 0
      %v2273 = vcvt.s32.f32 %v2270
      %v2274 = vcvt.s32.f32 %v2271
      %v2275 = vcvt.s32.f32 %v2272
      %v2276 = vpack.c.bf16 %v2274, %v2273
      %v2277 = vpack.c.bf16 %v2275, %v2275
      %v2279 = vsel %vm2151, %v2276, 0
      %v2282 = vsel %vm2151, %v2277, 0
      %2284 = vmatpush.bf16.msra.mxu0 0
      %2285 = vmatpush.bf16.msra.mxu0 0
      %2286 = vmatpush.bf16.msra.mxu0 0
      %2287 = vmatpush.bf16.msra.mxu0 0
      %2288 = vmatpush.bf16.msra.mxu0 0
      %2289 = vmatpush.bf16.msra.mxu0 0
      %2290 = vmatpush.bf16.msra.mxu0 %v2159
      %2291 = vmatpush.bf16.msra.mxu0 %v2149
      %2292 = vmatmul.bf16.gmra.mxu0 %v2279
      %v2293 = vpop.f32.mrf.mxu0
      %v2294 = vadd.f32 0.0, %v2293
      %v2295 = vpop.f32.mrf.mxu0
      %v2296 = vadd.f32 0.0, %v2295
      %2297 = vmatmul.bf16.gmra.mxu0 %v2282
      %v2298 = vpop.f32.mrf.mxu0
      %v2299 = vadd.f32 0.0, %v2298
      %v2300 = vpop.f32.mrf.mxu0
      %2301 = vdwg.mxu0
      %v2302 = vpack.c.bf16 %v2294, %v2294
      %v2303 = vpack.c.bf16 %v2296, %v2296
      %v2304 = vpack.c.bf16 %v2299, %v2299
      %vm2305 = vcmp.eq.s32.totalorder %v971, %v960
      %vm2306 = vcmp.eq.s32.totalorder %v971, %v961
      %vm2307 = vcmp.eq.s32.totalorder %v971, %v962
      %v2308 = vsel %vm2305, 1, 0
      %v2309 = vsel %vm2306, 1, 0
      %v2310 = vsel %vm2307, 1, 0
      %v2311 = vcvt.s32.f32 %v2308
      %v2312 = vcvt.s32.f32 %v2309
      %v2313 = vcvt.s32.f32 %v2310
      %v2314 = vpack.c.bf16 %v2312, %v2311
      %v2315 = vpack.c.bf16 %v2313, %v2313
      %v2317 = vsel %vm2151, %v2314, 0
      %v2320 = vsel %vm2151, %v2315, 0
      %2322 = vmatpush.bf16.msra.mxu0 0
      %2323 = vmatpush.bf16.msra.mxu0 0
      %2324 = vmatpush.bf16.msra.mxu0 0
      %2325 = vmatpush.bf16.msra.mxu0 0
      %2326 = vmatpush.bf16.msra.mxu0 0
      %2327 = vmatpush.bf16.msra.mxu0 0
      %2328 = vmatpush.bf16.msra.mxu0 %v2159
      %2329 = vmatpush.bf16.msra.mxu0 %v2149
      %2330 = vmatmul.bf16.gmra.mxu0 %v2317
      %v2331 = vpop.f32.mrf.mxu0
      %v2332 = vadd.f32 0.0, %v2331
      %v2333 = vpop.f32.mrf.mxu0
      %v2334 = vadd.f32 0.0, %v2333
      %2335 = vmatmul.bf16.gmra.mxu0 %v2320
      %v2336 = vpop.f32.mrf.mxu0
      %v2337 = vadd.f32 0.0, %v2336
      %v2338 = vpop.f32.mrf.mxu0
      %2339 = vdwg.mxu0
      %v2340 = vpack.c.bf16 %v2332, %v2332
      %v2341 = vpack.c.bf16 %v2334, %v2334
      %v2342 = vpack.c.bf16 %v2337, %v2337
      %v2343 = vpack.c.bf16 %v1004, %v1004
      %v2344 = vsel %vm2151, %v1012, 0
      %v2347 = vsel %vm2151, %v2343, 0
      %2349 = vmatpush.bf16.msra.mxu0 0
      %2350 = vmatpush.bf16.msra.mxu0 0
      %2351 = vmatpush.bf16.msra.mxu0 0
      %2352 = vmatpush.bf16.msra.mxu0 0
      %2353 = vmatpush.bf16.msra.mxu0 0
      %2354 = vmatpush.bf16.msra.mxu0 0
      %2355 = vmatpush.bf16.msra.mxu0 %v2159
      %2356 = vmatpush.bf16.msra.mxu0 %v2149
      %2357 = vmatmul.bf16.gmra.mxu0 %v2344
      %v2358 = vpop.f32.mrf.mxu0
      %v2359 = vadd.f32 0.0, %v2358
      %v2360 = vpop.f32.mrf.mxu0
      %v2361 = vadd.f32 0.0, %v2360
      %2362 = vmatmul.bf16.gmra.mxu0 %v2347
      %v2363 = vpop.f32.mrf.mxu0
      %v2364 = vadd.f32 0.0, %v2363
      %v2365 = vpop.f32.mrf.mxu0
      %2366 = vdwg.mxu0
      %v2367 = vpack.c.bf16 %v2359, %v2359
      %v2368 = vpack.c.bf16 %v2361, %v2361
      %v2369 = vpack.c.bf16 %v2364, %v2364
      %v2370 = vadd.s32 %v960, 2
      %v2371 = vadd.s32 %v961, 2
      %v2372 = vadd.s32 %v962, 2
      %vm2373 = vcmp.eq.s32.totalorder %v971, %v2370
      %vm2374 = vcmp.eq.s32.totalorder %v971, %v2371
      %vm2375 = vcmp.eq.s32.totalorder %v971, %v2372
      %v2376 = vsel %vm2373, 1, 0
      %v2377 = vsel %vm2374, 1, 0
      %v2378 = vsel %vm2375, 1, 0
      %v2379 = vcvt.s32.f32 %v2376
      %v2380 = vcvt.s32.f32 %v2377
      %v2381 = vcvt.s32.f32 %v2378
      %v2382 = vpack.c.bf16 %v2380, %v2379
      %v2383 = vpack.c.bf16 %v2381, %v2381
      %v2385 = vsel %vm2151, %v2382, 0
      %v2388 = vsel %vm2151, %v2383, 0
      %2390 = vmatpush.bf16.msra.mxu0 0
      %2391 = vmatpush.bf16.msra.mxu0 0
      %2392 = vmatpush.bf16.msra.mxu0 0
      %2393 = vmatpush.bf16.msra.mxu0 0
      %2394 = vmatpush.bf16.msra.mxu0 0
      %2395 = vmatpush.bf16.msra.mxu0 0
      %2396 = vmatpush.bf16.msra.mxu0 %v2159
      %2397 = vmatpush.bf16.msra.mxu0 %v2149
      %2398 = vmatmul.bf16.gmra.mxu0 %v2385
      %v2399 = vpop.f32.mrf.mxu0
      %v2400 = vadd.f32 0.0, %v2399
      %v2401 = vpop.f32.mrf.mxu0
      %v2402 = vadd.f32 0.0, %v2401
      %2403 = vmatmul.bf16.gmra.mxu0 %v2388
      %v2404 = vpop.f32.mrf.mxu0
      %v2405 = vadd.f32 0.0, %v2404
      %v2406 = vpop.f32.mrf.mxu0
      %2407 = vdwg.mxu0
      %v2408 = vpack.c.bf16 %v2400, %v2400
      %v2409 = vpack.c.bf16 %v2402, %v2402
      %v2410 = vpack.c.bf16 %v2405, %v2405
      %v2411 = vadd.s32 %v960, 3
      %v2412 = vadd.s32 %v961, 3
      %v2413 = vadd.s32 %v962, 3
      %vm2414 = vcmp.eq.s32.totalorder %v971, %v2411
      %vm2415 = vcmp.eq.s32.totalorder %v971, %v2412
      %vm2416 = vcmp.eq.s32.totalorder %v971, %v2413
      %v2417 = vsel %vm2414, 1, 0
      %v2418 = vsel %vm2415, 1, 0
      %v2419 = vsel %vm2416, 1, 0
      %v2420 = vcvt.s32.f32 %v2417
      %v2421 = vcvt.s32.f32 %v2418
      %v2422 = vcvt.s32.f32 %v2419
      %v2423 = vpack.c.bf16 %v2421, %v2420
      %v2424 = vpack.c.bf16 %v2422, %v2422
      %v2426 = vsel %vm2151, %v2423, 0
      %v2429 = vsel %vm2151, %v2424, 0
      %2431 = vmatpush.bf16.msra.mxu0 0
      %2432 = vmatpush.bf16.msra.mxu0 0
      %2433 = vmatpush.bf16.msra.mxu0 0
      %2434 = vmatpush.bf16.msra.mxu0 0
      %2435 = vmatpush.bf16.msra.mxu0 0
      %2436 = vmatpush.bf16.msra.mxu0 0
      %2437 = vmatpush.bf16.msra.mxu0 %v2159
      %2438 = vmatpush.bf16.msra.mxu0 %v2149
      %2439 = vmatmul.bf16.gmra.mxu0 %v2426
      %v2440 = vpop.f32.mrf.mxu0
      %v2441 = vadd.f32 0.0, %v2440
      %v2442 = vpop.f32.mrf.mxu0
      %v2443 = vadd.f32 0.0, %v2442
      %2444 = vmatmul.bf16.gmra.mxu0 %v2429
      %v2445 = vpop.f32.mrf.mxu0
      %v2446 = vadd.f32 0.0, %v2445
      %v2447 = vpop.f32.mrf.mxu0
      %2448 = vdwg.mxu0
      %v2449 = vpack.c.bf16 %v2441, %v2441
      %v2450 = vpack.c.bf16 %v2443, %v2443
      %v2451 = vpack.c.bf16 %v2446, %v2446
      %v2455 = vunpack.c.l.b16 %v2179
      %v2456 = vunpack.c.l.b16 %v2180
      %v2457 = vunpack.c.l.b16 %v2181
      %v2458 = vpack.c.b16 %v2456, %v2455
      %v2459 = vpack.c.b16 %v2457, %v2457
      %v2463 = vunpack.c.l.b16 %v2220
      %v2464 = vunpack.c.l.b16 %v2221
      %v2465 = vunpack.c.l.b16 %v2222
      %v2466 = vpack.c.b16 %v2464, %v2463
      %v2467 = vpack.c.b16 %v2465, %v2465
      %2468 = vrot.lane.b32.xlu0 %v2466, 64
      %v2469 = vpop.permute.xlu0 %2468
      %2470 = vrot.lane.b32.xlu0 %v2467, 64
      %v2471 = vpop.permute.xlu0 %2470
      %v2475 = vunpack.c.l.b16 %v2261
      %v2476 = vunpack.c.l.b16 %v2262
      %v2477 = vunpack.c.l.b16 %v2263
      %v2478 = vpack.c.b16 %v2476, %v2475
      %v2479 = vpack.c.b16 %v2477, %v2477
      %v2483 = vunpack.c.l.b16 %v2302
      %v2484 = vunpack.c.l.b16 %v2303
      %v2485 = vunpack.c.l.b16 %v2304
      %v2486 = vpack.c.b16 %v2484, %v2483
      %v2487 = vpack.c.b16 %v2485, %v2485
      %2488 = vrot.lane.b32.xlu0 %v2486, 64
      %v2489 = vpop.permute.xlu0 %2488
      %2490 = vrot.lane.b32.xlu0 %v2487, 64
      %v2491 = vpop.permute.xlu0 %2490
      %v2495 = vunpack.c.l.b16 %v2340
      %v2496 = vunpack.c.l.b16 %v2341
      %v2497 = vunpack.c.l.b16 %v2342
      %v2498 = vpack.c.b16 %v2496, %v2495
      %v2499 = vpack.c.b16 %v2497, %v2497
      %v2503 = vunpack.c.l.b16 %v2367
      %v2504 = vunpack.c.l.b16 %v2368
      %v2505 = vunpack.c.l.b16 %v2369
      %v2506 = vpack.c.b16 %v2504, %v2503
      %v2507 = vpack.c.b16 %v2505, %v2505
      %2508 = vrot.lane.b32.xlu0 %v2506, 64
      %v2509 = vpop.permute.xlu0 %2508
      %2510 = vrot.lane.b32.xlu0 %v2507, 64
      %v2511 = vpop.permute.xlu0 %2510
      %v2515 = vunpack.c.l.b16 %v2408
      %v2516 = vunpack.c.l.b16 %v2409
      %v2517 = vunpack.c.l.b16 %v2410
      %v2518 = vpack.c.b16 %v2516, %v2515
      %v2519 = vpack.c.b16 %v2517, %v2517
      %v2523 = vunpack.c.l.b16 %v2449
      %v2524 = vunpack.c.l.b16 %v2450
      %v2525 = vunpack.c.l.b16 %v2451
      %v2526 = vpack.c.b16 %v2524, %v2523
      %v2527 = vpack.c.b16 %v2525, %v2525
      %2528 = vrot.lane.b32.xlu0 %v2526, 64
      %v2529 = vpop.permute.xlu0 %2528
      %2530 = vrot.lane.b32.xlu0 %v2527, 64
      %v2531 = vpop.permute.xlu0 %2530
      %vm2532 = vcmask 523264
      %v2535 = vsel %vm2532, %v2458, %v2469
      %v2539 = vsel %vm2532, %v2459, %v2471
      %v2543 = vsel %vm2532, %v2478, %v2489
      %v2547 = vsel %vm2532, %v2479, %v2491
      %v2551 = vsel %vm2532, %v2498, %v2509
      %v2555 = vsel %vm2532, %v2499, %v2511
      %v2559 = vsel %vm2532, %v2518, %v2529
      %v2563 = vsel %vm2532, %v2519, %v2531
      %v2565 = vld [vmem:[%s25] sm:$0xf]
      %v2566 = vld [vmem:[%s25 + $0x4] sm:$0xf]
      %v2567 = vld [vmem:[%s25 + $0x8] sm:$0xf]
      %v2568 = vld [vmem:[%s25 + $0xc] sm:$0xf]
      %v2569 = vld [vmem:[%s25 + $0x10] sm:$0xf]
      %v2570 = vld [vmem:[%s25 + $0x14] sm:$0xf]
      %v2571 = vld [vmem:[%s25 + $0x18] sm:$0xf]
      %v2572 = vld [vmem:[%s25 + $0x1c] sm:$0xf]
      %v2573 = vld [vmem:[%s25 + $0x20] sm:$0xf]
      %v2574 = vld [vmem:[%s25 + $0x24] sm:$0xf]
      %v2575 = vld [vmem:[%s25 + $0x28] sm:$0xf]
      %v2576 = vld [vmem:[%s25 + $0x2c] sm:$0xf]
      %v2577 = vld [vmem:[%s25 + $0x30] sm:$0xf]
      %v2578 = vld [vmem:[%s25 + $0x34] sm:$0xf]
      %v2579 = vld [vmem:[%s25 + $0x38] sm:$0xf]
      %v2580 = vld [vmem:[%s25 + $0x3c] sm:$0xf]
      %v2581 = vld [vmem:[%s25 + $0x40] sm:$0xf]
      %v2582 = vld [vmem:[%s25 + $0x44] sm:$0xf]
      %v2583 = vld [vmem:[%s25 + $0x48] sm:$0xf]
      %v2584 = vld [vmem:[%s25 + $0x4c] sm:$0xf]
      %v2585 = vld [vmem:[%s25 + $0x50] sm:$0xf]
      %v2586 = vld [vmem:[%s25 + $0x54] sm:$0xf]
      %v2587 = vld [vmem:[%s25 + $0x58] sm:$0xf]
      %v2588 = vld [vmem:[%s25 + $0x5c] sm:$0xf]
      %v2589 = vld [vmem:[%s25 + $0x60] sm:$0xf]
      %v2590 = vld [vmem:[%s25 + $0x64] sm:$0xf]
      %v2591 = vld [vmem:[%s25 + $0x68] sm:$0xf]
      %v2592 = vld [vmem:[%s25 + $0x6c] sm:$0xf]
      %v2593 = vld [vmem:[%s25 + $0x70] sm:$0xf]
      %v2594 = vld [vmem:[%s25 + $0x74] sm:$0xf]
      %v2595 = vld [vmem:[%s25 + $0x78] sm:$0xf]
      %v2596 = vld [vmem:[%s25 + $0x7c] sm:$0xf]
      %v2597 = vld [vmem:[%s25 + $0x80] sm:$0xf]
      %v2598 = vld [vmem:[%s25 + $0x84] sm:$0xf]
      %v2599 = vld [vmem:[%s25 + $0x88] sm:$0xf]
      %v2600 = vld [vmem:[%s25 + $0x8c] sm:$0xf]
      %v2601 = vld [vmem:[%s25 + $0x90] sm:$0xf]
      %v2602 = vld [vmem:[%s25 + $0x94] sm:$0xf]
      %v2603 = vld [vmem:[%s25 + $0x98] sm:$0xf]
      %v2604 = vld [vmem:[%s25 + $0x9c] sm:$0xf]
      %v2605 = vld [vmem:[%s25 + $0xa0] sm:$0xf]
      %v2606 = vld [vmem:[%s25 + $0xa4] sm:$0xf]
      %v2607 = vld [vmem:[%s25 + $0xa8] sm:$0xf]
      %v2608 = vld [vmem:[%s25 + $0xac] sm:$0xf]
      %v2609 = vld [vmem:[%s25 + $0xb0] sm:$0xf]
      %v2610 = vld [vmem:[%s25 + $0xb4] sm:$0xf]
      %v2611 = vld [vmem:[%s25 + $0xb8] sm:$0xf]
      %v2612 = vld [vmem:[%s25 + $0xbc] sm:$0xf]
      %v2613 = vld [vmem:[%s25 + $0xc0] sm:$0xf]
      %v2614 = vld [vmem:[%s25 + $0xc4] sm:$0xf]
      %v2615 = vld [vmem:[%s25 + $0xc8] sm:$0xf]
      %v2616 = vld [vmem:[%s25 + $0xcc] sm:$0xf]
      %v2617 = vld [vmem:[%s25 + $0xd0] sm:$0xf]
      %v2618 = vld [vmem:[%s25 + $0xd4] sm:$0xf]
      %v2619 = vld [vmem:[%s25 + $0xd8] sm:$0xf]
      %v2620 = vld [vmem:[%s25 + $0xdc] sm:$0xf]
      %v2621 = vld [vmem:[%s25 + $0xe0] sm:$0xf]
      %v2622 = vld [vmem:[%s25 + $0xe4] sm:$0xf]
      %v2623 = vld [vmem:[%s25 + $0xe8] sm:$0xf]
      %v2624 = vld [vmem:[%s25 + $0xec] sm:$0xf]
      %v2625 = vld [vmem:[%s25 + $0xf0] sm:$0xf]
      %v2626 = vld [vmem:[%s25 + $0xf4] sm:$0xf]
      %v2627 = vld [vmem:[%s25 + $0xf8] sm:$0xf]
      %v2628 = vld [vmem:[%s25 + $0xfc] sm:$0xf]
      %v2629 = vld [vmem:[%s27] sm:$0x1]
      %v2631 = vperm.slane %v2629, 0
      %v2697 = vunpack.c.l.b16 %v2565
      %v2698 = vunpack.c.l.b16 %v2566
      %v2699 = vunpack.c.l.b16 %v2567
      %v2700 = vunpack.c.l.b16 %v2568
      %v2701 = vunpack.c.l.b16 %v2569
      %v2702 = vunpack.c.l.b16 %v2570
      %v2703 = vunpack.c.l.b16 %v2571
      %v2704 = vunpack.c.l.b16 %v2572
      %v2705 = vunpack.c.l.b16 %v2573
      %v2706 = vunpack.c.l.b16 %v2574
      %v2707 = vunpack.c.l.b16 %v2575
      %v2708 = vunpack.c.l.b16 %v2576
      %v2709 = vunpack.c.l.b16 %v2577
      %v2710 = vunpack.c.l.b16 %v2578
      %v2711 = vunpack.c.l.b16 %v2579
      %v2712 = vunpack.c.l.b16 %v2580
      %v2713 = vunpack.c.l.b16 %v2581
      %v2714 = vunpack.c.l.b16 %v2582
      %v2715 = vunpack.c.l.b16 %v2583
      %v2716 = vunpack.c.l.b16 %v2584
      %v2717 = vunpack.c.l.b16 %v2585
      %v2718 = vunpack.c.l.b16 %v2586
      %v2719 = vunpack.c.l.b16 %v2587
      %v2720 = vunpack.c.l.b16 %v2588
      %v2721 = vunpack.c.l.b16 %v2589
      %v2722 = vunpack.c.l.b16 %v2590
      %v2723 = vunpack.c.l.b16 %v2591
      %v2724 = vunpack.c.l.b16 %v2592
      %v2725 = vunpack.c.l.b16 %v2593
      %v2726 = vunpack.c.l.b16 %v2594
      %v2727 = vunpack.c.l.b16 %v2595
      %v2728 = vunpack.c.l.b16 %v2596
      %v2729 = vunpack.c.l.b16 %v2597
      %v2730 = vunpack.c.l.b16 %v2598
      %v2731 = vunpack.c.l.b16 %v2599
      %v2732 = vunpack.c.l.b16 %v2600
      %v2733 = vunpack.c.l.b16 %v2601
      %v2734 = vunpack.c.l.b16 %v2602
      %v2735 = vunpack.c.l.b16 %v2603
      %v2736 = vunpack.c.l.b16 %v2604
      %v2737 = vunpack.c.l.b16 %v2605
      %v2738 = vunpack.c.l.b16 %v2606
      %v2739 = vunpack.c.l.b16 %v2607
      %v2740 = vunpack.c.l.b16 %v2608
      %v2741 = vunpack.c.l.b16 %v2609
      %v2742 = vunpack.c.l.b16 %v2610
      %v2743 = vunpack.c.l.b16 %v2611
      %v2744 = vunpack.c.l.b16 %v2612
      %v2745 = vunpack.c.l.b16 %v2613
      %v2746 = vunpack.c.l.b16 %v2614
      %v2747 = vunpack.c.l.b16 %v2615
      %v2748 = vunpack.c.l.b16 %v2616
      %v2749 = vunpack.c.l.b16 %v2617
      %v2750 = vunpack.c.l.b16 %v2618
      %v2751 = vunpack.c.l.b16 %v2619
      %v2752 = vunpack.c.l.b16 %v2620
      %v2753 = vunpack.c.l.b16 %v2621
      %v2754 = vunpack.c.l.b16 %v2622
      %v2755 = vunpack.c.l.b16 %v2623
      %v2756 = vunpack.c.l.b16 %v2624
      %v2757 = vunpack.c.l.b16 %v2625
      %v2758 = vunpack.c.l.b16 %v2626
      %v2759 = vunpack.c.l.b16 %v2627
      %v2760 = vunpack.c.l.b16 %v2628
      %v2761 = vpack.c.b16 %v2698, %v2697
      %v2762 = vpack.c.b16 %v2700, %v2699
      %v2763 = vpack.c.b16 %v2702, %v2701
      %v2764 = vpack.c.b16 %v2704, %v2703
      %v2765 = vpack.c.b16 %v2706, %v2705
      %v2766 = vpack.c.b16 %v2708, %v2707
      %v2767 = vpack.c.b16 %v2710, %v2709
      %v2768 = vpack.c.b16 %v2712, %v2711
      %v2769 = vpack.c.b16 %v2714, %v2713
      %v2770 = vpack.c.b16 %v2716, %v2715
      %v2771 = vpack.c.b16 %v2718, %v2717
      %v2772 = vpack.c.b16 %v2720, %v2719
      %v2773 = vpack.c.b16 %v2722, %v2721
      %v2774 = vpack.c.b16 %v2724, %v2723
      %v2775 = vpack.c.b16 %v2726, %v2725
      %v2776 = vpack.c.b16 %v2728, %v2727
      %v2777 = vpack.c.b16 %v2730, %v2729
      %v2778 = vpack.c.b16 %v2732, %v2731
      %v2779 = vpack.c.b16 %v2734, %v2733
      %v2780 = vpack.c.b16 %v2736, %v2735
      %v2781 = vpack.c.b16 %v2738, %v2737
      %v2782 = vpack.c.b16 %v2740, %v2739
      %v2783 = vpack.c.b16 %v2742, %v2741
      %v2784 = vpack.c.b16 %v2744, %v2743
      %v2785 = vpack.c.b16 %v2746, %v2745
      %v2786 = vpack.c.b16 %v2748, %v2747
      %v2787 = vpack.c.b16 %v2750, %v2749
      %v2788 = vpack.c.b16 %v2752, %v2751
      %v2789 = vpack.c.b16 %v2754, %v2753
      %v2790 = vpack.c.b16 %v2756, %v2755
      %v2791 = vpack.c.b16 %v2758, %v2757
      %v2792 = vpack.c.b16 %v2760, %v2759
      %2825 = vmatpush.bf16.msra.mxu0 %v2768
      %2826 = vmatpush.bf16.msra.mxu0 %v2767
      %2827 = vmatpush.bf16.msra.mxu0 %v2766
      %2828 = vmatpush.bf16.msra.mxu0 %v2765
      %2829 = vmatpush.bf16.msra.mxu0 %v2764
      %2830 = vmatpush.bf16.msra.mxu0 %v2763
      %2831 = vmatpush.bf16.msra.mxu0 %v2762
      %2832 = vmatpush.bf16.msra.mxu0 %v2761
      %2833 = vmatmul.bf16.gmra.mxu0 %v2535
      %v2834 = vpop.f32.mrf.mxu0
      %v2835 = vadd.f32 %v2631, %v2834
      %v2836 = vpop.f32.mrf.mxu0
      %v2837 = vadd.f32 %v2631, %v2836
      %2838 = vmatmul.bf16.gmra.mxu0 %v2539
      %v2839 = vpop.f32.mrf.mxu0
      %v2840 = vadd.f32 %v2631, %v2839
      %v2841 = vpop.f32.mrf.mxu0
      %2842 = vdwg.mxu0
      %2843 = vmatpush.bf16.msra.mxu0 %v2776
      %2844 = vmatpush.bf16.msra.mxu0 %v2775
      %2845 = vmatpush.bf16.msra.mxu0 %v2774
      %2846 = vmatpush.bf16.msra.mxu0 %v2773
      %2847 = vmatpush.bf16.msra.mxu0 %v2772
      %2848 = vmatpush.bf16.msra.mxu0 %v2771
      %2849 = vmatpush.bf16.msra.mxu0 %v2770
      %2850 = vmatpush.bf16.msra.mxu0 %v2769
      %2851 = vmatmul.bf16.gmra.mxu0 %v2543
      %v2852 = vpop.f32.mrf.mxu0
      %v2853 = vadd.f32 %v2835, %v2852
      %v2854 = vpop.f32.mrf.mxu0
      %v2855 = vadd.f32 %v2837, %v2854
      %2856 = vmatmul.bf16.gmra.mxu0 %v2547
      %v2857 = vpop.f32.mrf.mxu0
      %v2858 = vadd.f32 %v2840, %v2857
      %v2859 = vpop.f32.mrf.mxu0
      %2860 = vdwg.mxu0
      %2861 = vmatpush.bf16.msra.mxu0 %v2784
      %2862 = vmatpush.bf16.msra.mxu0 %v2783
      %2863 = vmatpush.bf16.msra.mxu0 %v2782
      %2864 = vmatpush.bf16.msra.mxu0 %v2781
      %2865 = vmatpush.bf16.msra.mxu0 %v2780
      %2866 = vmatpush.bf16.msra.mxu0 %v2779
      %2867 = vmatpush.bf16.msra.mxu0 %v2778
      %2868 = vmatpush.bf16.msra.mxu0 %v2777
      %2869 = vmatmul.bf16.gmra.mxu0 %v2551
      %v2870 = vpop.f32.mrf.mxu0
      %v2871 = vadd.f32 %v2853, %v2870
      %v2872 = vpop.f32.mrf.mxu0
      %v2873 = vadd.f32 %v2855, %v2872
      %2874 = vmatmul.bf16.gmra.mxu0 %v2555
      %v2875 = vpop.f32.mrf.mxu0
      %v2876 = vadd.f32 %v2858, %v2875
      %v2877 = vpop.f32.mrf.mxu0
      %2878 = vdwg.mxu0
      %2879 = vmatpush.bf16.msra.mxu0 %v2792
      %2880 = vmatpush.bf16.msra.mxu0 %v2791
      %2881 = vmatpush.bf16.msra.mxu0 %v2790
      %2882 = vmatpush.bf16.msra.mxu0 %v2789
      %2883 = vmatpush.bf16.msra.mxu0 %v2788
      %2884 = vmatpush.bf16.msra.mxu0 %v2787
      %2885 = vmatpush.bf16.msra.mxu0 %v2786
      %2886 = vmatpush.bf16.msra.mxu0 %v2785
      %2887 = vmatmul.bf16.gmra.mxu0 %v2559
      %v2888 = vpop.f32.mrf.mxu0
      %v2889 = vadd.f32 %v2871, %v2888
      %v2890 = vpop.f32.mrf.mxu0
      %v2891 = vadd.f32 %v2873, %v2890
      %2892 = vmatmul.bf16.gmra.mxu0 %v2563
      %v2893 = vpop.f32.mrf.mxu0
      %v2894 = vadd.f32 %v2876, %v2893
      %v2895 = vpop.f32.mrf.mxu0
      %2896 = vdwg.mxu0
      %v2897 = vmul.f32 %v2889, %v2889
      %v2898 = vmul.f32 %v2891, %v2891
      %v2899 = vmul.f32 %v2894, %v2894
      %v2900 = vmul.f32 %v2889, %v2897
      %v2901 = vmul.f32 %v2891, %v2898
      %v2902 = vmul.f32 %v2894, %v2899
      %v2903 = vmul.f32 %v2900, 0.044715
      %v2904 = vmul.f32 %v2901, 0.044715
      %v2905 = vmul.f32 %v2902, 0.044715
      %v2906 = vadd.f32 %v2889, %v2903
      %v2907 = vadd.f32 %v2891, %v2904
      %v2908 = vadd.f32 %v2894, %v2905
      %v2909 = vmul.f32 %v2906, 0.7978846
      %v2910 = vmul.f32 %v2907, 0.7978846
      %v2911 = vmul.f32 %v2908, 0.7978846
      %v2912 = vtanh.pop %v2909
      %v2913 = vtanh.pop %v2910
      %v2914 = vtanh.pop %v2911
      %v2915 = vadd.f32 %v2912, 1.0
      %v2916 = vadd.f32 %v2913, 1.0
      %v2917 = vadd.f32 %v2914, 1.0
      %v2918 = vmul.f32 %v2915, 0.5
      %v2919 = vmul.f32 %v2916, 0.5
      %v2920 = vmul.f32 %v2917, 0.5
      %v2921 = vmul.f32 %v2889, %v2918
      %v2922 = vmul.f32 %v2891, %v2919
      %v2923 = vmul.f32 %v2894, %v2920
      %v2924 = vadd.f32 %v2115, %v2921
      %v2925 = vadd.f32 %v2117, %v2922
      %v2926 = vadd.f32 %v2120, %v2923
      %vm2927 = vcmp.lt.s32.totalorder %v971, %v1977
      %v2928 = vsel %vm2927, 0.0, -10000.0
      %v2929 = vpack.c.bf16 %v2925, %v2924
      %v2930 = vpack.c.bf16 %v2926, %v2926
      %v2931 = vld [vmem:[%s29] sm:$0xff]
      %v2932 = vld [vmem:[%s29 + $0x8] sm:$0xff]
      %v2933 = vld [vmem:[%s29 + $0x10] sm:$0xff]
      %v2934 = vld [vmem:[%s29 + $0x18] sm:$0xff]
      %v2935 = vld [vmem:[%s29 + $0x20] sm:$0xff]
      %v2936 = vld [vmem:[%s29 + $0x28] sm:$0xff]
      %v2937 = vld [vmem:[%s29 + $0x30] sm:$0xff]
      %v2938 = vld [vmem:[%s29 + $0x38] sm:$0xff]
      %v2939 = vld [vmem:[%s31] sm:$0x3]
      %v2941 = vperm.slane %v2939, 0
      %v2942 = vperm.slane %v2939, 1
      %v2953 = vunpack.c.l.b16 %v2931
      %v2954 = vunpack.c.h.b16 %v2931
      %v2955 = vunpack.c.l.b16 %v2932
      %v2956 = vunpack.c.h.b16 %v2932
      %v2957 = vunpack.c.l.b16 %v2933
      %v2958 = vunpack.c.h.b16 %v2933
      %v2959 = vunpack.c.l.b16 %v2934
      %v2960 = vunpack.c.h.b16 %v2934
      %v2961 = vunpack.c.l.b16 %v2935
      %v2962 = vunpack.c.h.b16 %v2935
      %v2963 = vunpack.c.l.b16 %v2936
      %v2964 = vunpack.c.h.b16 %v2936
      %v2965 = vunpack.c.l.b16 %v2937
      %v2966 = vunpack.c.h.b16 %v2937
      %v2967 = vunpack.c.l.b16 %v2938
      %v2968 = vunpack.c.h.b16 %v2938
      %v2969 = vpack.c.b16 %v2955, %v2953
      %v2970 = vpack.c.b16 %v2956, %v2954
      %v2971 = vpack.c.b16 %v2959, %v2957
      %v2972 = vpack.c.b16 %v2960, %v2958
      %v2973 = vpack.c.b16 %v2963, %v2961
      %v2974 = vpack.c.b16 %v2964, %v2962
      %v2975 = vpack.c.b16 %v2967, %v2965
      %v2976 = vpack.c.b16 %v2968, %v2966
      %v2986 = vsel %vm2532, %v2929, 0
      %v2989 = vsel %vm2532, %v2930, 0
      %2991 = vmatpush.bf16.msra.mxu0 0
      %2992 = vmatpush.bf16.msra.mxu0 0
      %2993 = vmatpush.bf16.msra.mxu0 0
      %2994 = vmatpush.bf16.msra.mxu0 0
      %2995 = vmatpush.bf16.msra.mxu0 %v2975
      %2996 = vmatpush.bf16.msra.mxu0 %v2973
      %2997 = vmatpush.bf16.msra.mxu0 %v2971
      %2998 = vmatpush.bf16.msra.mxu0 %v2969
      %2999 = vmatmul.bf16.gmra.mxu0 %v2986
      %v3000 = vpop.f32.mrf.mxu0
      %v3001 = vadd.f32 %v2941, %v3000
      %v3002 = vpop.f32.mrf.mxu0
      %v3003 = vadd.f32 %v2941, %v3002
      %3004 = vmatmul.bf16.gmra.mxu0 %v2989
      %v3005 = vpop.f32.mrf.mxu0
      %v3006 = vadd.f32 %v2941, %v3005
      %v3007 = vpop.f32.mrf.mxu0
      %3008 = vdwg.mxu0
      %3009 = vmatpush.bf16.msra.mxu0 0
      %3010 = vmatpush.bf16.msra.mxu0 0
      %3011 = vmatpush.bf16.msra.mxu0 0
      %3012 = vmatpush.bf16.msra.mxu0 0
      %3013 = vmatpush.bf16.msra.mxu0 %v2976
      %3014 = vmatpush.bf16.msra.mxu0 %v2974
      %3015 = vmatpush.bf16.msra.mxu0 %v2972
      %3016 = vmatpush.bf16.msra.mxu0 %v2970
      %3017 = vmatmul.bf16.gmra.mxu0 %v2986
      %v3018 = vpop.f32.mrf.mxu0
      %v3019 = vadd.f32 %v2942, %v3018
      %v3020 = vpop.f32.mrf.mxu0
      %v3021 = vadd.f32 %v2942, %v3020
      %3022 = vmatmul.bf16.gmra.mxu0 %v2989
      %v3023 = vpop.f32.mrf.mxu0
      %v3024 = vadd.f32 %v2942, %v3023
      %v3025 = vpop.f32.mrf.mxu0
      %3026 = vdwg.mxu0
      %v3027 = vpack.c.bf16 %v3003, %v3001
      %v3028 = vpack.c.bf16 %v3006, %v3006
      %v3029 = vpack.c.bf16 %v3021, %v3019
      %v3030 = vpack.c.bf16 %v3024, %v3024
      %3033 = vrot.lane.b32.xlu0 %v3027, 64
      %v3034 = vpop.permute.xlu0 %3033
      %3035 = vrot.lane.b32.xlu0 %v3028, 64
      %v3036 = vpop.permute.xlu0 %3035
      %vm3037 = vcmask 130048
      %v3039 = vsel %vm3037, %v3027, 0
      %v3042 = vsel %vm3037, %v3028, 0
      %v3045 = vsel %vm3037, %v3034, 0
      %v3048 = vsel %vm3037, %v3036, 0
      %3050 = vmatpush.bf16.xpose.msra.mxu0 0
      %3051 = vmatpush.bf16.xpose.msra.mxu0 0
      %3052 = vmatpush.bf16.xpose.msra.mxu0 0
      %3053 = vmatpush.bf16.xpose.msra.mxu0 0
      %3054 = vmatpush.bf16.xpose.msra.mxu0 0
      %3055 = vmatpush.bf16.xpose.msra.mxu0 0
      %3056 = vmatpush.bf16.xpose.msra.mxu0 %v3048
      %3057 = vmatpush.bf16.xpose.msra.mxu0 %v3045
      %3058 = vmatmul.bf16.gmra.mxu0 %v3039
      %v3059 = vpop.f32.mrf.mxu0
      %v3060 = vadd.f32 %v2928, %v3059
      %v3061 = vpop.f32.mrf.mxu0
      %v3062 = vadd.f32 %v2928, %v3061
      %3063 = vmatmul.bf16.gmra.mxu0 %v3042
      %v3064 = vpop.f32.mrf.mxu0
      %v3065 = vadd.f32 %v2928, %v3064
      %v3066 = vpop.f32.mrf.mxu0
      %3067 = vdwg.mxu0
      %v3068 = vsel %vm2151, %v3060, -inf
      %3069 = vmax.xlane.f32.xlu0 %v3068
      %v3070 = vpop.xlane.xlu0 %3069
      %v3071 = vsel %vm2151, %v3062, -inf
      %3072 = vmax.xlane.f32.xlu0 %v3071
      %v3073 = vpop.xlane.xlu0 %3072
      %v3074 = vsel %vm2151, %v3065, -inf
      %3075 = vmax.xlane.f32.xlu0 %v3074
      %v3076 = vpop.xlane.xlu0 %3075
      %v3077 = vsub.f32 %v3060, %v3070
      %v3078 = vsub.f32 %v3062, %v3073
      %v3079 = vsub.f32 %v3065, %v3076
      %v3080 = vmul.f32 %v3077, 1.442695
      %v3081 = vpow.pop %v3080
      %v3082 = vmul.f32 %v3078, 1.442695
      %v3083 = vpow.pop %v3082
      %v3084 = vmul.f32 %v3079, 1.442695
      %v3085 = vpow.pop %v3084
      %v3086 = vsel %vm2151, %v3081, 0.0
      %3087 = vadd.xlane.f32.xlu0 %v3086
      %v3088 = vpop.xlane.xlu0 %3087
      %v3089 = vsel %vm2151, %v3083, 0.0
      %3090 = vadd.xlane.f32.xlu0 %v3089
      %v3091 = vpop.xlane.xlu0 %3090
      %v3092 = vsel %vm2151, %v3085, 0.0
      %3093 = vadd.xlane.f32.xlu0 %v3092
      %v3094 = vpop.xlane.xlu0 %3093
      %v3095 = vrcp.pop %v3088
      %v3096 = vrcp.pop %v3091
      %v3097 = vrcp.pop %v3094
      %v3098 = vmul.f32 %v3081, %v3095
      %v3099 = vmul.f32 %v3083, %v3096
      %v3100 = vmul.f32 %v3085, %v3097
      %v3101 = vpack.c.bf16 %v3099, %v3098
      %v3102 = vpack.c.bf16 %v3100, %v3100
      %v3104 = vsel %vm2151, %v3101, 0
      %v3107 = vsel %vm2151, %v3102, 0
      %v3110 = vsel %vm1820, %v3030, 0
      %3112 = vmatpush.bf16.msra.mxu0 0
      %3113 = vmatpush.bf16.msra.mxu0 0
      %3114 = vmatpush.bf16.msra.mxu0 0
      %3115 = vmatpush.bf16.msra.mxu0 0
      %3116 = vmatpush.bf16.msra.mxu0 0
      %3117 = vmatpush.bf16.msra.mxu0 0
      %3118 = vmatpush.bf16.msra.mxu0 %v3110
      %3119 = vmatpush.bf16.msra.mxu0 %v3029
      %3120 = vmatmul.bf16.gmra.mxu0 %v3104
      %v3121 = vpop.f32.mrf.mxu0
      %v3122 = vadd.f32 0.0, %v3121
      %v3123 = vpop.f32.mrf.mxu0
      %v3124 = vadd.f32 0.0, %v3123
      %3125 = vmatmul.bf16.gmra.mxu0 %v3107
      %v3126 = vpop.f32.mrf.mxu0
      %v3127 = vadd.f32 0.0, %v3126
      %v3128 = vpop.f32.mrf.mxu0
      %3129 = vdwg.mxu0
      %3130 = vrot.lane.b32.xlu0 %v3027, 112
      %v3131 = vpop.permute.xlu0 %3130
      %3132 = vrot.lane.b32.xlu0 %v3028, 112
      %v3133 = vpop.permute.xlu0 %3132
      %3134 = vrot.lane.b32.xlu0 %v3027, 48
      %v3135 = vpop.permute.xlu0 %3134
      %3136 = vrot.lane.b32.xlu0 %v3028, 48
      %v3137 = vpop.permute.xlu0 %3136
      %v3139 = vsel %vm3037, %v3131, 0
      %v3142 = vsel %vm3037, %v3133, 0
      %v3145 = vsel %vm3037, %v3135, 0
      %v3148 = vsel %vm3037, %v3137, 0
      %3150 = vmatpush.bf16.xpose.msra.mxu0 0
      %3151 = vmatpush.bf16.xpose.msra.mxu0 0
      %3152 = vmatpush.bf16.xpose.msra.mxu0 0
      %3153 = vmatpush.bf16.xpose.msra.mxu0 0
      %3154 = vmatpush.bf16.xpose.msra.mxu0 0
      %3155 = vmatpush.bf16.xpose.msra.mxu0 0
      %3156 = vmatpush.bf16.xpose.msra.mxu0 %v3148
      %3157 = vmatpush.bf16.xpose.msra.mxu0 %v3145
      %3158 = vmatmul.bf16.gmra.mxu0 %v3139
      %v3159 = vpop.f32.mrf.mxu0
      %v3160 = vadd.f32 %v2928, %v3159
      %v3161 = vpop.f32.mrf.mxu0
      %v3162 = vadd.f32 %v2928, %v3161
      %3163 = vmatmul.bf16.gmra.mxu0 %v3142
      %v3164 = vpop.f32.mrf.mxu0
      %v3165 = vadd.f32 %v2928, %v3164
      %v3166 = vpop.f32.mrf.mxu0
      %3167 = vdwg.mxu0
      %v3168 = vsel %vm2151, %v3160, -inf
      %3169 = vmax.xlane.f32.xlu0 %v3168
      %v3170 = vpop.xlane.xlu0 %3169
      %v3171 = vsel %vm2151, %v3162, -inf
      %3172 = vmax.xlane.f32.xlu0 %v3171
      %v3173 = vpop.xlane.xlu0 %3172
      %v3174 = vsel %vm2151, %v3165, -inf
      %3175 = vmax.xlane.f32.xlu0 %v3174
      %v3176 = vpop.xlane.xlu0 %3175
      %v3177 = vsub.f32 %v3160, %v3170
      %v3178 = vsub.f32 %v3162, %v3173
      %v3179 = vsub.f32 %v3165, %v3176
      %v3180 = vmul.f32 %v3177, 1.442695
      %v3181 = vpow.pop %v3180
      %v3182 = vmul.f32 %v3178, 1.442695
      %v3183 = vpow.pop %v3182
      %v3184 = vmul.f32 %v3179, 1.442695
      %v3185 = vpow.pop %v3184
      %v3186 = vsel %vm2151, %v3181, 0.0
      %3187 = vadd.xlane.f32.xlu0 %v3186
      %v3188 = vpop.xlane.xlu0 %3187
      %v3189 = vsel %vm2151, %v3183, 0.0
      %3190 = vadd.xlane.f32.xlu0 %v3189
      %v3191 = vpop.xlane.xlu0 %3190
      %v3192 = vsel %vm2151, %v3185, 0.0
      %3193 = vadd.xlane.f32.xlu0 %v3192
      %v3194 = vpop.xlane.xlu0 %3193
      %v3195 = vrcp.pop %v3188
      %v3196 = vrcp.pop %v3191
      %v3197 = vrcp.pop %v3194
      %v3198 = vmul.f32 %v3181, %v3195
      %v3199 = vmul.f32 %v3183, %v3196
      %v3200 = vmul.f32 %v3185, %v3197
      %v3201 = vpack.c.bf16 %v3199, %v3198
      %v3202 = vpack.c.bf16 %v3200, %v3200
      %3205 = vrot.lane.b32.xlu0 %v3029, 112
      %v3206 = vpop.permute.xlu0 %3205
      %3207 = vrot.lane.b32.xlu0 %v3030, 112
      %v3208 = vpop.permute.xlu0 %3207
      %v3211 = vsel %vm2151, %v3201, 0
      %v3214 = vsel %vm2151, %v3202, 0
      %v3217 = vsel %vm1820, %v3208, 0
      %3219 = vmatpush.bf16.msra.mxu0 0
      %3220 = vmatpush.bf16.msra.mxu0 0
      %3221 = vmatpush.bf16.msra.mxu0 0
      %3222 = vmatpush.bf16.msra.mxu0 0
      %3223 = vmatpush.bf16.msra.mxu0 0
      %3224 = vmatpush.bf16.msra.mxu0 0
      %3225 = vmatpush.bf16.msra.mxu0 %v3217
      %3226 = vmatpush.bf16.msra.mxu0 %v3206
      %3227 = vmatmul.bf16.gmra.mxu0 %v3211
      %v3228 = vpop.f32.mrf.mxu0
      %v3229 = vadd.f32 0.0, %v3228
      %v3230 = vpop.f32.mrf.mxu0
      %v3231 = vadd.f32 0.0, %v3230
      %3232 = vmatmul.bf16.gmra.mxu0 %v3214
      %v3233 = vpop.f32.mrf.mxu0
      %v3234 = vadd.f32 0.0, %v3233
      %v3235 = vpop.f32.mrf.mxu0
      %3236 = vdwg.mxu0
      %3237 = vrot.lane.b32.xlu0 %v3027, 96
      %v3238 = vpop.permute.xlu0 %3237
      %3239 = vrot.lane.b32.xlu0 %v3028, 96
      %v3240 = vpop.permute.xlu0 %3239
      %3241 = vrot.lane.b32.xlu0 %v3027, 32
      %v3242 = vpop.permute.xlu0 %3241
      %3243 = vrot.lane.b32.xlu0 %v3028, 32
      %v3244 = vpop.permute.xlu0 %3243
      %v3246 = vsel %vm3037, %v3238, 0
      %v3249 = vsel %vm3037, %v3240, 0
      %v3252 = vsel %vm3037, %v3242, 0
      %v3255 = vsel %vm3037, %v3244, 0
      %3257 = vmatpush.bf16.xpose.msra.mxu0 0
      %3258 = vmatpush.bf16.xpose.msra.mxu0 0
      %3259 = vmatpush.bf16.xpose.msra.mxu0 0
      %3260 = vmatpush.bf16.xpose.msra.mxu0 0
      %3261 = vmatpush.bf16.xpose.msra.mxu0 0
      %3262 = vmatpush.bf16.xpose.msra.mxu0 0
      %3263 = vmatpush.bf16.xpose.msra.mxu0 %v3255
      %3264 = vmatpush.bf16.xpose.msra.mxu0 %v3252
      %3265 = vmatmul.bf16.gmra.mxu0 %v3246
      %v3266 = vpop.f32.mrf.mxu0
      %v3267 = vadd.f32 %v2928, %v3266
      %v3268 = vpop.f32.mrf.mxu0
      %v3269 = vadd.f32 %v2928, %v3268
      %3270 = vmatmul.bf16.gmra.mxu0 %v3249
      %v3271 = vpop.f32.mrf.mxu0
      %v3272 = vadd.f32 %v2928, %v3271
      %v3273 = vpop.f32.mrf.mxu0
      %3274 = vdwg.mxu0
      %v3275 = vsel %vm2151, %v3267, -inf
      %3276 = vmax.xlane.f32.xlu0 %v3275
      %v3277 = vpop.xlane.xlu0 %3276
      %v3278 = vsel %vm2151, %v3269, -inf
      %3279 = vmax.xlane.f32.xlu0 %v3278
      %v3280 = vpop.xlane.xlu0 %3279
      %v3281 = vsel %vm2151, %v3272, -inf
      %3282 = vmax.xlane.f32.xlu0 %v3281
      %v3283 = vpop.xlane.xlu0 %3282
      %v3284 = vsub.f32 %v3267, %v3277
      %v3285 = vsub.f32 %v3269, %v3280
      %v3286 = vsub.f32 %v3272, %v3283
      %v3287 = vmul.f32 %v3284, 1.442695
      %v3288 = vpow.pop %v3287
      %v3289 = vmul.f32 %v3285, 1.442695
      %v3290 = vpow.pop %v3289
      %v3291 = vmul.f32 %v3286, 1.442695
      %v3292 = vpow.pop %v3291
      %v3293 = vsel %vm2151, %v3288, 0.0
      %3294 = vadd.xlane.f32.xlu0 %v3293
      %v3295 = vpop.xlane.xlu0 %3294
      %v3296 = vsel %vm2151, %v3290, 0.0
      %3297 = vadd.xlane.f32.xlu0 %v3296
      %v3298 = vpop.xlane.xlu0 %3297
      %v3299 = vsel %vm2151, %v3292, 0.0
      %3300 = vadd.xlane.f32.xlu0 %v3299
      %v3301 = vpop.xlane.xlu0 %3300
      %v3302 = vrcp.pop %v3295
      %v3303 = vrcp.pop %v3298
      %v3304 = vrcp.pop %v3301
      %v3305 = vmul.f32 %v3288, %v3302
      %v3306 = vmul.f32 %v3290, %v3303
      %v3307 = vmul.f32 %v3292, %v3304
      %v3308 = vpack.c.bf16 %v3306, %v3305
      %v3309 = vpack.c.bf16 %v3307, %v3307
      %3310 = vrot.lane.b32.xlu0 %v3029, 96
      %v3311 = vpop.permute.xlu0 %3310
      %3312 = vrot.lane.b32.xlu0 %v3030, 96
      %v3313 = vpop.permute.xlu0 %3312
      %v3316 = vsel %vm2151, %v3308, 0
      %v3319 = vsel %vm2151, %v3309, 0
      %v3322 = vsel %vm1820, %v3313, 0
      %3324 = vmatpush.bf16.msra.mxu0 0
      %3325 = vmatpush.bf16.msra.mxu0 0
      %3326 = vmatpush.bf16.msra.mxu0 0
      %3327 = vmatpush.bf16.msra.mxu0 0
      %3328 = vmatpush.bf16.msra.mxu0 0
      %3329 = vmatpush.bf16.msra.mxu0 0
      %3330 = vmatpush.bf16.msra.mxu0 %v3322
      %3331 = vmatpush.bf16.msra.mxu0 %v3311
      %3332 = vmatmul.bf16.gmra.mxu0 %v3316
      %v3333 = vpop.f32.mrf.mxu0
      %v3334 = vadd.f32 0.0, %v3333
      %v3335 = vpop.f32.mrf.mxu0
      %v3336 = vadd.f32 0.0, %v3335
      %3337 = vmatmul.bf16.gmra.mxu0 %v3319
      %v3338 = vpop.f32.mrf.mxu0
      %v3339 = vadd.f32 0.0, %v3338
      %v3340 = vpop.f32.mrf.mxu0
      %3341 = vdwg.mxu0
      %3342 = vrot.lane.b32.xlu0 %v3027, 80
      %v3343 = vpop.permute.xlu0 %3342
      %3344 = vrot.lane.b32.xlu0 %v3028, 80
      %v3345 = vpop.permute.xlu0 %3344
      %3346 = vrot.lane.b32.xlu0 %v3027, 16
      %v3347 = vpop.permute.xlu0 %3346
      %3348 = vrot.lane.b32.xlu0 %v3028, 16
      %v3349 = vpop.permute.xlu0 %3348
      %v3351 = vsel %vm3037, %v3343, 0
      %v3354 = vsel %vm3037, %v3345, 0
      %v3357 = vsel %vm3037, %v3347, 0
      %v3360 = vsel %vm3037, %v3349, 0
      %3362 = vmatpush.bf16.xpose.msra.mxu0 0
      %3363 = vmatpush.bf16.xpose.msra.mxu0 0
      %3364 = vmatpush.bf16.xpose.msra.mxu0 0
      %3365 = vmatpush.bf16.xpose.msra.mxu0 0
      %3366 = vmatpush.bf16.xpose.msra.mxu0 0
      %3367 = vmatpush.bf16.xpose.msra.mxu0 0
      %3368 = vmatpush.bf16.xpose.msra.mxu0 %v3360
      %3369 = vmatpush.bf16.xpose.msra.mxu0 %v3357
      %3370 = vmatmul.bf16.gmra.mxu0 %v3351
      %v3371 = vpop.f32.mrf.mxu0
      %v3372 = vadd.f32 %v2928, %v3371
      %v3373 = vpop.f32.mrf.mxu0
      %v3374 = vadd.f32 %v2928, %v3373
      %3375 = vmatmul.bf16.gmra.mxu0 %v3354
      %v3376 = vpop.f32.mrf.mxu0
      %v3377 = vadd.f32 %v2928, %v3376
      %v3378 = vpop.f32.mrf.mxu0
      %3379 = vdwg.mxu0
      %v3380 = vsel %vm2151, %v3372, -inf
      %3381 = vmax.xlane.f32.xlu0 %v3380
      %v3382 = vpop.xlane.xlu0 %3381
      %v3383 = vsel %vm2151, %v3374, -inf
      %3384 = vmax.xlane.f32.xlu0 %v3383
      %v3385 = vpop.xlane.xlu0 %3384
      %v3386 = vsel %vm2151, %v3377, -inf
      %3387 = vmax.xlane.f32.xlu0 %v3386
      %v3388 = vpop.xlane.xlu0 %3387
      %v3389 = vsub.f32 %v3372, %v3382
      %v3390 = vsub.f32 %v3374, %v3385
      %v3391 = vsub.f32 %v3377, %v3388
      %v3392 = vmul.f32 %v3389, 1.442695
      %v3393 = vpow.pop %v3392
      %v3394 = vmul.f32 %v3390, 1.442695
      %v3395 = vpow.pop %v3394
      %v3396 = vmul.f32 %v3391, 1.442695
      %v3397 = vpow.pop %v3396
      %v3398 = vsel %vm2151, %v3393, 0.0
      %3399 = vadd.xlane.f32.xlu0 %v3398
      %v3400 = vpop.xlane.xlu0 %3399
      %v3401 = vsel %vm2151, %v3395, 0.0
      %3402 = vadd.xlane.f32.xlu0 %v3401
      %v3403 = vpop.xlane.xlu0 %3402
      %v3404 = vsel %vm2151, %v3397, 0.0
      %3405 = vadd.xlane.f32.xlu0 %v3404
      %v3406 = vpop.xlane.xlu0 %3405
      %v3407 = vrcp.pop %v3400
      %v3408 = vrcp.pop %v3403
      %v3409 = vrcp.pop %v3406
      %v3410 = vmul.f32 %v3393, %v3407
      %v3411 = vmul.f32 %v3395, %v3408
      %v3412 = vmul.f32 %v3397, %v3409
      %v3413 = vpack.c.bf16 %v3411, %v3410
      %v3414 = vpack.c.bf16 %v3412, %v3412
      %3415 = vrot.lane.b32.xlu0 %v3029, 80
      %v3416 = vpop.permute.xlu0 %3415
      %3417 = vrot.lane.b32.xlu0 %v3030, 80
      %v3418 = vpop.permute.xlu0 %3417
      %v3421 = vsel %vm2151, %v3413, 0
      %v3424 = vsel %vm2151, %v3414, 0
      %v3427 = vsel %vm1820, %v3418, 0
      %3429 = vmatpush.bf16.msra.mxu0 0
      %3430 = vmatpush.bf16.msra.mxu0 0
      %3431 = vmatpush.bf16.msra.mxu0 0
      %3432 = vmatpush.bf16.msra.mxu0 0
      %3433 = vmatpush.bf16.msra.mxu0 0
      %3434 = vmatpush.bf16.msra.mxu0 0
      %3435 = vmatpush.bf16.msra.mxu0 %v3427
      %3436 = vmatpush.bf16.msra.mxu0 %v3416
      %3437 = vmatmul.bf16.gmra.mxu0 %v3421
      %v3438 = vpop.f32.mrf.mxu0
      %v3439 = vadd.f32 0.0, %v3438
      %v3440 = vpop.f32.mrf.mxu0
      %v3441 = vadd.f32 0.0, %v3440
      %3442 = vmatmul.bf16.gmra.mxu0 %v3424
      %v3443 = vpop.f32.mrf.mxu0
      %v3444 = vadd.f32 0.0, %v3443
      %v3445 = vpop.f32.mrf.mxu0
      %3446 = vdwg.mxu0
      %3450 = vrot.lane.b32.xlu0 %v3229, 16
      %v3451 = vpop.permute.xlu0 %3450
      %3452 = vrot.lane.b32.xlu0 %v3231, 16
      %v3453 = vpop.permute.xlu0 %3452
      %3454 = vrot.lane.b32.xlu0 %v3234, 16
      %v3455 = vpop.permute.xlu0 %3454
      %3462 = vrot.lane.b32.xlu0 %v3334, 32
      %v3463 = vpop.permute.xlu0 %3462
      %3464 = vrot.lane.b32.xlu0 %v3336, 32
      %v3465 = vpop.permute.xlu0 %3464
      %3466 = vrot.lane.b32.xlu0 %v3339, 32
      %v3467 = vpop.permute.xlu0 %3466
      %3474 = vrot.lane.b32.xlu0 %v3439, 48
      %v3475 = vpop.permute.xlu0 %3474
      %3476 = vrot.lane.b32.xlu0 %v3441, 48
      %v3477 = vpop.permute.xlu0 %3476
      %3478 = vrot.lane.b32.xlu0 %v3444, 48
      %v3479 = vpop.permute.xlu0 %3478
      %v3483 = vsel %vm3037, %v3122, %v3451
      %v3484 = vsel %vm3037, %v3124, %v3453
      %v3485 = vsel %vm3037, %v3127, %v3455
      %v3486 = vsel %vm1223, %v3483, %v3463
      %v3487 = vsel %vm1223, %v3484, %v3465
      %v3488 = vsel %vm1223, %v3485, %v3467
      %vm3489 = vcmask 392192
      %v3490 = vsel %vm3489, %v3486, %v3475
      %v3491 = vsel %vm3489, %v3487, %v3477
      %v3492 = vsel %vm3489, %v3488, %v3479
      %v3493 = vpack.c.bf16 %v3491, %v3490
      %v3494 = vpack.c.bf16 %v3492, %v3492
      %v3495 = vld [vmem:[%s33] sm:$0xf]
      %v3496 = vld [vmem:[%s33 + $0x4] sm:$0xf]
      %v3497 = vld [vmem:[%s33 + $0x8] sm:$0xf]
      %v3498 = vld [vmem:[%s33 + $0xc] sm:$0xf]
      %v3499 = vld [vmem:[%s33 + $0x10] sm:$0xf]
      %v3500 = vld [vmem:[%s33 + $0x14] sm:$0xf]
      %v3501 = vld [vmem:[%s33 + $0x18] sm:$0xf]
      %v3502 = vld [vmem:[%s33 + $0x1c] sm:$0xf]
      %v3503 = vld [vmem:[%s35] sm:$0x1]
      %v3505 = vperm.slane %v3503, 0
      %v3515 = vunpack.c.l.b16 %v3495
      %v3516 = vunpack.c.l.b16 %v3496
      %v3517 = vunpack.c.l.b16 %v3497
      %v3518 = vunpack.c.l.b16 %v3498
      %v3519 = vunpack.c.l.b16 %v3499
      %v3520 = vunpack.c.l.b16 %v3500
      %v3521 = vunpack.c.l.b16 %v3501
      %v3522 = vunpack.c.l.b16 %v3502
      %v3523 = vpack.c.b16 %v3516, %v3515
      %v3524 = vpack.c.b16 %v3518, %v3517
      %v3525 = vpack.c.b16 %v3520, %v3519
      %v3526 = vpack.c.b16 %v3522, %v3521
      %v3532 = vsel %vm2532, %v3493, 0
      %v3535 = vsel %vm2532, %v3494, 0
      %3537 = vmatpush.bf16.msra.mxu0 0
      %3538 = vmatpush.bf16.msra.mxu0 0
      %3539 = vmatpush.bf16.msra.mxu0 0
      %3540 = vmatpush.bf16.msra.mxu0 0
      %3541 = vmatpush.bf16.msra.mxu0 %v3526
      %3542 = vmatpush.bf16.msra.mxu0 %v3525
      %3543 = vmatpush.bf16.msra.mxu0 %v3524
      %3544 = vmatpush.bf16.msra.mxu0 %v3523
      %3545 = vmatmul.bf16.gmra.mxu0 %v3532
      %v3546 = vpop.f32.mrf.mxu0
      %v3547 = vadd.f32 %v3505, %v3546
      %v3548 = vpop.f32.mrf.mxu0
      %v3549 = vadd.f32 %v3505, %v3548
      %3550 = vmatmul.bf16.gmra.mxu0 %v3535
      %v3551 = vpop.f32.mrf.mxu0
      %v3552 = vadd.f32 %v3505, %v3551
      %v3553 = vpop.f32.mrf.mxu0
      %3554 = vdwg.mxu0
      %v3555 = vadd.f32 %v2924, %v3547
      %v3556 = vadd.f32 %v2925, %v3549
      %v3557 = vadd.f32 %v2926, %v3552
      %v3558 = vld [vmem:[%s37] sm:$0x1]
      %v3559 = vld [vmem:[%s39] sm:$0x1]
      %v3560 = vsel %vm2532, %v3555, 0.0
      %3561 = vadd.xlane.f32.xlu0 %v3560
      %v3562 = vpop.xlane.xlu0 %3561
      %v3563 = vsel %vm2532, %v3556, 0.0
      %3564 = vadd.xlane.f32.xlu0 %v3563
      %v3565 = vpop.xlane.xlu0 %3564
      %v3566 = vsel %vm2532, %v3557, 0.0
      %3567 = vadd.xlane.f32.xlu0 %v3566
      %v3568 = vpop.xlane.xlu0 %3567
      %v3569 = vrcp.pop 64.0
      %v3570 = vmul.f32 64.0, %v3569
      %v3571 = vsub.f32 1.0, %v3570
      %v3572 = vmul.f32 %v3569, %v3571
      %v3573 = vadd.f32 %v3569, %v3572
      %vm3574 = vweird.f32 %v3569
      %v3575 = vsel %vm3574, %v3569, %v3573
      %v3576 = vmul.f32 %v3562, %v3575
      %v3577 = vmul.f32 %v3565, %v3575
      %v3578 = vmul.f32 %v3568, %v3575
      %v3579 = vsub.f32 %v3555, %v3576
      %v3580 = vsub.f32 %v3556, %v3577
      %v3581 = vsub.f32 %v3557, %v3578
      %v3582 = vmul.f32 %v3579, %v3579
      %v3583 = vmul.f32 %v3580, %v3580
      %v3584 = vmul.f32 %v3581, %v3581
      %v3585 = vsel %vm2532, %v3582, 0.0
      %3586 = vadd.xlane.f32.xlu0 %v3585
      %v3587 = vpop.xlane.xlu0 %3586
      %v3588 = vsel %vm2532, %v3583, 0.0
      %3589 = vadd.xlane.f32.xlu0 %v3588
      %v3590 = vpop.xlane.xlu0 %3589
      %v3591 = vsel %vm2532, %v3584, 0.0
      %3592 = vadd.xlane.f32.xlu0 %v3591
      %v3593 = vpop.xlane.xlu0 %3592
      %v3594 = vmul.f32 %v3587, %v3575
      %v3595 = vmul.f32 %v3590, %v3575
      %v3596 = vmul.f32 %v3593, %v3575
      %v3597 = vadd.f32 %v3594, 1e-05
      %v3598 = vadd.f32 %v3595, 1e-05
      %v3599 = vadd.f32 %v3596, 1e-05
      %v3600 = vrsqrt.pop %v3597
      %v3601 = vmul.f32 %v3600, %v3597
      %v3602 = vmul.f32 %v3601, %v3600
      %v3603 = vmul.f32 0.5, %v3602
      %v3604 = vsub.f32 1.5, %v3603
      %v3605 = vmul.f32 %v3600, %v3604
      %vm3606 = vweird.f32 %v3597
      %vm3607 = vweird.f32 %v3600
      %vm3608 = vmor %vm3606, %vm3607
      %v3609 = vsel %vm3608, %v3600, %v3605
      %v3610 = vrsqrt.pop %v3598
      %v3611 = vmul.f32 %v3610, %v3598
      %v3612 = vmul.f32 %v3611, %v3610
      %v3613 = vmul.f32 0.5, %v3612
      %v3614 = vsub.f32 1.5, %v3613
      %v3615 = vmul.f32 %v3610, %v3614
      %vm3616 = vweird.f32 %v3598
      %vm3617 = vweird.f32 %v3610
      %vm3618 = vmor %vm3616, %vm3617
      %v3619 = vsel %vm3618, %v3610, %v3615
      %v3620 = vrsqrt.pop %v3599
      %v3621 = vmul.f32 %v3620, %v3599
      %v3622 = vmul.f32 %v3621, %v3620
      %v3623 = vmul.f32 0.5, %v3622
      %v3624 = vsub.f32 1.5, %v3623
      %v3625 = vmul.f32 %v3620, %v3624
      %vm3626 = vweird.f32 %v3599
      %vm3627 = vweird.f32 %v3620
      %vm3628 = vmor %vm3626, %vm3627
      %v3629 = vsel %vm3628, %v3620, %v3625
      %v3630 = vmul.f32 %v3579, %v3609
      %v3631 = vmul.f32 %v3580, %v3619
      %v3632 = vmul.f32 %v3581, %v3629
      %v3634 = vperm.slane %v3558, 0
      %v3636 = vmul.f32 %v3630, %v3634
      %v3637 = vmul.f32 %v3631, %v3634
      %v3638 = vmul.f32 %v3632, %v3634
      %v3640 = vperm.slane %v3559, 0
      %v3642 = vadd.f32 %v3636, %v3640
      %v3643 = vadd.f32 %v3637, %v3640
      %v3644 = vadd.f32 %v3638, %v3640
      %v3645 = vpack.c.bf16 %v3643, %v3642
      %v3646 = vpack.c.bf16 %v3644, %v3644
      %v3647 = vld [vmem:[%s41] sm:$0xf]
      %v3648 = vld [vmem:[%s41 + $0x4] sm:$0xf]
      %v3649 = vld [vmem:[%s41 + $0x8] sm:$0xf]
      %v3650 = vld [vmem:[%s41 + $0xc] sm:$0xf]
      %v3651 = vld [vmem:[%s41 + $0x10] sm:$0xf]
      %v3652 = vld [vmem:[%s41 + $0x14] sm:$0xf]
      %v3653 = vld [vmem:[%s41 + $0x18] sm:$0xf]
      %v3654 = vld [vmem:[%s41 + $0x1c] sm:$0xf]
      %v3655 = vld [vmem:[%s43] sm:$0x1]
      %v3657 = vperm.slane %v3655, 0
      %v3667 = vunpack.c.l.b16 %v3647
      %v3668 = vunpack.c.l.b16 %v3648
      %v3669 = vunpack.c.l.b16 %v3649
      %v3670 = vunpack.c.l.b16 %v3650
      %v3671 = vunpack.c.l.b16 %v3651
      %v3672 = vunpack.c.l.b16 %v3652
      %v3673 = vunpack.c.l.b16 %v3653
      %v3674 = vunpack.c.l.b16 %v3654
      %v3675 = vpack.c.b16 %v3668, %v3667
      %v3676 = vpack.c.b16 %v3670, %v3669
      %v3677 = vpack.c.b16 %v3672, %v3671
      %v3678 = vpack.c.b16 %v3674, %v3673
      %v3684 = vsel %vm2532, %v3645, 0
      %v3687 = vsel %vm2532, %v3646, 0
      %3689 = vmatpush.bf16.msra.mxu0 0
      %3690 = vmatpush.bf16.msra.mxu0 0
      %3691 = vmatpush.bf16.msra.mxu0 0
      %3692 = vmatpush.bf16.msra.mxu0 0
      %3693 = vmatpush.bf16.msra.mxu0 %v3678
      %3694 = vmatpush.bf16.msra.mxu0 %v3677
      %3695 = vmatpush.bf16.msra.mxu0 %v3676
      %3696 = vmatpush.bf16.msra.mxu0 %v3675
      %3697 = vmatmul.bf16.gmra.mxu0 %v3684
      %v3698 = vpop.f32.mrf.mxu0
      %v3699 = vadd.f32 %v3657, %v3698
      %v3700 = vpop.f32.mrf.mxu0
      %v3701 = vadd.f32 %v3657, %v3700
      %3702 = vmatmul.bf16.gmra.mxu0 %v3687
      %v3703 = vpop.f32.mrf.mxu0
      %v3704 = vadd.f32 %v3657, %v3703
      %v3705 = vpop.f32.mrf.mxu0
      %3706 = vdwg.mxu0
      %v3707 = vmul.f32 %v3699, %v3699
      %v3708 = vmul.f32 %v3701, %v3701
      %v3709 = vmul.f32 %v3704, %v3704
      %v3710 = vmul.f32 %v3699, %v3707
      %v3711 = vmul.f32 %v3701, %v3708
      %v3712 = vmul.f32 %v3704, %v3709
      %v3713 = vmul.f32 %v3710, 0.044715
      %v3714 = vmul.f32 %v3711, 0.044715
      %v3715 = vmul.f32 %v3712, 0.044715
      %v3716 = vadd.f32 %v3699, %v3713
      %v3717 = vadd.f32 %v3701, %v3714
      %v3718 = vadd.f32 %v3704, %v3715
      %v3719 = vmul.f32 %v3716, 0.7978846
      %v3720 = vmul.f32 %v3717, 0.7978846
      %v3721 = vmul.f32 %v3718, 0.7978846
      %v3722 = vtanh.pop %v3719
      %v3723 = vtanh.pop %v3720
      %v3724 = vtanh.pop %v3721
      %v3725 = vadd.f32 %v3722, 1.0
      %v3726 = vadd.f32 %v3723, 1.0
      %v3727 = vadd.f32 %v3724, 1.0
      %v3728 = vmul.f32 %v3725, 0.5
      %v3729 = vmul.f32 %v3726, 0.5
      %v3730 = vmul.f32 %v3727, 0.5
      %v3731 = vmul.f32 %v3699, %v3728
      %v3732 = vmul.f32 %v3701, %v3729
      %v3733 = vmul.f32 %v3704, %v3730
      %v3734 = vpack.c.bf16 %v3732, %v3731
      %v3735 = vpack.c.bf16 %v3733, %v3733
      %v3736 = vld [vmem:[%s45] sm:$0xf]
      %v3737 = vld [vmem:[%s45 + $0x4] sm:$0xf]
      %v3738 = vld [vmem:[%s45 + $0x8] sm:$0xf]
      %v3739 = vld [vmem:[%s45 + $0xc] sm:$0xf]
      %v3740 = vld [vmem:[%s45 + $0x10] sm:$0xf]
      %v3741 = vld [vmem:[%s45 + $0x14] sm:$0xf]
      %v3742 = vld [vmem:[%s45 + $0x18] sm:$0xf]
      %v3743 = vld [vmem:[%s45 + $0x1c] sm:$0xf]
      %v3744 = vld [vmem:[%s45 + $0x20] sm:$0xf]
      %v3745 = vld [vmem:[%s45 + $0x24] sm:$0xf]
      %v3746 = vld [vmem:[%s45 + $0x28] sm:$0xf]
      %v3747 = vld [vmem:[%s45 + $0x2c] sm:$0xf]
      %v3748 = vld [vmem:[%s45 + $0x30] sm:$0xf]
      %v3749 = vld [vmem:[%s45 + $0x34] sm:$0xf]
      %v3750 = vld [vmem:[%s45 + $0x38] sm:$0xf]
      %v3751 = vld [vmem:[%s45 + $0x3c] sm:$0xf]
      %v3752 = vld [vmem:[%s47] sm:$0x1]
      %v3754 = vperm.slane %v3752, 0
      %v3772 = vunpack.c.l.b16 %v3736
      %v3773 = vunpack.c.l.b16 %v3737
      %v3774 = vunpack.c.l.b16 %v3738
      %v3775 = vunpack.c.l.b16 %v3739
      %v3776 = vunpack.c.l.b16 %v3740
      %v3777 = vunpack.c.l.b16 %v3741
      %v3778 = vunpack.c.l.b16 %v3742
      %v3779 = vunpack.c.l.b16 %v3743
      %v3780 = vunpack.c.l.b16 %v3744
      %v3781 = vunpack.c.l.b16 %v3745
      %v3782 = vunpack.c.l.b16 %v3746
      %v3783 = vunpack.c.l.b16 %v3747
      %v3784 = vunpack.c.l.b16 %v3748
      %v3785 = vunpack.c.l.b16 %v3749
      %v3786 = vunpack.c.l.b16 %v3750
      %v3787 = vunpack.c.l.b16 %v3751
      %v3788 = vpack.c.b16 %v3773, %v3772
      %v3789 = vpack.c.b16 %v3775, %v3774
      %v3790 = vpack.c.b16 %v3777, %v3776
      %v3791 = vpack.c.b16 %v3779, %v3778
      %v3792 = vpack.c.b16 %v3781, %v3780
      %v3793 = vpack.c.b16 %v3783, %v3782
      %v3794 = vpack.c.b16 %v3785, %v3784
      %v3795 = vpack.c.b16 %v3787, %v3786
      %3804 = vmatpush.bf16.msra.mxu0 %v3795
      %3805 = vmatpush.bf16.msra.mxu0 %v3794
      %3806 = vmatpush.bf16.msra.mxu0 %v3793
      %3807 = vmatpush.bf16.msra.mxu0 %v3792
      %3808 = vmatpush.bf16.msra.mxu0 %v3791
      %3809 = vmatpush.bf16.msra.mxu0 %v3790
      %3810 = vmatpush.bf16.msra.mxu0 %v3789
      %3811 = vmatpush.bf16.msra.mxu0 %v3788
      %3812 = vmatmul.bf16.gmra.mxu0 %v3734
      %v3813 = vpop.f32.mrf.mxu0
      %v3814 = vadd.f32 %v3754, %v3813
      %v3815 = vpop.f32.mrf.mxu0
      %v3816 = vadd.f32 %v3754, %v3815
      %3817 = vmatmul.bf16.gmra.mxu0 %v3735
      %v3818 = vpop.f32.mrf.mxu0
      %v3819 = vadd.f32 %v3754, %v3818
      %v3820 = vpop.f32.mrf.mxu0
      %3821 = vdwg.mxu0
      %v3822 = vadd.f32 %v3642, %v3814
      %v3823 = vadd.f32 %v3643, %v3816
      %v3824 = vadd.f32 %v3644, %v3819
      %v3825 = vld [vmem:[%s49] sm:$0x1]
      %v3826 = vld [vmem:[%s51] sm:$0x1]
      %v3827 = vsel %vm2532, %v3822, 0.0
      %3828 = vadd.xlane.f32.xlu0 %v3827
      %v3829 = vpop.xlane.xlu0 %3828
      %v3830 = vsel %vm2532, %v3823, 0.0
      %3831 = vadd.xlane.f32.xlu0 %v3830
      %v3832 = vpop.xlane.xlu0 %3831
      %v3833 = vsel %vm2532, %v3824, 0.0
      %3834 = vadd.xlane.f32.xlu0 %v3833
      %v3835 = vpop.xlane.xlu0 %3834
      %v3836 = vmul.f32 %v3829, %v3575
      %v3837 = vmul.f32 %v3832, %v3575
      %v3838 = vmul.f32 %v3835, %v3575
      %v3839 = vsub.f32 %v3822, %v3836
      %v3840 = vsub.f32 %v3823, %v3837
      %v3841 = vsub.f32 %v3824, %v3838
      %v3842 = vmul.f32 %v3839, %v3839
      %v3843 = vmul.f32 %v3840, %v3840
      %v3844 = vmul.f32 %v3841, %v3841
      %v3845 = vsel %vm2532, %v3842, 0.0
      %3846 = vadd.xlane.f32.xlu0 %v3845
      %v3847 = vpop.xlane.xlu0 %3846
      %v3848 = vsel %vm2532, %v3843, 0.0
      %3849 = vadd.xlane.f32.xlu0 %v3848
      %v3850 = vpop.xlane.xlu0 %3849
      %v3851 = vsel %vm2532, %v3844, 0.0
      %3852 = vadd.xlane.f32.xlu0 %v3851
      %v3853 = vpop.xlane.xlu0 %3852
      %v3854 = vmul.f32 %v3847, %v3575
      %v3855 = vmul.f32 %v3850, %v3575
      %v3856 = vmul.f32 %v3853, %v3575
      %v3857 = vadd.f32 %v3854, 1e-05
      %v3858 = vadd.f32 %v3855, 1e-05
      %v3859 = vadd.f32 %v3856, 1e-05
      %v3860 = vrsqrt.pop %v3857
      %v3861 = vmul.f32 %v3860, %v3857
      %v3862 = vmul.f32 %v3861, %v3860
      %v3863 = vmul.f32 0.5, %v3862
      %v3864 = vsub.f32 1.5, %v3863
      %v3865 = vmul.f32 %v3860, %v3864
      %vm3866 = vweird.f32 %v3857
      %vm3867 = vweird.f32 %v3860
      %vm3868 = vmor %vm3866, %vm3867
      %v3869 = vsel %vm3868, %v3860, %v3865
      %v3870 = vrsqrt.pop %v3858
      %v3871 = vmul.f32 %v3870, %v3858
      %v3872 = vmul.f32 %v3871, %v3870
      %v3873 = vmul.f32 0.5, %v3872
      %v3874 = vsub.f32 1.5, %v3873
      %v3875 = vmul.f32 %v3870, %v3874
      %vm3876 = vweird.f32 %v3858
      %vm3877 = vweird.f32 %v3870
      %vm3878 = vmor %vm3876, %vm3877
      %v3879 = vsel %vm3878, %v3870, %v3875
      %v3880 = vrsqrt.pop %v3859
      %v3881 = vmul.f32 %v3880, %v3859
      %v3882 = vmul.f32 %v3881, %v3880
      %v3883 = vmul.f32 0.5, %v3882
      %v3884 = vsub.f32 1.5, %v3883
      %v3885 = vmul.f32 %v3880, %v3884
      %vm3886 = vweird.f32 %v3859
      %vm3887 = vweird.f32 %v3880
      %vm3888 = vmor %vm3886, %vm3887
      %v3889 = vsel %vm3888, %v3880, %v3885
      %v3890 = vmul.f32 %v3839, %v3869
      %v3891 = vmul.f32 %v3840, %v3879
      %v3892 = vmul.f32 %v3841, %v3889
      %v3894 = vperm.slane %v3825, 0
      %v3896 = vmul.f32 %v3890, %v3894
      %v3897 = vmul.f32 %v3891, %v3894
      %v3898 = vmul.f32 %v3892, %v3894
      %v3900 = vperm.slane %v3826, 0
      %v3902 = vadd.f32 %v3896, %v3900
      %v3903 = vadd.f32 %v3897, %v3900
      %v3904 = vadd.f32 %v3898, %v3900
      %v3905 = vpack.c.bf16 %v3903, %v3902
      %v3906 = vpack.c.bf16 %v3904, %v3904
      %s3907 = scalar_lea.vmem %s29, 64
      %v3908 = vld [vmem:[%s3907] sm:$0xff]
      %v3909 = vld [vmem:[%s3907 + $0x8] sm:$0xff]
      %v3910 = vld [vmem:[%s3907 + $0x10] sm:$0xff]
      %v3911 = vld [vmem:[%s3907 + $0x18] sm:$0xff]
      %v3912 = vld [vmem:[%s3907 + $0x20] sm:$0xff]
      %v3913 = vld [vmem:[%s3907 + $0x28] sm:$0xff]
      %v3914 = vld [vmem:[%s3907 + $0x30] sm:$0xff]
      %v3915 = vld [vmem:[%s3907 + $0x38] sm:$0xff]
      %s3916 = scalar_lea.vmem %s31, 2
      %v3917 = vld [vmem:[%s3916] sm:$0x3]
      %v3919 = vperm.slane %v3917, 0
      %v3920 = vperm.slane %v3917, 1
      %v3931 = vunpack.c.l.b16 %v3908
      %v3932 = vunpack.c.h.b16 %v3908
      %v3933 = vunpack.c.l.b16 %v3909
      %v3934 = vunpack.c.h.b16 %v3909
      %v3935 = vunpack.c.l.b16 %v3910
      %v3936 = vunpack.c.h.b16 %v3910
      %v3937 = vunpack.c.l.b16 %v3911
      %v3938 = vunpack.c.h.b16 %v3911
      %v3939 = vunpack.c.l.b16 %v3912
      %v3940 = vunpack.c.h.b16 %v3912
      %v3941 = vunpack.c.l.b16 %v3913
      %v3942 = vunpack.c.h.b16 %v3913
      %v3943 = vunpack.c.l.b16 %v3914
      %v3944 = vunpack.c.h.b16 %v3914
      %v3945 = vunpack.c.l.b16 %v3915
      %v3946 = vunpack.c.h.b16 %v3915
      %v3947 = vpack.c.b16 %v3933, %v3931
      %v3948 = vpack.c.b16 %v3934, %v3932
      %v3949 = vpack.c.b16 %v3937, %v3935
      %v3950 = vpack.c.b16 %v3938, %v3936
      %v3951 = vpack.c.b16 %v3941, %v3939
      %v3952 = vpack.c.b16 %v3942, %v3940
      %v3953 = vpack.c.b16 %v3945, %v3943
      %v3954 = vpack.c.b16 %v3946, %v3944
      %v3964 = vsel %vm2532, %v3905, 0
      %v3967 = vsel %vm2532, %v3906, 0
      %3969 = vmatpush.bf16.msra.mxu0 0
      %3970 = vmatpush.bf16.msra.mxu0 0
      %3971 = vmatpush.bf16.msra.mxu0 0
      %3972 = vmatpush.bf16.msra.mxu0 0
      %3973 = vmatpush.bf16.msra.mxu0 %v3953
      %3974 = vmatpush.bf16.msra.mxu0 %v3951
      %3975 = vmatpush.bf16.msra.mxu0 %v3949
      %3976 = vmatpush.bf16.msra.mxu0 %v3947
      %3977 = vmatmul.bf16.gmra.mxu0 %v3964
      %v3978 = vpop.f32.mrf.mxu0
      %v3979 = vadd.f32 %v3919, %v3978
      %v3980 = vpop.f32.mrf.mxu0
      %v3981 = vadd.f32 %v3919, %v3980
      %3982 = vmatmul.bf16.gmra.mxu0 %v3967
      %v3983 = vpop.f32.mrf.mxu0
      %v3984 = vadd.f32 %v3919, %v3983
      %v3985 = vpop.f32.mrf.mxu0
      %3986 = vdwg.mxu0
      %3987 = vmatpush.bf16.msra.mxu0 0
      %3988 = vmatpush.bf16.msra.mxu0 0
      %3989 = vmatpush.bf16.msra.mxu0 0
      %3990 = vmatpush.bf16.msra.mxu0 0
      %3991 = vmatpush.bf16.msra.mxu0 %v3954
      %3992 = vmatpush.bf16.msra.mxu0 %v3952
      %3993 = vmatpush.bf16.msra.mxu0 %v3950
      %3994 = vmatpush.bf16.msra.mxu0 %v3948
      %3995 = vmatmul.bf16.gmra.mxu0 %v3964
      %v3996 = vpop.f32.mrf.mxu0
      %v3997 = vadd.f32 %v3920, %v3996
      %v3998 = vpop.f32.mrf.mxu0
      %v3999 = vadd.f32 %v3920, %v3998
      %4000 = vmatmul.bf16.gmra.mxu0 %v3967
      %v4001 = vpop.f32.mrf.mxu0
      %v4002 = vadd.f32 %v3920, %v4001
      %v4003 = vpop.f32.mrf.mxu0
      %4004 = vdwg.mxu0
      %v4005 = vpack.c.bf16 %v3981, %v3979
      %v4006 = vpack.c.bf16 %v3984, %v3984
      %v4007 = vpack.c.bf16 %v3999, %v3997
      %v4008 = vpack.c.bf16 %v4002, %v4002
      %4011 = vrot.lane.b32.xlu0 %v4005, 64
      %v4012 = vpop.permute.xlu0 %4011
      %4013 = vrot.lane.b32.xlu0 %v4006, 64
      %v4014 = vpop.permute.xlu0 %4013
      %v4016 = vsel %vm3037, %v4005, 0
      %v4019 = vsel %vm3037, %v4006, 0
      %v4022 = vsel %vm3037, %v4012, 0
      %v4025 = vsel %vm3037, %v4014, 0
      %4027 = vmatpush.bf16.xpose.msra.mxu0 0
      %4028 = vmatpush.bf16.xpose.msra.mxu0 0
      %4029 = vmatpush.bf16.xpose.msra.mxu0 0
      %4030 = vmatpush.bf16.xpose.msra.mxu0 0
      %4031 = vmatpush.bf16.xpose.msra.mxu0 0
      %4032 = vmatpush.bf16.xpose.msra.mxu0 0
      %4033 = vmatpush.bf16.xpose.msra.mxu0 %v4025
      %4034 = vmatpush.bf16.xpose.msra.mxu0 %v4022
      %4035 = vmatmul.bf16.gmra.mxu0 %v4016
      %v4036 = vpop.f32.mrf.mxu0
      %v4037 = vadd.f32 %v2928, %v4036
      %v4038 = vpop.f32.mrf.mxu0
      %v4039 = vadd.f32 %v2928, %v4038
      %4040 = vmatmul.bf16.gmra.mxu0 %v4019
      %v4041 = vpop.f32.mrf.mxu0
      %v4042 = vadd.f32 %v2928, %v4041
      %v4043 = vpop.f32.mrf.mxu0
      %4044 = vdwg.mxu0
      %v4045 = vsel %vm2151, %v4037, -inf
      %4046 = vmax.xlane.f32.xlu0 %v4045
      %v4047 = vpop.xlane.xlu0 %4046
      %v4048 = vsel %vm2151, %v4039, -inf
      %4049 = vmax.xlane.f32.xlu0 %v4048
      %v4050 = vpop.xlane.xlu0 %4049
      %v4051 = vsel %vm2151, %v4042, -inf
      %4052 = vmax.xlane.f32.xlu0 %v4051
      %v4053 = vpop.xlane.xlu0 %4052
      %v4054 = vsub.f32 %v4037, %v4047
      %v4055 = vsub.f32 %v4039, %v4050
      %v4056 = vsub.f32 %v4042, %v4053
      %v4057 = vmul.f32 %v4054, 1.442695
      %v4058 = vpow.pop %v4057
      %v4059 = vmul.f32 %v4055, 1.442695
      %v4060 = vpow.pop %v4059
      %v4061 = vmul.f32 %v4056, 1.442695
      %v4062 = vpow.pop %v4061
      %v4063 = vsel %vm2151, %v4058, 0.0
      %4064 = vadd.xlane.f32.xlu0 %v4063
      %v4065 = vpop.xlane.xlu0 %4064
      %v4066 = vsel %vm2151, %v4060, 0.0
      %4067 = vadd.xlane.f32.xlu0 %v4066
      %v4068 = vpop.xlane.xlu0 %4067
      %v4069 = vsel %vm2151, %v4062, 0.0
      %4070 = vadd.xlane.f32.xlu0 %v4069
      %v4071 = vpop.xlane.xlu0 %4070
      %v4072 = vrcp.pop %v4065
      %v4073 = vrcp.pop %v4068
      %v4074 = vrcp.pop %v4071
      %v4075 = vmul.f32 %v4058, %v4072
      %v4076 = vmul.f32 %v4060, %v4073
      %v4077 = vmul.f32 %v4062, %v4074
      %v4078 = vpack.c.bf16 %v4076, %v4075
      %v4079 = vpack.c.bf16 %v4077, %v4077
      %v4081 = vsel %vm2151, %v4078, 0
      %v4084 = vsel %vm2151, %v4079, 0
      %v4087 = vsel %vm1820, %v4008, 0
      %4089 = vmatpush.bf16.msra.mxu0 0
      %4090 = vmatpush.bf16.msra.mxu0 0
      %4091 = vmatpush.bf16.msra.mxu0 0
      %4092 = vmatpush.bf16.msra.mxu0 0
      %4093 = vmatpush.bf16.msra.mxu0 0
      %4094 = vmatpush.bf16.msra.mxu0 0
      %4095 = vmatpush.bf16.msra.mxu0 %v4087
      %4096 = vmatpush.bf16.msra.mxu0 %v4007
      %4097 = vmatmul.bf16.gmra.mxu0 %v4081
      %v4098 = vpop.f32.mrf.mxu0
      %v4099 = vadd.f32 0.0, %v4098
      %v4100 = vpop.f32.mrf.mxu0
      %v4101 = vadd.f32 0.0, %v4100
      %4102 = vmatmul.bf16.gmra.mxu0 %v4084
      %v4103 = vpop.f32.mrf.mxu0
      %v4104 = vadd.f32 0.0, %v4103
      %v4105 = vpop.f32.mrf.mxu0
      %4106 = vdwg.mxu0
      %4107 = vrot.lane.b32.xlu0 %v4005, 112
      %v4108 = vpop.permute.xlu0 %4107
      %4109 = vrot.lane.b32.xlu0 %v4006, 112
      %v4110 = vpop.permute.xlu0 %4109
      %4111 = vrot.lane.b32.xlu0 %v4005, 48
      %v4112 = vpop.permute.xlu0 %4111
      %4113 = vrot.lane.b32.xlu0 %v4006, 48
      %v4114 = vpop.permute.xlu0 %4113
      %v4116 = vsel %vm3037, %v4108, 0
      %v4119 = vsel %vm3037, %v4110, 0
      %v4122 = vsel %vm3037, %v4112, 0
      %v4125 = vsel %vm3037, %v4114, 0
      %4127 = vmatpush.bf16.xpose.msra.mxu0 0
      %4128 = vmatpush.bf16.xpose.msra.mxu0 0
      %4129 = vmatpush.bf16.xpose.msra.mxu0 0
      %4130 = vmatpush.bf16.xpose.msra.mxu0 0
      %4131 = vmatpush.bf16.xpose.msra.mxu0 0
      %4132 = vmatpush.bf16.xpose.msra.mxu0 0
      %4133 = vmatpush.bf16.xpose.msra.mxu0 %v4125
      %4134 = vmatpush.bf16.xpose.msra.mxu0 %v4122
      %4135 = vmatmul.bf16.gmra.mxu0 %v4116
      %v4136 = vpop.f32.mrf.mxu0
      %v4137 = vadd.f32 %v2928, %v4136
      %v4138 = vpop.f32.mrf.mxu0
      %v4139 = vadd.f32 %v2928, %v4138
      %4140 = vmatmul.bf16.gmra.mxu0 %v4119
      %v4141 = vpop.f32.mrf.mxu0
      %v4142 = vadd.f32 %v2928, %v4141
      %v4143 = vpop.f32.mrf.mxu0
      %4144 = vdwg.mxu0
      %v4145 = vsel %vm2151, %v4137, -inf
      %4146 = vmax.xlane.f32.xlu0 %v4145
      %v4147 = vpop.xlane.xlu0 %4146
      %v4148 = vsel %vm2151, %v4139, -inf
      %4149 = vmax.xlane.f32.xlu0 %v4148
      %v4150 = vpop.xlane.xlu0 %4149
      %v4151 = vsel %vm2151, %v4142, -inf
      %4152 = vmax.xlane.f32.xlu0 %v4151
      %v4153 = vpop.xlane.xlu0 %4152
      %v4154 = vsub.f32 %v4137, %v4147
      %v4155 = vsub.f32 %v4139, %v4150
      %v4156 = vsub.f32 %v4142, %v4153
      %v4157 = vmul.f32 %v4154, 1.442695
      %v4158 = vpow.pop %v4157
      %v4159 = vmul.f32 %v4155, 1.442695
      %v4160 = vpow.pop %v4159
      %v4161 = vmul.f32 %v4156, 1.442695
      %v4162 = vpow.pop %v4161
      %v4163 = vsel %vm2151, %v4158, 0.0
      %4164 = vadd.xlane.f32.xlu0 %v4163
      %v4165 = vpop.xlane.xlu0 %4164
      %v4166 = vsel %vm2151, %v4160, 0.0
      %4167 = vadd.xlane.f32.xlu0 %v4166
      %v4168 = vpop.xlane.xlu0 %4167
      %v4169 = vsel %vm2151, %v4162, 0.0
      %4170 = vadd.xlane.f32.xlu0 %v4169
      %v4171 = vpop.xlane.xlu0 %4170
      %v4172 = vrcp.pop %v4165
      %v4173 = vrcp.pop %v4168
      %v4174 = vrcp.pop %v4171
      %v4175 = vmul.f32 %v4158, %v4172
      %v4176 = vmul.f32 %v4160, %v4173
      %v4177 = vmul.f32 %v4162, %v4174
      %v4178 = vpack.c.bf16 %v4176, %v4175
      %v4179 = vpack.c.bf16 %v4177, %v4177
      %4182 = vrot.lane.b32.xlu0 %v4007, 112
      %v4183 = vpop.permute.xlu0 %4182
      %4184 = vrot.lane.b32.xlu0 %v4008, 112
      %v4185 = vpop.permute.xlu0 %4184
      %v4188 = vsel %vm2151, %v4178, 0
      %v4191 = vsel %vm2151, %v4179, 0
      %v4194 = vsel %vm1820, %v4185, 0
      %4196 = vmatpush.bf16.msra.mxu0 0
      %4197 = vmatpush.bf16.msra.mxu0 0
      %4198 = vmatpush.bf16.msra.mxu0 0
      %4199 = vmatpush.bf16.msra.mxu0 0
      %4200 = vmatpush.bf16.msra.mxu0 0
      %4201 = vmatpush.bf16.msra.mxu0 0
      %4202 = vmatpush.bf16.msra.mxu0 %v4194
      %4203 = vmatpush.bf16.msra.mxu0 %v4183
      %4204 = vmatmul.bf16.gmra.mxu0 %v4188
      %v4205 = vpop.f32.mrf.mxu0
      %v4206 = vadd.f32 0.0, %v4205
      %v4207 = vpop.f32.mrf.mxu0
      %v4208 = vadd.f32 0.0, %v4207
      %4209 = vmatmul.bf16.gmra.mxu0 %v4191
      %v4210 = vpop.f32.mrf.mxu0
      %v4211 = vadd.f32 0.0, %v4210
      %v4212 = vpop.f32.mrf.mxu0
      %4213 = vdwg.mxu0
      %4214 = vrot.lane.b32.xlu0 %v4005, 96
      %v4215 = vpop.permute.xlu0 %4214
      %4216 = vrot.lane.b32.xlu0 %v4006, 96
      %v4217 = vpop.permute.xlu0 %4216
      %4218 = vrot.lane.b32.xlu0 %v4005, 32
      %v4219 = vpop.permute.xlu0 %4218
      %4220 = vrot.lane.b32.xlu0 %v4006, 32
      %v4221 = vpop.permute.xlu0 %4220
      %v4223 = vsel %vm3037, %v4215, 0
      %v4226 = vsel %vm3037, %v4217, 0
      %v4229 = vsel %vm3037, %v4219, 0
      %v4232 = vsel %vm3037, %v4221, 0
      %4234 = vmatpush.bf16.xpose.msra.mxu0 0
      %4235 = vmatpush.bf16.xpose.msra.mxu0 0
      %4236 = vmatpush.bf16.xpose.msra.mxu0 0
      %4237 = vmatpush.bf16.xpose.msra.mxu0 0
      %4238 = vmatpush.bf16.xpose.msra.mxu0 0
      %4239 = vmatpush.bf16.xpose.msra.mxu0 0
      %4240 = vmatpush.bf16.xpose.msra.mxu0 %v4232
      %4241 = vmatpush.bf16.xpose.msra.mxu0 %v4229
      %4242 = vmatmul.bf16.gmra.mxu0 %v4223
      %v4243 = vpop.f32.mrf.mxu0
      %v4244 = vadd.f32 %v2928, %v4243
      %v4245 = vpop.f32.mrf.mxu0
      %v4246 = vadd.f32 %v2928, %v4245
      %4247 = vmatmul.bf16.gmra.mxu0 %v4226
      %v4248 = vpop.f32.mrf.mxu0
      %v4249 = vadd.f32 %v2928, %v4248
      %v4250 = vpop.f32.mrf.mxu0
      %4251 = vdwg.mxu0
      %v4252 = vsel %vm2151, %v4244, -inf
      %4253 = vmax.xlane.f32.xlu0 %v4252
      %v4254 = vpop.xlane.xlu0 %4253
      %v4255 = vsel %vm2151, %v4246, -inf
      %4256 = vmax.xlane.f32.xlu0 %v4255
      %v4257 = vpop.xlane.xlu0 %4256
      %v4258 = vsel %vm2151, %v4249, -inf
      %4259 = vmax.xlane.f32.xlu0 %v4258
      %v4260 = vpop.xlane.xlu0 %4259
      %v4261 = vsub.f32 %v4244, %v4254
      %v4262 = vsub.f32 %v4246, %v4257
      %v4263 = vsub.f32 %v4249, %v4260
      %v4264 = vmul.f32 %v4261, 1.442695
      %v4265 = vpow.pop %v4264
      %v4266 = vmul.f32 %v4262, 1.442695
      %v4267 = vpow.pop %v4266
      %v4268 = vmul.f32 %v4263, 1.442695
      %v4269 = vpow.pop %v4268
      %v4270 = vsel %vm2151, %v4265, 0.0
      %4271 = vadd.xlane.f32.xlu0 %v4270
      %v4272 = vpop.xlane.xlu0 %4271
      %v4273 = vsel %vm2151, %v4267, 0.0
      %4274 = vadd.xlane.f32.xlu0 %v4273
      %v4275 = vpop.xlane.xlu0 %4274
      %v4276 = vsel %vm2151, %v4269, 0.0
      %4277 = vadd.xlane.f32.xlu0 %v4276
      %v4278 = vpop.xlane.xlu0 %4277
      %v4279 = vrcp.pop %v4272
      %v4280 = vrcp.pop %v4275
      %v4281 = vrcp.pop %v4278
      %v4282 = vmul.f32 %v4265, %v4279
      %v4283 = vmul.f32 %v4267, %v4280
      %v4284 = vmul.f32 %v4269, %v4281
      %v4285 = vpack.c.bf16 %v4283, %v4282
      %v4286 = vpack.c.bf16 %v4284, %v4284
      %4287 = vrot.lane.b32.xlu0 %v4007, 96
      %v4288 = vpop.permute.xlu0 %4287
      %4289 = vrot.lane.b32.xlu0 %v4008, 96
      %v4290 = vpop.permute.xlu0 %4289
      %v4293 = vsel %vm2151, %v4285, 0
      %v4296 = vsel %vm2151, %v4286, 0
      %v4299 = vsel %vm1820, %v4290, 0
      %4301 = vmatpush.bf16.msra.mxu0 0
      %4302 = vmatpush.bf16.msra.mxu0 0
      %4303 = vmatpush.bf16.msra.mxu0 0
      %4304 = vmatpush.bf16.msra.mxu0 0
      %4305 = vmatpush.bf16.msra.mxu0 0
      %4306 = vmatpush.bf16.msra.mxu0 0
      %4307 = vmatpush.bf16.msra.mxu0 %v4299
      %4308 = vmatpush.bf16.msra.mxu0 %v4288
      %4309 = vmatmul.bf16.gmra.mxu0 %v4293
      %v4310 = vpop.f32.mrf.mxu0
      %v4311 = vadd.f32 0.0, %v4310
      %v4312 = vpop.f32.mrf.mxu0
      %v4313 = vadd.f32 0.0, %v4312
      %4314 = vmatmul.bf16.gmra.mxu0 %v4296
      %v4315 = vpop.f32.mrf.mxu0
      %v4316 = vadd.f32 0.0, %v4315
      %v4317 = vpop.f32.mrf.mxu0
      %4318 = vdwg.mxu0
      %4319 = vrot.lane.b32.xlu0 %v4005, 80
      %v4320 = vpop.permute.xlu0 %4319
      %4321 = vrot.lane.b32.xlu0 %v4006, 80
      %v4322 = vpop.permute.xlu0 %4321
      %4323 = vrot.lane.b32.xlu0 %v4005, 16
      %v4324 = vpop.permute.xlu0 %4323
      %4325 = vrot.lane.b32.xlu0 %v4006, 16
      %v4326 = vpop.permute.xlu0 %4325
      %v4328 = vsel %vm3037, %v4320, 0
      %v4331 = vsel %vm3037, %v4322, 0
      %v4334 = vsel %vm3037, %v4324, 0
      %v4337 = vsel %vm3037, %v4326, 0
      %4339 = vmatpush.bf16.xpose.msra.mxu0 0
      %4340 = vmatpush.bf16.xpose.msra.mxu0 0
      %4341 = vmatpush.bf16.xpose.msra.mxu0 0
      %4342 = vmatpush.bf16.xpose.msra.mxu0 0
      %4343 = vmatpush.bf16.xpose.msra.mxu0 0
      %4344 = vmatpush.bf16.xpose.msra.mxu0 0
      %4345 = vmatpush.bf16.xpose.msra.mxu0 %v4337
      %4346 = vmatpush.bf16.xpose.msra.mxu0 %v4334
      %4347 = vmatmul.bf16.gmra.mxu0 %v4328
      %v4348 = vpop.f32.mrf.mxu0
      %v4349 = vadd.f32 %v2928, %v4348
      %v4350 = vpop.f32.mrf.mxu0
      %v4351 = vadd.f32 %v2928, %v4350
      %4352 = vmatmul.bf16.gmra.mxu0 %v4331
      %v4353 = vpop.f32.mrf.mxu0
      %v4354 = vadd.f32 %v2928, %v4353
      %v4355 = vpop.f32.mrf.mxu0
      %4356 = vdwg.mxu0
      %v4357 = vsel %vm2151, %v4349, -inf
      %4358 = vmax.xlane.f32.xlu0 %v4357
      %v4359 = vpop.xlane.xlu0 %4358
      %v4360 = vsel %vm2151, %v4351, -inf
      %4361 = vmax.xlane.f32.xlu0 %v4360
      %v4362 = vpop.xlane.xlu0 %4361
      %v4363 = vsel %vm2151, %v4354, -inf
      %4364 = vmax.xlane.f32.xlu0 %v4363
      %v4365 = vpop.xlane.xlu0 %4364
      %v4366 = vsub.f32 %v4349, %v4359
      %v4367 = vsub.f32 %v4351, %v4362
      %v4368 = vsub.f32 %v4354, %v4365
      %v4369 = vmul.f32 %v4366, 1.442695
      %v4370 = vpow.pop %v4369
      %v4371 = vmul.f32 %v4367, 1.442695
      %v4372 = vpow.pop %v4371
      %v4373 = vmul.f32 %v4368, 1.442695
      %v4374 = vpow.pop %v4373
      %v4375 = vsel %vm2151, %v4370, 0.0
      %4376 = vadd.xlane.f32.xlu0 %v4375
      %v4377 = vpop.xlane.xlu0 %4376
      %v4378 = vsel %vm2151, %v4372, 0.0
      %4379 = vadd.xlane.f32.xlu0 %v4378
      %v4380 = vpop.xlane.xlu0 %4379
      %v4381 = vsel %vm2151, %v4374, 0.0
      %4382 = vadd.xlane.f32.xlu0 %v4381
      %v4383 = vpop.xlane.xlu0 %4382
      %v4384 = vrcp.pop %v4377
      %v4385 = vrcp.pop %v4380
      %v4386 = vrcp.pop %v4383
      %v4387 = vmul.f32 %v4370, %v4384
      %v4388 = vmul.f32 %v4372, %v4385
      %v4389 = vmul.f32 %v4374, %v4386
      %v4390 = vpack.c.bf16 %v4388, %v4387
      %v4391 = vpack.c.bf16 %v4389, %v4389
      %4392 = vrot.lane.b32.xlu0 %v4007, 80
      %v4393 = vpop.permute.xlu0 %4392
      %4394 = vrot.lane.b32.xlu0 %v4008, 80
      %v4395 = vpop.permute.xlu0 %4394
      %v4398 = vsel %vm2151, %v4390, 0
      %v4401 = vsel %vm2151, %v4391, 0
      %v4404 = vsel %vm1820, %v4395, 0
      %4406 = vmatpush.bf16.msra.mxu0 0
      %4407 = vmatpush.bf16.msra.mxu0 0
      %4408 = vmatpush.bf16.msra.mxu0 0
      %4409 = vmatpush.bf16.msra.mxu0 0
      %4410 = vmatpush.bf16.msra.mxu0 0
      %4411 = vmatpush.bf16.msra.mxu0 0
      %4412 = vmatpush.bf16.msra.mxu0 %v4404
      %4413 = vmatpush.bf16.msra.mxu0 %v4393
      %4414 = vmatmul.bf16.gmra.mxu0 %v4398
      %v4415 = vpop.f32.mrf.mxu0
      %v4416 = vadd.f32 0.0, %v4415
      %v4417 = vpop.f32.mrf.mxu0
      %v4418 = vadd.f32 0.0, %v4417
      %4419 = vmatmul.bf16.gmra.mxu0 %v4401
      %v4420 = vpop.f32.mrf.mxu0
      %v4421 = vadd.f32 0.0, %v4420
      %v4422 = vpop.f32.mrf.mxu0
      %4423 = vdwg.mxu0
      %4427 = vrot.lane.b32.xlu0 %v4206, 16
      %v4428 = vpop.permute.xlu0 %4427
      %4429 = vrot.lane.b32.xlu0 %v4208, 16
      %v4430 = vpop.permute.xlu0 %4429
      %4431 = vrot.lane.b32.xlu0 %v4211, 16
      %v4432 = vpop.permute.xlu0 %4431
      %4439 = vrot.lane.b32.xlu0 %v4311, 32
      %v4440 = vpop.permute.xlu0 %4439
      %4441 = vrot.lane.b32.xlu0 %v4313, 32
      %v4442 = vpop.permute.xlu0 %4441
      %4443 = vrot.lane.b32.xlu0 %v4316, 32
      %v4444 = vpop.permute.xlu0 %4443
      %4451 = vrot.lane.b32.xlu0 %v4416, 48
      %v4452 = vpop.permute.xlu0 %4451
      %4453 = vrot.lane.b32.xlu0 %v4418, 48
      %v4454 = vpop.permute.xlu0 %4453
      %4455 = vrot.lane.b32.xlu0 %v4421, 48
      %v4456 = vpop.permute.xlu0 %4455
      %v4460 = vsel %vm3037, %v4099, %v4428
      %v4461 = vsel %vm3037, %v4101, %v4430
      %v4462 = vsel %vm3037, %v4104, %v4432
      %v4463 = vsel %vm1223, %v4460, %v4440
      %v4464 = vsel %vm1223, %v4461, %v4442
      %v4465 = vsel %vm1223, %v4462, %v4444
      %v4466 = vsel %vm3489, %v4463, %v4452
      %v4467 = vsel %vm3489, %v4464, %v4454
      %v4468 = vsel %vm3489, %v4465, %v4456
      %v4469 = vpack.c.bf16 %v4467, %v4466
      %v4470 = vpack.c.bf16 %v4468, %v4468
      %s4471 = scalar_lea.vmem %s33, 32
      %v4472 = vld [vmem:[%s4471] sm:$0xf]
      %v4473 = vld [vmem:[%s4471 + $0x4] sm:$0xf]
      %v4474 = vld [vmem:[%s4471 + $0x8] sm:$0xf]
      %v4475 = vld [vmem:[%s4471 + $0xc] sm:$0xf]
      %v4476 = vld [vmem:[%s4471 + $0x10] sm:$0xf]
      %v4477 = vld [vmem:[%s4471 + $0x14] sm:$0xf]
      %v4478 = vld [vmem:[%s4471 + $0x18] sm:$0xf]
      %v4479 = vld [vmem:[%s4471 + $0x1c] sm:$0xf]
      %s4480 = scalar_lea.vmem %s35, 1
      %v4481 = vld [vmem:[%s4480] sm:$0x1]
      %v4483 = vperm.slane %v4481, 0
      %v4493 = vunpack.c.l.b16 %v4472
      %v4494 = vunpack.c.l.b16 %v4473
      %v4495 = vunpack.c.l.b16 %v4474
      %v4496 = vunpack.c.l.b16 %v4475
      %v4497 = vunpack.c.l.b16 %v4476
      %v4498 = vunpack.c.l.b16 %v4477
      %v4499 = vunpack.c.l.b16 %v4478
      %v4500 = vunpack.c.l.b16 %v4479
      %v4501 = vpack.c.b16 %v4494, %v4493
      %v4502 = vpack.c.b16 %v4496, %v4495
      %v4503 = vpack.c.b16 %v4498, %v4497
      %v4504 = vpack.c.b16 %v4500, %v4499
      %v4510 = vsel %vm2532, %v4469, 0
      %v4513 = vsel %vm2532, %v4470, 0
      %4515 = vmatpush.bf16.msra.mxu0 0
      %4516 = vmatpush.bf16.msra.mxu0 0
      %4517 = vmatpush.bf16.msra.mxu0 0
      %4518 = vmatpush.bf16.msra.mxu0 0
      %4519 = vmatpush.bf16.msra.mxu0 %v4504
      %4520 = vmatpush.bf16.msra.mxu0 %v4503
      %4521 = vmatpush.bf16.msra.mxu0 %v4502
      %4522 = vmatpush.bf16.msra.mxu0 %v4501
      %4523 = vmatmul.bf16.gmra.mxu0 %v4510
      %v4524 = vpop.f32.mrf.mxu0
      %v4525 = vadd.f32 %v4483, %v4524
      %v4526 = vpop.f32.mrf.mxu0
      %v4527 = vadd.f32 %v4483, %v4526
      %4528 = vmatmul.bf16.gmra.mxu0 %v4513
      %v4529 = vpop.f32.mrf.mxu0
      %v4530 = vadd.f32 %v4483, %v4529
      %v4531 = vpop.f32.mrf.mxu0
      %4532 = vdwg.mxu0
      %v4533 = vadd.f32 %v3902, %v4525
      %v4534 = vadd.f32 %v3903, %v4527
      %v4535 = vadd.f32 %v3904, %v4530
      %s4536 = scalar_lea.vmem %s37, 1
      %v4537 = vld [vmem:[%s4536] sm:$0x1]
      %s4538 = scalar_lea.vmem %s39, 1
      %v4539 = vld [vmem:[%s4538] sm:$0x1]
      %v4540 = vsel %vm2532, %v4533, 0.0
      %4541 = vadd.xlane.f32.xlu0 %v4540
      %v4542 = vpop.xlane.xlu0 %4541
      %v4543 = vsel %vm2532, %v4534, 0.0
      %4544 = vadd.xlane.f32.xlu0 %v4543
      %v4545 = vpop.xlane.xlu0 %4544
      %v4546 = vsel %vm2532, %v4535, 0.0
      %4547 = vadd.xlane.f32.xlu0 %v4546
      %v4548 = vpop.xlane.xlu0 %4547
      %v4549 = vmul.f32 %v4542, %v3575
      %v4550 = vmul.f32 %v4545, %v3575
      %v4551 = vmul.f32 %v4548, %v3575
      %v4552 = vsub.f32 %v4533, %v4549
      %v4553 = vsub.f32 %v4534, %v4550
      %v4554 = vsub.f32 %v4535, %v4551
      %v4555 = vmul.f32 %v4552, %v4552
      %v4556 = vmul.f32 %v4553, %v4553
      %v4557 = vmul.f32 %v4554, %v4554
      %v4558 = vsel %vm2532, %v4555, 0.0
      %4559 = vadd.xlane.f32.xlu0 %v4558
      %v4560 = vpop.xlane.xlu0 %4559
      %v4561 = vsel %vm2532, %v4556, 0.0
      %4562 = vadd.xlane.f32.xlu0 %v4561
      %v4563 = vpop.xlane.xlu0 %4562
      %v4564 = vsel %vm2532, %v4557, 0.0
      %4565 = vadd.xlane.f32.xlu0 %v4564
      %v4566 = vpop.xlane.xlu0 %4565
      %v4567 = vmul.f32 %v4560, %v3575
      %v4568 = vmul.f32 %v4563, %v3575
      %v4569 = vmul.f32 %v4566, %v3575
      %v4570 = vadd.f32 %v4567, 1e-05
      %v4571 = vadd.f32 %v4568, 1e-05
      %v4572 = vadd.f32 %v4569, 1e-05
      %v4573 = vrsqrt.pop %v4570
      %v4574 = vmul.f32 %v4573, %v4570
      %v4575 = vmul.f32 %v4574, %v4573
      %v4576 = vmul.f32 0.5, %v4575
      %v4577 = vsub.f32 1.5, %v4576
      %v4578 = vmul.f32 %v4573, %v4577
      %vm4579 = vweird.f32 %v4570
      %vm4580 = vweird.f32 %v4573
      %vm4581 = vmor %vm4579, %vm4580
      %v4582 = vsel %vm4581, %v4573, %v4578
      %v4583 = vrsqrt.pop %v4571
      %v4584 = vmul.f32 %v4583, %v4571
      %v4585 = vmul.f32 %v4584, %v4583
      %v4586 = vmul.f32 0.5, %v4585
      %v4587 = vsub.f32 1.5, %v4586
      %v4588 = vmul.f32 %v4583, %v4587
      %vm4589 = vweird.f32 %v4571
      %vm4590 = vweird.f32 %v4583
      %vm4591 = vmor %vm4589, %vm4590
      %v4592 = vsel %vm4591, %v4583, %v4588
      %v4593 = vrsqrt.pop %v4572
      %v4594 = vmul.f32 %v4593, %v4572
      %v4595 = vmul.f32 %v4594, %v4593
      %v4596 = vmul.f32 0.5, %v4595
      %v4597 = vsub.f32 1.5, %v4596
      %v4598 = vmul.f32 %v4593, %v4597
      %vm4599 = vweird.f32 %v4572
      %vm4600 = vweird.f32 %v4593
      %vm4601 = vmor %vm4599, %vm4600
      %v4602 = vsel %vm4601, %v4593, %v4598
      %v4603 = vmul.f32 %v4552, %v4582
      %v4604 = vmul.f32 %v4553, %v4592
      %v4605 = vmul.f32 %v4554, %v4602
      %v4607 = vperm.slane %v4537, 0
      %v4609 = vmul.f32 %v4603, %v4607
      %v4610 = vmul.f32 %v4604, %v4607
      %v4611 = vmul.f32 %v4605, %v4607
      %v4613 = vperm.slane %v4539, 0
      %v4615 = vadd.f32 %v4609, %v4613
      %v4616 = vadd.f32 %v4610, %v4613
      %v4617 = vadd.f32 %v4611, %v4613
      %v4618 = vpack.c.bf16 %v4616, %v4615
      %v4619 = vpack.c.bf16 %v4617, %v4617
      %s4620 = scalar_lea.vmem %s41, 32
      %v4621 = vld [vmem:[%s4620] sm:$0xf]
      %v4622 = vld [vmem:[%s4620 + $0x4] sm:$0xf]
      %v4623 = vld [vmem:[%s4620 + $0x8] sm:$0xf]
      %v4624 = vld [vmem:[%s4620 + $0xc] sm:$0xf]
      %v4625 = vld [vmem:[%s4620 + $0x10] sm:$0xf]
      %v4626 = vld [vmem:[%s4620 + $0x14] sm:$0xf]
      %v4627 = vld [vmem:[%s4620 + $0x18] sm:$0xf]
      %v4628 = vld [vmem:[%s4620 + $0x1c] sm:$0xf]
      %s4629 = scalar_lea.vmem %s43, 1
      %v4630 = vld [vmem:[%s4629] sm:$0x1]
      %v4632 = vperm.slane %v4630, 0
      %v4642 = vunpack.c.l.b16 %v4621
      %v4643 = vunpack.c.l.b16 %v4622
      %v4644 = vunpack.c.l.b16 %v4623
      %v4645 = vunpack.c.l.b16 %v4624
      %v4646 = vunpack.c.l.b16 %v4625
      %v4647 = vunpack.c.l.b16 %v4626
      %v4648 = vunpack.c.l.b16 %v4627
      %v4649 = vunpack.c.l.b16 %v4628
      %v4650 = vpack.c.b16 %v4643, %v4642
      %v4651 = vpack.c.b16 %v4645, %v4644
      %v4652 = vpack.c.b16 %v4647, %v4646
      %v4653 = vpack.c.b16 %v4649, %v4648
      %v4659 = vsel %vm2532, %v4618, 0
      %v4662 = vsel %vm2532, %v4619, 0
      %4664 = vmatpush.bf16.msra.mxu0 0
      %4665 = vmatpush.bf16.msra.mxu0 0
      %4666 = vmatpush.bf16.msra.mxu0 0
      %4667 = vmatpush.bf16.msra.mxu0 0
      %4668 = vmatpush.bf16.msra.mxu0 %v4653
      %4669 = vmatpush.bf16.msra.mxu0 %v4652
      %4670 = vmatpush.bf16.msra.mxu0 %v4651
      %4671 = vmatpush.bf16.msra.mxu0 %v4650
      %4672 = vmatmul.bf16.gmra.mxu0 %v4659
      %v4673 = vpop.f32.mrf.mxu0
      %v4674 = vadd.f32 %v4632, %v4673
      %v4675 = vpop.f32.mrf.mxu0
      %v4676 = vadd.f32 %v4632, %v4675
      %4677 = vmatmul.bf16.gmra.mxu0 %v4662
      %v4678 = vpop.f32.mrf.mxu0
      %v4679 = vadd.f32 %v4632, %v4678
      %v4680 = vpop.f32.mrf.mxu0
      %4681 = vdwg.mxu0
      %v4682 = vmul.f32 %v4674, %v4674
      %v4683 = vmul.f32 %v4676, %v4676
      %v4684 = vmul.f32 %v4679, %v4679
      %v4685 = vmul.f32 %v4674, %v4682
      %v4686 = vmul.f32 %v4676, %v4683
      %v4687 = vmul.f32 %v4679, %v4684
      %v4688 = vmul.f32 %v4685, 0.044715
      %v4689 = vmul.f32 %v4686, 0.044715
      %v4690 = vmul.f32 %v4687, 0.044715
      %v4691 = vadd.f32 %v4674, %v4688
      %v4692 = vadd.f32 %v4676, %v4689
      %v4693 = vadd.f32 %v4679, %v4690
      %v4694 = vmul.f32 %v4691, 0.7978846
      %v4695 = vmul.f32 %v4692, 0.7978846
      %v4696 = vmul.f32 %v4693, 0.7978846
      %v4697 = vtanh.pop %v4694
      %v4698 = vtanh.pop %v4695
      %v4699 = vtanh.pop %v4696
      %v4700 = vadd.f32 %v4697, 1.0
      %v4701 = vadd.f32 %v4698, 1.0
      %v4702 = vadd.f32 %v4699, 1.0
      %v4703 = vmul.f32 %v4700, 0.5
      %v4704 = vmul.f32 %v4701, 0.5
      %v4705 = vmul.f32 %v4702, 0.5
      %v4706 = vmul.f32 %v4674, %v4703
      %v4707 = vmul.f32 %v4676, %v4704
      %v4708 = vmul.f32 %v4679, %v4705
      %v4709 = vpack.c.bf16 %v4707, %v4706
      %v4710 = vpack.c.bf16 %v4708, %v4708
      %s4711 = scalar_lea.vmem %s45, 64
      %v4712 = vld [vmem:[%s4711] sm:$0xf]
      %v4713 = vld [vmem:[%s4711 + $0x4] sm:$0xf]
      %v4714 = vld [vmem:[%s4711 + $0x8] sm:$0xf]
      %v4715 = vld [vmem:[%s4711 + $0xc] sm:$0xf]
      %v4716 = vld [vmem:[%s4711 + $0x10] sm:$0xf]
      %v4717 = vld [vmem:[%s4711 + $0x14] sm:$0xf]
      %v4718 = vld [vmem:[%s4711 + $0x18] sm:$0xf]
      %v4719 = vld [vmem:[%s4711 + $0x1c] sm:$0xf]
      %v4720 = vld [vmem:[%s4711 + $0x20] sm:$0xf]
      %v4721 = vld [vmem:[%s4711 + $0x24] sm:$0xf]
      %v4722 = vld [vmem:[%s4711 + $0x28] sm:$0xf]
      %v4723 = vld [vmem:[%s4711 + $0x2c] sm:$0xf]
      %v4724 = vld [vmem:[%s4711 + $0x30] sm:$0xf]
      %v4725 = vld [vmem:[%s4711 + $0x34] sm:$0xf]
      %v4726 = vld [vmem:[%s4711 + $0x38] sm:$0xf]
      %v4727 = vld [vmem:[%s4711 + $0x3c] sm:$0xf]
      %s4728 = scalar_lea.vmem %s47, 1
      %v4729 = vld [vmem:[%s4728] sm:$0x1]
      %v4731 = vperm.slane %v4729, 0
      %v4749 = vunpack.c.l.b16 %v4712
      %v4750 = vunpack.c.l.b16 %v4713
      %v4751 = vunpack.c.l.b16 %v4714
      %v4752 = vunpack.c.l.b16 %v4715
      %v4753 = vunpack.c.l.b16 %v4716
      %v4754 = vunpack.c.l.b16 %v4717
      %v4755 = vunpack.c.l.b16 %v4718
      %v4756 = vunpack.c.l.b16 %v4719
      %v4757 = vunpack.c.l.b16 %v4720
      %v4758 = vunpack.c.l.b16 %v4721
      %v4759 = vunpack.c.l.b16 %v4722
      %v4760 = vunpack.c.l.b16 %v4723
      %v4761 = vunpack.c.l.b16 %v4724
      %v4762 = vunpack.c.l.b16 %v4725
      %v4763 = vunpack.c.l.b16 %v4726
      %v4764 = vunpack.c.l.b16 %v4727
      %v4765 = vpack.c.b16 %v4750, %v4749
      %v4766 = vpack.c.b16 %v4752, %v4751
      %v4767 = vpack.c.b16 %v4754, %v4753
      %v4768 = vpack.c.b16 %v4756, %v4755
      %v4769 = vpack.c.b16 %v4758, %v4757
      %v4770 = vpack.c.b16 %v4760, %v4759
      %v4771 = vpack.c.b16 %v4762, %v4761
      %v4772 = vpack.c.b16 %v4764, %v4763
      %4781 = vmatpush.bf16.msra.mxu0 %v4772
      %4782 = vmatpush.bf16.msra.mxu0 %v4771
      %4783 = vmatpush.bf16.msra.mxu0 %v4770
      %4784 = vmatpush.bf16.msra.mxu0 %v4769
      %4785 = vmatpush.bf16.msra.mxu0 %v4768
      %4786 = vmatpush.bf16.msra.mxu0 %v4767
      %4787 = vmatpush.bf16.msra.mxu0 %v4766
      %4788 = vmatpush.bf16.msra.mxu0 %v4765
      %4789 = vmatmul.bf16.gmra.mxu0 %v4709
      %v4790 = vpop.f32.mrf.mxu0
      %v4791 = vadd.f32 %v4731, %v4790
      %v4792 = vpop.f32.mrf.mxu0
      %v4793 = vadd.f32 %v4731, %v4792
      %4794 = vmatmul.bf16.gmra.mxu0 %v4710
      %v4795 = vpop.f32.mrf.mxu0
      %v4796 = vadd.f32 %v4731, %v4795
      %v4797 = vpop.f32.mrf.mxu0
      %4798 = vdwg.mxu0
      %v4799 = vadd.f32 %v4615, %v4791
      %v4800 = vadd.f32 %v4616, %v4793
      %v4801 = vadd.f32 %v4617, %v4796
      %s4802 = scalar_lea.vmem %s49, 1
      %v4803 = vld [vmem:[%s4802] sm:$0x1]
      %s4804 = scalar_lea.vmem %s51, 1
      %v4805 = vld [vmem:[%s4804] sm:$0x1]
      %v4806 = vsel %vm2532, %v4799, 0.0
      %4807 = vadd.xlane.f32.xlu0 %v4806
      %v4808 = vpop.xlane.xlu0 %4807
      %v4809 = vsel %vm2532, %v4800, 0.0
      %4810 = vadd.xlane.f32.xlu0 %v4809
      %v4811 = vpop.xlane.xlu0 %4810
      %v4812 = vsel %vm2532, %v4801, 0.0
      %4813 = vadd.xlane.f32.xlu0 %v4812
      %v4814 = vpop.xlane.xlu0 %4813
      %v4815 = vmul.f32 %v4808, %v3575
      %v4816 = vmul.f32 %v4811, %v3575
      %v4817 = vmul.f32 %v4814, %v3575
      %v4818 = vsub.f32 %v4799, %v4815
      %v4819 = vsub.f32 %v4800, %v4816
      %v4820 = vsub.f32 %v4801, %v4817
      %v4821 = vmul.f32 %v4818, %v4818
      %v4822 = vmul.f32 %v4819, %v4819
      %v4823 = vmul.f32 %v4820, %v4820
      %v4824 = vsel %vm2532, %v4821, 0.0
      %4825 = vadd.xlane.f32.xlu0 %v4824
      %v4826 = vpop.xlane.xlu0 %4825
      %v4827 = vsel %vm2532, %v4822, 0.0
      %4828 = vadd.xlane.f32.xlu0 %v4827
      %v4829 = vpop.xlane.xlu0 %4828
      %v4830 = vsel %vm2532, %v4823, 0.0
      %4831 = vadd.xlane.f32.xlu0 %v4830
      %v4832 = vpop.xlane.xlu0 %4831
      %v4833 = vmul.f32 %v4826, %v3575
      %v4834 = vmul.f32 %v4829, %v3575
      %v4835 = vmul.f32 %v4832, %v3575
      %v4836 = vadd.f32 %v4833, 1e-05
      %v4837 = vadd.f32 %v4834, 1e-05
      %v4838 = vadd.f32 %v4835, 1e-05
      %v4839 = vrsqrt.pop %v4836
      %v4840 = vmul.f32 %v4839, %v4836
      %v4841 = vmul.f32 %v4840, %v4839
      %v4842 = vmul.f32 0.5, %v4841
      %v4843 = vsub.f32 1.5, %v4842
      %v4844 = vmul.f32 %v4839, %v4843
      %vm4845 = vweird.f32 %v4836
      %vm4846 = vweird.f32 %v4839
      %vm4847 = vmor %vm4845, %vm4846
      %v4848 = vsel %vm4847, %v4839, %v4844
      %v4849 = vrsqrt.pop %v4837
      %v4850 = vmul.f32 %v4849, %v4837
      %v4851 = vmul.f32 %v4850, %v4849
      %v4852 = vmul.f32 0.5, %v4851
      %v4853 = vsub.f32 1.5, %v4852
      %v4854 = vmul.f32 %v4849, %v4853
      %vm4855 = vweird.f32 %v4837
      %vm4856 = vweird.f32 %v4849
      %vm4857 = vmor %vm4855, %vm4856
      %v4858 = vsel %vm4857, %v4849, %v4854
      %v4859 = vrsqrt.pop %v4838
      %v4860 = vmul.f32 %v4859, %v4838
      %v4861 = vmul.f32 %v4860, %v4859
      %v4862 = vmul.f32 0.5, %v4861
      %v4863 = vsub.f32 1.5, %v4862
      %v4864 = vmul.f32 %v4859, %v4863
      %vm4865 = vweird.f32 %v4838
      %vm4866 = vweird.f32 %v4859
      %vm4867 = vmor %vm4865, %vm4866
      %v4868 = vsel %vm4867, %v4859, %v4864
      %v4869 = vmul.f32 %v4818, %v4848
      %v4870 = vmul.f32 %v4819, %v4858
      %v4871 = vmul.f32 %v4820, %v4868
      %v4873 = vperm.slane %v4803, 0
      %v4875 = vmul.f32 %v4869, %v4873
      %v4876 = vmul.f32 %v4870, %v4873
      %v4877 = vmul.f32 %v4871, %v4873
      %v4879 = vperm.slane %v4805, 0
      %v4881 = vadd.f32 %v4875, %v4879
      %v4882 = vadd.f32 %v4876, %v4879
      %v4883 = vadd.f32 %v4877, %v4879
      %v4884 = vld [vmem:[%s53] sm:$0x1]
      %v4885 = vld [vmem:[%s55] sm:$0x1]
      %v4886 = vsel %vm2532, %v4881, 0.0
      %4887 = vadd.xlane.f32.xlu0 %v4886
      %v4888 = vpop.xlane.xlu0 %4887
      %v4889 = vsel %vm2532, %v4882, 0.0
      %4890 = vadd.xlane.f32.xlu0 %v4889
      %v4891 = vpop.xlane.xlu0 %4890
      %v4892 = vsel %vm2532, %v4883, 0.0
      %4893 = vadd.xlane.f32.xlu0 %v4892
      %v4894 = vpop.xlane.xlu0 %4893
      %v4895 = vmul.f32 %v4888, %v3575
      %v4896 = vmul.f32 %v4891, %v3575
      %v4897 = vmul.f32 %v4894, %v3575
      %v4898 = vsub.f32 %v4881, %v4895
      %v4899 = vsub.f32 %v4882, %v4896
      %v4900 = vsub.f32 %v4883, %v4897
      %v4901 = vmul.f32 %v4898, %v4898
      %v4902 = vmul.f32 %v4899, %v4899
      %v4903 = vmul.f32 %v4900, %v4900
      %v4904 = vsel %vm2532, %v4901, 0.0
      %4905 = vadd.xlane.f32.xlu0 %v4904
      %v4906 = vpop.xlane.xlu0 %4905
      %v4907 = vsel %vm2532, %v4902, 0.0
      %4908 = vadd.xlane.f32.xlu0 %v4907
      %v4909 = vpop.xlane.xlu0 %4908
      %v4910 = vsel %vm2532, %v4903, 0.0
      %4911 = vadd.xlane.f32.xlu0 %v4910
      %v4912 = vpop.xlane.xlu0 %4911
      %v4913 = vmul.f32 %v4906, %v3575
      %v4914 = vmul.f32 %v4909, %v3575
      %v4915 = vmul.f32 %v4912, %v3575
      %v4916 = vadd.f32 %v4913, 1e-05
      %v4917 = vadd.f32 %v4914, 1e-05
      %v4918 = vadd.f32 %v4915, 1e-05
      %v4919 = vrsqrt.pop %v4916
      %v4920 = vmul.f32 %v4919, %v4916
      %v4921 = vmul.f32 %v4920, %v4919
      %v4922 = vmul.f32 0.5, %v4921
      %v4923 = vsub.f32 1.5, %v4922
      %v4924 = vmul.f32 %v4919, %v4923
      %vm4925 = vweird.f32 %v4916
      %vm4926 = vweird.f32 %v4919
      %vm4927 = vmor %vm4925, %vm4926
      %v4928 = vsel %vm4927, %v4919, %v4924
      %v4929 = vrsqrt.pop %v4917
      %v4930 = vmul.f32 %v4929, %v4917
      %v4931 = vmul.f32 %v4930, %v4929
      %v4932 = vmul.f32 0.5, %v4931
      %v4933 = vsub.f32 1.5, %v4932
      %v4934 = vmul.f32 %v4929, %v4933
      %vm4935 = vweird.f32 %v4917
      %vm4936 = vweird.f32 %v4929
      %vm4937 = vmor %vm4935, %vm4936
      %v4938 = vsel %vm4937, %v4929, %v4934
      %v4939 = vrsqrt.pop %v4918
      %v4940 = vmul.f32 %v4939, %v4918
      %v4941 = vmul.f32 %v4940, %v4939
      %v4942 = vmul.f32 0.5, %v4941
      %v4943 = vsub.f32 1.5, %v4942
      %v4944 = vmul.f32 %v4939, %v4943
      %vm4945 = vweird.f32 %v4918
      %vm4946 = vweird.f32 %v4939
      %vm4947 = vmor %vm4945, %vm4946
      %v4948 = vsel %vm4947, %v4939, %v4944
      %v4949 = vmul.f32 %v4898, %v4928
      %v4950 = vmul.f32 %v4899, %v4938
      %v4951 = vmul.f32 %v4900, %v4948
      %v4953 = vperm.slane %v4884, 0
      %v4955 = vmul.f32 %v4949, %v4953
      %v4956 = vmul.f32 %v4950, %v4953
      %v4957 = vmul.f32 %v4951, %v4953
      %v4959 = vperm.slane %v4885, 0
      %v4961 = vadd.f32 %v4955, %v4959
      %v4962 = vadd.f32 %v4956, %v4959
      %v4963 = vadd.f32 %v4957, %v4959
      %v4964 = vld [vmem:[%s57] sm:$0xff]
      %v4965 = vld [vmem:[%s57 + $0x8] sm:$0xff]
      %v4966 = vld [vmem:[%s57 + $0x10] sm:$0xff]
      %v4967 = vld [vmem:[%s57 + $0x18] sm:$0xff]
      %v4968 = vld [vmem:[%s57 + $0x20] sm:$0xff]
      %v4969 = vld [vmem:[%s57 + $0x28] sm:$0xff]
      %v4970 = vld [vmem:[%s57 + $0x30] sm:$0xff]
      %v4971 = vld [vmem:[%s57 + $0x38] sm:$0xff]
      %v4972 = vld [vmem:[%s59] sm:$0x1]
      %v4974 = vperm.slane %v4972, 0
      %v4977 = vsel %vm2532, %v4961, 0
      %v4980 = vsel %vm2532, %v4962, 0
      %v4983 = vsel %vm2532, %v4963, 0
      %4985 = vmatpush.msra.mxu0 0.0
      %4986 = vmatpush.msra.mxu0 0.0
      %4987 = vmatpush.msra.mxu0 0.0
      %4988 = vmatpush.msra.mxu0 0.0
      %4989 = vmatpush.msra.mxu0 0.0
      %4990 = vmatpush.msra.mxu0 0.0
      %4991 = vmatpush.msra.mxu0 0.0
      %4992 = vmatpush.msra.mxu0 0.0
      %4993 = vmatpush.msra.mxu0 %v4971
      %4994 = vmatpush.msra.mxu0 %v4970
      %4995 = vmatpush.msra.mxu0 %v4969
      %4996 = vmatpush.msra.mxu0 %v4968
      %4997 = vmatpush.msra.mxu0 %v4967
      %4998 = vmatpush.msra.mxu0 %v4966
      %4999 = vmatpush.msra.mxu0 %v4965
      %5000 = vmatpush.msra.mxu0 %v4964
      %5001 = vmatmul.f32.gmra.mxu0 %v4977
      %v5002 = vpop.f32.mrf.mxu0
      %v5003 = vadd.f32 %v4974, %v5002
      %5004 = vmatmul.f32.gmra.mxu0 %v4980
      %v5005 = vpop.f32.mrf.mxu0
      %v5006 = vadd.f32 %v4974, %v5005
      %5007 = vmatmul.f32.gmra.mxu0 %v4983
      %v5008 = vpop.f32.mrf.mxu0
      %v5009 = vadd.f32 %v4974, %v5008
      %5010 = vdwg.mxu0
      %v5011 = vmul.f32 %v5003, %v5003
      %v5012 = vmul.f32 %v5006, %v5006
      %v5013 = vmul.f32 %v5009, %v5009
      %v5014 = vsel %vm1223, %v5011, 0.0
      %5015 = vadd.xlane.f32.xlu0 %v5014
      %v5016 = vpop.xlane.xlu0 %5015
      %v5017 = vsel %vm1223, %v5012, 0.0
      %5018 = vadd.xlane.f32.xlu0 %v5017
      %v5019 = vpop.xlane.xlu0 %5018
      %v5020 = vsel %vm1223, %v5013, 0.0
      %5021 = vadd.xlane.f32.xlu0 %v5020
      %v5022 = vpop.xlane.xlu0 %5021
      %v5023 = vmax.f32 %v5016, 1e-12
      %v5024 = vmax.f32 %v5019, 1e-12
      %v5025 = vmax.f32 %v5022, 1e-12
      %v5026 = vrsqrt.pop %v5023
      %v5027 = vmul.f32 %v5026, %v5023
      %v5028 = vmul.f32 %v5027, %v5026
      %v5029 = vmul.f32 0.5, %v5028
      %v5030 = vsub.f32 1.5, %v5029
      %v5031 = vmul.f32 %v5026, %v5030
      %vm5032 = vweird.f32 %v5023
      %vm5033 = vweird.f32 %v5026
      %vm5034 = vmor %vm5032, %vm5033
      %v5035 = vsel %vm5034, %v5026, %v5031
      %v5036 = vrsqrt.pop %v5024
      %v5037 = vmul.f32 %v5036, %v5024
      %v5038 = vmul.f32 %v5037, %v5036
      %v5039 = vmul.f32 0.5, %v5038
      %v5040 = vsub.f32 1.5, %v5039
      %v5041 = vmul.f32 %v5036, %v5040
      %vm5042 = vweird.f32 %v5024
      %vm5043 = vweird.f32 %v5036
      %vm5044 = vmor %vm5042, %vm5043
      %v5045 = vsel %vm5044, %v5036, %v5041
      %v5046 = vrsqrt.pop %v5025
      %v5047 = vmul.f32 %v5046, %v5025
      %v5048 = vmul.f32 %v5047, %v5046
      %v5049 = vmul.f32 0.5, %v5048
      %v5050 = vsub.f32 1.5, %v5049
      %v5051 = vmul.f32 %v5046, %v5050
      %vm5052 = vweird.f32 %v5025
      %vm5053 = vweird.f32 %v5046
      %vm5054 = vmor %vm5052, %vm5053
      %v5055 = vsel %vm5054, %v5046, %v5051
      %v5056 = vmul.f32 %v5003, %v5035
      %v5057 = vmul.f32 %v5006, %v5045
      %v5058 = vmul.f32 %v5009, %v5055
      %v5059 = vld [vmem:[%s61] sm:$0xff]
      %v5060 = vld [vmem:[%s61 + $0x8] sm:$0xff]
      %v5061 = vld [vmem:[%s61 + $0x10] sm:$0xff]
      %v5062 = vld [vmem:[%s61 + $0x18] sm:$0xff]
      %v5063 = vmul.f32 %v5059, %v5059
      %v5064 = vmul.f32 %v5060, %v5060
      %v5065 = vmul.f32 %v5061, %v5061
      %v5066 = vmul.f32 %v5062, %v5062
      %v5067 = vsel %vm2532, %v5063, 0.0
      %v5068 = vsel %vm2532, %v5064, 0.0
      %v5069 = vadd.f32 %v5067, %v5068
      %v5070 = vsel %vm2532, %v5065, 0.0
      %v5071 = vadd.f32 %v5069, %v5070
      %v5072 = vsel %vm2532, %v5066, 0.0
      %v5073 = vadd.f32 %v5071, %v5072
      %v5074 = vrot.slane %v5073, 4
      %v5075 = vadd.f32 %v5073, %v5074
      %v5076 = vrot.slane %v5075, 2
      %v5077 = vadd.f32 %v5075, %v5076
      %v5078 = vrot.slane %v5077, 1
      %v5079 = vadd.f32 %v5077, %v5078
      %v5080 = vmax.f32 %v5079, 1e-12
      %v5081 = vrsqrt.pop %v5080
      %v5082 = vmul.f32 %v5081, %v5080
      %v5083 = vmul.f32 %v5082, %v5081
      %v5084 = vmul.f32 0.5, %v5083
      %v5085 = vsub.f32 1.5, %v5084
      %v5086 = vmul.f32 %v5081, %v5085
      %vm5087 = vweird.f32 %v5080
      %vm5088 = vweird.f32 %v5081
      %vm5089 = vmor %vm5087, %vm5088
      %v5090 = vsel %vm5089, %v5081, %v5086
      %v5091 = vmul.f32 %v5059, %v5090
      %v5092 = vmul.f32 %v5060, %v5090
      %v5093 = vmul.f32 %v5061, %v5090
      %v5094 = vmul.f32 %v5062, %v5090
      %v5096 = vsel %vm1223, %v5056, 0
      %v5099 = vsel %vm1223, %v5057, 0
      %v5102 = vsel %vm1223, %v5058, 0
      %5104 = vmatpush.msra.mxu0 0.0
      %5105 = vmatpush.msra.mxu0 0.0
      %5106 = vmatpush.msra.mxu0 0.0
      %5107 = vmatpush.msra.mxu0 0.0
      %5108 = vmatpush.msra.mxu0 0.0
      %5109 = vmatpush.msra.mxu0 0.0
      %5110 = vmatpush.msra.mxu0 0.0
      %5111 = vmatpush.msra.mxu0 0.0
      %5112 = vmatpush.msra.mxu0 0.0
      %5113 = vmatpush.msra.mxu0 0.0
      %5114 = vmatpush.msra.mxu0 0.0
      %5115 = vmatpush.msra.mxu0 0.0
      %5116 = vmatpush.msra.mxu0 %v5094
      %5117 = vmatpush.msra.mxu0 %v5093
      %5118 = vmatpush.msra.mxu0 %v5092
      %5119 = vmatpush.msra.mxu0 %v5091
      %5120 = vmatmul.f32.gmra.mxu0 %v5096
      %v5121 = vpop.f32.mrf.mxu0
      %v5122 = vadd.f32 0.0, %v5121
      %5123 = vmatmul.f32.gmra.mxu0 %v5099
      %v5124 = vpop.f32.mrf.mxu0
      %v5125 = vadd.f32 0.0, %v5124
      %5126 = vmatmul.f32.gmra.mxu0 %v5102
      %v5127 = vpop.f32.mrf.mxu0
      %v5128 = vadd.f32 0.0, %v5127
      %5129 = vdwg.mxu0
      %5130 = vst.msk [vmem:[%s940] sm:$0xff] %vm2532, %v5122
      %5131 = vst.msk [vmem:[%s940 + $0x8] sm:$0xff] %vm2532, %v5125
      %5132 = vst.msk [vmem:[%s940 + $0x10] sm:$0xff] %vm2532, %v5128
      %s5133 = smul.u32 3, %s82
      %p5134 = scmp.lt.s32.totalorder %s5133, 5
      %s5135 = scalar_select %p5134, %s5133, 5
      %s5136 = smul.addr %s5135, 8
      %s5137 = scalar_lea.vmem %s63, %s5136
      // Predicated region
      $region141: #{model_forward.2} parent=139 // pred_check
        %p5138 = pneg %p735
      $region142: #{model_forward.2} parent=139 // pred_check_branch
        %5140 = sbr.rel (%p5138) target = $region144
      $region143: #{model_forward.2} parent=139 // pred_region
        %s5141 = smul.u32 3, %s82
      $region144: #{model_forward.2} parent=139 // pred_fallthru
        _
    $region140: #{model_forward.2} parent=5 // pred_fallthru
      _
    %p5142 = scmp.le.s32.totalorder 2, %s77
    // Predicated region
    $region145: #{model_forward.2} parent=5 // pred_check
      %p5143 = pneg %p5142
    $region146: #{model_forward.2} parent=5 // pred_check_branch
      %5145 = sbr.rel (%p5143) target = $region148
    $region147: #{model_forward.2} parent=5 // pred_region
      %s5146 = ssub.s32 %s77, 2
      // Predicated region
      $region149: #{model_forward.2} parent=147 // pred_check
        %p5147 = pneg %p741
      $region150: #{model_forward.2} parent=147 // pred_check_branch
        %5149 = sbr.rel (%p5147) target = $region152
      $region151: #{model_forward.2} parent=147 // pred_region
        %s5150 = smul.u32 3, %s83
        %p5151 = scmp.lt.s32.totalorder %s5150, 5
        %s5152 = scalar_select %p5151, %s5150, 5
        %s5153 = smul.addr %s5152, 8
        %s5154 = scalar_lea.vmem %s63, %s5153
      $region152: #{model_forward.2} parent=147 // pred_fallthru
        _
    $region148: #{model_forward.2} parent=5 // pred_fallthru
      _
  $region6: #{model_forward.2} parent=0 // loop_footer
    %s81 = sadd.s32 1, %s77
  $region7: #{model_forward.2} parent=0 // loop_footer_branch
    %76 = sbr.rel target = $region3
  $region8: #{model_forward.2} parent=0 // loop_exit
    _

</llo_original>
